<compile_context>
chip_gen: v6e
topology: v6e:2x2x1
jax: 0.10.0
libtpu: 0.0.40
codegen_flags: <defaults>
</compile_context>

<pallas_src>
import math

import jax
import jax.numpy as jnp
from jax.experimental import pallas as pl
from jax.experimental.pallas import tpu as pltpu

# ----------------------------- hyper-parameters ------------------------------
NUM_SCENES = 4     # num_scenes
DECODER_DIM = 32   # transformer d_model
C_T = 32           # backbone.num_channels[0]
C_ROT = 64         # backbone.num_channels[1]
CH = 1024          # PoseRegressor hidden width (fixed in the module)


# ------------- Pallas kernel 1: lane-dense per-channel spatial sum -----------
def _chan_sum_kernel(x_ref, out_ref):
    """Accumulate per-channel sums over the HW (lane) axis of one tile."""
    j = pl.program_id(2)

    @pl.when(j == 0)
    def _():
        out_ref[...] = jnp.zeros_like(out_ref)

    s = jnp.sum(x_ref[...], axis=2)      # (1, C) f32
    out_ref[...] += s[None, None]        # (1, 1, 1, C) resident accumulator


def _pick_hw_tile(hw):
    # Largest lane-dense tile (multiple of 128) dividing HW, capped at ~3 MiB
    # per step so double-buffered inputs stay well inside v7x's scoped VMEM.
    for cand in (262144, 131072, 65536, 32768, 16384,
                 8192, 4096, 2048, 1024, 512, 256, 128):
        if hw % cand == 0:
            return cand
    return hw                            # full-extent block (always legal)


def channel_mean_pallas(x_planes):
    """x_planes: [B, C, HW] f32 (channel-plane view of NCHW). Returns [B, C]."""
    B, C, HW = x_planes.shape
    tl = _pick_hw_tile(HW)
    n_tiles = HW // tl
    # Extra leading parallel axis so both v7x TensorCores work even when B == 1.
    n_split = 2 if (n_tiles % 2 == 0 and n_tiles >= 2) else 1
    tps = n_tiles // n_split

    partial = pl.pallas_call(
        _chan_sum_kernel,
        out_shape=jax.ShapeDtypeStruct((n_split, B, 1, C), jnp.float32),
        grid=(n_split, B, tps),
        in_specs=[pl.BlockSpec((1, C, tl), lambda s, b, j: (b, 0, s * tps + j))],
        out_specs=pl.BlockSpec((1, 1, 1, C), lambda s, b, j: (s, b, 0, 0)),
        compiler_params=pltpu.CompilerParams(
            dimension_semantics=("parallel", "parallel", "arbitrary")),
    )(x_planes)
    # Tiny epilogue in XLA: add the partial sums and normalize by HW.
    return jnp.sum(partial, axis=(0, 2)) * (1.0 / HW)


# ------------- Pallas kernel 2: scene selection + per-scene pose heads --------
def _gelu(x):
    # tanh-approximate GELU (EUP slot).
    # TODO(synk): PyTorch F.gelu default is exact-erf; tanh approx differs ~1e-3.
    c = 0.7978845608028654  # sqrt(2/pi)
    return 0.5 * x * (1.0 + jnp.tanh(c * (x + 0.044715 * x * x * x)))


def _head_kernel(cm_ref, wft_ref, bft_ref, wfr_ref, bfr_ref,
                 qt_ref, qr_ref, wse_ref, bse_ref, ov_ref,
                 wht_ref, bht_ref, whr_ref, bhr_ref,
                 wot_ref, wor_ref, bo_ref,
                 pose_ref, logd_ref):
    cm = cm_ref[...]                                            # (B, 3) f32

    # Fused (backbone-lift @ input_proj) applied to the spatial mean.
    mean_t = jnp.dot(cm, wft_ref[...], preferred_element_type=jnp.float32) + bft_ref[...]
    mean_r = jnp.dot(cm, wfr_ref[...], preferred_element_type=jnp.float32) + bfr_ref[...]

    # Transformer stand-in: query embeddings + projected spatial mean.
    dt = qt_ref[...][None, :, :] + mean_t[:, None, :]           # (B, S, D)
    dr = qr_ref[...][None, :, :] + mean_r[:, None, :]
    B, S, D = dt.shape

    # scene_embed(cat(t, rot)) : Linear(2D -> 1), split into the two halves.
    wse = wse_ref[...]                                          # (1, 2D)
    w_t = wse[:, :D][None, :, :]
    w_r = wse[:, D:][None, :, :]
    logits = (jnp.sum(dt * w_t, axis=-1) + jnp.sum(dr * w_r, axis=-1)
              + bse_ref[...])                                   # (B, S)

    # log(Softmax(dim=1)) over scenes (f32 VPU/EUP).
    m = jnp.max(logits, axis=1, keepdims=True)
    z = logits - m
    lse = jnp.log(jnp.sum(jnp.exp(z), axis=1, keepdims=True))
    logd_ref[...] = z - lse

    # argmax over scenes (first index on ties) with optional GT override (-1 == None).
    s_iota = jax.lax.broadcasted_iota(jnp.int32, (B, S), 1)
    amax = jnp.min(jnp.where(logits == m, s_iota.astype(jnp.float32), float(S)),
                   axis=1, keepdims=True).astype(jnp.int32)     # (B, 1)
    ov = ov_ref[...]
    sel = jnp.where(ov >= 0, ov, amax)                          # (B, 1)
    onehot = (s_iota == sel).astype(jnp.float32)                # (B, S)

    # global_desc = one-hot gather of the selected scene's local descriptor.
    g_t = jnp.sum(onehot[:, :, None] * dt, axis=1)              # (B, D)
    g_r = jnp.sum(onehot[:, :, None] * dr, axis=1)              # (B, D)

    # Per-scene PoseRegressor heads.  All S scenes' weights are VMEM-resident;
    # compute every scene with M=B matmuls (static unroll over S=4) and one-hot
    # select — no per-batch weight DMA, no M=1 dots, no concatenate.
    CHh = wht_ref.shape[2]
    h_t = jnp.zeros((B, CHh), jnp.float32)
    h_r = jnp.zeros((B, CHh), jnp.float32)
    for s in range(S):
        oh = onehot[:, s:s + 1]                                 # (B, 1)
        h_t = h_t + oh * _gelu(
            jnp.dot(g_t, wht_ref[s], preferred_element_type=jnp.float32) + bht_ref[s])
        h_r = h_r + oh * _gelu(
            jnp.dot(g_r, whr_ref[s], preferred_element_type=jnp.float32) + bhr_ref[s])

    # Output layer: two (B,CH)@(CH,8) dots added into one packed 8-lane slab
    # (lanes 0:3 = x_t, 3:7 = x_rot), then one-hot scene selection.
    pose = jnp.zeros((B, 8), jnp.float32)
    for s in range(S):
        oh = onehot[:, s:s + 1]
        pose = pose + oh * (
            jnp.dot(h_t, wot_ref[s], preferred_element_type=jnp.float32)
            + jnp.dot(h_r, wor_ref[s], preferred_element_type=jnp.float32)
            + bo_ref[s])
    pose_ref[...] = pose


def pose_and_scene_pallas(chan_mean, wf_t, bf_t, wf_r, bf_r, idx_override, params):
    B = chan_mean.shape[0]
    S = params["query_t"].shape[0]
    # Single launch, no grid: every operand (weights ~1.3 MiB) lives whole in VMEM.
    return pl.pallas_call(
        _head_kernel,
        out_shape=(jax.ShapeDtypeStruct((B, 8), jnp.float32),   # packed pose
                   jax.ShapeDtypeStruct((B, S), jnp.float32)),  # scene_log_distr
    )(chan_mean, wf_t, bf_t, wf_r, bf_r,
      params["query_t"], params["query_rot"],
      params["scene_embed_w"], params["scene_embed_b"], idx_override,
      params["head_wh_t"], params["head_bh_t"],
      params["head_wh_rot"], params["head_bh_rot"],
      params["head_wo_t8"], params["head_wo_rot8"], params["head_bo8"])


# ----------------------------- full forward -----------------------------------
def ms_transposenet_forward(params, samples, scene_indices=None):
    """samples: [B, 3, H, W] NCHW f32.  Returns (expected_pose [B,7], scene_log_distr [B,S])."""
    B, C, H, W = samples.shape
    HW = H * W

    # Channel-plane view (free reshape; HW on lanes; no NCHW<->NHWC transpose).
    x_planes = samples.reshape(B, C, HW).astype(jnp.float32)

    # TODO(synk): build_backbone / Transformer are external pretrained modules;
    # with the linear stand-ins both image branches reduce exactly to this
    # per-channel spatial mean.
    chan_mean = channel_mean_pallas(x_planes)                   # (B, 3) f32

    # Fused lift (3->C) + input_proj 1x1 conv (C->D): W_f = (proj_w @ bb_w).T.
    wf_t = (params["proj_t_w"] @ params["bb_w_t"]).T                              # (3, D)
    bf_t = (params["proj_t_w"] @ params["bb_b_t"] + params["proj_t_b"]).reshape(1, -1)
    wf_r = (params["proj_rot_w"] @ params["bb_w_rot"]).T                          # (3, D)
    bf_r = (params["proj_rot_w"] @ params["bb_b_rot"] + params["proj_rot_b"]).reshape(1, -1)

    if scene_indices is None:
        idx_override = jnp.full((B, 1), -1, jnp.int32)
    else:
        idx_override = jnp.asarray(scene_indices, jnp.int32).reshape(B, 1)

    pose8, scene_log_distr = pose_and_scene_pallas(
        chan_mean, wf_t, bf_t, wf_r, bf_r, idx_override, params)
    return pose8[:, :7], scene_log_distr                        # cat((x_t, x_rot), dim=1)


# ----------------------------- deterministic params ---------------------------
def _xavier(key, shape, fan_in, fan_out):
    limit = math.sqrt(6.0 / (fan_in + fan_out))
    return jax.random.uniform(key, shape, jnp.float32, -limit, limit)


def init_params(key):
    S, D, ch = NUM_SCENES, DECODER_DIM, CH
    ks = list(jax.random.split(key, 16))

    # Logical per-scene regressor weights (as in the PyTorch module), f32
    # throughout (bf16 dropped — these stages are tiny / not bandwidth bound).
    reg_t_wh = _xavier(ks[9], (S, D, ch), D, ch)
    reg_r_wh = _xavier(ks[10], (S, D, ch), D, ch)
    reg_t_wo = _xavier(ks[11], (S, ch, 3), ch, 3)
    reg_r_wo = _xavier(ks[12], (S, ch, 4), ch, 4)
    reg_t_bh = jnp.zeros((S, ch), jnp.float32)
    reg_r_bh = jnp.zeros((S, ch), jnp.float32)
    reg_t_bo = jnp.zeros((S, 3), jnp.float32)
    reg_r_bo = jnp.zeros((S, 4), jnp.float32)

    # Packed output heads: t -> lanes 0:3, rot -> lanes 3:7 of an 8-lane slab.
    wo_t8 = jnp.zeros((S, ch, 8), jnp.float32).at[:, :, 0:3].set(reg_t_wo)
    wo_r8 = jnp.zeros((S, ch, 8), jnp.float32).at[:, :, 3:7].set(reg_r_wo)
    bo8 = (jnp.zeros((S, 1, 8), jnp.float32)
           .at[:, 0, 0:3].set(reg_t_bo).at[:, 0, 3:7].set(reg_r_bo))

    return {
        # backbone stand-in (channel lift 3 -> C)
        "bb_w_t": _xavier(ks[0], (C_T, 3), 3, C_T),
        "bb_b_t": jnp.zeros((C_T,), jnp.float32),
        "bb_w_rot": _xavier(ks[1], (C_ROT, 3), 3, C_ROT),
        "bb_b_rot": jnp.zeros((C_ROT,), jnp.float32),
        # input_proj_t / input_proj_rot : Conv2d(C, D, 1) -> weight [D, C]
        "proj_t_w": _xavier(ks[2], (DECODER_DIM, C_T), C_T, DECODER_DIM),
        "proj_t_b": _xavier(ks[3], (DECODER_DIM,), C_T, DECODER_DIM),
        "proj_rot_w": _xavier(ks[4], (DECODER_DIM, C_ROT), C_ROT, DECODER_DIM),
        "proj_rot_b": _xavier(ks[5], (DECODER_DIM,), C_ROT, DECODER_DIM),
        # query embeddings (nn.Embedding(num_scenes, D))
        "query_t": jax.random.normal(ks[6], (S, DECODER_DIM), jnp.float32),
        "query_rot": jax.random.normal(ks[7], (S, DECODER_DIM), jnp.float32),
        # scene_embed: Linear(2D, 1)
        "scene_embed_w": _xavier(ks[8], (1, 2 * DECODER_DIM), 2 * DECODER_DIM, 1),
        "scene_embed_b": jnp.zeros((1, 1), jnp.float32),
        # per-scene PoseRegressor heads (all scenes kept VMEM-resident)
        "head_wh_t": reg_t_wh,                       # (S, D, CH)
        "head_bh_t": reg_t_bh.reshape(S, 1, ch),     # (S, 1, CH)
        "head_wh_rot": reg_r_wh,
        "head_bh_rot": reg_r_bh.reshape(S, 1, ch),
        "head_wo_t8": wo_t8,                         # (S, CH, 8)
        "head_wo_rot8": wo_r8,
        "head_bo8": bo8,                             # (S, 1, 8)
    }


# ----------------------------- demo --------------------------------------------
if __name__ == "__main__":
    key = jax.random.PRNGKey(0)
    k_img, k_par = jax.random.split(key)

    B, H, W = 2, 32, 32
    samples = jax.random.normal(k_img, (B, 3, H, W), jnp.float32)  # NCHW images
    params = init_params(k_par)

    fwd = jax.jit(lambda p, x: ms_transposenet_forward(p, x, scene_indices=None))
    pose, scene_log_distr = fwd(params, samples)
    jax.block_until_ready((pose, scene_log_distr))

    assert pose.shape == (B, 7) and pose.dtype == jnp.float32
    assert scene_log_distr.shape == (B, NUM_SCENES)
    assert bool(jnp.all(jnp.isfinite(pose)))
    # log-softmax rows must sum to 1 in probability space
    assert bool(jnp.allclose(jnp.sum(jnp.exp(scene_log_distr), axis=1), 1.0, atol=1e-5))

    # GT scene-index override path (scene_indices != None)
    pose_gt, log_gt = ms_transposenet_forward(
        params, samples, scene_indices=jnp.array([1, 3], jnp.int32))
    jax.block_until_ready((pose_gt, log_gt))
    assert pose_gt.shape == (B, 7) and bool(jnp.all(jnp.isfinite(pose_gt)))

    print("KERNEL_OK")
</pallas_src>

<mosaic_0001>
module attributes {stable_mosaic.version = 11 : i64} {
  func.func @_chan_sum_kernel(%arg0: i32, %arg1: i32, %arg2: i32, %arg3: memref<1x3x1024xf32, #tpu.memory_space<vmem>>, %arg4: memref<1x1x1x3xf32, #tpu.memory_space<vmem>>) attributes {dimension_semantics = [#tpu.dimension_semantics<parallel>, #tpu.dimension_semantics<parallel>, #tpu.dimension_semantics<arbitrary>], iteration_bounds = array<i64: 1, 2, 1>, scalar_prefetch = 0 : i64, scratch_operands = 0 : i64, tpu.core_type = #tpu.core_type<tc>, window_params = [{transform_indices = @transform_0, window_bounds = array<i64: 1, 3, 1024>}, {transform_indices = @transform_1, window_bounds = array<i64: 1, 1, 1, 3>}]} {
    %c0_i32 = arith.constant 0 : i32
    %0 = arith.cmpi eq, %arg2, %c0_i32 : i32
    %1 = arith.extui %0 : i1 to i32
    %c0_i32_0 = arith.constant 0 : i32
    %2 = arith.cmpi ne, %1, %c0_i32_0 : i32
    scf.if %2 {
      %cst_11 = arith.constant 0.000000e+00 : f32
      %9 = vector.broadcast %cst_11 : f32 to vector<1x1x1x3xf32>
      %c0_12 = arith.constant 0 : index
      %c0_13 = arith.constant 0 : index
      %c0_14 = arith.constant 0 : index
      %c0_15 = arith.constant 0 : index
      %10 = vector.load %arg4[%c0_12, %c0_13, %c0_14, %c0_15] : memref<1x1x1x3xf32, #tpu.memory_space<vmem>>, vector<1x1x1x3xf32>
      tpu.vector_store %arg4[%c0_12, %c0_13, %c0_14, %c0_15], %9 {strides = array<i32>} : memref<1x1x1x3xf32, #tpu.memory_space<vmem>>, vector<1x1x1x3xf32>,
    } else {
    }
    %c0 = arith.constant 0 : index
    %c0_1 = arith.constant 0 : index
    %c0_2 = arith.constant 0 : index
    %3 = vector.load %arg3[%c0, %c0_1, %c0_2] : memref<1x3x1024xf32, #tpu.memory_space<vmem>>, vector<1x3x1024xf32>
    %cst = arith.constant dense<0.000000e+00> : vector<1x3xf32>
    %4 = vector.multi_reduction <add>, %3, %cst [2] : vector<1x3x1024xf32> to vector<1x3xf32>
    %c0_3 = arith.constant 0 : index
    %c0_4 = arith.constant 0 : index
    %c0_5 = arith.constant 0 : index
    %c0_6 = arith.constant 0 : index
    %5 = vector.load %arg4[%c0_3, %c0_4, %c0_5, %c0_6] : memref<1x1x1x3xf32, #tpu.memory_space<vmem>>, vector<1x1x1x3xf32>
    %6 = vector.shape_cast %4 : vector<1x3xf32> to vector<1x1x1x3xf32>
    %7 = arith.addf %5, %6 : vector<1x1x1x3xf32>
    %c0_7 = arith.constant 0 : index
    %c0_8 = arith.constant 0 : index
    %c0_9 = arith.constant 0 : index
    %c0_10 = arith.constant 0 : index
    %8 = vector.load %arg4[%c0_7, %c0_8, %c0_9, %c0_10] : memref<1x1x1x3xf32, #tpu.memory_space<vmem>>, vector<1x1x1x3xf32>
    tpu.vector_store %arg4[%c0_7, %c0_8, %c0_9, %c0_10], %7 {strides = array<i32>} : memref<1x1x1x3xf32, #tpu.memory_space<vmem>>, vector<1x1x1x3xf32>,
    return
  }
  func.func @transform_0(%arg0: i32, %arg1: i32, %arg2: i32) -> (i32, i32, i32) {
    %c1_i32 = arith.constant 1 : i32
    %0 = arith.muli %arg0, %c1_i32 : i32
    %1 = arith.addi %0, %arg2 : i32
    %c0_i32 = arith.constant 0 : i32
    %c0_i32_0 = arith.constant 0 : i32
    return %arg1, %c0_i32, %1 : i32, i32, i32
  }
  func.func @transform_1(%arg0: i32, %arg1: i32, %arg2: i32) -> (i32, i32, i32, i32) {
    %c0_i32 = arith.constant 0 : i32
    %c0_i32_0 = arith.constant 0 : i32
    %c0_i32_1 = arith.constant 0 : i32
    return %arg0, %arg1, %c0_i32, %c0_i32_0 : i32, i32, i32, i32
  }
}

module attributes {stable_mosaic.version = 11 : i64} {
  func.func @_head_kernel(%arg0: memref<2x3xf32, #tpu.memory_space<vmem>>, %arg1: memref<3x32xf32, #tpu.memory_space<vmem>>, %arg2: memref<1x32xf32, #tpu.memory_space<vmem>>, %arg3: memref<3x32xf32, #tpu.memory_space<vmem>>, %arg4: memref<1x32xf32, #tpu.memory_space<vmem>>, %arg5: memref<4x32xf32, #tpu.memory_space<vmem>>, %arg6: memref<4x32xf32, #tpu.memory_space<vmem>>, %arg7: memref<1x64xf32, #tpu.memory_space<vmem>>, %arg8: memref<1x1xf32, #tpu.memory_space<vmem>>, %arg9: memref<2x1xi32, #tpu.memory_space<vmem>>, %arg10: memref<4x32x1024xf32, #tpu.memory_space<vmem>>, %arg11: memref<4x1x1024xf32, #tpu.memory_space<vmem>>, %arg12: memref<4x32x1024xf32, #tpu.memory_space<vmem>>, %arg13: memref<4x1x1024xf32, #tpu.memory_space<vmem>>, %arg14: memref<4x1024x8xf32, #tpu.memory_space<vmem>>, %arg15: memref<4x1024x8xf32, #tpu.memory_space<vmem>>, %arg16: memref<4x1x8xf32, #tpu.memory_space<vmem>>, %arg17: memref<2x8xf32, #tpu.memory_space<vmem>>, %arg18: memref<2x4xf32, #tpu.memory_space<vmem>>) attributes {dimension_semantics = [], scalar_prefetch = 0 : i64, scratch_operands = 0 : i64, tpu.core_type = #tpu.core_type<tc>} {
    %c0 = arith.constant 0 : index
    %c0_0 = arith.constant 0 : index
    %0 = vector.load %arg0[%c0, %c0_0] : memref<2x3xf32, #tpu.memory_space<vmem>>, vector<2x3xf32>
    %c0_1 = arith.constant 0 : index
    %c0_2 = arith.constant 0 : index
    %1 = vector.load %arg1[%c0_1, %c0_2] : memref<3x32xf32, #tpu.memory_space<vmem>>, vector<3x32xf32>
    %cst = arith.constant dense<0.000000e+00> : vector<2x32xf32>
    %2 = tpu.matmul %0, %1, %cst {dimension_numbers = #tpu.dot_dimension_numbers<[1], [0], [0], [1], [0, 0, 1, 1], [], []>} : vector<2x3xf32>, vector<3x32xf32>, vector<2x32xf32> -> vector<2x32xf32>
    %c0_3 = arith.constant 0 : index
    %c0_4 = arith.constant 0 : index
    %3 = vector.load %arg2[%c0_3, %c0_4] : memref<1x32xf32, #tpu.memory_space<vmem>>, vector<1x32xf32>
    %4 = vector.broadcast %3 : vector<1x32xf32> to vector<2x32xf32>
    %5 = arith.addf %2, %4 : vector<2x32xf32>
    %c0_5 = arith.constant 0 : index
    %c0_6 = arith.constant 0 : index
    %6 = vector.load %arg3[%c0_5, %c0_6] : memref<3x32xf32, #tpu.memory_space<vmem>>, vector<3x32xf32>
    %cst_7 = arith.constant dense<0.000000e+00> : vector<2x32xf32>
    %7 = tpu.matmul %0, %6, %cst_7 {dimension_numbers = #tpu.dot_dimension_numbers<[1], [0], [0], [1], [0, 0, 1, 1], [], []>} : vector<2x3xf32>, vector<3x32xf32>, vector<2x32xf32> -> vector<2x32xf32>
    %c0_8 = arith.constant 0 : index
    %c0_9 = arith.constant 0 : index
    %8 = vector.load %arg4[%c0_8, %c0_9] : memref<1x32xf32, #tpu.memory_space<vmem>>, vector<1x32xf32>
    %9 = vector.broadcast %8 : vector<1x32xf32> to vector<2x32xf32>
    %10 = arith.addf %7, %9 : vector<2x32xf32>
    %c0_10 = arith.constant 0 : index
    %c0_11 = arith.constant 0 : index
    %11 = vector.load %arg5[%c0_10, %c0_11] : memref<4x32xf32, #tpu.memory_space<vmem>>, vector<4x32xf32>
    %12 = vector.shape_cast %11 : vector<4x32xf32> to vector<1x4x32xf32>
    %13 = vector.shape_cast %5 : vector<2x32xf32> to vector<2x1x32xf32>
    %14 = vector.broadcast %12 : vector<1x4x32xf32> to vector<2x4x32xf32>
    %15 = vector.broadcast %13 : vector<2x1x32xf32> to vector<2x4x32xf32>
    %16 = arith.addf %14, %15 : vector<2x4x32xf32>
    %c0_12 = arith.constant 0 : index
    %c0_13 = arith.constant 0 : index
    %17 = vector.load %arg6[%c0_12, %c0_13] : memref<4x32xf32, #tpu.memory_space<vmem>>, vector<4x32xf32>
    %18 = vector.shape_cast %17 : vector<4x32xf32> to vector<1x4x32xf32>
    %19 = vector.shape_cast %10 : vector<2x32xf32> to vector<2x1x32xf32>
    %20 = vector.broadcast %18 : vector<1x4x32xf32> to vector<2x4x32xf32>
    %21 = vector.broadcast %19 : vector<2x1x32xf32> to vector<2x4x32xf32>
    %22 = arith.addf %20, %21 : vector<2x4x32xf32>
    %c0_14 = arith.constant 0 : index
    %c0_15 = arith.constant 0 : index
    %23 = vector.load %arg7[%c0_14, %c0_15] : memref<1x64xf32, #tpu.memory_space<vmem>>, vector<1x64xf32>
    %24 = vector.extract_strided_slice %23 {offsets = [0, 0], sizes = [1, 32], strides = [1, 1]} : vector<1x64xf32> to vector<1x32xf32>
    %25 = vector.shape_cast %24 : vector<1x32xf32> to vector<1x1x32xf32>
    %26 = vector.extract_strided_slice %23 {offsets = [0, 32], sizes = [1, 32], strides = [1, 1]} : vector<1x64xf32> to vector<1x32xf32>
    %27 = vector.shape_cast %26 : vector<1x32xf32> to vector<1x1x32xf32>
    %28 = vector.broadcast %25 : vector<1x1x32xf32> to vector<2x4x32xf32>
    %29 = arith.mulf %16, %28 : vector<2x4x32xf32>
    %cst_16 = arith.constant dense<0.000000e+00> : vector<2x4xf32>
    %30 = vector.multi_reduction <add>, %29, %cst_16 [2] : vector<2x4x32xf32> to vector<2x4xf32>
    %31 = vector.broadcast %27 : vector<1x1x32xf32> to vector<2x4x32xf32>
    %32 = arith.mulf %22, %31 : vector<2x4x32xf32>
    %cst_17 = arith.constant dense<0.000000e+00> : vector<2x4xf32>
    %33 = vector.multi_reduction <add>, %32, %cst_17 [2] : vector<2x4x32xf32> to vector<2x4xf32>
    %34 = arith.addf %30, %33 : vector<2x4xf32>
    %c0_18 = arith.constant 0 : index
    %c0_19 = arith.constant 0 : index
    %35 = vector.load %arg8[%c0_18, %c0_19] : memref<1x1xf32, #tpu.memory_space<vmem>>, vector<1x1xf32>
    %36 = vector.broadcast %35 : vector<1x1xf32> to vector<2x4xf32>
    %37 = arith.addf %34, %36 : vector<2x4xf32>
    %cst_20 = arith.constant dense<0xFF800000> : vector<2xf32>
    %38 = vector.multi_reduction <maximumf>, %37, %cst_20 [1] : vector<2x4xf32> to vector<2xf32>
    %39 = vector.shape_cast %38 : vector<2xf32> to vector<2x1xf32>
    %40 = vector.broadcast %39 : vector<2x1xf32> to vector<2x4xf32>
    %41 = arith.subf %37, %40 : vector<2x4xf32>
    %42 = math.exp %41 : vector<2x4xf32>
    %cst_21 = arith.constant dense<0.000000e+00> : vector<2xf32>
    %43 = vector.multi_reduction <add>, %42, %cst_21 [1] : vector<2x4xf32> to vector<2xf32>
    %44 = vector.shape_cast %43 : vector<2xf32> to vector<2x1xf32>
    %45 = math.log %44 : vector<2x1xf32>
    %46 = vector.broadcast %45 : vector<2x1xf32> to vector<2x4xf32>
    %47 = arith.subf %41, %46 : vector<2x4xf32>
    %c0_22 = arith.constant 0 : index
    %c0_23 = arith.constant 0 : index
    %48 = vector.load %arg18[%c0_22, %c0_23] : memref<2x4xf32, #tpu.memory_space<vmem>>, vector<2x4xf32>
    tpu.vector_store %arg18[%c0_22, %c0_23], %47 {strides = array<i32>} : memref<2x4xf32, #tpu.memory_space<vmem>>, vector<2x4xf32>,
    %49 = tpu.iota {dimensions = array<i32: 1>} : vector<2x4xi32>
    %50 = vector.broadcast %39 : vector<2x1xf32> to vector<2x4xf32>
    %51 = arith.cmpf oeq, %37, %50 : vector<2x4xf32>
    %52 = arith.sitofp %49 : vector<2x4xi32> to vector<2x4xf32>
    %cst_24 = arith.constant 4.000000e+00 : f32
    %53 = vector.broadcast %cst_24 : f32 to vector<2x4xf32>
    %54 = arith.select %51, %52, %53 : vector<2x4xi1>, vector<2x4xf32>
    %cst_25 = arith.constant dense<0x7F800000> : vector<2xf32>
    %55 = vector.multi_reduction <minimumf>, %54, %cst_25 [1] : vector<2x4xf32> to vector<2xf32>
    %56 = vector.shape_cast %55 : vector<2xf32> to vector<2x1xf32>
    %57 = arith.fptosi %56 : vector<2x1xf32> to vector<2x1xi32>
    %c0_26 = arith.constant 0 : index
    %c0_27 = arith.constant 0 : index
    %58 = vector.load %arg9[%c0_26, %c0_27] : memref<2x1xi32, #tpu.memory_space<vmem>>, vector<2x1xi32>
    %c0_i32 = arith.constant 0 : i32
    %59 = vector.broadcast %c0_i32 : i32 to vector<2x1xi32>
    %60 = arith.cmpi sge, %58, %59 : vector<2x1xi32>
    %61 = arith.select %60, %58, %57 : vector<2x1xi1>, vector<2x1xi32>
    %62 = vector.broadcast %61 : vector<2x1xi32> to vector<2x4xi32>
    %63 = arith.cmpi eq, %49, %62 : vector<2x4xi32>
    %64 = arith.extui %63 : vector<2x4xi1> to vector<2x4xi32>
    %65 = arith.sitofp %64 : vector<2x4xi32> to vector<2x4xf32>
    %66 = vector.shape_cast %65 : vector<2x4xf32> to vector<2x4x1xf32>
    %67 = vector.broadcast %66 : vector<2x4x1xf32> to vector<2x4x32xf32>
    %68 = arith.mulf %67, %16 : vector<2x4x32xf32>
    %cst_28 = arith.constant dense<0.000000e+00> : vector<2x32xf32>
    %69 = vector.multi_reduction <add>, %68, %cst_28 [1] : vector<2x4x32xf32> to vector<2x32xf32>
    %70 = vector.shape_cast %65 : vector<2x4xf32> to vector<2x4x1xf32>
    %71 = vector.broadcast %70 : vector<2x4x1xf32> to vector<2x4x32xf32>
    %72 = arith.mulf %71, %22 : vector<2x4x32xf32>
    %cst_29 = arith.constant dense<0.000000e+00> : vector<2x32xf32>
    %73 = vector.multi_reduction <add>, %72, %cst_29 [1] : vector<2x4x32xf32> to vector<2x32xf32>
    %cst_30 = arith.constant 0.000000e+00 : f32
    %74 = vector.broadcast %cst_30 : f32 to vector<2x1024xf32>
    %cst_31 = arith.constant 0.000000e+00 : f32
    %75 = vector.broadcast %cst_31 : f32 to vector<2x1024xf32>
    %76 = vector.extract_strided_slice %65 {offsets = [0, 0], sizes = [2, 1], strides = [1, 1]} : vector<2x4xf32> to vector<2x1xf32>
    %c0_32 = arith.constant 0 : index
    %c0_33 = arith.constant 0 : index
    %c0_34 = arith.constant 0 : index
    %77 = vector.load %arg10[%c0_32, %c0_33, %c0_34] : memref<4x32x1024xf32, #tpu.memory_space<vmem>>, vector<1x32x1024xf32>
    %78 = vector.shape_cast %77 : vector<1x32x1024xf32> to vector<32x1024xf32>
    %cst_35 = arith.constant dense<0.000000e+00> : vector<2x1024xf32>
    %79 = tpu.matmul %69, %78, %cst_35 {dimension_numbers = #tpu.dot_dimension_numbers<[1], [0], [0], [1], [0, 0, 1, 1], [], []>} : vector<2x32xf32>, vector<32x1024xf32>, vector<2x1024xf32> -> vector<2x1024xf32>
    %c0_36 = arith.constant 0 : index
    %c0_37 = arith.constant 0 : index
    %c0_38 = arith.constant 0 : index
    %80 = vector.load %arg11[%c0_36, %c0_37, %c0_38] : memref<4x1x1024xf32, #tpu.memory_space<vmem>>, vector<1x1x1024xf32>
    %81 = vector.shape_cast %80 : vector<1x1x1024xf32> to vector<1x1024xf32>
    %82 = vector.broadcast %81 : vector<1x1024xf32> to vector<2x1024xf32>
    %83 = arith.addf %79, %82 : vector<2x1024xf32>
    %cst_39 = arith.constant 5.000000e-01 : f32
    %84 = vector.broadcast %cst_39 : f32 to vector<2x1024xf32>
    %85 = arith.mulf %84, %83 : vector<2x1024xf32>
    %cst_40 = arith.constant 4.471500e-02 : f32
    %86 = vector.broadcast %cst_40 : f32 to vector<2x1024xf32>
    %87 = arith.mulf %86, %83 : vector<2x1024xf32>
    %88 = arith.mulf %87, %83 : vector<2x1024xf32>
    %89 = arith.mulf %88, %83 : vector<2x1024xf32>
    %90 = arith.addf %83, %89 : vector<2x1024xf32>
    %cst_41 = arith.constant 0.797884583 : f32
    %91 = vector.broadcast %cst_41 : f32 to vector<2x1024xf32>
    %92 = arith.mulf %91, %90 : vector<2x1024xf32>
    %93 = math.tanh %92 : vector<2x1024xf32>
    %cst_42 = arith.constant 1.000000e+00 : f32
    %94 = vector.broadcast %cst_42 : f32 to vector<2x1024xf32>
    %95 = arith.addf %94, %93 : vector<2x1024xf32>
    %96 = arith.mulf %85, %95 : vector<2x1024xf32>
    %97 = vector.broadcast %76 : vector<2x1xf32> to vector<2x1024xf32>
    %98 = arith.mulf %97, %96 : vector<2x1024xf32>
    %99 = arith.addf %74, %98 : vector<2x1024xf32>
    %c0_43 = arith.constant 0 : index
    %c0_44 = arith.constant 0 : index
    %c0_45 = arith.constant 0 : index
    %100 = vector.load %arg12[%c0_43, %c0_44, %c0_45] : memref<4x32x1024xf32, #tpu.memory_space<vmem>>, vector<1x32x1024xf32>
    %101 = vector.shape_cast %100 : vector<1x32x1024xf32> to vector<32x1024xf32>
    %cst_46 = arith.constant dense<0.000000e+00> : vector<2x1024xf32>
    %102 = tpu.matmul %73, %101, %cst_46 {dimension_numbers = #tpu.dot_dimension_numbers<[1], [0], [0], [1], [0, 0, 1, 1], [], []>} : vector<2x32xf32>, vector<32x1024xf32>, vector<2x1024xf32> -> vector<2x1024xf32>
    %c0_47 = arith.constant 0 : index
    %c0_48 = arith.constant 0 : index
    %c0_49 = arith.constant 0 : index
    %103 = vector.load %arg13[%c0_47, %c0_48, %c0_49] : memref<4x1x1024xf32, #tpu.memory_space<vmem>>, vector<1x1x1024xf32>
    %104 = vector.shape_cast %103 : vector<1x1x1024xf32> to vector<1x1024xf32>
    %105 = vector.broadcast %104 : vector<1x1024xf32> to vector<2x1024xf32>
    %106 = arith.addf %102, %105 : vector<2x1024xf32>
    %cst_50 = arith.constant 5.000000e-01 : f32
    %107 = vector.broadcast %cst_50 : f32 to vector<2x1024xf32>
    %108 = arith.mulf %107, %106 : vector<2x1024xf32>
    %cst_51 = arith.constant 4.471500e-02 : f32
    %109 = vector.broadcast %cst_51 : f32 to vector<2x1024xf32>
    %110 = arith.mulf %109, %106 : vector<2x1024xf32>
    %111 = arith.mulf %110, %106 : vector<2x1024xf32>
    %112 = arith.mulf %111, %106 : vector<2x1024xf32>
    %113 = arith.addf %106, %112 : vector<2x1024xf32>
    %cst_52 = arith.constant 0.797884583 : f32
    %114 = vector.broadcast %cst_52 : f32 to vector<2x1024xf32>
    %115 = arith.mulf %114, %113 : vector<2x1024xf32>
    %116 = math.tanh %115 : vector<2x1024xf32>
    %cst_53 = arith.constant 1.000000e+00 : f32
    %117 = vector.broadcast %cst_53 : f32 to vector<2x1024xf32>
    %118 = arith.addf %117, %116 : vector<2x1024xf32>
    %119 = arith.mulf %108, %118 : vector<2x1024xf32>
    %120 = vector.broadcast %76 : vector<2x1xf32> to vector<2x1024xf32>
    %121 = arith.mulf %120, %119 : vector<2x1024xf32>
    %122 = arith.addf %75, %121 : vector<2x1024xf32>
    %123 = vector.extract_strided_slice %65 {offsets = [0, 1], sizes = [2, 1], strides = [1, 1]} : vector<2x4xf32> to vector<2x1xf32>
    %c1 = arith.constant 1 : index
    %c0_54 = arith.constant 0 : index
    %c0_55 = arith.constant 0 : index
    %124 = vector.load %arg10[%c1, %c0_54, %c0_55] : memref<4x32x1024xf32, #tpu.memory_space<vmem>>, vector<1x32x1024xf32>
    %125 = vector.shape_cast %124 : vector<1x32x1024xf32> to vector<32x1024xf32>
    %cst_56 = arith.constant dense<0.000000e+00> : vector<2x1024xf32>
    %126 = tpu.matmul %69, %125, %cst_56 {dimension_numbers = #tpu.dot_dimension_numbers<[1], [0], [0], [1], [0, 0, 1, 1], [], []>} : vector<2x32xf32>, vector<32x1024xf32>, vector<2x1024xf32> -> vector<2x1024xf32>
    %c1_57 = arith.constant 1 : index
    %c0_58 = arith.constant 0 : index
    %c0_59 = arith.constant 0 : index
    %127 = vector.load %arg11[%c1_57, %c0_58, %c0_59] : memref<4x1x1024xf32, #tpu.memory_space<vmem>>, vector<1x1x1024xf32>
    %128 = vector.shape_cast %127 : vector<1x1x1024xf32> to vector<1x1024xf32>
    %129 = vector.broadcast %128 : vector<1x1024xf32> to vector<2x1024xf32>
    %130 = arith.addf %126, %129 : vector<2x1024xf32>
    %cst_60 = arith.constant 5.000000e-01 : f32
    %131 = vector.broadcast %cst_60 : f32 to vector<2x1024xf32>
    %132 = arith.mulf %131, %130 : vector<2x1024xf32>
    %cst_61 = arith.constant 4.471500e-02 : f32
    %133 = vector.broadcast %cst_61 : f32 to vector<2x1024xf32>
    %134 = arith.mulf %133, %130 : vector<2x1024xf32>
    %135 = arith.mulf %134, %130 : vector<2x1024xf32>
    %136 = arith.mulf %135, %130 : vector<2x1024xf32>
    %137 = arith.addf %130, %136 : vector<2x1024xf32>
    %cst_62 = arith.constant 0.797884583 : f32
    %138 = vector.broadcast %cst_62 : f32 to vector<2x1024xf32>
    %139 = arith.mulf %138, %137 : vector<2x1024xf32>
    %140 = math.tanh %139 : vector<2x1024xf32>
    %cst_63 = arith.constant 1.000000e+00 : f32
    %141 = vector.broadcast %cst_63 : f32 to vector<2x1024xf32>
    %142 = arith.addf %141, %140 : vector<2x1024xf32>
    %143 = arith.mulf %132, %142 : vector<2x1024xf32>
    %144 = vector.broadcast %123 : vector<2x1xf32> to vector<2x1024xf32>
    %145 = arith.mulf %144, %143 : vector<2x1024xf32>
    %146 = arith.addf %99, %145 : vector<2x1024xf32>
    %c1_64 = arith.constant 1 : index
    %c0_65 = arith.constant 0 : index
    %c0_66 = arith.constant 0 : index
    %147 = vector.load %arg12[%c1_64, %c0_65, %c0_66] : memref<4x32x1024xf32, #tpu.memory_space<vmem>>, vector<1x32x1024xf32>
    %148 = vector.shape_cast %147 : vector<1x32x1024xf32> to vector<32x1024xf32>
    %cst_67 = arith.constant dense<0.000000e+00> : vector<2x1024xf32>
    %149 = tpu.matmul %73, %148, %cst_67 {dimension_numbers = #tpu.dot_dimension_numbers<[1], [0], [0], [1], [0, 0, 1, 1], [], []>} : vector<2x32xf32>, vector<32x1024xf32>, vector<2x1024xf32> -> vector<2x1024xf32>
    %c1_68 = arith.constant 1 : index
    %c0_69 = arith.constant 0 : index
    %c0_70 = arith.constant 0 : index
    %150 = vector.load %arg13[%c1_68, %c0_69, %c0_70] : memref<4x1x1024xf32, #tpu.memory_space<vmem>>, vector<1x1x1024xf32>
    %151 = vector.shape_cast %150 : vector<1x1x1024xf32> to vector<1x1024xf32>
    %152 = vector.broadcast %151 : vector<1x1024xf32> to vector<2x1024xf32>
    %153 = arith.addf %149, %152 : vector<2x1024xf32>
    %cst_71 = arith.constant 5.000000e-01 : f32
    %154 = vector.broadcast %cst_71 : f32 to vector<2x1024xf32>
    %155 = arith.mulf %154, %153 : vector<2x1024xf32>
    %cst_72 = arith.constant 4.471500e-02 : f32
    %156 = vector.broadcast %cst_72 : f32 to vector<2x1024xf32>
    %157 = arith.mulf %156, %153 : vector<2x1024xf32>
    %158 = arith.mulf %157, %153 : vector<2x1024xf32>
    %159 = arith.mulf %158, %153 : vector<2x1024xf32>
    %160 = arith.addf %153, %159 : vector<2x1024xf32>
    %cst_73 = arith.constant 0.797884583 : f32
    %161 = vector.broadcast %cst_73 : f32 to vector<2x1024xf32>
    %162 = arith.mulf %161, %160 : vector<2x1024xf32>
    %163 = math.tanh %162 : vector<2x1024xf32>
    %cst_74 = arith.constant 1.000000e+00 : f32
    %164 = vector.broadcast %cst_74 : f32 to vector<2x1024xf32>
    %165 = arith.addf %164, %163 : vector<2x1024xf32>
    %166 = arith.mulf %155, %165 : vector<2x1024xf32>
    %167 = vector.broadcast %123 : vector<2x1xf32> to vector<2x1024xf32>
    %168 = arith.mulf %167, %166 : vector<2x1024xf32>
    %169 = arith.addf %122, %168 : vector<2x1024xf32>
    %170 = vector.extract_strided_slice %65 {offsets = [0, 2], sizes = [2, 1], strides = [1, 1]} : vector<2x4xf32> to vector<2x1xf32>
    %c2 = arith.constant 2 : index
    %c0_75 = arith.constant 0 : index
    %c0_76 = arith.constant 0 : index
    %171 = vector.load %arg10[%c2, %c0_75, %c0_76] : memref<4x32x1024xf32, #tpu.memory_space<vmem>>, vector<1x32x1024xf32>
    %172 = vector.shape_cast %171 : vector<1x32x1024xf32> to vector<32x1024xf32>
    %cst_77 = arith.constant dense<0.000000e+00> : vector<2x1024xf32>
    %173 = tpu.matmul %69, %172, %cst_77 {dimension_numbers = #tpu.dot_dimension_numbers<[1], [0], [0], [1], [0, 0, 1, 1], [], []>} : vector<2x32xf32>, vector<32x1024xf32>, vector<2x1024xf32> -> vector<2x1024xf32>
    %c2_78 = arith.constant 2 : index
    %c0_79 = arith.constant 0 : index
    %c0_80 = arith.constant 0 : index
    %174 = vector.load %arg11[%c2_78, %c0_79, %c0_80] : memref<4x1x1024xf32, #tpu.memory_space<vmem>>, vector<1x1x1024xf32>
    %175 = vector.shape_cast %174 : vector<1x1x1024xf32> to vector<1x1024xf32>
    %176 = vector.broadcast %175 : vector<1x1024xf32> to vector<2x1024xf32>
    %177 = arith.addf %173, %176 : vector<2x1024xf32>
    %cst_81 = arith.constant 5.000000e-01 : f32
    %178 = vector.broadcast %cst_81 : f32 to vector<2x1024xf32>
    %179 = arith.mulf %178, %177 : vector<2x1024xf32>
    %cst_82 = arith.constant 4.471500e-02 : f32
    %180 = vector.broadcast %cst_82 : f32 to vector<2x1024xf32>
    %181 = arith.mulf %180, %177 : vector<2x1024xf32>
    %182 = arith.mulf %181, %177 : vector<2x1024xf32>
    %183 = arith.mulf %182, %177 : vector<2x1024xf32>
    %184 = arith.addf %177, %183 : vector<2x1024xf32>
    %cst_83 = arith.constant 0.797884583 : f32
    %185 = vector.broadcast %cst_83 : f32 to vector<2x1024xf32>
    %186 = arith.mulf %185, %184 : vector<2x1024xf32>
    %187 = math.tanh %186 : vector<2x1024xf32>
    %cst_84 = arith.constant 1.000000e+00 : f32
    %188 = vector.broadcast %cst_84 : f32 to vector<2x1024xf32>
    %189 = arith.addf %188, %187 : vector<2x1024xf32>
    %190 = arith.mulf %179, %189 : vector<2x1024xf32>
    %191 = vector.broadcast %170 : vector<2x1xf32> to vector<2x1024xf32>
    %192 = arith.mulf %191, %190 : vector<2x1024xf32>
    %193 = arith.addf %146, %192 : vector<2x1024xf32>
    %c2_85 = arith.constant 2 : index
    %c0_86 = arith.constant 0 : index
    %c0_87 = arith.constant 0 : index
    %194 = vector.load %arg12[%c2_85, %c0_86, %c0_87] : memref<4x32x1024xf32, #tpu.memory_space<vmem>>, vector<1x32x1024xf32>
    %195 = vector.shape_cast %194 : vector<1x32x1024xf32> to vector<32x1024xf32>
    %cst_88 = arith.constant dense<0.000000e+00> : vector<2x1024xf32>
    %196 = tpu.matmul %73, %195, %cst_88 {dimension_numbers = #tpu.dot_dimension_numbers<[1], [0], [0], [1], [0, 0, 1, 1], [], []>} : vector<2x32xf32>, vector<32x1024xf32>, vector<2x1024xf32> -> vector<2x1024xf32>
    %c2_89 = arith.constant 2 : index
    %c0_90 = arith.constant 0 : index
    %c0_91 = arith.constant 0 : index
    %197 = vector.load %arg13[%c2_89, %c0_90, %c0_91] : memref<4x1x1024xf32, #tpu.memory_space<vmem>>, vector<1x1x1024xf32>
    %198 = vector.shape_cast %197 : vector<1x1x1024xf32> to vector<1x1024xf32>
    %199 = vector.broadcast %198 : vector<1x1024xf32> to vector<2x1024xf32>
    %200 = arith.addf %196, %199 : vector<2x1024xf32>
    %cst_92 = arith.constant 5.000000e-01 : f32
    %201 = vector.broadcast %cst_92 : f32 to vector<2x1024xf32>
    %202 = arith.mulf %201, %200 : vector<2x1024xf32>
    %cst_93 = arith.constant 4.471500e-02 : f32
    %203 = vector.broadcast %cst_93 : f32 to vector<2x1024xf32>
    %204 = arith.mulf %203, %200 : vector<2x1024xf32>
    %205 = arith.mulf %204, %200 : vector<2x1024xf32>
    %206 = arith.mulf %205, %200 : vector<2x1024xf32>
    %207 = arith.addf %200, %206 : vector<2x1024xf32>
    %cst_94 = arith.constant 0.797884583 : f32
    %208 = vector.broadcast %cst_94 : f32 to vector<2x1024xf32>
    %209 = arith.mulf %208, %207 : vector<2x1024xf32>
    %210 = math.tanh %209 : vector<2x1024xf32>
    %cst_95 = arith.constant 1.000000e+00 : f32
    %211 = vector.broadcast %cst_95 : f32 to vector<2x1024xf32>
    %212 = arith.addf %211, %210 : vector<2x1024xf32>
    %213 = arith.mulf %202, %212 : vector<2x1024xf32>
    %214 = vector.broadcast %170 : vector<2x1xf32> to vector<2x1024xf32>
    %215 = arith.mulf %214, %213 : vector<2x1024xf32>
    %216 = arith.addf %169, %215 : vector<2x1024xf32>
    %217 = vector.extract_strided_slice %65 {offsets = [0, 3], sizes = [2, 1], strides = [1, 1]} : vector<2x4xf32> to vector<2x1xf32>
    %c3 = arith.constant 3 : index
    %c0_96 = arith.constant 0 : index
    %c0_97 = arith.constant 0 : index
    %218 = vector.load %arg10[%c3, %c0_96, %c0_97] : memref<4x32x1024xf32, #tpu.memory_space<vmem>>, vector<1x32x1024xf32>
    %219 = vector.shape_cast %218 : vector<1x32x1024xf32> to vector<32x1024xf32>
    %cst_98 = arith.constant dense<0.000000e+00> : vector<2x1024xf32>
    %220 = tpu.matmul %69, %219, %cst_98 {dimension_numbers = #tpu.dot_dimension_numbers<[1], [0], [0], [1], [0, 0, 1, 1], [], []>} : vector<2x32xf32>, vector<32x1024xf32>, vector<2x1024xf32> -> vector<2x1024xf32>
    %c3_99 = arith.constant 3 : index
    %c0_100 = arith.constant 0 : index
    %c0_101 = arith.constant 0 : index
    %221 = vector.load %arg11[%c3_99, %c0_100, %c0_101] : memref<4x1x1024xf32, #tpu.memory_space<vmem>>, vector<1x1x1024xf32>
    %222 = vector.shape_cast %221 : vector<1x1x1024xf32> to vector<1x1024xf32>
    %223 = vector.broadcast %222 : vector<1x1024xf32> to vector<2x1024xf32>
    %224 = arith.addf %220, %223 : vector<2x1024xf32>
    %cst_102 = arith.constant 5.000000e-01 : f32
    %225 = vector.broadcast %cst_102 : f32 to vector<2x1024xf32>
    %226 = arith.mulf %225, %224 : vector<2x1024xf32>
    %cst_103 = arith.constant 4.471500e-02 : f32
    %227 = vector.broadcast %cst_103 : f32 to vector<2x1024xf32>
    %228 = arith.mulf %227, %224 : vector<2x1024xf32>
    %229 = arith.mulf %228, %224 : vector<2x1024xf32>
    %230 = arith.mulf %229, %224 : vector<2x1024xf32>
    %231 = arith.addf %224, %230 : vector<2x1024xf32>
    %cst_104 = arith.constant 0.797884583 : f32
    %232 = vector.broadcast %cst_104 : f32 to vector<2x1024xf32>
    %233 = arith.mulf %232, %231 : vector<2x1024xf32>
    %234 = math.tanh %233 : vector<2x1024xf32>
    %cst_105 = arith.constant 1.000000e+00 : f32
    %235 = vector.broadcast %cst_105 : f32 to vector<2x1024xf32>
    %236 = arith.addf %235, %234 : vector<2x1024xf32>
    %237 = arith.mulf %226, %236 : vector<2x1024xf32>
    %238 = vector.broadcast %217 : vector<2x1xf32> to vector<2x1024xf32>
    %239 = arith.mulf %238, %237 : vector<2x1024xf32>
    %240 = arith.addf %193, %239 : vector<2x1024xf32>
    %c3_106 = arith.constant 3 : index
    %c0_107 = arith.constant 0 : index
    %c0_108 = arith.constant 0 : index
    %241 = vector.load %arg12[%c3_106, %c0_107, %c0_108] : memref<4x32x1024xf32, #tpu.memory_space<vmem>>, vector<1x32x1024xf32>
    %242 = vector.shape_cast %241 : vector<1x32x1024xf32> to vector<32x1024xf32>
    %cst_109 = arith.constant dense<0.000000e+00> : vector<2x1024xf32>
    %243 = tpu.matmul %73, %242, %cst_109 {dimension_numbers = #tpu.dot_dimension_numbers<[1], [0], [0], [1], [0, 0, 1, 1], [], []>} : vector<2x32xf32>, vector<32x1024xf32>, vector<2x1024xf32> -> vector<2x1024xf32>
    %c3_110 = arith.constant 3 : index
    %c0_111 = arith.constant 0 : index
    %c0_112 = arith.constant 0 : index
    %244 = vector.load %arg13[%c3_110, %c0_111, %c0_112] : memref<4x1x1024xf32, #tpu.memory_space<vmem>>, vector<1x1x1024xf32>
    %245 = vector.shape_cast %244 : vector<1x1x1024xf32> to vector<1x1024xf32>
    %246 = vector.broadcast %245 : vector<1x1024xf32> to vector<2x1024xf32>
    %247 = arith.addf %243, %246 : vector<2x1024xf32>
    %cst_113 = arith.constant 5.000000e-01 : f32
    %248 = vector.broadcast %cst_113 : f32 to vector<2x1024xf32>
    %249 = arith.mulf %248, %247 : vector<2x1024xf32>
    %cst_114 = arith.constant 4.471500e-02 : f32
    %250 = vector.broadcast %cst_114 : f32 to vector<2x1024xf32>
    %251 = arith.mulf %250, %247 : vector<2x1024xf32>
    %252 = arith.mulf %251, %247 : vector<2x1024xf32>
    %253 = arith.mulf %252, %247 : vector<2x1024xf32>
    %254 = arith.addf %247, %253 : vector<2x1024xf32>
    %cst_115 = arith.constant 0.797884583 : f32
    %255 = vector.broadcast %cst_115 : f32 to vector<2x1024xf32>
    %256 = arith.mulf %255, %254 : vector<2x1024xf32>
    %257 = math.tanh %256 : vector<2x1024xf32>
    %cst_116 = arith.constant 1.000000e+00 : f32
    %258 = vector.broadcast %cst_116 : f32 to vector<2x1024xf32>
    %259 = arith.addf %258, %257 : vector<2x1024xf32>
    %260 = arith.mulf %249, %259 : vector<2x1024xf32>
    %261 = vector.broadcast %217 : vector<2x1xf32> to vector<2x1024xf32>
    %262 = arith.mulf %261, %260 : vector<2x1024xf32>
    %263 = arith.addf %216, %262 : vector<2x1024xf32>
    %cst_117 = arith.constant 0.000000e+00 : f32
    %264 = vector.broadcast %cst_117 : f32 to vector<2x8xf32>
    %265 = vector.extract_strided_slice %65 {offsets = [0, 0], sizes = [2, 1], strides = [1, 1]} : vector<2x4xf32> to vector<2x1xf32>
    %c0_118 = arith.constant 0 : index
    %c0_119 = arith.constant 0 : index
    %c0_120 = arith.constant 0 : index
    %266 = vector.load %arg14[%c0_118, %c0_119, %c0_120] : memref<4x1024x8xf32, #tpu.memory_space<vmem>>, vector<1x1024x8xf32>
    %267 = vector.shape_cast %266 : vector<1x1024x8xf32> to vector<1024x8xf32>
    %cst_121 = arith.constant dense<0.000000e+00> : vector<2x8xf32>
    %268 = tpu.matmul %240, %267, %cst_121 {dimension_numbers = #tpu.dot_dimension_numbers<[1], [0], [0], [1], [0, 0, 1, 1], [], []>} : vector<2x1024xf32>, vector<1024x8xf32>, vector<2x8xf32> -> vector<2x8xf32>
    %c0_122 = arith.constant 0 : index
    %c0_123 = arith.constant 0 : index
    %c0_124 = arith.constant 0 : index
    %269 = vector.load %arg15[%c0_122, %c0_123, %c0_124] : memref<4x1024x8xf32, #tpu.memory_space<vmem>>, vector<1x1024x8xf32>
    %270 = vector.shape_cast %269 : vector<1x1024x8xf32> to vector<1024x8xf32>
    %cst_125 = arith.constant dense<0.000000e+00> : vector<2x8xf32>
    %271 = tpu.matmul %263, %270, %cst_125 {dimension_numbers = #tpu.dot_dimension_numbers<[1], [0], [0], [1], [0, 0, 1, 1], [], []>} : vector<2x1024xf32>, vector<1024x8xf32>, vector<2x8xf32> -> vector<2x8xf32>
    %272 = arith.addf %268, %271 : vector<2x8xf32>
    %c0_126 = arith.constant 0 : index
    %c0_127 = arith.constant 0 : index
    %c0_128 = arith.constant 0 : index
    %273 = vector.load %arg16[%c0_126, %c0_127, %c0_128] : memref<4x1x8xf32, #tpu.memory_space<vmem>>, vector<1x1x8xf32>
    %274 = vector.shape_cast %273 : vector<1x1x8xf32> to vector<1x8xf32>
    %275 = vector.broadcast %274 : vector<1x8xf32> to vector<2x8xf32>
    %276 = arith.addf %272, %275 : vector<2x8xf32>
    %277 = vector.broadcast %265 : vector<2x1xf32> to vector<2x8xf32>
    %278 = arith.mulf %277, %276 : vector<2x8xf32>
    %279 = arith.addf %264, %278 : vector<2x8xf32>
    %280 = vector.extract_strided_slice %65 {offsets = [0, 1], sizes = [2, 1], strides = [1, 1]} : vector<2x4xf32> to vector<2x1xf32>
    %c1_129 = arith.constant 1 : index
    %c0_130 = arith.constant 0 : index
    %c0_131 = arith.constant 0 : index
    %281 = vector.load %arg14[%c1_129, %c0_130, %c0_131] : memref<4x1024x8xf32, #tpu.memory_space<vmem>>, vector<1x1024x8xf32>
    %282 = vector.shape_cast %281 : vector<1x1024x8xf32> to vector<1024x8xf32>
    %cst_132 = arith.constant dense<0.000000e+00> : vector<2x8xf32>
    %283 = tpu.matmul %240, %282, %cst_132 {dimension_numbers = #tpu.dot_dimension_numbers<[1], [0], [0], [1], [0, 0, 1, 1], [], []>} : vector<2x1024xf32>, vector<1024x8xf32>, vector<2x8xf32> -> vector<2x8xf32>
    %c1_133 = arith.constant 1 : index
    %c0_134 = arith.constant 0 : index
    %c0_135 = arith.constant 0 : index
    %284 = vector.load %arg15[%c1_133, %c0_134, %c0_135] : memref<4x1024x8xf32, #tpu.memory_space<vmem>>, vector<1x1024x8xf32>
    %285 = vector.shape_cast %284 : vector<1x1024x8xf32> to vector<1024x8xf32>
    %cst_136 = arith.constant dense<0.000000e+00> : vector<2x8xf32>
    %286 = tpu.matmul %263, %285, %cst_136 {dimension_numbers = #tpu.dot_dimension_numbers<[1], [0], [0], [1], [0, 0, 1, 1], [], []>} : vector<2x1024xf32>, vector<1024x8xf32>, vector<2x8xf32> -> vector<2x8xf32>
    %287 = arith.addf %283, %286 : vector<2x8xf32>
    %c1_137 = arith.constant 1 : index
    %c0_138 = arith.constant 0 : index
    %c0_139 = arith.constant 0 : index
    %288 = vector.load %arg16[%c1_137, %c0_138, %c0_139] : memref<4x1x8xf32, #tpu.memory_space<vmem>>, vector<1x1x8xf32>
    %289 = vector.shape_cast %288 : vector<1x1x8xf32> to vector<1x8xf32>
    %290 = vector.broadcast %289 : vector<1x8xf32> to vector<2x8xf32>
    %291 = arith.addf %287, %290 : vector<2x8xf32>
    %292 = vector.broadcast %280 : vector<2x1xf32> to vector<2x8xf32>
    %293 = arith.mulf %292, %291 : vector<2x8xf32>
    %294 = arith.addf %279, %293 : vector<2x8xf32>
    %295 = vector.extract_strided_slice %65 {offsets = [0, 2], sizes = [2, 1], strides = [1, 1]} : vector<2x4xf32> to vector<2x1xf32>
    %c2_140 = arith.constant 2 : index
    %c0_141 = arith.constant 0 : index
    %c0_142 = arith.constant 0 : index
    %296 = vector.load %arg14[%c2_140, %c0_141, %c0_142] : memref<4x1024x8xf32, #tpu.memory_space<vmem>>, vector<1x1024x8xf32>
    %297 = vector.shape_cast %296 : vector<1x1024x8xf32> to vector<1024x8xf32>
    %cst_143 = arith.constant dense<0.000000e+00> : vector<2x8xf32>
    %298 = tpu.matmul %240, %297, %cst_143 {dimension_numbers = #tpu.dot_dimension_numbers<[1], [0], [0], [1], [0, 0, 1, 1], [], []>} : vector<2x1024xf32>, vector<1024x8xf32>, vector<2x8xf32> -> vector<2x8xf32>
    %c2_144 = arith.constant 2 : index
    %c0_145 = arith.constant 0 : index
    %c0_146 = arith.constant 0 : index
    %299 = vector.load %arg15[%c2_144, %c0_145, %c0_146] : memref<4x1024x8xf32, #tpu.memory_space<vmem>>, vector<1x1024x8xf32>
    %300 = vector.shape_cast %299 : vector<1x1024x8xf32> to vector<1024x8xf32>
    %cst_147 = arith.constant dense<0.000000e+00> : vector<2x8xf32>
    %301 = tpu.matmul %263, %300, %cst_147 {dimension_numbers = #tpu.dot_dimension_numbers<[1], [0], [0], [1], [0, 0, 1, 1], [], []>} : vector<2x1024xf32>, vector<1024x8xf32>, vector<2x8xf32> -> vector<2x8xf32>
    %302 = arith.addf %298, %301 : vector<2x8xf32>
    %c2_148 = arith.constant 2 : index
    %c0_149 = arith.constant 0 : index
    %c0_150 = arith.constant 0 : index
    %303 = vector.load %arg16[%c2_148, %c0_149, %c0_150] : memref<4x1x8xf32, #tpu.memory_space<vmem>>, vector<1x1x8xf32>
    %304 = vector.shape_cast %303 : vector<1x1x8xf32> to vector<1x8xf32>
    %305 = vector.broadcast %304 : vector<1x8xf32> to vector<2x8xf32>
    %306 = arith.addf %302, %305 : vector<2x8xf32>
    %307 = vector.broadcast %295 : vector<2x1xf32> to vector<2x8xf32>
    %308 = arith.mulf %307, %306 : vector<2x8xf32>
    %309 = arith.addf %294, %308 : vector<2x8xf32>
    %310 = vector.extract_strided_slice %65 {offsets = [0, 3], sizes = [2, 1], strides = [1, 1]} : vector<2x4xf32> to vector<2x1xf32>
    %c3_151 = arith.constant 3 : index
    %c0_152 = arith.constant 0 : index
    %c0_153 = arith.constant 0 : index
    %311 = vector.load %arg14[%c3_151, %c0_152, %c0_153] : memref<4x1024x8xf32, #tpu.memory_space<vmem>>, vector<1x1024x8xf32>
    %312 = vector.shape_cast %311 : vector<1x1024x8xf32> to vector<1024x8xf32>
    %cst_154 = arith.constant dense<0.000000e+00> : vector<2x8xf32>
    %313 = tpu.matmul %240, %312, %cst_154 {dimension_numbers = #tpu.dot_dimension_numbers<[1], [0], [0], [1], [0, 0, 1, 1], [], []>} : vector<2x1024xf32>, vector<1024x8xf32>, vector<2x8xf32> -> vector<2x8xf32>
    %c3_155 = arith.constant 3 : index
    %c0_156 = arith.constant 0 : index
    %c0_157 = arith.constant 0 : index
    %314 = vector.load %arg15[%c3_155, %c0_156, %c0_157] : memref<4x1024x8xf32, #tpu.memory_space<vmem>>, vector<1x1024x8xf32>
    %315 = vector.shape_cast %314 : vector<1x1024x8xf32> to vector<1024x8xf32>
    %cst_158 = arith.constant dense<0.000000e+00> : vector<2x8xf32>
    %316 = tpu.matmul %263, %315, %cst_158 {dimension_numbers = #tpu.dot_dimension_numbers<[1], [0], [0], [1], [0, 0, 1, 1], [], []>} : vector<2x1024xf32>, vector<1024x8xf32>, vector<2x8xf32> -> vector<2x8xf32>
    %317 = arith.addf %313, %316 : vector<2x8xf32>
    %c3_159 = arith.constant 3 : index
    %c0_160 = arith.constant 0 : index
    %c0_161 = arith.constant 0 : index
    %318 = vector.load %arg16[%c3_159, %c0_160, %c0_161] : memref<4x1x8xf32, #tpu.memory_space<vmem>>, vector<1x1x8xf32>
    %319 = vector.shape_cast %318 : vector<1x1x8xf32> to vector<1x8xf32>
    %320 = vector.broadcast %319 : vector<1x8xf32> to vector<2x8xf32>
    %321 = arith.addf %317, %320 : vector<2x8xf32>
    %322 = vector.broadcast %310 : vector<2x1xf32> to vector<2x8xf32>
    %323 = arith.mulf %322, %321 : vector<2x8xf32>
    %324 = arith.addf %309, %323 : vector<2x8xf32>
    %c0_162 = arith.constant 0 : index
    %c0_163 = arith.constant 0 : index
    %325 = vector.load %arg17[%c0_162, %c0_163] : memref<2x8xf32, #tpu.memory_space<vmem>>, vector<2x8xf32>
    tpu.vector_store %arg17[%c0_162, %c0_163], %324 {strides = array<i32>} : memref<2x8xf32, #tpu.memory_space<vmem>>, vector<2x8xf32>,
    return
  }
}

</mosaic_0001>

<llo_original>
// kernel: _lambda_.2
$region0: #{_lambda_.2}
  #allocation0 [shape = 'u32[]', space=smem, size = 0x4, offset = 0x4, fixed_abs, tag = 'smem constant byte address 0x4 - core index']
  #allocation1 [shape = 'u32[144,128]{1,0:T(1,128)}', space=vmem, size = 0x12000, scoped, tag = 'internal scratch']
  %s0 = inlined_call_operand.vmem [shape: f32[2,3,1024], index: 0, kind: input, shape index: {}]
  %s1 = inlined_call_operand.vmem [shape: f32[1,2,1,3], index: 1, kind: output, shape index: {}]
  %s2 = sld [smem:[#allocation0]]
  $region41: #{_lambda_.2} parent=0
    _
  %s4 = ssub.s32 1, %s2
  %s5 = scalar_select 0, %s4, %s2
  loop: start=0, step=1, limit=4
  $region2: #{_lambda_.2} parent=0 // loop_pre_header
    _
  $region3: #{_lambda_.2} parent=0 // loop_header
    %s7 = sphi 0, %s11
    %p8 = scmp.ge.s32.totalorder %s7, 4
    %s14 = sphi 0, %s33
    %s15 = sphi 0, %s29
    %s16 = sphi 0, %s25
    %s17 = sphi 0, %s14
    %s18 = sphi 0, %s15
    %s19 = sphi 0, %s16
    %s20 = sphi 0, %s17
    %s21 = sphi 0, %s18
    %s22 = sphi 0, %s19
    %s40 = sphi 0, %s42
    %s43 = sphi 0, %s40
    %s44 = sphi 0, %s43
    %s60 = sphi 0, %s44
    %s68 = sphi 0, %s70
    %s71 = sphi 0, %s68
    %s72 = sphi 0, %s71
    %s88 = sphi 0, %s72
  $region4: #{_lambda_.2} parent=0 // loop_header_branch
    %10 = sbr.rel (%p8) target = $region8
  $region5: #{_lambda_.2} parent=0 // loop_body
    %s12 = ssub.s32 %s7, 1
    %s13 = ssub.s32 %s7, 2
    %s23 = sadd.s32 1, %s16
    %p24 = scmp.ge.s32.totalorder %s23, 1
    %s25 = scalar_select %p24, 0, %s23
    %s26 = sadd.s32 1, %s15
    %s27 = scalar_select %p24, %s26, %s15
    %p28 = scmp.ge.s32.totalorder %s27, 2
    %s29 = scalar_select %p28, 0, %s27
    %s30 = sadd.s32 1, %s14
    %s31 = scalar_select %p28, %s30, %s14
    %p32 = scmp.ge.s32.totalorder %s31, 1
    %s33 = scalar_select %p32, 0, %s31
    %s34 = sadd.s32 %s14, %s16
    %s35 = sadd.s32 %s33, %s25
    %s36 = ssub.s32 %s15, %s29
    %s37 = ssub.s32 %s34, %s35
    %s38 = sor.u32 %s36, %s37
    %p39 = scmp.eq.s32.totalorder %s38, 0
    %s41 = sadd.s32 %s40, 1
    %s42 = scalar_select %p39, %s40, %s41
    %p45 = pneg %p39
    %p46 = scmp.eq.s32.totalorder %s7, 1
    %p47 = por %p45, %p46
    %p48 = scmp.ne.s32.totalorder %s40, %s43
    %p49 = scmp.eq.s32.totalorder %s7, 0
    %p50 = por %p48, %p49
    %p51 = scmp.ne.s32.totalorder %s40, %s43
    %p52 = scmp.eq.s32.totalorder %s12, 1
    %p53 = por %p51, %p52
    %p54 = scmp.ne.s32.totalorder %s43, %s44
    %p55 = scmp.eq.s32.totalorder %s12, 0
    %p56 = por %p54, %p55
    %p57 = scmp.ne.s32.totalorder %s43, %s44
    %p58 = scmp.eq.s32.totalorder %s13, 1
    %p59 = por %p57, %p58
    %p61 = scmp.ne.s32.totalorder %s44, %s60
    %p62 = scmp.eq.s32.totalorder %s13, 0
    %p63 = por %p61, %p62
    %s64 = ssub.s32 %s14, %s33
    %s65 = ssub.s32 %s15, %s29
    %s66 = sor.u32 %s64, %s65
    %p67 = scmp.eq.s32.totalorder %s66, 0
    %s69 = sadd.s32 %s68, 1
    %s70 = scalar_select %p67, %s68, %s69
    %p73 = pneg %p67
    %p74 = scmp.eq.s32.totalorder %s7, 1
    %p75 = por %p73, %p74
    %p76 = scmp.ne.s32.totalorder %s68, %s71
    %p77 = scmp.eq.s32.totalorder %s7, 0
    %p78 = por %p76, %p77
    %p79 = scmp.ne.s32.totalorder %s68, %s71
    %p80 = scmp.eq.s32.totalorder %s12, 1
    %p81 = por %p79, %p80
    %p82 = scmp.ne.s32.totalorder %s71, %s72
    %p83 = scmp.eq.s32.totalorder %s12, 0
    %p84 = por %p82, %p83
    %p85 = scmp.ne.s32.totalorder %s71, %s72
    %p86 = scmp.eq.s32.totalorder %s13, 1
    %p87 = por %p85, %p86
    %p89 = scmp.ne.s32.totalorder %s72, %s88
    %p90 = scmp.eq.s32.totalorder %s13, 0
    %p91 = por %p89, %p90
    %p92 = scmp.le.s32.totalorder 1, %s7
    %p93 = scmp.lt.s32.totalorder %s7, 3
    %p94 = pnand %p92, %p93
    %p95 = pneg %p94
    // Predicated region
    $region9: #{_lambda_.2} parent=5 // pred_check
      _
    $region10: #{_lambda_.2} parent=5 // pred_check_branch
      %97 = sbr.rel (%p94) target = $region12
    $region11: #{_lambda_.2} parent=5 // pred_region
      %s98 = ssub.s32 %s7, 1
    $region12: #{_lambda_.2} parent=5 // pred_fallthru
      _
    %p99 = scmp.lt.s32.totalorder %s7, 2
    // Predicated region
    $region13: #{_lambda_.2} parent=5 // pred_check
      %p100 = pneg %p99
    $region14: #{_lambda_.2} parent=5 // pred_check_branch
      %102 = sbr.rel (%p100) target = $region16
    $region15: #{_lambda_.2} parent=5 // pred_region
      // Predicated region
      $region17: #{_lambda_.2} parent=15 // pred_check
        %p103 = pneg %p50
      $region18: #{_lambda_.2} parent=15 // pred_check_branch
        %105 = sbr.rel (%p103) target = $region20
      $region19: #{_lambda_.2} parent=15 // pred_region
        %s106 = sadd.s32 %s14, %s16
        %s107 = smul.u32 8, %s106
        %p108 = scmp.lt.s32.totalorder %s15, 1
        %s109 = scalar_select %p108, %s15, 1
        %p110 = scmp.lt.s32.totalorder %s107, 7
        %s111 = scalar_select %p110, %s107, 7
        %s112 = smul.addr %s109, 8
        %s113 = sadd.s32 %s111, %s112
        %s114 = smul.addr %s113, 4
        %s115 = scalar_lea.vmem %s0, %s114
        %s116 = sadd.s32 %s14, %s16
        %s117 = smul.u32 8, %s116
      $region20: #{_lambda_.2} parent=15 // pred_fallthru
        _
    $region16: #{_lambda_.2} parent=5 // pred_fallthru
      _
    %p118 = scmp.le.s32.totalorder 1, %s7
    %p119 = scmp.lt.s32.totalorder %s7, 3
    %p120 = pnand %p118, %p119
    %p121 = pneg %p120
    // Predicated region
    $region21: #{_lambda_.2} parent=5 // pred_check
      _
    $region22: #{_lambda_.2} parent=5 // pred_check_branch
      %123 = sbr.rel (%p120) target = $region24
    $region23: #{_lambda_.2} parent=5 // pred_region
      %s124 = ssub.s32 %s7, 1
      %s125 = sadd.s32 %s17, %s19
      %s126 = smul.u32 8, %s125
      %p127 = scmp.lt.s32.totalorder %s18, 1
      %s128 = scalar_select %p127, %s18, 1
      %p129 = scmp.lt.s32.totalorder %s126, 7
      %s130 = scalar_select %p129, %s126, 7
      %s131 = smul.addr %s128, 8
      %s132 = sadd.s32 %s130, %s131
      %s133 = smul.addr %s132, 4
      %s134 = scalar_lea.vmem %s0, %s133
      %p135 = pneg %p56
      %p136 = pneg %p53
      %p137 = pneg %p84
      %p138 = pneg %p81
      %p139 = scmp.lt.s32.totalorder %s17, 0
      %s140 = scalar_select %p139, %s17, 0
      %p141 = scmp.lt.s32.totalorder %s18, 1
      %s142 = scalar_select %p141, %s18, 1
      %s143 = smul.addr %s140, 2
      %s144 = sadd.s32 %s142, %s143
      %s145 = scalar_lea.vmem %s1, %s144
      %s146 = sadd.s32 %s17, %s19
      %s147 = smul.u32 8, %s146
      %p148 = scmp.lt.s32.totalorder %s18, 1
      %s149 = scalar_select %p148, %s18, 1
      %p150 = scmp.lt.s32.totalorder %s147, 7
      %s151 = scalar_select %p150, %s147, 7
      %s152 = smul.addr %s149, 8
      %s153 = sadd.s32 %s151, %s152
      %s154 = smul.addr %s153, 4
      %s155 = scalar_lea.vmem %s0, %s154
      %s156 = sadd.s32 %s17, %s19
      %s157 = smul.u32 8, %s156
      %p158 = scmp.lt.s32.totalorder %s17, 0
      %s159 = scalar_select %p158, %s17, 0
      %p160 = scmp.lt.s32.totalorder %s18, 1
      %s161 = scalar_select %p160, %s18, 1
      %s162 = smul.addr %s159, 2
      %s163 = sadd.s32 %s161, %s162
      %s164 = scalar_lea.vmem %s1, %s163
      %p165 = scmp.eq.s32.totalorder %s19, 0
      // Predicated region
      $region25: #{_lambda_.2} parent=23 // pred_check
        %p166 = pneg %p165
      $region26: #{_lambda_.2} parent=23 // pred_check_branch
        %168 = sbr.rel (%p166) target = $region28
      $region27: #{_lambda_.2} parent=23 // pred_region
        %vm169 = vcmask 16384
        %170 = vst.msk [vmem:[%s164] sm:$0x1] %vm169, 0.0
      $region28: #{_lambda_.2} parent=23 // pred_fallthru
        _
      %v171 = vld [vmem:[%s155] sm:$0x77]
      %v172 = vld [vmem:[%s155 + $0x8] sm:$0x77]
      %v173 = vld [vmem:[%s155 + $0x10] sm:$0x77]
      %v174 = vld [vmem:[%s155 + $0x18] sm:$0x77]
      %v179 = vcombine.high %v171, %v171
      %v180 = vcombine.high %v172, %v172
      %v181 = vcombine.high %v173, %v173
      %v182 = vcombine.high %v174, %v174
      %vm187 = vcmask 1042432
      %v188 = vsel %vm187, %v171, 0.0
      %v189 = vsel %vm187, %v179, 0.0
      %v190 = vadd.f32 %v188, %v189
      %v191 = vsel %vm187, %v172, 0.0
      %v192 = vadd.f32 %v190, %v191
      %v193 = vsel %vm187, %v180, 0.0
      %v194 = vadd.f32 %v192, %v193
      %v195 = vsel %vm187, %v173, 0.0
      %v196 = vadd.f32 %v194, %v195
      %v197 = vsel %vm187, %v181, 0.0
      %v198 = vadd.f32 %v196, %v197
      %v199 = vsel %vm187, %v174, 0.0
      %v200 = vadd.f32 %v198, %v199
      %v201 = vsel %vm187, %v182, 0.0
      %v202 = vadd.f32 %v200, %v201
      %203 = vadd.xlane.f32.xlu0 %v202
      %v204 = vpop.xlane.xlu0 %203
      %v205 = vld [vmem:[%s164] sm:$0x1]
      %v207 = vlaneseq
      %v208 = vshrl.u32 %v207, 7
      %v209 = vsub.s32 0, %v208
      %v210 = vrot.slane %v204, %v209
      %v211 = vlaneseq
      %v212 = vshrl.u32 %v211, 7
      %v213 = vsub.s32 1, %v212
      %v214 = vrot.slane %v204, %v213
      %v215 = vlaneseq
      %v216 = vshrl.u32 %v215, 7
      %v217 = vsub.s32 2, %v216
      %v218 = vrot.slane %v204, %v217
      %v219 = vcombine.low %v210, %v214
      %v221 = vunpack.c.l.s4 1966171168
      %v222 = vunpack.c.0.s8 %v221
      %v223 = vlaneseq
      %v224 = vshrl.u32 %v223, 7
      %v225 = vsub.s32 %v222, %v224
      %v226 = vrot.slane %v219, %v225
      %v228 = vunpack.c.l.s4 1966171168
      %v229 = vunpack.c.0.s8 %v228
      %v230 = vlaneseq
      %v231 = vshrl.u32 %v230, 7
      %v232 = vsub.s32 %v229, %v231
      %v233 = vrot.slane %v218, %v232
      %v234 = vcombine.low %v226, %v233
      %v236 = vunpack.c.l.s4 1966171168
      %v237 = vunpack.c.0.s8 %v236
      %v238 = vlaneseq
      %v239 = vshrl.u32 %v238, 7
      %v240 = vsub.s32 %v237, %v239
      %v241 = vrot.slane %v234, %v240
      %242 = vset.pattern.permute.xlu0 0
      %243 = vperm.xlu0 %242, %v241
      %v244 = vpop.permute.xlu0 %243
      %v245 = vlaneseq
      %v246 = vand.u32 %v245, 127
      %v247 = vlaneseq
      %v248 = vshrl.u32 %v247, 7
      %v249 = vsub.s32 %v246, %v248
      %v250 = vrot.slane %v244, %v249
      %v252 = vunpack.c.l.s4 1966171168
      %v253 = vunpack.c.0.s8 %v252
      %v254 = vlaneseq
      %v255 = vshrl.u32 %v254, 7
      %v256 = vsub.s32 %v253, %v255
      %v257 = vrot.slane %v250, %v256
      %v259 = vunpack.c.l.s4 1966171168
      %v260 = vunpack.c.0.s8 %v259
      %v261 = vlaneseq
      %v262 = vshrl.u32 %v261, 7
      %v263 = vsub.s32 %v260, %v262
      %v264 = vrot.slane %v257, %v263
      %v266 = vadd.f32 %v205, %v264
      %vm267 = vcmask 16384
      %268 = vst.msk [vmem:[%s164] sm:$0x1] %vm267, %v266
      %p269 = scmp.lt.s32.totalorder %s17, 0
      %s270 = scalar_select %p269, %s17, 0
      %p271 = scmp.lt.s32.totalorder %s18, 1
      %s272 = scalar_select %p271, %s18, 1
      %s273 = smul.addr %s270, 2
      %s274 = sadd.s32 %s272, %s273
      %s275 = scalar_lea.vmem %s1, %s274
      // Predicated region
      $region29: #{_lambda_.2} parent=23 // pred_check
        %p276 = pneg %p81
      $region30: #{_lambda_.2} parent=23 // pred_check_branch
        %278 = sbr.rel (%p276) target = $region32
      $region31: #{_lambda_.2} parent=23 // pred_region
        _
      $region32: #{_lambda_.2} parent=23 // pred_fallthru
        _
    $region24: #{_lambda_.2} parent=5 // pred_fallthru
      _
    %p279 = scmp.le.s32.totalorder 2, %s7
    // Predicated region
    $region33: #{_lambda_.2} parent=5 // pred_check
      %p280 = pneg %p279
    $region34: #{_lambda_.2} parent=5 // pred_check_branch
      %282 = sbr.rel (%p280) target = $region36
    $region35: #{_lambda_.2} parent=5 // pred_region
      %s283 = ssub.s32 %s7, 2
      // Predicated region
      $region37: #{_lambda_.2} parent=35 // pred_check
        %p284 = pneg %p87
      $region38: #{_lambda_.2} parent=35 // pred_check_branch
        %286 = sbr.rel (%p284) target = $region40
      $region39: #{_lambda_.2} parent=35 // pred_region
        %p287 = scmp.lt.s32.totalorder %s20, 0
        %s288 = scalar_select %p287, %s20, 0
        %p289 = scmp.lt.s32.totalorder %s21, 1
        %s290 = scalar_select %p289, %s21, 1
        %s291 = smul.addr %s288, 2
        %s292 = sadd.s32 %s290, %s291
        %s293 = scalar_lea.vmem %s1, %s292
      $region40: #{_lambda_.2} parent=35 // pred_fallthru
        _
    $region36: #{_lambda_.2} parent=5 // pred_fallthru
      _
  $region6: #{_lambda_.2} parent=0 // loop_footer
    %s11 = sadd.s32 1, %s7
  $region7: #{_lambda_.2} parent=0 // loop_footer_branch
    %6 = sbr.rel target = $region3
  $region8: #{_lambda_.2} parent=0 // loop_exit
    _

// kernel: _lambda_.3
$region0: #{_lambda_.3}
  #allocation0 [shape = 'u32[]', space=smem, size = 0x4, offset = 0x4, fixed_abs, tag = 'smem constant byte address 0x4 - core index']
  #allocation1 [shape = 'u32[144,128]{1,0:T(1,128)}', space=vmem, size = 0x12000, scoped, tag = 'internal scratch']
  #allocation2 [shape = 'f32[1,1]{1,0:T(1,128)S(1)}', space=vmem, size = 0x200, scoped, tag = 'scoped memory for _lambda_.3']
  %s0 = inlined_call_operand.vmem [shape: f32[2,3], index: 0, kind: input, shape index: {}]
  %s1 = inlined_call_operand.vmem [shape: f32[3,32], index: 1, kind: input, shape index: {}]
  %s2 = inlined_call_operand.vmem [shape: f32[1,32], index: 2, kind: input, shape index: {}]
  %s3 = inlined_call_operand.vmem [shape: f32[3,32], index: 3, kind: input, shape index: {}]
  %s4 = inlined_call_operand.vmem [shape: f32[1,32], index: 4, kind: input, shape index: {}]
  %s5 = inlined_call_operand.vmem [shape: f32[4,32], index: 5, kind: input, shape index: {}]
  %s6 = inlined_call_operand.vmem [shape: f32[4,32], index: 6, kind: input, shape index: {}]
  %s7 = inlined_call_operand.vmem [shape: f32[1,64], index: 7, kind: input, shape index: {}]
  %s8 = inlined_call_operand.<no memory space> [shape: f32[1,1], index: 8, kind: input, shape index: {}]
  %s9 = inlined_call_operand.vmem [shape: s32[2,1], index: 9, kind: input, shape index: {}]
  %s10 = inlined_call_operand.vmem [shape: f32[4,32,1024], index: 10, kind: input, shape index: {}]
  %s11 = inlined_call_operand.vmem [shape: f32[4,1,1024], index: 11, kind: input, shape index: {}]
  %s12 = inlined_call_operand.vmem [shape: f32[4,32,1024], index: 12, kind: input, shape index: {}]
  %s13 = inlined_call_operand.vmem [shape: f32[4,1,1024], index: 13, kind: input, shape index: {}]
  %s14 = inlined_call_operand.vmem [shape: f32[4,1024,8], index: 14, kind: input, shape index: {}]
  %s15 = inlined_call_operand.vmem [shape: f32[4,1024,8], index: 15, kind: input, shape index: {}]
  %s16 = inlined_call_operand.vmem [shape: f32[4,1,8], index: 16, kind: input, shape index: {}]
  %s17 = inlined_call_operand.hbm [shape: f32[2,8], index: 17, kind: output, shape index: {0}]
  %s18 = inlined_call_operand.hbm [shape: f32[2,4], index: 18, kind: output, shape index: {1}]
  %19 = xla_tuple %s17, %s18
  %s20 = sld [smem:[#allocation0]]
  $region86: #{_lambda_.3} parent=0
    _
  %s22 = ssub.s32 1, %s20
  %s23 = scalar_select 0, %s22, %s20
  %v24 = vstv %s8
  %25 = vst [vmem:[#allocation2] sm:$0x1] %v24
  $region1: #{_lambda_.3} parent=0
    #allocation3 [shape = 'u8[1024]{0}', space=vmem, size = 0x400, scoped, tag = 'output window, operand 0, single buffered']
    #allocation4 [shape = 's32[1]{0}', space=sflag, size = 0x4, scoped, tag = 'scoped memory for _lambda_.3']
    #allocation5 [shape = 'u8[1024]{0}', space=vmem, size = 0x400, scoped, tag = 'output window, operand 1, single buffered']
    #allocation6 [shape = 's32[1]{0}', space=sflag, size = 0x4, scoped, tag = 'scoped memory for _lambda_.3']
    %26 = vsyncpa [#allocation4], 0
    %27 = vsyncpa [#allocation6], 0
    // Predicated region
    $region2: #{_lambda_.3} parent=1 // pred_check
      _
    $region3: #{_lambda_.3} parent=1 // pred_check_branch
      %29 = sbr.rel (0) target = $region5
    $region4: #{_lambda_.3} parent=1 // pred_region
      _
    $region5: #{_lambda_.3} parent=1 // pred_fallthru
      _
    // Predicated region
    $region6: #{_lambda_.3} parent=1 // pred_check
      _
    $region7: #{_lambda_.3} parent=1 // pred_check_branch
      %31 = sbr.rel (0) target = $region9
    $region8: #{_lambda_.3} parent=1 // pred_region
      _
    $region9: #{_lambda_.3} parent=1 // pred_fallthru
      _
    // Predicated region
    $region10: #{_lambda_.3} parent=1 // pred_check
      _
    $region11: #{_lambda_.3} parent=1 // pred_check_branch
      %33 = sbr.rel (0) target = $region13
    $region12: #{_lambda_.3} parent=1 // pred_region
      _
    $region13: #{_lambda_.3} parent=1 // pred_fallthru
      _
    // Predicated region
    $region14: #{_lambda_.3} parent=1 // pred_check
      _
    $region15: #{_lambda_.3} parent=1 // pred_check_branch
      %35 = sbr.rel (0) target = $region17
    $region16: #{_lambda_.3} parent=1 // pred_region
      _
    $region17: #{_lambda_.3} parent=1 // pred_fallthru
      _
    // Predicated region
    $region18: #{_lambda_.3} parent=1 // pred_check
      _
    $region19: #{_lambda_.3} parent=1 // pred_check_branch
      %37 = sbr.rel (0) target = $region21
    $region20: #{_lambda_.3} parent=1 // pred_region
      _
    $region21: #{_lambda_.3} parent=1 // pred_fallthru
      _
    // Predicated region
    $region22: #{_lambda_.3} parent=1 // pred_check
      _
    $region23: #{_lambda_.3} parent=1 // pred_check_branch
      %39 = sbr.rel (0) target = $region25
    $region24: #{_lambda_.3} parent=1 // pred_region
      _
    $region25: #{_lambda_.3} parent=1 // pred_fallthru
      _
    // Predicated region
    $region26: #{_lambda_.3} parent=1 // pred_check
      _
    $region27: #{_lambda_.3} parent=1 // pred_check_branch
      %41 = sbr.rel (0) target = $region29
    $region28: #{_lambda_.3} parent=1 // pred_region
      _
    $region29: #{_lambda_.3} parent=1 // pred_fallthru
      _
    // Predicated region
    $region30: #{_lambda_.3} parent=1 // pred_check
      _
    $region31: #{_lambda_.3} parent=1 // pred_check_branch
      %43 = sbr.rel (0) target = $region33
    $region32: #{_lambda_.3} parent=1 // pred_region
      _
    $region33: #{_lambda_.3} parent=1 // pred_fallthru
      _
    // Predicated region
    $region34: #{_lambda_.3} parent=1 // pred_check
      _
    $region35: #{_lambda_.3} parent=1 // pred_check_branch
      %45 = sbr.rel (0) target = $region37
    $region36: #{_lambda_.3} parent=1 // pred_region
      _
    $region37: #{_lambda_.3} parent=1 // pred_fallthru
      _
    // Predicated region
    $region38: #{_lambda_.3} parent=1 // pred_check
      _
    $region39: #{_lambda_.3} parent=1 // pred_check_branch
      %47 = sbr.rel (0) target = $region41
    $region40: #{_lambda_.3} parent=1 // pred_region
      _
    $region41: #{_lambda_.3} parent=1 // pred_fallthru
      _
    // Predicated region
    $region42: #{_lambda_.3} parent=1 // pred_check
      _
    $region43: #{_lambda_.3} parent=1 // pred_check_branch
      %49 = sbr.rel (0) target = $region45
    $region44: #{_lambda_.3} parent=1 // pred_region
      _
    $region45: #{_lambda_.3} parent=1 // pred_fallthru
      _
    // Predicated region
    $region46: #{_lambda_.3} parent=1 // pred_check
      _
    $region47: #{_lambda_.3} parent=1 // pred_check_branch
      %51 = sbr.rel (0) target = $region49
    $region48: #{_lambda_.3} parent=1 // pred_region
      _
    $region49: #{_lambda_.3} parent=1 // pred_fallthru
      _
    // Predicated region
    $region50: #{_lambda_.3} parent=1 // pred_check
      _
    $region51: #{_lambda_.3} parent=1 // pred_check_branch
      %53 = sbr.rel (0) target = $region53
    $region52: #{_lambda_.3} parent=1 // pred_region
      _
    $region53: #{_lambda_.3} parent=1 // pred_fallthru
      _
    // Predicated region
    $region54: #{_lambda_.3} parent=1 // pred_check
      _
    $region55: #{_lambda_.3} parent=1 // pred_check_branch
      %55 = sbr.rel (0) target = $region57
    $region56: #{_lambda_.3} parent=1 // pred_region
      _
    $region57: #{_lambda_.3} parent=1 // pred_fallthru
      _
    // Predicated region
    $region58: #{_lambda_.3} parent=1 // pred_check
      _
    $region59: #{_lambda_.3} parent=1 // pred_check_branch
      %57 = sbr.rel (0) target = $region61
    $region60: #{_lambda_.3} parent=1 // pred_region
      _
    $region61: #{_lambda_.3} parent=1 // pred_fallthru
      _
    // Predicated region
    $region62: #{_lambda_.3} parent=1 // pred_check
      _
    $region63: #{_lambda_.3} parent=1 // pred_check_branch
      %59 = sbr.rel (0) target = $region65
    $region64: #{_lambda_.3} parent=1 // pred_region
      _
    $region65: #{_lambda_.3} parent=1 // pred_fallthru
      _
    // Predicated region
    $region66: #{_lambda_.3} parent=1 // pred_check
      _
    $region67: #{_lambda_.3} parent=1 // pred_check_branch
      %61 = sbr.rel (0) target = $region69
    $region68: #{_lambda_.3} parent=1 // pred_region
      _
    $region69: #{_lambda_.3} parent=1 // pred_fallthru
      _
    %v62 = vld [vmem:[%s0] sm:$0x3]
    %v63 = vld [vmem:[%s1] sm:$0x7]
    %v64 = vld [vmem:[%s2] sm:$0x1]
    %v66 = vlaneseq
    %v67 = vshrl.u32 %v66, 7
    %v68 = vsub.s32 0, %v67
    %v69 = vrot.slane %v64, %v68
    %vm71 = vcmask 23552
    %v73 = vsel %vm71, %v62, 0
    %vm75 = vcmask 1042432
    %v77 = vsel %vm75, %v63, 0
    %79 = vmatprep.subr.mxu0 0.0
    %80 = vmatpush1.msra.mxu0 0.0
    %81 = vmatprep.subr.mxu0 0.0
    %82 = vmatpush1.msra.mxu0 0.0
    %83 = vmatprep.subr.mxu0 0.0
    %84 = vmatpush1.msra.mxu0 0.0
    %85 = vmatprep.subr.mxu0 0.0
    %86 = vmatpush1.msra.mxu0 0.0
    %87 = vmatprep.subr.mxu0 0.0
    %88 = vmatpush1.msra.mxu0 0.0
    %89 = vmatprep.subr.mxu0 0.0
    %90 = vmatpush1.msra.mxu0 0.0
    %91 = vmatprep.subr.mxu0 0.0
    %92 = vmatpush1.msra.mxu0 0.0
    %93 = vmatprep.subr.mxu0 0.0
    %94 = vmatpush1.msra.mxu0 0.0
    %95 = vmatprep.subr.mxu0 0.0
    %96 = vmatpush1.msra.mxu0 0.0
    %97 = vmatprep.subr.mxu0 0.0
    %98 = vmatpush1.msra.mxu0 0.0
    %99 = vmatprep.subr.mxu0 0.0
    %100 = vmatpush1.msra.mxu0 0.0
    %101 = vmatprep.subr.mxu0 0.0
    %102 = vmatpush1.msra.mxu0 0.0
    %103 = vmatprep.subr.mxu0 0.0
    %104 = vmatpush1.msra.mxu0 0.0
    %105 = vmatprep.subr.mxu0 0.0
    %106 = vmatpush1.msra.mxu0 0.0
    %107 = vmatprep.subr.mxu0 0.0
    %108 = vmatpush1.msra.mxu0 0.0
    %109 = vmatprep.subr.mxu0 0.0
    %110 = vmatpush1.msra.mxu0 %v77
    %111 = vmatprep.subr.mxu0 0.0
    %112 = vmatpush2.msra.mxu0 0.0
    %113 = vmatprep.subr.mxu0 0.0
    %114 = vmatpush2.msra.mxu0 0.0
    %115 = vmatprep.subr.mxu0 0.0
    %116 = vmatpush2.msra.mxu0 0.0
    %117 = vmatprep.subr.mxu0 0.0
    %118 = vmatpush2.msra.mxu0 0.0
    %119 = vmatprep.subr.mxu0 0.0
    %120 = vmatpush2.msra.mxu0 0.0
    %121 = vmatprep.subr.mxu0 0.0
    %122 = vmatpush2.msra.mxu0 0.0
    %123 = vmatprep.subr.mxu0 0.0
    %124 = vmatpush2.msra.mxu0 0.0
    %125 = vmatprep.subr.mxu0 0.0
    %126 = vmatpush2.msra.mxu0 0.0
    %127 = vmatprep.subr.mxu0 0.0
    %128 = vmatpush2.msra.mxu0 0.0
    %129 = vmatprep.subr.mxu0 0.0
    %130 = vmatpush2.msra.mxu0 0.0
    %131 = vmatprep.subr.mxu0 0.0
    %132 = vmatpush2.msra.mxu0 0.0
    %133 = vmatprep.subr.mxu0 0.0
    %134 = vmatpush2.msra.mxu0 0.0
    %135 = vmatprep.subr.mxu0 0.0
    %136 = vmatpush2.msra.mxu0 0.0
    %137 = vmatprep.subr.mxu0 0.0
    %138 = vmatpush2.msra.mxu0 0.0
    %139 = vmatprep.subr.mxu0 0.0
    %140 = vmatpush2.msra.mxu0 0.0
    %141 = vmatprep.subr.mxu0 0.0
    %142 = vmatpush2.msra.mxu0 0.0
    %143 = vmatprep.mubr.f32.mxu0 0.0
    %144 = vmatmul.mubr.f32.gmra.mxu0 %v73
    %v145 = vpop.f32.mrf.mxu0
    %v146 = vadd.f32 %v69, %v145
    %v147 = vpop.f32.mrf.mxu0
    %148 = vdwg.mxu0
    %v149 = vld [vmem:[%s3] sm:$0x7]
    %v150 = vld [vmem:[%s4] sm:$0x1]
    %v152 = vlaneseq
    %v153 = vshrl.u32 %v152, 7
    %v154 = vsub.s32 0, %v153
    %v155 = vrot.slane %v150, %v154
    %v158 = vsel %vm75, %v149, 0
    %160 = vmatprep.subr.mxu0 0.0
    %161 = vmatpush1.msra.mxu0 0.0
    %162 = vmatprep.subr.mxu0 0.0
    %163 = vmatpush1.msra.mxu0 0.0
    %164 = vmatprep.subr.mxu0 0.0
    %165 = vmatpush1.msra.mxu0 0.0
    %166 = vmatprep.subr.mxu0 0.0
    %167 = vmatpush1.msra.mxu0 0.0
    %168 = vmatprep.subr.mxu0 0.0
    %169 = vmatpush1.msra.mxu0 0.0
    %170 = vmatprep.subr.mxu0 0.0
    %171 = vmatpush1.msra.mxu0 0.0
    %172 = vmatprep.subr.mxu0 0.0
    %173 = vmatpush1.msra.mxu0 0.0
    %174 = vmatprep.subr.mxu0 0.0
    %175 = vmatpush1.msra.mxu0 0.0
    %176 = vmatprep.subr.mxu0 0.0
    %177 = vmatpush1.msra.mxu0 0.0
    %178 = vmatprep.subr.mxu0 0.0
    %179 = vmatpush1.msra.mxu0 0.0
    %180 = vmatprep.subr.mxu0 0.0
    %181 = vmatpush1.msra.mxu0 0.0
    %182 = vmatprep.subr.mxu0 0.0
    %183 = vmatpush1.msra.mxu0 0.0
    %184 = vmatprep.subr.mxu0 0.0
    %185 = vmatpush1.msra.mxu0 0.0
    %186 = vmatprep.subr.mxu0 0.0
    %187 = vmatpush1.msra.mxu0 0.0
    %188 = vmatprep.subr.mxu0 0.0
    %189 = vmatpush1.msra.mxu0 0.0
    %190 = vmatprep.subr.mxu0 0.0
    %191 = vmatpush1.msra.mxu0 %v158
    %192 = vmatprep.subr.mxu0 0.0
    %193 = vmatpush2.msra.mxu0 0.0
    %194 = vmatprep.subr.mxu0 0.0
    %195 = vmatpush2.msra.mxu0 0.0
    %196 = vmatprep.subr.mxu0 0.0
    %197 = vmatpush2.msra.mxu0 0.0
    %198 = vmatprep.subr.mxu0 0.0
    %199 = vmatpush2.msra.mxu0 0.0
    %200 = vmatprep.subr.mxu0 0.0
    %201 = vmatpush2.msra.mxu0 0.0
    %202 = vmatprep.subr.mxu0 0.0
    %203 = vmatpush2.msra.mxu0 0.0
    %204 = vmatprep.subr.mxu0 0.0
    %205 = vmatpush2.msra.mxu0 0.0
    %206 = vmatprep.subr.mxu0 0.0
    %207 = vmatpush2.msra.mxu0 0.0
    %208 = vmatprep.subr.mxu0 0.0
    %209 = vmatpush2.msra.mxu0 0.0
    %210 = vmatprep.subr.mxu0 0.0
    %211 = vmatpush2.msra.mxu0 0.0
    %212 = vmatprep.subr.mxu0 0.0
    %213 = vmatpush2.msra.mxu0 0.0
    %214 = vmatprep.subr.mxu0 0.0
    %215 = vmatpush2.msra.mxu0 0.0
    %216 = vmatprep.subr.mxu0 0.0
    %217 = vmatpush2.msra.mxu0 0.0
    %218 = vmatprep.subr.mxu0 0.0
    %219 = vmatpush2.msra.mxu0 0.0
    %220 = vmatprep.subr.mxu0 0.0
    %221 = vmatpush2.msra.mxu0 0.0
    %222 = vmatprep.subr.mxu0 0.0
    %223 = vmatpush2.msra.mxu0 0.0
    %224 = vmatprep.mubr.f32.mxu0 0.0
    %225 = vmatmul.mubr.f32.gmra.mxu0 %v73
    %v226 = vpop.f32.mrf.mxu0
    %v227 = vadd.f32 %v155, %v226
    %v228 = vpop.f32.mrf.mxu0
    %229 = vdwg.mxu0
    %v230 = vld [vmem:[%s5] sm:$0xf]
    %v233 = vunpack.c.l.s4 1966171168
    %v234 = vunpack.c.0.s8 %v233
    %v235 = vlaneseq
    %v236 = vshrl.u32 %v235, 7
    %v237 = vsub.s32 %v234, %v236
    %v238 = vrot.slane %v146, %v237
    %v239 = vcombine.high %v238, %v238
    %v241 = vunpack.c.l.s4 1966171168
    %v242 = vunpack.c.0.s8 %v241
    %v243 = vlaneseq
    %v244 = vshrl.u32 %v243, 7
    %v245 = vsub.s32 %v242, %v244
    %v246 = vrot.slane %v238, %v245
    %v248 = vunpack.c.l.s4 1966171168
    %v249 = vunpack.c.0.s8 %v248
    %v250 = vlaneseq
    %v251 = vshrl.u32 %v250, 7
    %v252 = vsub.s32 %v249, %v251
    %v253 = vrot.slane %v239, %v252
    %v254 = vlaneseq
    %v255 = vshrl.u32 %v254, 7
    %v256 = vsub.s32 0, %v255
    %v257 = vrot.slane %v246, %v256
    %v258 = vlaneseq
    %v259 = vshrl.u32 %v258, 7
    %v260 = vsub.s32 0, %v259
    %v261 = vrot.slane %v253, %v260
    %v264 = vadd.f32 %v230, %v257
    %v265 = vadd.f32 %v230, %v261
    %v266 = vld [vmem:[%s6] sm:$0xf]
    %v269 = vunpack.c.l.s4 1966171168
    %v270 = vunpack.c.0.s8 %v269
    %v271 = vlaneseq
    %v272 = vshrl.u32 %v271, 7
    %v273 = vsub.s32 %v270, %v272
    %v274 = vrot.slane %v227, %v273
    %v275 = vcombine.high %v274, %v274
    %v277 = vunpack.c.l.s4 1966171168
    %v278 = vunpack.c.0.s8 %v277
    %v279 = vlaneseq
    %v280 = vshrl.u32 %v279, 7
    %v281 = vsub.s32 %v278, %v280
    %v282 = vrot.slane %v274, %v281
    %v284 = vunpack.c.l.s4 1966171168
    %v285 = vunpack.c.0.s8 %v284
    %v286 = vlaneseq
    %v287 = vshrl.u32 %v286, 7
    %v288 = vsub.s32 %v285, %v287
    %v289 = vrot.slane %v275, %v288
    %v290 = vlaneseq
    %v291 = vshrl.u32 %v290, 7
    %v292 = vsub.s32 0, %v291
    %v293 = vrot.slane %v282, %v292
    %v294 = vlaneseq
    %v295 = vshrl.u32 %v294, 7
    %v296 = vsub.s32 0, %v295
    %v297 = vrot.slane %v289, %v296
    %v300 = vadd.f32 %v266, %v293
    %v301 = vadd.f32 %v266, %v297
    %v302 = vld [vmem:[%s7] sm:$0x1]
    %v304 = vlaneseq
    %v305 = vshrl.u32 %v304, 7
    %v306 = vsub.s32 0, %v305
    %v307 = vrot.slane %v302, %v306
    %v309 = vmul.f32 %v264, %v307
    %v310 = vmul.f32 %v265, %v307
    %vm311 = vcmask 257024
    %v312 = vsel %vm311, %v309, 0.0
    %313 = vadd.xlane.f32.xlu0 %v312
    %v314 = vpop.xlane.xlu0 %313
    %v315 = vsel %vm311, %v310, 0.0
    %316 = vadd.xlane.f32.xlu0 %v315
    %v317 = vpop.xlane.xlu0 %316
    %318 = vrot.lane.b32.xlu0 %v307, 96
    %v319 = vpop.permute.xlu0 %318
    %v321 = vmul.f32 %v300, %v319
    %v322 = vmul.f32 %v301, %v319
    %v323 = vsel %vm311, %v321, 0.0
    %324 = vadd.xlane.f32.xlu0 %v323
    %v325 = vpop.xlane.xlu0 %324
    %v326 = vsel %vm311, %v322, 0.0
    %327 = vadd.xlane.f32.xlu0 %v326
    %v328 = vpop.xlane.xlu0 %327
    %v329 = vadd.f32 %v314, %v325
    %v330 = vadd.f32 %v317, %v328
    %v331 = vld [vmem:[#allocation2] sm:$0x1]
    %v333 = vlaneseq
    %v334 = vshrl.u32 %v333, 7
    %v335 = vsub.s32 0, %v334
    %v336 = vrot.slane %v331, %v335
    %337 = vset.pattern.permute.xlu0 0
    %338 = vperm.xlu0 %337, %v336
    %v339 = vpop.permute.xlu0 %338
    %v341 = vadd.f32 %v329, %v339
    %v342 = vadd.f32 %v330, %v339
    %v345 = vlaneseq
    %v346 = vand.u32 %v345, 127
    %v347 = vlaneseq
    %v348 = vshrl.u32 %v347, 7
    %v349 = vsub.s32 %v346, %v348
    %v350 = vrot.slane %v341, %v349
    %v351 = vlaneseq
    %v352 = vshrl.u32 %v351, 7
    %v353 = vsub.s32 %v346, %v352
    %v354 = vrot.slane %v342, %v353
    %vm355 = vcmask 1041409
    %v356 = vsel %vm355, %v354, %v350
    %vm358 = vcmask 25600
    %v359 = vsel %vm358, %v356, -inf
    %360 = vmax.xlane.f32.xlu0 %v359
    %v361 = vpop.xlane.xlu0 %360
    %v363 = vlaneseq
    %v364 = vshrl.u32 %v363, 7
    %v365 = vsub.s32 0, %v364
    %v366 = vrot.slane %v361, %v365
    %v367 = vlaneseq
    %v368 = vshrl.u32 %v367, 7
    %v369 = vsub.s32 1, %v368
    %v370 = vrot.slane %v361, %v369
    %v373 = vsub.f32 %v341, %v366
    %v374 = vsub.f32 %v342, %v370
    %v375 = vmul.f32 %v373, 1.442695
    %v376 = vpow.pop %v375
    %v377 = vmul.f32 %v374, 1.442695
    %v378 = vpow.pop %v377
    %381 = vset.pattern.permute.xlu0 0
    %382 = vperm.xlu0 %381, %v376
    %v383 = vpop.permute.xlu0 %382
    %384 = vset.pattern.permute.xlu0 0
    %385 = vperm.xlu0 %384, %v378
    %v386 = vpop.permute.xlu0 %385
    %v387 = vlaneseq
    %v388 = vshrl.u32 %v387, 7
    %v389 = vsub.s32 %v346, %v388
    %v390 = vrot.slane %v383, %v389
    %v391 = vlaneseq
    %v392 = vshrl.u32 %v391, 7
    %v393 = vsub.s32 %v346, %v392
    %v394 = vrot.slane %v386, %v393
    %v395 = vsel %vm355, %v394, %v390
    %v397 = vsel %vm358, %v395, 0.0
    %398 = vadd.xlane.f32.xlu0 %v397
    %v399 = vpop.xlane.xlu0 %398
    %v400 = vlog2.pop %v399
    %v401 = vmul.f32 %v400, 0.6931472
    %v403 = vlaneseq
    %v404 = vshrl.u32 %v403, 7
    %v405 = vsub.s32 0, %v404
    %v406 = vrot.slane %v401, %v405
    %v407 = vlaneseq
    %v408 = vshrl.u32 %v407, 7
    %v409 = vsub.s32 1, %v408
    %v410 = vrot.slane %v401, %v409
    %v413 = vsub.f32 %v373, %v406
    %v414 = vsub.f32 %v374, %v410
    %417 = vset.pattern.permute.xlu0 0
    %418 = vperm.xlu0 %417, %v413
    %v419 = vpop.permute.xlu0 %418
    %420 = vset.pattern.permute.xlu0 0
    %421 = vperm.xlu0 %420, %v414
    %v422 = vpop.permute.xlu0 %421
    %v423 = vlaneseq
    %v424 = vshrl.u32 %v423, 7
    %v425 = vsub.s32 %v346, %v424
    %v426 = vrot.slane %v419, %v425
    %v427 = vlaneseq
    %v428 = vshrl.u32 %v427, 7
    %v429 = vsub.s32 %v346, %v428
    %v430 = vrot.slane %v422, %v429
    %v431 = vsel %vm355, %v430, %v426
    %433 = vst.msk [vmem:[#allocation5] sm:$0x3] %vm358, %v431
    %vm434 = vcmp.eq.f32.partialorder %v341, %v366
    %vm435 = vcmp.eq.f32.partialorder %v342, %v370
    %v436 = vcvt.s32.f32 %v346
    %439 = vbcast.lane.b32.xlu0 %v436, 256
    %v440 = vpop.permute.xlu0 %439
    %v442 = vsel %vm434, %v440, 4.0
    %v443 = vsel %vm435, %v440, 4.0
    %446 = vset.pattern.permute.xlu0 0
    %447 = vperm.xlu0 %446, %v442
    %v448 = vpop.permute.xlu0 %447
    %449 = vset.pattern.permute.xlu0 0
    %450 = vperm.xlu0 %449, %v443
    %v451 = vpop.permute.xlu0 %450
    %v452 = vlaneseq
    %v453 = vshrl.u32 %v452, 7
    %v454 = vsub.s32 %v346, %v453
    %v455 = vrot.slane %v448, %v454
    %v456 = vlaneseq
    %v457 = vshrl.u32 %v456, 7
    %v458 = vsub.s32 %v346, %v457
    %v459 = vrot.slane %v451, %v458
    %v460 = vsel %vm355, %v459, %v455
    %v462 = vsel %vm358, %v460, inf
    %463 = vmin.xlane.f32.xlu0 %v462
    %v464 = vpop.xlane.xlu0 %463
    %v465 = vcvt.f32.s32.to.zero.pseudo %v464
    %v466 = vld [vmem:[%s9] sm:$0x3]
    %vm467 = vcmp.ge.s32.totalorder %v466, 0
    %v468 = vsel %vm467, %v466, %v465
    %469 = vset.pattern.permute.xlu0 0
    %470 = vperm.xlu0 %469, %v468
    %v471 = vpop.permute.xlu0 %470
    %vm472 = vcmp.eq.s32.totalorder %v346, %v471
    %v473 = vsel %vm472, 1, 0
    %v474 = vcvt.s32.f32 %v473
    %v475 = vlaneseq
    %v476 = vshrl.u32 %v475, 7
    %v477 = vsub.s32 0, %v476
    %v478 = vrot.slane %v474, %v477
    %480 = vbcast.lane.b32.xlu0 %v478, 256
    %v481 = vpop.permute.xlu0 %480
    %v482 = vlaneseq
    %v483 = vshrl.u32 %v482, 7
    %v484 = vsub.s32 1, %v483
    %v485 = vrot.slane %v474, %v484
    %487 = vbcast.lane.b32.xlu0 %v485, 256
    %v488 = vpop.permute.xlu0 %487
    %v489 = vmul.f32 %v481, %v264
    %v490 = vmul.f32 %v488, %v265
    %v491 = vsel %vm311, %v489, 0.0
    %v492 = vrot.slane %v491, 4
    %v493 = vadd.f32 %v491, %v492
    %v494 = vrot.slane %v493, 2
    %v495 = vadd.f32 %v493, %v494
    %v496 = vrot.slane %v495, 1
    %v497 = vadd.f32 %v495, %v496
    %v498 = vsel %vm311, %v490, 0.0
    %v499 = vrot.slane %v498, 4
    %v500 = vadd.f32 %v498, %v499
    %v501 = vrot.slane %v500, 2
    %v502 = vadd.f32 %v500, %v501
    %v503 = vrot.slane %v502, 1
    %v504 = vadd.f32 %v502, %v503
    %v505 = vmul.f32 %v481, %v300
    %v506 = vmul.f32 %v488, %v301
    %v507 = vsel %vm311, %v505, 0.0
    %v508 = vrot.slane %v507, 4
    %v509 = vadd.f32 %v507, %v508
    %v510 = vrot.slane %v509, 2
    %v511 = vadd.f32 %v509, %v510
    %v512 = vrot.slane %v511, 1
    %v513 = vadd.f32 %v511, %v512
    %v514 = vsel %vm311, %v506, 0.0
    %v515 = vrot.slane %v514, 4
    %v516 = vadd.f32 %v514, %v515
    %v517 = vrot.slane %v516, 2
    %v518 = vadd.f32 %v516, %v517
    %v519 = vrot.slane %v518, 1
    %v520 = vadd.f32 %v518, %v519
    %v521 = vld [vmem:[%s10] sm:$0xff]
    %v522 = vld [vmem:[%s10 + $0x8] sm:$0xff]
    %v523 = vld [vmem:[%s10 + $0x10] sm:$0xff]
    %v524 = vld [vmem:[%s10 + $0x18] sm:$0xff]
    %v525 = vld [vmem:[%s10 + $0x20] sm:$0xff]
    %v526 = vld [vmem:[%s10 + $0x28] sm:$0xff]
    %v527 = vld [vmem:[%s10 + $0x30] sm:$0xff]
    %v528 = vld [vmem:[%s10 + $0x38] sm:$0xff]
    %v529 = vld [vmem:[%s10 + $0x40] sm:$0xff]
    %v530 = vld [vmem:[%s10 + $0x48] sm:$0xff]
    %v531 = vld [vmem:[%s10 + $0x50] sm:$0xff]
    %v532 = vld [vmem:[%s10 + $0x58] sm:$0xff]
    %v533 = vld [vmem:[%s10 + $0x60] sm:$0xff]
    %v534 = vld [vmem:[%s10 + $0x68] sm:$0xff]
    %v535 = vld [vmem:[%s10 + $0x70] sm:$0xff]
    %v536 = vld [vmem:[%s10 + $0x78] sm:$0xff]
    %v537 = vld [vmem:[%s10 + $0x80] sm:$0xff]
    %v538 = vld [vmem:[%s10 + $0x88] sm:$0xff]
    %v539 = vld [vmem:[%s10 + $0x90] sm:$0xff]
    %v540 = vld [vmem:[%s10 + $0x98] sm:$0xff]
    %v541 = vld [vmem:[%s10 + $0xa0] sm:$0xff]
    %v542 = vld [vmem:[%s10 + $0xa8] sm:$0xff]
    %v543 = vld [vmem:[%s10 + $0xb0] sm:$0xff]
    %v544 = vld [vmem:[%s10 + $0xb8] sm:$0xff]
    %v545 = vld [vmem:[%s10 + $0xc0] sm:$0xff]
    %v546 = vld [vmem:[%s10 + $0xc8] sm:$0xff]
    %v547 = vld [vmem:[%s10 + $0xd0] sm:$0xff]
    %v548 = vld [vmem:[%s10 + $0xd8] sm:$0xff]
    %v549 = vld [vmem:[%s10 + $0xe0] sm:$0xff]
    %v550 = vld [vmem:[%s10 + $0xe8] sm:$0xff]
    %v551 = vld [vmem:[%s10 + $0xf0] sm:$0xff]
    %v552 = vld [vmem:[%s10 + $0xf8] sm:$0xff]
    %v553 = vld [vmem:[%s11] sm:$0xff]
    %v555 = vlaneseq
    %v556 = vshrl.u32 %v555, 7
    %v557 = vsub.s32 0, %v556
    %v558 = vrot.slane %v553, %v557
    %v559 = vlaneseq
    %v560 = vshrl.u32 %v559, 7
    %v561 = vsub.s32 1, %v560
    %v562 = vrot.slane %v553, %v561
    %v563 = vlaneseq
    %v564 = vshrl.u32 %v563, 7
    %v565 = vsub.s32 2, %v564
    %v566 = vrot.slane %v553, %v565
    %v567 = vlaneseq
    %v568 = vshrl.u32 %v567, 7
    %v569 = vsub.s32 3, %v568
    %v570 = vrot.slane %v553, %v569
    %v571 = vlaneseq
    %v572 = vshrl.u32 %v571, 7
    %v573 = vsub.s32 4, %v572
    %v574 = vrot.slane %v553, %v573
    %v575 = vlaneseq
    %v576 = vshrl.u32 %v575, 7
    %v577 = vsub.s32 5, %v576
    %v578 = vrot.slane %v553, %v577
    %v579 = vlaneseq
    %v580 = vshrl.u32 %v579, 7
    %v581 = vsub.s32 6, %v580
    %v582 = vrot.slane %v553, %v581
    %v583 = vlaneseq
    %v584 = vshrl.u32 %v583, 7
    %v585 = vsub.s32 7, %v584
    %v586 = vrot.slane %v553, %v585
    %v597 = vsel %vm355, %v504, %v497
    %vm598 = vcmask 261120
    %v599 = vsel %vm598, %v597, 0
    %601 = vmatprep.subr.mxu0 0.0
    %602 = vmatpush1.msra.mxu0 0.0
    %603 = vmatprep.subr.mxu0 0.0
    %604 = vmatpush1.msra.mxu0 0.0
    %605 = vmatprep.subr.mxu0 0.0
    %606 = vmatpush1.msra.mxu0 0.0
    %607 = vmatprep.subr.mxu0 0.0
    %608 = vmatpush1.msra.mxu0 0.0
    %609 = vmatprep.subr.mxu0 0.0
    %610 = vmatpush1.msra.mxu0 0.0
    %611 = vmatprep.subr.mxu0 0.0
    %612 = vmatpush1.msra.mxu0 0.0
    %613 = vmatprep.subr.mxu0 0.0
    %614 = vmatpush1.msra.mxu0 0.0
    %615 = vmatprep.subr.mxu0 0.0
    %616 = vmatpush1.msra.mxu0 0.0
    %617 = vmatprep.subr.mxu0 0.0
    %618 = vmatpush1.msra.mxu0 0.0
    %619 = vmatprep.subr.mxu0 0.0
    %620 = vmatpush1.msra.mxu0 0.0
    %621 = vmatprep.subr.mxu0 0.0
    %622 = vmatpush1.msra.mxu0 0.0
    %623 = vmatprep.subr.mxu0 0.0
    %624 = vmatpush1.msra.mxu0 0.0
    %625 = vmatprep.subr.mxu0 %v546
    %626 = vmatpush1.msra.mxu0 %v545
    %627 = vmatprep.subr.mxu0 %v538
    %628 = vmatpush1.msra.mxu0 %v537
    %629 = vmatprep.subr.mxu0 %v530
    %630 = vmatpush1.msra.mxu0 %v529
    %631 = vmatprep.subr.mxu0 %v522
    %632 = vmatpush1.msra.mxu0 %v521
    %633 = vmatprep.subr.mxu0 0.0
    %634 = vmatpush2.msra.mxu0 0.0
    %635 = vmatprep.subr.mxu0 0.0
    %636 = vmatpush2.msra.mxu0 0.0
    %637 = vmatprep.subr.mxu0 0.0
    %638 = vmatpush2.msra.mxu0 0.0
    %639 = vmatprep.subr.mxu0 0.0
    %640 = vmatpush2.msra.mxu0 0.0
    %641 = vmatprep.subr.mxu0 0.0
    %642 = vmatpush2.msra.mxu0 0.0
    %643 = vmatprep.subr.mxu0 0.0
    %644 = vmatpush2.msra.mxu0 0.0
    %645 = vmatprep.subr.mxu0 0.0
    %646 = vmatpush2.msra.mxu0 0.0
    %647 = vmatprep.subr.mxu0 0.0
    %648 = vmatpush2.msra.mxu0 0.0
    %649 = vmatprep.subr.mxu0 0.0
    %650 = vmatpush2.msra.mxu0 0.0
    %651 = vmatprep.subr.mxu0 0.0
    %652 = vmatpush2.msra.mxu0 0.0
    %653 = vmatprep.subr.mxu0 0.0
    %654 = vmatpush2.msra.mxu0 0.0
    %655 = vmatprep.subr.mxu0 0.0
    %656 = vmatpush2.msra.mxu0 0.0
    %657 = vmatprep.subr.mxu0 0.0
    %658 = vmatpush2.msra.mxu0 0.0
    %659 = vmatprep.subr.mxu0 0.0
    %660 = vmatpush2.msra.mxu0 0.0
    %661 = vmatprep.subr.mxu0 0.0
    %662 = vmatpush2.msra.mxu0 0.0
    %663 = vmatprep.subr.mxu0 0.0
    %664 = vmatpush2.msra.mxu0 0.0
    %665 = vmatprep.mubr.f32.mxu0 0.0
    %666 = vmatmul.mubr.f32.gmra.mxu0 %v599
    %v667 = vpop.f32.mrf.mxu0
    %v668 = vadd.f32 %v558, %v667
    %v669 = vpop.f32.mrf.mxu0
    %v670 = vadd.f32 %v562, %v669
    %671 = vdwg.mxu0
    %672 = vmatprep.subr.mxu0 0.0
    %673 = vmatpush1.msra.mxu0 0.0
    %674 = vmatprep.subr.mxu0 0.0
    %675 = vmatpush1.msra.mxu0 0.0
    %676 = vmatprep.subr.mxu0 0.0
    %677 = vmatpush1.msra.mxu0 0.0
    %678 = vmatprep.subr.mxu0 0.0
    %679 = vmatpush1.msra.mxu0 0.0
    %680 = vmatprep.subr.mxu0 0.0
    %681 = vmatpush1.msra.mxu0 0.0
    %682 = vmatprep.subr.mxu0 0.0
    %683 = vmatpush1.msra.mxu0 0.0
    %684 = vmatprep.subr.mxu0 0.0
    %685 = vmatpush1.msra.mxu0 0.0
    %686 = vmatprep.subr.mxu0 0.0
    %687 = vmatpush1.msra.mxu0 0.0
    %688 = vmatprep.subr.mxu0 0.0
    %689 = vmatpush1.msra.mxu0 0.0
    %690 = vmatprep.subr.mxu0 0.0
    %691 = vmatpush1.msra.mxu0 0.0
    %692 = vmatprep.subr.mxu0 0.0
    %693 = vmatpush1.msra.mxu0 0.0
    %694 = vmatprep.subr.mxu0 0.0
    %695 = vmatpush1.msra.mxu0 0.0
    %696 = vmatprep.subr.mxu0 %v548
    %697 = vmatpush1.msra.mxu0 %v547
    %698 = vmatprep.subr.mxu0 %v540
    %699 = vmatpush1.msra.mxu0 %v539
    %700 = vmatprep.subr.mxu0 %v532
    %701 = vmatpush1.msra.mxu0 %v531
    %702 = vmatprep.subr.mxu0 %v524
    %703 = vmatpush1.msra.mxu0 %v523
    %704 = vmatprep.subr.mxu0 0.0
    %705 = vmatpush2.msra.mxu0 0.0
    %706 = vmatprep.subr.mxu0 0.0
    %707 = vmatpush2.msra.mxu0 0.0
    %708 = vmatprep.subr.mxu0 0.0
    %709 = vmatpush2.msra.mxu0 0.0
    %710 = vmatprep.subr.mxu0 0.0
    %711 = vmatpush2.msra.mxu0 0.0
    %712 = vmatprep.subr.mxu0 0.0
    %713 = vmatpush2.msra.mxu0 0.0
    %714 = vmatprep.subr.mxu0 0.0
    %715 = vmatpush2.msra.mxu0 0.0
    %716 = vmatprep.subr.mxu0 0.0
    %717 = vmatpush2.msra.mxu0 0.0
    %718 = vmatprep.subr.mxu0 0.0
    %719 = vmatpush2.msra.mxu0 0.0
    %720 = vmatprep.subr.mxu0 0.0
    %721 = vmatpush2.msra.mxu0 0.0
    %722 = vmatprep.subr.mxu0 0.0
    %723 = vmatpush2.msra.mxu0 0.0
    %724 = vmatprep.subr.mxu0 0.0
    %725 = vmatpush2.msra.mxu0 0.0
    %726 = vmatprep.subr.mxu0 0.0
    %727 = vmatpush2.msra.mxu0 0.0
    %728 = vmatprep.subr.mxu0 0.0
    %729 = vmatpush2.msra.mxu0 0.0
    %730 = vmatprep.subr.mxu0 0.0
    %731 = vmatpush2.msra.mxu0 0.0
    %732 = vmatprep.subr.mxu0 0.0
    %733 = vmatpush2.msra.mxu0 0.0
    %734 = vmatprep.subr.mxu0 0.0
    %735 = vmatpush2.msra.mxu0 0.0
    %736 = vmatprep.mubr.f32.mxu0 0.0
    %737 = vmatmul.mubr.f32.gmra.mxu0 %v599
    %v738 = vpop.f32.mrf.mxu0
    %v739 = vadd.f32 %v566, %v738
    %v740 = vpop.f32.mrf.mxu0
    %v741 = vadd.f32 %v570, %v740
    %742 = vdwg.mxu0
    %743 = vmatprep.subr.mxu0 0.0
    %744 = vmatpush1.msra.mxu0 0.0
    %745 = vmatprep.subr.mxu0 0.0
    %746 = vmatpush1.msra.mxu0 0.0
    %747 = vmatprep.subr.mxu0 0.0
    %748 = vmatpush1.msra.mxu0 0.0
    %749 = vmatprep.subr.mxu0 0.0
    %750 = vmatpush1.msra.mxu0 0.0
    %751 = vmatprep.subr.mxu0 0.0
    %752 = vmatpush1.msra.mxu0 0.0
    %753 = vmatprep.subr.mxu0 0.0
    %754 = vmatpush1.msra.mxu0 0.0
    %755 = vmatprep.subr.mxu0 0.0
    %756 = vmatpush1.msra.mxu0 0.0
    %757 = vmatprep.subr.mxu0 0.0
    %758 = vmatpush1.msra.mxu0 0.0
    %759 = vmatprep.subr.mxu0 0.0
    %760 = vmatpush1.msra.mxu0 0.0
    %761 = vmatprep.subr.mxu0 0.0
    %762 = vmatpush1.msra.mxu0 0.0
    %763 = vmatprep.subr.mxu0 0.0
    %764 = vmatpush1.msra.mxu0 0.0
    %765 = vmatprep.subr.mxu0 0.0
    %766 = vmatpush1.msra.mxu0 0.0
    %767 = vmatprep.subr.mxu0 %v550
    %768 = vmatpush1.msra.mxu0 %v549
    %769 = vmatprep.subr.mxu0 %v542
    %770 = vmatpush1.msra.mxu0 %v541
    %771 = vmatprep.subr.mxu0 %v534
    %772 = vmatpush1.msra.mxu0 %v533
    %773 = vmatprep.subr.mxu0 %v526
    %774 = vmatpush1.msra.mxu0 %v525
    %775 = vmatprep.subr.mxu0 0.0
    %776 = vmatpush2.msra.mxu0 0.0
    %777 = vmatprep.subr.mxu0 0.0
    %778 = vmatpush2.msra.mxu0 0.0
    %779 = vmatprep.subr.mxu0 0.0
    %780 = vmatpush2.msra.mxu0 0.0
    %781 = vmatprep.subr.mxu0 0.0
    %782 = vmatpush2.msra.mxu0 0.0
    %783 = vmatprep.subr.mxu0 0.0
    %784 = vmatpush2.msra.mxu0 0.0
    %785 = vmatprep.subr.mxu0 0.0
    %786 = vmatpush2.msra.mxu0 0.0
    %787 = vmatprep.subr.mxu0 0.0
    %788 = vmatpush2.msra.mxu0 0.0
    %789 = vmatprep.subr.mxu0 0.0
    %790 = vmatpush2.msra.mxu0 0.0
    %791 = vmatprep.subr.mxu0 0.0
    %792 = vmatpush2.msra.mxu0 0.0
    %793 = vmatprep.subr.mxu0 0.0
    %794 = vmatpush2.msra.mxu0 0.0
    %795 = vmatprep.subr.mxu0 0.0
    %796 = vmatpush2.msra.mxu0 0.0
    %797 = vmatprep.subr.mxu0 0.0
    %798 = vmatpush2.msra.mxu0 0.0
    %799 = vmatprep.subr.mxu0 0.0
    %800 = vmatpush2.msra.mxu0 0.0
    %801 = vmatprep.subr.mxu0 0.0
    %802 = vmatpush2.msra.mxu0 0.0
    %803 = vmatprep.subr.mxu0 0.0
    %804 = vmatpush2.msra.mxu0 0.0
    %805 = vmatprep.subr.mxu0 0.0
    %806 = vmatpush2.msra.mxu0 0.0
    %807 = vmatprep.mubr.f32.mxu0 0.0
    %808 = vmatmul.mubr.f32.gmra.mxu0 %v599
    %v809 = vpop.f32.mrf.mxu0
    %v810 = vadd.f32 %v574, %v809
    %v811 = vpop.f32.mrf.mxu0
    %v812 = vadd.f32 %v578, %v811
    %813 = vdwg.mxu0
    %814 = vmatprep.subr.mxu0 0.0
    %815 = vmatpush1.msra.mxu0 0.0
    %816 = vmatprep.subr.mxu0 0.0
    %817 = vmatpush1.msra.mxu0 0.0
    %818 = vmatprep.subr.mxu0 0.0
    %819 = vmatpush1.msra.mxu0 0.0
    %820 = vmatprep.subr.mxu0 0.0
    %821 = vmatpush1.msra.mxu0 0.0
    %822 = vmatprep.subr.mxu0 0.0
    %823 = vmatpush1.msra.mxu0 0.0
    %824 = vmatprep.subr.mxu0 0.0
    %825 = vmatpush1.msra.mxu0 0.0
    %826 = vmatprep.subr.mxu0 0.0
    %827 = vmatpush1.msra.mxu0 0.0
    %828 = vmatprep.subr.mxu0 0.0
    %829 = vmatpush1.msra.mxu0 0.0
    %830 = vmatprep.subr.mxu0 0.0
    %831 = vmatpush1.msra.mxu0 0.0
    %832 = vmatprep.subr.mxu0 0.0
    %833 = vmatpush1.msra.mxu0 0.0
    %834 = vmatprep.subr.mxu0 0.0
    %835 = vmatpush1.msra.mxu0 0.0
    %836 = vmatprep.subr.mxu0 0.0
    %837 = vmatpush1.msra.mxu0 0.0
    %838 = vmatprep.subr.mxu0 %v552
    %839 = vmatpush1.msra.mxu0 %v551
    %840 = vmatprep.subr.mxu0 %v544
    %841 = vmatpush1.msra.mxu0 %v543
    %842 = vmatprep.subr.mxu0 %v536
    %843 = vmatpush1.msra.mxu0 %v535
    %844 = vmatprep.subr.mxu0 %v528
    %845 = vmatpush1.msra.mxu0 %v527
    %846 = vmatprep.subr.mxu0 0.0
    %847 = vmatpush2.msra.mxu0 0.0
    %848 = vmatprep.subr.mxu0 0.0
    %849 = vmatpush2.msra.mxu0 0.0
    %850 = vmatprep.subr.mxu0 0.0
    %851 = vmatpush2.msra.mxu0 0.0
    %852 = vmatprep.subr.mxu0 0.0
    %853 = vmatpush2.msra.mxu0 0.0
    %854 = vmatprep.subr.mxu0 0.0
    %855 = vmatpush2.msra.mxu0 0.0
    %856 = vmatprep.subr.mxu0 0.0
    %857 = vmatpush2.msra.mxu0 0.0
    %858 = vmatprep.subr.mxu0 0.0
    %859 = vmatpush2.msra.mxu0 0.0
    %860 = vmatprep.subr.mxu0 0.0
    %861 = vmatpush2.msra.mxu0 0.0
    %862 = vmatprep.subr.mxu0 0.0
    %863 = vmatpush2.msra.mxu0 0.0
    %864 = vmatprep.subr.mxu0 0.0
    %865 = vmatpush2.msra.mxu0 0.0
    %866 = vmatprep.subr.mxu0 0.0
    %867 = vmatpush2.msra.mxu0 0.0
    %868 = vmatprep.subr.mxu0 0.0
    %869 = vmatpush2.msra.mxu0 0.0
    %870 = vmatprep.subr.mxu0 0.0
    %871 = vmatpush2.msra.mxu0 0.0
    %872 = vmatprep.subr.mxu0 0.0
    %873 = vmatpush2.msra.mxu0 0.0
    %874 = vmatprep.subr.mxu0 0.0
    %875 = vmatpush2.msra.mxu0 0.0
    %876 = vmatprep.subr.mxu0 0.0
    %877 = vmatpush2.msra.mxu0 0.0
    %878 = vmatprep.mubr.f32.mxu0 0.0
    %879 = vmatmul.mubr.f32.gmra.mxu0 %v599
    %v880 = vpop.f32.mrf.mxu0
    %v881 = vadd.f32 %v582, %v880
    %v882 = vpop.f32.mrf.mxu0
    %v883 = vadd.f32 %v586, %v882
    %884 = vdwg.mxu0
    %v885 = vmul.f32 %v668, 0.5
    %v886 = vmul.f32 %v670, 0.5
    %v887 = vmul.f32 %v739, 0.5
    %v888 = vmul.f32 %v741, 0.5
    %v889 = vmul.f32 %v810, 0.5
    %v890 = vmul.f32 %v812, 0.5
    %v891 = vmul.f32 %v881, 0.5
    %v892 = vmul.f32 %v883, 0.5
    %v893 = vmul.f32 %v668, 0.044715
    %v894 = vmul.f32 %v670, 0.044715
    %v895 = vmul.f32 %v739, 0.044715
    %v896 = vmul.f32 %v741, 0.044715
    %v897 = vmul.f32 %v810, 0.044715
    %v898 = vmul.f32 %v812, 0.044715
    %v899 = vmul.f32 %v881, 0.044715
    %v900 = vmul.f32 %v883, 0.044715
    %v901 = vmul.f32 %v893, %v668
    %v902 = vmul.f32 %v894, %v670
    %v903 = vmul.f32 %v895, %v739
    %v904 = vmul.f32 %v896, %v741
    %v905 = vmul.f32 %v897, %v810
    %v906 = vmul.f32 %v898, %v812
    %v907 = vmul.f32 %v899, %v881
    %v908 = vmul.f32 %v900, %v883
    %v909 = vmul.f32 %v901, %v668
    %v910 = vmul.f32 %v902, %v670
    %v911 = vmul.f32 %v903, %v739
    %v912 = vmul.f32 %v904, %v741
    %v913 = vmul.f32 %v905, %v810
    %v914 = vmul.f32 %v906, %v812
    %v915 = vmul.f32 %v907, %v881
    %v916 = vmul.f32 %v908, %v883
    %v917 = vadd.f32 %v668, %v909
    %v918 = vadd.f32 %v670, %v910
    %v919 = vadd.f32 %v739, %v911
    %v920 = vadd.f32 %v741, %v912
    %v921 = vadd.f32 %v810, %v913
    %v922 = vadd.f32 %v812, %v914
    %v923 = vadd.f32 %v881, %v915
    %v924 = vadd.f32 %v883, %v916
    %v925 = vmul.f32 %v917, 0.7978846
    %v926 = vmul.f32 %v918, 0.7978846
    %v927 = vmul.f32 %v919, 0.7978846
    %v928 = vmul.f32 %v920, 0.7978846
    %v929 = vmul.f32 %v921, 0.7978846
    %v930 = vmul.f32 %v922, 0.7978846
    %v931 = vmul.f32 %v923, 0.7978846
    %v932 = vmul.f32 %v924, 0.7978846
    %v933 = vtanh.pop %v925
    %v934 = vtanh.pop %v926
    %v935 = vtanh.pop %v927
    %v936 = vtanh.pop %v928
    %v937 = vtanh.pop %v929
    %v938 = vtanh.pop %v930
    %v939 = vtanh.pop %v931
    %v940 = vtanh.pop %v932
    %v941 = vadd.f32 %v933, 1.0
    %v942 = vadd.f32 %v934, 1.0
    %v943 = vadd.f32 %v935, 1.0
    %v944 = vadd.f32 %v936, 1.0
    %v945 = vadd.f32 %v937, 1.0
    %v946 = vadd.f32 %v938, 1.0
    %v947 = vadd.f32 %v939, 1.0
    %v948 = vadd.f32 %v940, 1.0
    %v949 = vmul.f32 %v885, %v941
    %v950 = vmul.f32 %v886, %v942
    %v951 = vmul.f32 %v887, %v943
    %v952 = vmul.f32 %v888, %v944
    %v953 = vmul.f32 %v889, %v945
    %v954 = vmul.f32 %v890, %v946
    %v955 = vmul.f32 %v891, %v947
    %v956 = vmul.f32 %v892, %v948
    %958 = vset.pattern.permute.xlu0 0
    %959 = vperm.xlu0 %958, %v474
    %v960 = vpop.permute.xlu0 %959
    %v962 = vmul.f32 %v960, %v949
    %v963 = vmul.f32 %v960, %v950
    %v964 = vmul.f32 %v960, %v951
    %v965 = vmul.f32 %v960, %v952
    %v966 = vmul.f32 %v960, %v953
    %v967 = vmul.f32 %v960, %v954
    %v968 = vmul.f32 %v960, %v955
    %v969 = vmul.f32 %v960, %v956
    %v970 = vadd.f32 %v962, 0.0
    %v971 = vadd.f32 %v963, 0.0
    %v972 = vadd.f32 %v964, 0.0
    %v973 = vadd.f32 %v965, 0.0
    %v974 = vadd.f32 %v966, 0.0
    %v975 = vadd.f32 %v967, 0.0
    %v976 = vadd.f32 %v968, 0.0
    %v977 = vadd.f32 %v969, 0.0
    %v978 = vld [vmem:[%s12] sm:$0xff]
    %v979 = vld [vmem:[%s12 + $0x8] sm:$0xff]
    %v980 = vld [vmem:[%s12 + $0x10] sm:$0xff]
    %v981 = vld [vmem:[%s12 + $0x18] sm:$0xff]
    %v982 = vld [vmem:[%s12 + $0x20] sm:$0xff]
    %v983 = vld [vmem:[%s12 + $0x28] sm:$0xff]
    %v984 = vld [vmem:[%s12 + $0x30] sm:$0xff]
    %v985 = vld [vmem:[%s12 + $0x38] sm:$0xff]
    %v986 = vld [vmem:[%s12 + $0x40] sm:$0xff]
    %v987 = vld [vmem:[%s12 + $0x48] sm:$0xff]
    %v988 = vld [vmem:[%s12 + $0x50] sm:$0xff]
    %v989 = vld [vmem:[%s12 + $0x58] sm:$0xff]
    %v990 = vld [vmem:[%s12 + $0x60] sm:$0xff]
    %v991 = vld [vmem:[%s12 + $0x68] sm:$0xff]
    %v992 = vld [vmem:[%s12 + $0x70] sm:$0xff]
    %v993 = vld [vmem:[%s12 + $0x78] sm:$0xff]
    %v994 = vld [vmem:[%s12 + $0x80] sm:$0xff]
    %v995 = vld [vmem:[%s12 + $0x88] sm:$0xff]
    %v996 = vld [vmem:[%s12 + $0x90] sm:$0xff]
    %v997 = vld [vmem:[%s12 + $0x98] sm:$0xff]
    %v998 = vld [vmem:[%s12 + $0xa0] sm:$0xff]
    %v999 = vld [vmem:[%s12 + $0xa8] sm:$0xff]
    %v1000 = vld [vmem:[%s12 + $0xb0] sm:$0xff]
    %v1001 = vld [vmem:[%s12 + $0xb8] sm:$0xff]
    %v1002 = vld [vmem:[%s12 + $0xc0] sm:$0xff]
    %v1003 = vld [vmem:[%s12 + $0xc8] sm:$0xff]
    %v1004 = vld [vmem:[%s12 + $0xd0] sm:$0xff]
    %v1005 = vld [vmem:[%s12 + $0xd8] sm:$0xff]
    %v1006 = vld [vmem:[%s12 + $0xe0] sm:$0xff]
    %v1007 = vld [vmem:[%s12 + $0xe8] sm:$0xff]
    %v1008 = vld [vmem:[%s12 + $0xf0] sm:$0xff]
    %v1009 = vld [vmem:[%s12 + $0xf8] sm:$0xff]
    %v1010 = vld [vmem:[%s13] sm:$0xff]
    %v1012 = vlaneseq
    %v1013 = vshrl.u32 %v1012, 7
    %v1014 = vsub.s32 0, %v1013
    %v1015 = vrot.slane %v1010, %v1014
    %v1016 = vlaneseq
    %v1017 = vshrl.u32 %v1016, 7
    %v1018 = vsub.s32 1, %v1017
    %v1019 = vrot.slane %v1010, %v1018
    %v1020 = vlaneseq
    %v1021 = vshrl.u32 %v1020, 7
    %v1022 = vsub.s32 2, %v1021
    %v1023 = vrot.slane %v1010, %v1022
    %v1024 = vlaneseq
    %v1025 = vshrl.u32 %v1024, 7
    %v1026 = vsub.s32 3, %v1025
    %v1027 = vrot.slane %v1010, %v1026
    %v1028 = vlaneseq
    %v1029 = vshrl.u32 %v1028, 7
    %v1030 = vsub.s32 4, %v1029
    %v1031 = vrot.slane %v1010, %v1030
    %v1032 = vlaneseq
    %v1033 = vshrl.u32 %v1032, 7
    %v1034 = vsub.s32 5, %v1033
    %v1035 = vrot.slane %v1010, %v1034
    %v1036 = vlaneseq
    %v1037 = vshrl.u32 %v1036, 7
    %v1038 = vsub.s32 6, %v1037
    %v1039 = vrot.slane %v1010, %v1038
    %v1040 = vlaneseq
    %v1041 = vshrl.u32 %v1040, 7
    %v1042 = vsub.s32 7, %v1041
    %v1043 = vrot.slane %v1010, %v1042
    %v1054 = vsel %vm355, %v520, %v513
    %v1055 = vsel %vm598, %v1054, 0
    %1057 = vmatprep.subr.mxu0 0.0
    %1058 = vmatpush1.msra.mxu0 0.0
    %1059 = vmatprep.subr.mxu0 0.0
    %1060 = vmatpush1.msra.mxu0 0.0
    %1061 = vmatprep.subr.mxu0 0.0
    %1062 = vmatpush1.msra.mxu0 0.0
    %1063 = vmatprep.subr.mxu0 0.0
    %1064 = vmatpush1.msra.mxu0 0.0
    %1065 = vmatprep.subr.mxu0 0.0
    %1066 = vmatpush1.msra.mxu0 0.0
    %1067 = vmatprep.subr.mxu0 0.0
    %1068 = vmatpush1.msra.mxu0 0.0
    %1069 = vmatprep.subr.mxu0 0.0
    %1070 = vmatpush1.msra.mxu0 0.0
    %1071 = vmatprep.subr.mxu0 0.0
    %1072 = vmatpush1.msra.mxu0 0.0
    %1073 = vmatprep.subr.mxu0 0.0
    %1074 = vmatpush1.msra.mxu0 0.0
    %1075 = vmatprep.subr.mxu0 0.0
    %1076 = vmatpush1.msra.mxu0 0.0
    %1077 = vmatprep.subr.mxu0 0.0
    %1078 = vmatpush1.msra.mxu0 0.0
    %1079 = vmatprep.subr.mxu0 0.0
    %1080 = vmatpush1.msra.mxu0 0.0
    %1081 = vmatprep.subr.mxu0 %v1003
    %1082 = vmatpush1.msra.mxu0 %v1002
    %1083 = vmatprep.subr.mxu0 %v995
    %1084 = vmatpush1.msra.mxu0 %v994
    %1085 = vmatprep.subr.mxu0 %v987
    %1086 = vmatpush1.msra.mxu0 %v986
    %1087 = vmatprep.subr.mxu0 %v979
    %1088 = vmatpush1.msra.mxu0 %v978
    %1089 = vmatprep.subr.mxu0 0.0
    %1090 = vmatpush2.msra.mxu0 0.0
    %1091 = vmatprep.subr.mxu0 0.0
    %1092 = vmatpush2.msra.mxu0 0.0
    %1093 = vmatprep.subr.mxu0 0.0
    %1094 = vmatpush2.msra.mxu0 0.0
    %1095 = vmatprep.subr.mxu0 0.0
    %1096 = vmatpush2.msra.mxu0 0.0
    %1097 = vmatprep.subr.mxu0 0.0
    %1098 = vmatpush2.msra.mxu0 0.0
    %1099 = vmatprep.subr.mxu0 0.0
    %1100 = vmatpush2.msra.mxu0 0.0
    %1101 = vmatprep.subr.mxu0 0.0
    %1102 = vmatpush2.msra.mxu0 0.0
    %1103 = vmatprep.subr.mxu0 0.0
    %1104 = vmatpush2.msra.mxu0 0.0
    %1105 = vmatprep.subr.mxu0 0.0
    %1106 = vmatpush2.msra.mxu0 0.0
    %1107 = vmatprep.subr.mxu0 0.0
    %1108 = vmatpush2.msra.mxu0 0.0
    %1109 = vmatprep.subr.mxu0 0.0
    %1110 = vmatpush2.msra.mxu0 0.0
    %1111 = vmatprep.subr.mxu0 0.0
    %1112 = vmatpush2.msra.mxu0 0.0
    %1113 = vmatprep.subr.mxu0 0.0
    %1114 = vmatpush2.msra.mxu0 0.0
    %1115 = vmatprep.subr.mxu0 0.0
    %1116 = vmatpush2.msra.mxu0 0.0
    %1117 = vmatprep.subr.mxu0 0.0
    %1118 = vmatpush2.msra.mxu0 0.0
    %1119 = vmatprep.subr.mxu0 0.0
    %1120 = vmatpush2.msra.mxu0 0.0
    %1121 = vmatprep.mubr.f32.mxu0 0.0
    %1122 = vmatmul.mubr.f32.gmra.mxu0 %v1055
    %v1123 = vpop.f32.mrf.mxu0
    %v1124 = vadd.f32 %v1015, %v1123
    %v1125 = vpop.f32.mrf.mxu0
    %v1126 = vadd.f32 %v1019, %v1125
    %1127 = vdwg.mxu0
    %1128 = vmatprep.subr.mxu0 0.0
    %1129 = vmatpush1.msra.mxu0 0.0
    %1130 = vmatprep.subr.mxu0 0.0
    %1131 = vmatpush1.msra.mxu0 0.0
    %1132 = vmatprep.subr.mxu0 0.0
    %1133 = vmatpush1.msra.mxu0 0.0
    %1134 = vmatprep.subr.mxu0 0.0
    %1135 = vmatpush1.msra.mxu0 0.0
    %1136 = vmatprep.subr.mxu0 0.0
    %1137 = vmatpush1.msra.mxu0 0.0
    %1138 = vmatprep.subr.mxu0 0.0
    %1139 = vmatpush1.msra.mxu0 0.0
    %1140 = vmatprep.subr.mxu0 0.0
    %1141 = vmatpush1.msra.mxu0 0.0
    %1142 = vmatprep.subr.mxu0 0.0
    %1143 = vmatpush1.msra.mxu0 0.0
    %1144 = vmatprep.subr.mxu0 0.0
    %1145 = vmatpush1.msra.mxu0 0.0
    %1146 = vmatprep.subr.mxu0 0.0
    %1147 = vmatpush1.msra.mxu0 0.0
    %1148 = vmatprep.subr.mxu0 0.0
    %1149 = vmatpush1.msra.mxu0 0.0
    %1150 = vmatprep.subr.mxu0 0.0
    %1151 = vmatpush1.msra.mxu0 0.0
    %1152 = vmatprep.subr.mxu0 %v1005
    %1153 = vmatpush1.msra.mxu0 %v1004
    %1154 = vmatprep.subr.mxu0 %v997
    %1155 = vmatpush1.msra.mxu0 %v996
    %1156 = vmatprep.subr.mxu0 %v989
    %1157 = vmatpush1.msra.mxu0 %v988
    %1158 = vmatprep.subr.mxu0 %v981
    %1159 = vmatpush1.msra.mxu0 %v980
    %1160 = vmatprep.subr.mxu0 0.0
    %1161 = vmatpush2.msra.mxu0 0.0
    %1162 = vmatprep.subr.mxu0 0.0
    %1163 = vmatpush2.msra.mxu0 0.0
    %1164 = vmatprep.subr.mxu0 0.0
    %1165 = vmatpush2.msra.mxu0 0.0
    %1166 = vmatprep.subr.mxu0 0.0
    %1167 = vmatpush2.msra.mxu0 0.0
    %1168 = vmatprep.subr.mxu0 0.0
    %1169 = vmatpush2.msra.mxu0 0.0
    %1170 = vmatprep.subr.mxu0 0.0
    %1171 = vmatpush2.msra.mxu0 0.0
    %1172 = vmatprep.subr.mxu0 0.0
    %1173 = vmatpush2.msra.mxu0 0.0
    %1174 = vmatprep.subr.mxu0 0.0
    %1175 = vmatpush2.msra.mxu0 0.0
    %1176 = vmatprep.subr.mxu0 0.0
    %1177 = vmatpush2.msra.mxu0 0.0
    %1178 = vmatprep.subr.mxu0 0.0
    %1179 = vmatpush2.msra.mxu0 0.0
    %1180 = vmatprep.subr.mxu0 0.0
    %1181 = vmatpush2.msra.mxu0 0.0
    %1182 = vmatprep.subr.mxu0 0.0
    %1183 = vmatpush2.msra.mxu0 0.0
    %1184 = vmatprep.subr.mxu0 0.0
    %1185 = vmatpush2.msra.mxu0 0.0
    %1186 = vmatprep.subr.mxu0 0.0
    %1187 = vmatpush2.msra.mxu0 0.0
    %1188 = vmatprep.subr.mxu0 0.0
    %1189 = vmatpush2.msra.mxu0 0.0
    %1190 = vmatprep.subr.mxu0 0.0
    %1191 = vmatpush2.msra.mxu0 0.0
    %1192 = vmatprep.mubr.f32.mxu0 0.0
    %1193 = vmatmul.mubr.f32.gmra.mxu0 %v1055
    %v1194 = vpop.f32.mrf.mxu0
    %v1195 = vadd.f32 %v1023, %v1194
    %v1196 = vpop.f32.mrf.mxu0
    %v1197 = vadd.f32 %v1027, %v1196
    %1198 = vdwg.mxu0
    %1199 = vmatprep.subr.mxu0 0.0
    %1200 = vmatpush1.msra.mxu0 0.0
    %1201 = vmatprep.subr.mxu0 0.0
    %1202 = vmatpush1.msra.mxu0 0.0
    %1203 = vmatprep.subr.mxu0 0.0
    %1204 = vmatpush1.msra.mxu0 0.0
    %1205 = vmatprep.subr.mxu0 0.0
    %1206 = vmatpush1.msra.mxu0 0.0
    %1207 = vmatprep.subr.mxu0 0.0
    %1208 = vmatpush1.msra.mxu0 0.0
    %1209 = vmatprep.subr.mxu0 0.0
    %1210 = vmatpush1.msra.mxu0 0.0
    %1211 = vmatprep.subr.mxu0 0.0
    %1212 = vmatpush1.msra.mxu0 0.0
    %1213 = vmatprep.subr.mxu0 0.0
    %1214 = vmatpush1.msra.mxu0 0.0
    %1215 = vmatprep.subr.mxu0 0.0
    %1216 = vmatpush1.msra.mxu0 0.0
    %1217 = vmatprep.subr.mxu0 0.0
    %1218 = vmatpush1.msra.mxu0 0.0
    %1219 = vmatprep.subr.mxu0 0.0
    %1220 = vmatpush1.msra.mxu0 0.0
    %1221 = vmatprep.subr.mxu0 0.0
    %1222 = vmatpush1.msra.mxu0 0.0
    %1223 = vmatprep.subr.mxu0 %v1007
    %1224 = vmatpush1.msra.mxu0 %v1006
    %1225 = vmatprep.subr.mxu0 %v999
    %1226 = vmatpush1.msra.mxu0 %v998
    %1227 = vmatprep.subr.mxu0 %v991
    %1228 = vmatpush1.msra.mxu0 %v990
    %1229 = vmatprep.subr.mxu0 %v983
    %1230 = vmatpush1.msra.mxu0 %v982
    %1231 = vmatprep.subr.mxu0 0.0
    %1232 = vmatpush2.msra.mxu0 0.0
    %1233 = vmatprep.subr.mxu0 0.0
    %1234 = vmatpush2.msra.mxu0 0.0
    %1235 = vmatprep.subr.mxu0 0.0
    %1236 = vmatpush2.msra.mxu0 0.0
    %1237 = vmatprep.subr.mxu0 0.0
    %1238 = vmatpush2.msra.mxu0 0.0
    %1239 = vmatprep.subr.mxu0 0.0
    %1240 = vmatpush2.msra.mxu0 0.0
    %1241 = vmatprep.subr.mxu0 0.0
    %1242 = vmatpush2.msra.mxu0 0.0
    %1243 = vmatprep.subr.mxu0 0.0
    %1244 = vmatpush2.msra.mxu0 0.0
    %1245 = vmatprep.subr.mxu0 0.0
    %1246 = vmatpush2.msra.mxu0 0.0
    %1247 = vmatprep.subr.mxu0 0.0
    %1248 = vmatpush2.msra.mxu0 0.0
    %1249 = vmatprep.subr.mxu0 0.0
    %1250 = vmatpush2.msra.mxu0 0.0
    %1251 = vmatprep.subr.mxu0 0.0
    %1252 = vmatpush2.msra.mxu0 0.0
    %1253 = vmatprep.subr.mxu0 0.0
    %1254 = vmatpush2.msra.mxu0 0.0
    %1255 = vmatprep.subr.mxu0 0.0
    %1256 = vmatpush2.msra.mxu0 0.0
    %1257 = vmatprep.subr.mxu0 0.0
    %1258 = vmatpush2.msra.mxu0 0.0
    %1259 = vmatprep.subr.mxu0 0.0
    %1260 = vmatpush2.msra.mxu0 0.0
    %1261 = vmatprep.subr.mxu0 0.0
    %1262 = vmatpush2.msra.mxu0 0.0
    %1263 = vmatprep.mubr.f32.mxu0 0.0
    %1264 = vmatmul.mubr.f32.gmra.mxu0 %v1055
    %v1265 = vpop.f32.mrf.mxu0
    %v1266 = vadd.f32 %v1031, %v1265
    %v1267 = vpop.f32.mrf.mxu0
    %v1268 = vadd.f32 %v1035, %v1267
    %1269 = vdwg.mxu0
    %1270 = vmatprep.subr.mxu0 0.0
    %1271 = vmatpush1.msra.mxu0 0.0
    %1272 = vmatprep.subr.mxu0 0.0
    %1273 = vmatpush1.msra.mxu0 0.0
    %1274 = vmatprep.subr.mxu0 0.0
    %1275 = vmatpush1.msra.mxu0 0.0
    %1276 = vmatprep.subr.mxu0 0.0
    %1277 = vmatpush1.msra.mxu0 0.0
    %1278 = vmatprep.subr.mxu0 0.0
    %1279 = vmatpush1.msra.mxu0 0.0
    %1280 = vmatprep.subr.mxu0 0.0
    %1281 = vmatpush1.msra.mxu0 0.0
    %1282 = vmatprep.subr.mxu0 0.0
    %1283 = vmatpush1.msra.mxu0 0.0
    %1284 = vmatprep.subr.mxu0 0.0
    %1285 = vmatpush1.msra.mxu0 0.0
    %1286 = vmatprep.subr.mxu0 0.0
    %1287 = vmatpush1.msra.mxu0 0.0
    %1288 = vmatprep.subr.mxu0 0.0
    %1289 = vmatpush1.msra.mxu0 0.0
    %1290 = vmatprep.subr.mxu0 0.0
    %1291 = vmatpush1.msra.mxu0 0.0
    %1292 = vmatprep.subr.mxu0 0.0
    %1293 = vmatpush1.msra.mxu0 0.0
    %1294 = vmatprep.subr.mxu0 %v1009
    %1295 = vmatpush1.msra.mxu0 %v1008
    %1296 = vmatprep.subr.mxu0 %v1001
    %1297 = vmatpush1.msra.mxu0 %v1000
    %1298 = vmatprep.subr.mxu0 %v993
    %1299 = vmatpush1.msra.mxu0 %v992
    %1300 = vmatprep.subr.mxu0 %v985
    %1301 = vmatpush1.msra.mxu0 %v984
    %1302 = vmatprep.subr.mxu0 0.0
    %1303 = vmatpush2.msra.mxu0 0.0
    %1304 = vmatprep.subr.mxu0 0.0
    %1305 = vmatpush2.msra.mxu0 0.0
    %1306 = vmatprep.subr.mxu0 0.0
    %1307 = vmatpush2.msra.mxu0 0.0
    %1308 = vmatprep.subr.mxu0 0.0
    %1309 = vmatpush2.msra.mxu0 0.0
    %1310 = vmatprep.subr.mxu0 0.0
    %1311 = vmatpush2.msra.mxu0 0.0
    %1312 = vmatprep.subr.mxu0 0.0
    %1313 = vmatpush2.msra.mxu0 0.0
    %1314 = vmatprep.subr.mxu0 0.0
    %1315 = vmatpush2.msra.mxu0 0.0
    %1316 = vmatprep.subr.mxu0 0.0
    %1317 = vmatpush2.msra.mxu0 0.0
    %1318 = vmatprep.subr.mxu0 0.0
    %1319 = vmatpush2.msra.mxu0 0.0
    %1320 = vmatprep.subr.mxu0 0.0
    %1321 = vmatpush2.msra.mxu0 0.0
    %1322 = vmatprep.subr.mxu0 0.0
    %1323 = vmatpush2.msra.mxu0 0.0
    %1324 = vmatprep.subr.mxu0 0.0
    %1325 = vmatpush2.msra.mxu0 0.0
    %1326 = vmatprep.subr.mxu0 0.0
    %1327 = vmatpush2.msra.mxu0 0.0
    %1328 = vmatprep.subr.mxu0 0.0
    %1329 = vmatpush2.msra.mxu0 0.0
    %1330 = vmatprep.subr.mxu0 0.0
    %1331 = vmatpush2.msra.mxu0 0.0
    %1332 = vmatprep.subr.mxu0 0.0
    %1333 = vmatpush2.msra.mxu0 0.0
    %1334 = vmatprep.mubr.f32.mxu0 0.0
    %1335 = vmatmul.mubr.f32.gmra.mxu0 %v1055
    %v1336 = vpop.f32.mrf.mxu0
    %v1337 = vadd.f32 %v1039, %v1336
    %v1338 = vpop.f32.mrf.mxu0
    %v1339 = vadd.f32 %v1043, %v1338
    %1340 = vdwg.mxu0
    %v1341 = vmul.f32 %v1124, 0.5
    %v1342 = vmul.f32 %v1126, 0.5
    %v1343 = vmul.f32 %v1195, 0.5
    %v1344 = vmul.f32 %v1197, 0.5
    %v1345 = vmul.f32 %v1266, 0.5
    %v1346 = vmul.f32 %v1268, 0.5
    %v1347 = vmul.f32 %v1337, 0.5
    %v1348 = vmul.f32 %v1339, 0.5
    %v1349 = vmul.f32 %v1124, 0.044715
    %v1350 = vmul.f32 %v1126, 0.044715
    %v1351 = vmul.f32 %v1195, 0.044715
    %v1352 = vmul.f32 %v1197, 0.044715
    %v1353 = vmul.f32 %v1266, 0.044715
    %v1354 = vmul.f32 %v1268, 0.044715
    %v1355 = vmul.f32 %v1337, 0.044715
    %v1356 = vmul.f32 %v1339, 0.044715
    %v1357 = vmul.f32 %v1349, %v1124
    %v1358 = vmul.f32 %v1350, %v1126
    %v1359 = vmul.f32 %v1351, %v1195
    %v1360 = vmul.f32 %v1352, %v1197
    %v1361 = vmul.f32 %v1353, %v1266
    %v1362 = vmul.f32 %v1354, %v1268
    %v1363 = vmul.f32 %v1355, %v1337
    %v1364 = vmul.f32 %v1356, %v1339
    %v1365 = vmul.f32 %v1357, %v1124
    %v1366 = vmul.f32 %v1358, %v1126
    %v1367 = vmul.f32 %v1359, %v1195
    %v1368 = vmul.f32 %v1360, %v1197
    %v1369 = vmul.f32 %v1361, %v1266
    %v1370 = vmul.f32 %v1362, %v1268
    %v1371 = vmul.f32 %v1363, %v1337
    %v1372 = vmul.f32 %v1364, %v1339
    %v1373 = vadd.f32 %v1124, %v1365
    %v1374 = vadd.f32 %v1126, %v1366
    %v1375 = vadd.f32 %v1195, %v1367
    %v1376 = vadd.f32 %v1197, %v1368
    %v1377 = vadd.f32 %v1266, %v1369
    %v1378 = vadd.f32 %v1268, %v1370
    %v1379 = vadd.f32 %v1337, %v1371
    %v1380 = vadd.f32 %v1339, %v1372
    %v1381 = vmul.f32 %v1373, 0.7978846
    %v1382 = vmul.f32 %v1374, 0.7978846
    %v1383 = vmul.f32 %v1375, 0.7978846
    %v1384 = vmul.f32 %v1376, 0.7978846
    %v1385 = vmul.f32 %v1377, 0.7978846
    %v1386 = vmul.f32 %v1378, 0.7978846
    %v1387 = vmul.f32 %v1379, 0.7978846
    %v1388 = vmul.f32 %v1380, 0.7978846
    %v1389 = vtanh.pop %v1381
    %v1390 = vtanh.pop %v1382
    %v1391 = vtanh.pop %v1383
    %v1392 = vtanh.pop %v1384
    %v1393 = vtanh.pop %v1385
    %v1394 = vtanh.pop %v1386
    %v1395 = vtanh.pop %v1387
    %v1396 = vtanh.pop %v1388
    %v1397 = vadd.f32 %v1389, 1.0
    %v1398 = vadd.f32 %v1390, 1.0
    %v1399 = vadd.f32 %v1391, 1.0
    %v1400 = vadd.f32 %v1392, 1.0
    %v1401 = vadd.f32 %v1393, 1.0
    %v1402 = vadd.f32 %v1394, 1.0
    %v1403 = vadd.f32 %v1395, 1.0
    %v1404 = vadd.f32 %v1396, 1.0
    %v1405 = vmul.f32 %v1341, %v1397
    %v1406 = vmul.f32 %v1342, %v1398
    %v1407 = vmul.f32 %v1343, %v1399
    %v1408 = vmul.f32 %v1344, %v1400
    %v1409 = vmul.f32 %v1345, %v1401
    %v1410 = vmul.f32 %v1346, %v1402
    %v1411 = vmul.f32 %v1347, %v1403
    %v1412 = vmul.f32 %v1348, %v1404
    %v1413 = vmul.f32 %v960, %v1405
    %v1414 = vmul.f32 %v960, %v1406
    %v1415 = vmul.f32 %v960, %v1407
    %v1416 = vmul.f32 %v960, %v1408
    %v1417 = vmul.f32 %v960, %v1409
    %v1418 = vmul.f32 %v960, %v1410
    %v1419 = vmul.f32 %v960, %v1411
    %v1420 = vmul.f32 %v960, %v1412
    %v1421 = vadd.f32 %v1413, 0.0
    %v1422 = vadd.f32 %v1414, 0.0
    %v1423 = vadd.f32 %v1415, 0.0
    %v1424 = vadd.f32 %v1416, 0.0
    %v1425 = vadd.f32 %v1417, 0.0
    %v1426 = vadd.f32 %v1418, 0.0
    %v1427 = vadd.f32 %v1419, 0.0
    %v1428 = vadd.f32 %v1420, 0.0
    %s1429 = scalar_lea.vmem %s10, 256
    %v1430 = vld [vmem:[%s1429] sm:$0xff]
    %v1431 = vld [vmem:[%s1429 + $0x8] sm:$0xff]
    %v1432 = vld [vmem:[%s1429 + $0x10] sm:$0xff]
    %v1433 = vld [vmem:[%s1429 + $0x18] sm:$0xff]
    %v1434 = vld [vmem:[%s1429 + $0x20] sm:$0xff]
    %v1435 = vld [vmem:[%s1429 + $0x28] sm:$0xff]
    %v1436 = vld [vmem:[%s1429 + $0x30] sm:$0xff]
    %v1437 = vld [vmem:[%s1429 + $0x38] sm:$0xff]
    %v1438 = vld [vmem:[%s1429 + $0x40] sm:$0xff]
    %v1439 = vld [vmem:[%s1429 + $0x48] sm:$0xff]
    %v1440 = vld [vmem:[%s1429 + $0x50] sm:$0xff]
    %v1441 = vld [vmem:[%s1429 + $0x58] sm:$0xff]
    %v1442 = vld [vmem:[%s1429 + $0x60] sm:$0xff]
    %v1443 = vld [vmem:[%s1429 + $0x68] sm:$0xff]
    %v1444 = vld [vmem:[%s1429 + $0x70] sm:$0xff]
    %v1445 = vld [vmem:[%s1429 + $0x78] sm:$0xff]
    %v1446 = vld [vmem:[%s1429 + $0x80] sm:$0xff]
    %v1447 = vld [vmem:[%s1429 + $0x88] sm:$0xff]
    %v1448 = vld [vmem:[%s1429 + $0x90] sm:$0xff]
    %v1449 = vld [vmem:[%s1429 + $0x98] sm:$0xff]
    %v1450 = vld [vmem:[%s1429 + $0xa0] sm:$0xff]
    %v1451 = vld [vmem:[%s1429 + $0xa8] sm:$0xff]
    %v1452 = vld [vmem:[%s1429 + $0xb0] sm:$0xff]
    %v1453 = vld [vmem:[%s1429 + $0xb8] sm:$0xff]
    %v1454 = vld [vmem:[%s1429 + $0xc0] sm:$0xff]
    %v1455 = vld [vmem:[%s1429 + $0xc8] sm:$0xff]
    %v1456 = vld [vmem:[%s1429 + $0xd0] sm:$0xff]
    %v1457 = vld [vmem:[%s1429 + $0xd8] sm:$0xff]
    %v1458 = vld [vmem:[%s1429 + $0xe0] sm:$0xff]
    %v1459 = vld [vmem:[%s1429 + $0xe8] sm:$0xff]
    %v1460 = vld [vmem:[%s1429 + $0xf0] sm:$0xff]
    %v1461 = vld [vmem:[%s1429 + $0xf8] sm:$0xff]
    %s1462 = scalar_lea.vmem %s11, 8
    %v1463 = vld [vmem:[%s1462] sm:$0xff]
    %v1465 = vlaneseq
    %v1466 = vshrl.u32 %v1465, 7
    %v1467 = vsub.s32 0, %v1466
    %v1468 = vrot.slane %v1463, %v1467
    %v1469 = vlaneseq
    %v1470 = vshrl.u32 %v1469, 7
    %v1471 = vsub.s32 1, %v1470
    %v1472 = vrot.slane %v1463, %v1471
    %v1473 = vlaneseq
    %v1474 = vshrl.u32 %v1473, 7
    %v1475 = vsub.s32 2, %v1474
    %v1476 = vrot.slane %v1463, %v1475
    %v1477 = vlaneseq
    %v1478 = vshrl.u32 %v1477, 7
    %v1479 = vsub.s32 3, %v1478
    %v1480 = vrot.slane %v1463, %v1479
    %v1481 = vlaneseq
    %v1482 = vshrl.u32 %v1481, 7
    %v1483 = vsub.s32 4, %v1482
    %v1484 = vrot.slane %v1463, %v1483
    %v1485 = vlaneseq
    %v1486 = vshrl.u32 %v1485, 7
    %v1487 = vsub.s32 5, %v1486
    %v1488 = vrot.slane %v1463, %v1487
    %v1489 = vlaneseq
    %v1490 = vshrl.u32 %v1489, 7
    %v1491 = vsub.s32 6, %v1490
    %v1492 = vrot.slane %v1463, %v1491
    %v1493 = vlaneseq
    %v1494 = vshrl.u32 %v1493, 7
    %v1495 = vsub.s32 7, %v1494
    %v1496 = vrot.slane %v1463, %v1495
    %1505 = vmatprep.subr.mxu0 0.0
    %1506 = vmatpush1.msra.mxu0 0.0
    %1507 = vmatprep.subr.mxu0 0.0
    %1508 = vmatpush1.msra.mxu0 0.0
    %1509 = vmatprep.subr.mxu0 0.0
    %1510 = vmatpush1.msra.mxu0 0.0
    %1511 = vmatprep.subr.mxu0 0.0
    %1512 = vmatpush1.msra.mxu0 0.0
    %1513 = vmatprep.subr.mxu0 0.0
    %1514 = vmatpush1.msra.mxu0 0.0
    %1515 = vmatprep.subr.mxu0 0.0
    %1516 = vmatpush1.msra.mxu0 0.0
    %1517 = vmatprep.subr.mxu0 0.0
    %1518 = vmatpush1.msra.mxu0 0.0
    %1519 = vmatprep.subr.mxu0 0.0
    %1520 = vmatpush1.msra.mxu0 0.0
    %1521 = vmatprep.subr.mxu0 0.0
    %1522 = vmatpush1.msra.mxu0 0.0
    %1523 = vmatprep.subr.mxu0 0.0
    %1524 = vmatpush1.msra.mxu0 0.0
    %1525 = vmatprep.subr.mxu0 0.0
    %1526 = vmatpush1.msra.mxu0 0.0
    %1527 = vmatprep.subr.mxu0 0.0
    %1528 = vmatpush1.msra.mxu0 0.0
    %1529 = vmatprep.subr.mxu0 %v1455
    %1530 = vmatpush1.msra.mxu0 %v1454
    %1531 = vmatprep.subr.mxu0 %v1447
    %1532 = vmatpush1.msra.mxu0 %v1446
    %1533 = vmatprep.subr.mxu0 %v1439
    %1534 = vmatpush1.msra.mxu0 %v1438
    %1535 = vmatprep.subr.mxu0 %v1431
    %1536 = vmatpush1.msra.mxu0 %v1430
    %1537 = vmatprep.subr.mxu0 0.0
    %1538 = vmatpush2.msra.mxu0 0.0
    %1539 = vmatprep.subr.mxu0 0.0
    %1540 = vmatpush2.msra.mxu0 0.0
    %1541 = vmatprep.subr.mxu0 0.0
    %1542 = vmatpush2.msra.mxu0 0.0
    %1543 = vmatprep.subr.mxu0 0.0
    %1544 = vmatpush2.msra.mxu0 0.0
    %1545 = vmatprep.subr.mxu0 0.0
    %1546 = vmatpush2.msra.mxu0 0.0
    %1547 = vmatprep.subr.mxu0 0.0
    %1548 = vmatpush2.msra.mxu0 0.0
    %1549 = vmatprep.subr.mxu0 0.0
    %1550 = vmatpush2.msra.mxu0 0.0
    %1551 = vmatprep.subr.mxu0 0.0
    %1552 = vmatpush2.msra.mxu0 0.0
    %1553 = vmatprep.subr.mxu0 0.0
    %1554 = vmatpush2.msra.mxu0 0.0
    %1555 = vmatprep.subr.mxu0 0.0
    %1556 = vmatpush2.msra.mxu0 0.0
    %1557 = vmatprep.subr.mxu0 0.0
    %1558 = vmatpush2.msra.mxu0 0.0
    %1559 = vmatprep.subr.mxu0 0.0
    %1560 = vmatpush2.msra.mxu0 0.0
    %1561 = vmatprep.subr.mxu0 0.0
    %1562 = vmatpush2.msra.mxu0 0.0
    %1563 = vmatprep.subr.mxu0 0.0
    %1564 = vmatpush2.msra.mxu0 0.0
    %1565 = vmatprep.subr.mxu0 0.0
    %1566 = vmatpush2.msra.mxu0 0.0
    %1567 = vmatprep.subr.mxu0 0.0
    %1568 = vmatpush2.msra.mxu0 0.0
    %1569 = vmatprep.mubr.f32.mxu0 0.0
    %1570 = vmatmul.mubr.f32.gmra.mxu0 %v599
    %v1571 = vpop.f32.mrf.mxu0
    %v1572 = vadd.f32 %v1468, %v1571
    %v1573 = vpop.f32.mrf.mxu0
    %v1574 = vadd.f32 %v1472, %v1573
    %1575 = vdwg.mxu0
    %1576 = vmatprep.subr.mxu0 0.0
    %1577 = vmatpush1.msra.mxu0 0.0
    %1578 = vmatprep.subr.mxu0 0.0
    %1579 = vmatpush1.msra.mxu0 0.0
    %1580 = vmatprep.subr.mxu0 0.0
    %1581 = vmatpush1.msra.mxu0 0.0
    %1582 = vmatprep.subr.mxu0 0.0
    %1583 = vmatpush1.msra.mxu0 0.0
    %1584 = vmatprep.subr.mxu0 0.0
    %1585 = vmatpush1.msra.mxu0 0.0
    %1586 = vmatprep.subr.mxu0 0.0
    %1587 = vmatpush1.msra.mxu0 0.0
    %1588 = vmatprep.subr.mxu0 0.0
    %1589 = vmatpush1.msra.mxu0 0.0
    %1590 = vmatprep.subr.mxu0 0.0
    %1591 = vmatpush1.msra.mxu0 0.0
    %1592 = vmatprep.subr.mxu0 0.0
    %1593 = vmatpush1.msra.mxu0 0.0
    %1594 = vmatprep.subr.mxu0 0.0
    %1595 = vmatpush1.msra.mxu0 0.0
    %1596 = vmatprep.subr.mxu0 0.0
    %1597 = vmatpush1.msra.mxu0 0.0
    %1598 = vmatprep.subr.mxu0 0.0
    %1599 = vmatpush1.msra.mxu0 0.0
    %1600 = vmatprep.subr.mxu0 %v1457
    %1601 = vmatpush1.msra.mxu0 %v1456
    %1602 = vmatprep.subr.mxu0 %v1449
    %1603 = vmatpush1.msra.mxu0 %v1448
    %1604 = vmatprep.subr.mxu0 %v1441
    %1605 = vmatpush1.msra.mxu0 %v1440
    %1606 = vmatprep.subr.mxu0 %v1433
    %1607 = vmatpush1.msra.mxu0 %v1432
    %1608 = vmatprep.subr.mxu0 0.0
    %1609 = vmatpush2.msra.mxu0 0.0
    %1610 = vmatprep.subr.mxu0 0.0
    %1611 = vmatpush2.msra.mxu0 0.0
    %1612 = vmatprep.subr.mxu0 0.0
    %1613 = vmatpush2.msra.mxu0 0.0
    %1614 = vmatprep.subr.mxu0 0.0
    %1615 = vmatpush2.msra.mxu0 0.0
    %1616 = vmatprep.subr.mxu0 0.0
    %1617 = vmatpush2.msra.mxu0 0.0
    %1618 = vmatprep.subr.mxu0 0.0
    %1619 = vmatpush2.msra.mxu0 0.0
    %1620 = vmatprep.subr.mxu0 0.0
    %1621 = vmatpush2.msra.mxu0 0.0
    %1622 = vmatprep.subr.mxu0 0.0
    %1623 = vmatpush2.msra.mxu0 0.0
    %1624 = vmatprep.subr.mxu0 0.0
    %1625 = vmatpush2.msra.mxu0 0.0
    %1626 = vmatprep.subr.mxu0 0.0
    %1627 = vmatpush2.msra.mxu0 0.0
    %1628 = vmatprep.subr.mxu0 0.0
    %1629 = vmatpush2.msra.mxu0 0.0
    %1630 = vmatprep.subr.mxu0 0.0
    %1631 = vmatpush2.msra.mxu0 0.0
    %1632 = vmatprep.subr.mxu0 0.0
    %1633 = vmatpush2.msra.mxu0 0.0
    %1634 = vmatprep.subr.mxu0 0.0
    %1635 = vmatpush2.msra.mxu0 0.0
    %1636 = vmatprep.subr.mxu0 0.0
    %1637 = vmatpush2.msra.mxu0 0.0
    %1638 = vmatprep.subr.mxu0 0.0
    %1639 = vmatpush2.msra.mxu0 0.0
    %1640 = vmatprep.mubr.f32.mxu0 0.0
    %1641 = vmatmul.mubr.f32.gmra.mxu0 %v599
    %v1642 = vpop.f32.mrf.mxu0
    %v1643 = vadd.f32 %v1476, %v1642
    %v1644 = vpop.f32.mrf.mxu0
    %v1645 = vadd.f32 %v1480, %v1644
    %1646 = vdwg.mxu0
    %1647 = vmatprep.subr.mxu0 0.0
    %1648 = vmatpush1.msra.mxu0 0.0
    %1649 = vmatprep.subr.mxu0 0.0
    %1650 = vmatpush1.msra.mxu0 0.0
    %1651 = vmatprep.subr.mxu0 0.0
    %1652 = vmatpush1.msra.mxu0 0.0
    %1653 = vmatprep.subr.mxu0 0.0
    %1654 = vmatpush1.msra.mxu0 0.0
    %1655 = vmatprep.subr.mxu0 0.0
    %1656 = vmatpush1.msra.mxu0 0.0
    %1657 = vmatprep.subr.mxu0 0.0
    %1658 = vmatpush1.msra.mxu0 0.0
    %1659 = vmatprep.subr.mxu0 0.0
    %1660 = vmatpush1.msra.mxu0 0.0
    %1661 = vmatprep.subr.mxu0 0.0
    %1662 = vmatpush1.msra.mxu0 0.0
    %1663 = vmatprep.subr.mxu0 0.0
    %1664 = vmatpush1.msra.mxu0 0.0
    %1665 = vmatprep.subr.mxu0 0.0
    %1666 = vmatpush1.msra.mxu0 0.0
    %1667 = vmatprep.subr.mxu0 0.0
    %1668 = vmatpush1.msra.mxu0 0.0
    %1669 = vmatprep.subr.mxu0 0.0
    %1670 = vmatpush1.msra.mxu0 0.0
    %1671 = vmatprep.subr.mxu0 %v1459
    %1672 = vmatpush1.msra.mxu0 %v1458
    %1673 = vmatprep.subr.mxu0 %v1451
    %1674 = vmatpush1.msra.mxu0 %v1450
    %1675 = vmatprep.subr.mxu0 %v1443
    %1676 = vmatpush1.msra.mxu0 %v1442
    %1677 = vmatprep.subr.mxu0 %v1435
    %1678 = vmatpush1.msra.mxu0 %v1434
    %1679 = vmatprep.subr.mxu0 0.0
    %1680 = vmatpush2.msra.mxu0 0.0
    %1681 = vmatprep.subr.mxu0 0.0
    %1682 = vmatpush2.msra.mxu0 0.0
    %1683 = vmatprep.subr.mxu0 0.0
    %1684 = vmatpush2.msra.mxu0 0.0
    %1685 = vmatprep.subr.mxu0 0.0
    %1686 = vmatpush2.msra.mxu0 0.0
    %1687 = vmatprep.subr.mxu0 0.0
    %1688 = vmatpush2.msra.mxu0 0.0
    %1689 = vmatprep.subr.mxu0 0.0
    %1690 = vmatpush2.msra.mxu0 0.0
    %1691 = vmatprep.subr.mxu0 0.0
    %1692 = vmatpush2.msra.mxu0 0.0
    %1693 = vmatprep.subr.mxu0 0.0
    %1694 = vmatpush2.msra.mxu0 0.0
    %1695 = vmatprep.subr.mxu0 0.0
    %1696 = vmatpush2.msra.mxu0 0.0
    %1697 = vmatprep.subr.mxu0 0.0
    %1698 = vmatpush2.msra.mxu0 0.0
    %1699 = vmatprep.subr.mxu0 0.0
    %1700 = vmatpush2.msra.mxu0 0.0
    %1701 = vmatprep.subr.mxu0 0.0
    %1702 = vmatpush2.msra.mxu0 0.0
    %1703 = vmatprep.subr.mxu0 0.0
    %1704 = vmatpush2.msra.mxu0 0.0
    %1705 = vmatprep.subr.mxu0 0.0
    %1706 = vmatpush2.msra.mxu0 0.0
    %1707 = vmatprep.subr.mxu0 0.0
    %1708 = vmatpush2.msra.mxu0 0.0
    %1709 = vmatprep.subr.mxu0 0.0
    %1710 = vmatpush2.msra.mxu0 0.0
    %1711 = vmatprep.mubr.f32.mxu0 0.0
    %1712 = vmatmul.mubr.f32.gmra.mxu0 %v599
    %v1713 = vpop.f32.mrf.mxu0
    %v1714 = vadd.f32 %v1484, %v1713
    %v1715 = vpop.f32.mrf.mxu0
    %v1716 = vadd.f32 %v1488, %v1715
    %1717 = vdwg.mxu0
    %1718 = vmatprep.subr.mxu0 0.0
    %1719 = vmatpush1.msra.mxu0 0.0
    %1720 = vmatprep.subr.mxu0 0.0
    %1721 = vmatpush1.msra.mxu0 0.0
    %1722 = vmatprep.subr.mxu0 0.0
    %1723 = vmatpush1.msra.mxu0 0.0
    %1724 = vmatprep.subr.mxu0 0.0
    %1725 = vmatpush1.msra.mxu0 0.0
    %1726 = vmatprep.subr.mxu0 0.0
    %1727 = vmatpush1.msra.mxu0 0.0
    %1728 = vmatprep.subr.mxu0 0.0
    %1729 = vmatpush1.msra.mxu0 0.0
    %1730 = vmatprep.subr.mxu0 0.0
    %1731 = vmatpush1.msra.mxu0 0.0
    %1732 = vmatprep.subr.mxu0 0.0
    %1733 = vmatpush1.msra.mxu0 0.0
    %1734 = vmatprep.subr.mxu0 0.0
    %1735 = vmatpush1.msra.mxu0 0.0
    %1736 = vmatprep.subr.mxu0 0.0
    %1737 = vmatpush1.msra.mxu0 0.0
    %1738 = vmatprep.subr.mxu0 0.0
    %1739 = vmatpush1.msra.mxu0 0.0
    %1740 = vmatprep.subr.mxu0 0.0
    %1741 = vmatpush1.msra.mxu0 0.0
    %1742 = vmatprep.subr.mxu0 %v1461
    %1743 = vmatpush1.msra.mxu0 %v1460
    %1744 = vmatprep.subr.mxu0 %v1453
    %1745 = vmatpush1.msra.mxu0 %v1452
    %1746 = vmatprep.subr.mxu0 %v1445
    %1747 = vmatpush1.msra.mxu0 %v1444
    %1748 = vmatprep.subr.mxu0 %v1437
    %1749 = vmatpush1.msra.mxu0 %v1436
    %1750 = vmatprep.subr.mxu0 0.0
    %1751 = vmatpush2.msra.mxu0 0.0
    %1752 = vmatprep.subr.mxu0 0.0
    %1753 = vmatpush2.msra.mxu0 0.0
    %1754 = vmatprep.subr.mxu0 0.0
    %1755 = vmatpush2.msra.mxu0 0.0
    %1756 = vmatprep.subr.mxu0 0.0
    %1757 = vmatpush2.msra.mxu0 0.0
    %1758 = vmatprep.subr.mxu0 0.0
    %1759 = vmatpush2.msra.mxu0 0.0
    %1760 = vmatprep.subr.mxu0 0.0
    %1761 = vmatpush2.msra.mxu0 0.0
    %1762 = vmatprep.subr.mxu0 0.0
    %1763 = vmatpush2.msra.mxu0 0.0
    %1764 = vmatprep.subr.mxu0 0.0
    %1765 = vmatpush2.msra.mxu0 0.0
    %1766 = vmatprep.subr.mxu0 0.0
    %1767 = vmatpush2.msra.mxu0 0.0
    %1768 = vmatprep.subr.mxu0 0.0
    %1769 = vmatpush2.msra.mxu0 0.0
    %1770 = vmatprep.subr.mxu0 0.0
    %1771 = vmatpush2.msra.mxu0 0.0
    %1772 = vmatprep.subr.mxu0 0.0
    %1773 = vmatpush2.msra.mxu0 0.0
    %1774 = vmatprep.subr.mxu0 0.0
    %1775 = vmatpush2.msra.mxu0 0.0
    %1776 = vmatprep.subr.mxu0 0.0
    %1777 = vmatpush2.msra.mxu0 0.0
    %1778 = vmatprep.subr.mxu0 0.0
    %1779 = vmatpush2.msra.mxu0 0.0
    %1780 = vmatprep.subr.mxu0 0.0
    %1781 = vmatpush2.msra.mxu0 0.0
    %1782 = vmatprep.mubr.f32.mxu0 0.0
    %1783 = vmatmul.mubr.f32.gmra.mxu0 %v599
    %v1784 = vpop.f32.mrf.mxu0
    %v1785 = vadd.f32 %v1492, %v1784
    %v1786 = vpop.f32.mrf.mxu0
    %v1787 = vadd.f32 %v1496, %v1786
    %1788 = vdwg.mxu0
    %v1789 = vmul.f32 %v1572, 0.5
    %v1790 = vmul.f32 %v1574, 0.5
    %v1791 = vmul.f32 %v1643, 0.5
    %v1792 = vmul.f32 %v1645, 0.5
    %v1793 = vmul.f32 %v1714, 0.5
    %v1794 = vmul.f32 %v1716, 0.5
    %v1795 = vmul.f32 %v1785, 0.5
    %v1796 = vmul.f32 %v1787, 0.5
    %v1797 = vmul.f32 %v1572, 0.044715
    %v1798 = vmul.f32 %v1574, 0.044715
    %v1799 = vmul.f32 %v1643, 0.044715
    %v1800 = vmul.f32 %v1645, 0.044715
    %v1801 = vmul.f32 %v1714, 0.044715
    %v1802 = vmul.f32 %v1716, 0.044715
    %v1803 = vmul.f32 %v1785, 0.044715
    %v1804 = vmul.f32 %v1787, 0.044715
    %v1805 = vmul.f32 %v1797, %v1572
    %v1806 = vmul.f32 %v1798, %v1574
    %v1807 = vmul.f32 %v1799, %v1643
    %v1808 = vmul.f32 %v1800, %v1645
    %v1809 = vmul.f32 %v1801, %v1714
    %v1810 = vmul.f32 %v1802, %v1716
    %v1811 = vmul.f32 %v1803, %v1785
    %v1812 = vmul.f32 %v1804, %v1787
    %v1813 = vmul.f32 %v1805, %v1572
    %v1814 = vmul.f32 %v1806, %v1574
    %v1815 = vmul.f32 %v1807, %v1643
    %v1816 = vmul.f32 %v1808, %v1645
    %v1817 = vmul.f32 %v1809, %v1714
    %v1818 = vmul.f32 %v1810, %v1716
    %v1819 = vmul.f32 %v1811, %v1785
    %v1820 = vmul.f32 %v1812, %v1787
    %v1821 = vadd.f32 %v1572, %v1813
    %v1822 = vadd.f32 %v1574, %v1814
    %v1823 = vadd.f32 %v1643, %v1815
    %v1824 = vadd.f32 %v1645, %v1816
    %v1825 = vadd.f32 %v1714, %v1817
    %v1826 = vadd.f32 %v1716, %v1818
    %v1827 = vadd.f32 %v1785, %v1819
    %v1828 = vadd.f32 %v1787, %v1820
    %v1829 = vmul.f32 %v1821, 0.7978846
    %v1830 = vmul.f32 %v1822, 0.7978846
    %v1831 = vmul.f32 %v1823, 0.7978846
    %v1832 = vmul.f32 %v1824, 0.7978846
    %v1833 = vmul.f32 %v1825, 0.7978846
    %v1834 = vmul.f32 %v1826, 0.7978846
    %v1835 = vmul.f32 %v1827, 0.7978846
    %v1836 = vmul.f32 %v1828, 0.7978846
    %v1837 = vtanh.pop %v1829
    %v1838 = vtanh.pop %v1830
    %v1839 = vtanh.pop %v1831
    %v1840 = vtanh.pop %v1832
    %v1841 = vtanh.pop %v1833
    %v1842 = vtanh.pop %v1834
    %v1843 = vtanh.pop %v1835
    %v1844 = vtanh.pop %v1836
    %v1845 = vadd.f32 %v1837, 1.0
    %v1846 = vadd.f32 %v1838, 1.0
    %v1847 = vadd.f32 %v1839, 1.0
    %v1848 = vadd.f32 %v1840, 1.0
    %v1849 = vadd.f32 %v1841, 1.0
    %v1850 = vadd.f32 %v1842, 1.0
    %v1851 = vadd.f32 %v1843, 1.0
    %v1852 = vadd.f32 %v1844, 1.0
    %v1853 = vmul.f32 %v1789, %v1845
    %v1854 = vmul.f32 %v1790, %v1846
    %v1855 = vmul.f32 %v1791, %v1847
    %v1856 = vmul.f32 %v1792, %v1848
    %v1857 = vmul.f32 %v1793, %v1849
    %v1858 = vmul.f32 %v1794, %v1850
    %v1859 = vmul.f32 %v1795, %v1851
    %v1860 = vmul.f32 %v1796, %v1852
    %1861 = vset.pattern.permute.xlu0 1
    %1862 = vperm.xlu0 %1861, %v474
    %v1863 = vpop.permute.xlu0 %1862
    %v1865 = vmul.f32 %v1863, %v1853
    %v1866 = vmul.f32 %v1863, %v1854
    %v1867 = vmul.f32 %v1863, %v1855
    %v1868 = vmul.f32 %v1863, %v1856
    %v1869 = vmul.f32 %v1863, %v1857
    %v1870 = vmul.f32 %v1863, %v1858
    %v1871 = vmul.f32 %v1863, %v1859
    %v1872 = vmul.f32 %v1863, %v1860
    %v1873 = vadd.f32 %v970, %v1865
    %v1874 = vadd.f32 %v971, %v1866
    %v1875 = vadd.f32 %v972, %v1867
    %v1876 = vadd.f32 %v973, %v1868
    %v1877 = vadd.f32 %v974, %v1869
    %v1878 = vadd.f32 %v975, %v1870
    %v1879 = vadd.f32 %v976, %v1871
    %v1880 = vadd.f32 %v977, %v1872
    %s1881 = scalar_lea.vmem %s12, 256
    %v1882 = vld [vmem:[%s1881] sm:$0xff]
    %v1883 = vld [vmem:[%s1881 + $0x8] sm:$0xff]
    %v1884 = vld [vmem:[%s1881 + $0x10] sm:$0xff]
    %v1885 = vld [vmem:[%s1881 + $0x18] sm:$0xff]
    %v1886 = vld [vmem:[%s1881 + $0x20] sm:$0xff]
    %v1887 = vld [vmem:[%s1881 + $0x28] sm:$0xff]
    %v1888 = vld [vmem:[%s1881 + $0x30] sm:$0xff]
    %v1889 = vld [vmem:[%s1881 + $0x38] sm:$0xff]
    %v1890 = vld [vmem:[%s1881 + $0x40] sm:$0xff]
    %v1891 = vld [vmem:[%s1881 + $0x48] sm:$0xff]
    %v1892 = vld [vmem:[%s1881 + $0x50] sm:$0xff]
    %v1893 = vld [vmem:[%s1881 + $0x58] sm:$0xff]
    %v1894 = vld [vmem:[%s1881 + $0x60] sm:$0xff]
    %v1895 = vld [vmem:[%s1881 + $0x68] sm:$0xff]
    %v1896 = vld [vmem:[%s1881 + $0x70] sm:$0xff]
    %v1897 = vld [vmem:[%s1881 + $0x78] sm:$0xff]
    %v1898 = vld [vmem:[%s1881 + $0x80] sm:$0xff]
    %v1899 = vld [vmem:[%s1881 + $0x88] sm:$0xff]
    %v1900 = vld [vmem:[%s1881 + $0x90] sm:$0xff]
    %v1901 = vld [vmem:[%s1881 + $0x98] sm:$0xff]
    %v1902 = vld [vmem:[%s1881 + $0xa0] sm:$0xff]
    %v1903 = vld [vmem:[%s1881 + $0xa8] sm:$0xff]
    %v1904 = vld [vmem:[%s1881 + $0xb0] sm:$0xff]
    %v1905 = vld [vmem:[%s1881 + $0xb8] sm:$0xff]
    %v1906 = vld [vmem:[%s1881 + $0xc0] sm:$0xff]
    %v1907 = vld [vmem:[%s1881 + $0xc8] sm:$0xff]
    %v1908 = vld [vmem:[%s1881 + $0xd0] sm:$0xff]
    %v1909 = vld [vmem:[%s1881 + $0xd8] sm:$0xff]
    %v1910 = vld [vmem:[%s1881 + $0xe0] sm:$0xff]
    %v1911 = vld [vmem:[%s1881 + $0xe8] sm:$0xff]
    %v1912 = vld [vmem:[%s1881 + $0xf0] sm:$0xff]
    %v1913 = vld [vmem:[%s1881 + $0xf8] sm:$0xff]
    %s1914 = scalar_lea.vmem %s13, 8
    %v1915 = vld [vmem:[%s1914] sm:$0xff]
    %v1917 = vlaneseq
    %v1918 = vshrl.u32 %v1917, 7
    %v1919 = vsub.s32 0, %v1918
    %v1920 = vrot.slane %v1915, %v1919
    %v1921 = vlaneseq
    %v1922 = vshrl.u32 %v1921, 7
    %v1923 = vsub.s32 1, %v1922
    %v1924 = vrot.slane %v1915, %v1923
    %v1925 = vlaneseq
    %v1926 = vshrl.u32 %v1925, 7
    %v1927 = vsub.s32 2, %v1926
    %v1928 = vrot.slane %v1915, %v1927
    %v1929 = vlaneseq
    %v1930 = vshrl.u32 %v1929, 7
    %v1931 = vsub.s32 3, %v1930
    %v1932 = vrot.slane %v1915, %v1931
    %v1933 = vlaneseq
    %v1934 = vshrl.u32 %v1933, 7
    %v1935 = vsub.s32 4, %v1934
    %v1936 = vrot.slane %v1915, %v1935
    %v1937 = vlaneseq
    %v1938 = vshrl.u32 %v1937, 7
    %v1939 = vsub.s32 5, %v1938
    %v1940 = vrot.slane %v1915, %v1939
    %v1941 = vlaneseq
    %v1942 = vshrl.u32 %v1941, 7
    %v1943 = vsub.s32 6, %v1942
    %v1944 = vrot.slane %v1915, %v1943
    %v1945 = vlaneseq
    %v1946 = vshrl.u32 %v1945, 7
    %v1947 = vsub.s32 7, %v1946
    %v1948 = vrot.slane %v1915, %v1947
    %1957 = vmatprep.subr.mxu0 0.0
    %1958 = vmatpush1.msra.mxu0 0.0
    %1959 = vmatprep.subr.mxu0 0.0
    %1960 = vmatpush1.msra.mxu0 0.0
    %1961 = vmatprep.subr.mxu0 0.0
    %1962 = vmatpush1.msra.mxu0 0.0
    %1963 = vmatprep.subr.mxu0 0.0
    %1964 = vmatpush1.msra.mxu0 0.0
    %1965 = vmatprep.subr.mxu0 0.0
    %1966 = vmatpush1.msra.mxu0 0.0
    %1967 = vmatprep.subr.mxu0 0.0
    %1968 = vmatpush1.msra.mxu0 0.0
    %1969 = vmatprep.subr.mxu0 0.0
    %1970 = vmatpush1.msra.mxu0 0.0
    %1971 = vmatprep.subr.mxu0 0.0
    %1972 = vmatpush1.msra.mxu0 0.0
    %1973 = vmatprep.subr.mxu0 0.0
    %1974 = vmatpush1.msra.mxu0 0.0
    %1975 = vmatprep.subr.mxu0 0.0
    %1976 = vmatpush1.msra.mxu0 0.0
    %1977 = vmatprep.subr.mxu0 0.0
    %1978 = vmatpush1.msra.mxu0 0.0
    %1979 = vmatprep.subr.mxu0 0.0
    %1980 = vmatpush1.msra.mxu0 0.0
    %1981 = vmatprep.subr.mxu0 %v1907
    %1982 = vmatpush1.msra.mxu0 %v1906
    %1983 = vmatprep.subr.mxu0 %v1899
    %1984 = vmatpush1.msra.mxu0 %v1898
    %1985 = vmatprep.subr.mxu0 %v1891
    %1986 = vmatpush1.msra.mxu0 %v1890
    %1987 = vmatprep.subr.mxu0 %v1883
    %1988 = vmatpush1.msra.mxu0 %v1882
    %1989 = vmatprep.subr.mxu0 0.0
    %1990 = vmatpush2.msra.mxu0 0.0
    %1991 = vmatprep.subr.mxu0 0.0
    %1992 = vmatpush2.msra.mxu0 0.0
    %1993 = vmatprep.subr.mxu0 0.0
    %1994 = vmatpush2.msra.mxu0 0.0
    %1995 = vmatprep.subr.mxu0 0.0
    %1996 = vmatpush2.msra.mxu0 0.0
    %1997 = vmatprep.subr.mxu0 0.0
    %1998 = vmatpush2.msra.mxu0 0.0
    %1999 = vmatprep.subr.mxu0 0.0
    %2000 = vmatpush2.msra.mxu0 0.0
    %2001 = vmatprep.subr.mxu0 0.0
    %2002 = vmatpush2.msra.mxu0 0.0
    %2003 = vmatprep.subr.mxu0 0.0
    %2004 = vmatpush2.msra.mxu0 0.0
    %2005 = vmatprep.subr.mxu0 0.0
    %2006 = vmatpush2.msra.mxu0 0.0
    %2007 = vmatprep.subr.mxu0 0.0
    %2008 = vmatpush2.msra.mxu0 0.0
    %2009 = vmatprep.subr.mxu0 0.0
    %2010 = vmatpush2.msra.mxu0 0.0
    %2011 = vmatprep.subr.mxu0 0.0
    %2012 = vmatpush2.msra.mxu0 0.0
    %2013 = vmatprep.subr.mxu0 0.0
    %2014 = vmatpush2.msra.mxu0 0.0
    %2015 = vmatprep.subr.mxu0 0.0
    %2016 = vmatpush2.msra.mxu0 0.0
    %2017 = vmatprep.subr.mxu0 0.0
    %2018 = vmatpush2.msra.mxu0 0.0
    %2019 = vmatprep.subr.mxu0 0.0
    %2020 = vmatpush2.msra.mxu0 0.0
    %2021 = vmatprep.mubr.f32.mxu0 0.0
    %2022 = vmatmul.mubr.f32.gmra.mxu0 %v1055
    %v2023 = vpop.f32.mrf.mxu0
    %v2024 = vadd.f32 %v1920, %v2023
    %v2025 = vpop.f32.mrf.mxu0
    %v2026 = vadd.f32 %v1924, %v2025
    %2027 = vdwg.mxu0
    %2028 = vmatprep.subr.mxu0 0.0
    %2029 = vmatpush1.msra.mxu0 0.0
    %2030 = vmatprep.subr.mxu0 0.0
    %2031 = vmatpush1.msra.mxu0 0.0
    %2032 = vmatprep.subr.mxu0 0.0
    %2033 = vmatpush1.msra.mxu0 0.0
    %2034 = vmatprep.subr.mxu0 0.0
    %2035 = vmatpush1.msra.mxu0 0.0
    %2036 = vmatprep.subr.mxu0 0.0
    %2037 = vmatpush1.msra.mxu0 0.0
    %2038 = vmatprep.subr.mxu0 0.0
    %2039 = vmatpush1.msra.mxu0 0.0
    %2040 = vmatprep.subr.mxu0 0.0
    %2041 = vmatpush1.msra.mxu0 0.0
    %2042 = vmatprep.subr.mxu0 0.0
    %2043 = vmatpush1.msra.mxu0 0.0
    %2044 = vmatprep.subr.mxu0 0.0
    %2045 = vmatpush1.msra.mxu0 0.0
    %2046 = vmatprep.subr.mxu0 0.0
    %2047 = vmatpush1.msra.mxu0 0.0
    %2048 = vmatprep.subr.mxu0 0.0
    %2049 = vmatpush1.msra.mxu0 0.0
    %2050 = vmatprep.subr.mxu0 0.0
    %2051 = vmatpush1.msra.mxu0 0.0
    %2052 = vmatprep.subr.mxu0 %v1909
    %2053 = vmatpush1.msra.mxu0 %v1908
    %2054 = vmatprep.subr.mxu0 %v1901
    %2055 = vmatpush1.msra.mxu0 %v1900
    %2056 = vmatprep.subr.mxu0 %v1893
    %2057 = vmatpush1.msra.mxu0 %v1892
    %2058 = vmatprep.subr.mxu0 %v1885
    %2059 = vmatpush1.msra.mxu0 %v1884
    %2060 = vmatprep.subr.mxu0 0.0
    %2061 = vmatpush2.msra.mxu0 0.0
    %2062 = vmatprep.subr.mxu0 0.0
    %2063 = vmatpush2.msra.mxu0 0.0
    %2064 = vmatprep.subr.mxu0 0.0
    %2065 = vmatpush2.msra.mxu0 0.0
    %2066 = vmatprep.subr.mxu0 0.0
    %2067 = vmatpush2.msra.mxu0 0.0
    %2068 = vmatprep.subr.mxu0 0.0
    %2069 = vmatpush2.msra.mxu0 0.0
    %2070 = vmatprep.subr.mxu0 0.0
    %2071 = vmatpush2.msra.mxu0 0.0
    %2072 = vmatprep.subr.mxu0 0.0
    %2073 = vmatpush2.msra.mxu0 0.0
    %2074 = vmatprep.subr.mxu0 0.0
    %2075 = vmatpush2.msra.mxu0 0.0
    %2076 = vmatprep.subr.mxu0 0.0
    %2077 = vmatpush2.msra.mxu0 0.0
    %2078 = vmatprep.subr.mxu0 0.0
    %2079 = vmatpush2.msra.mxu0 0.0
    %2080 = vmatprep.subr.mxu0 0.0
    %2081 = vmatpush2.msra.mxu0 0.0
    %2082 = vmatprep.subr.mxu0 0.0
    %2083 = vmatpush2.msra.mxu0 0.0
    %2084 = vmatprep.subr.mxu0 0.0
    %2085 = vmatpush2.msra.mxu0 0.0
    %2086 = vmatprep.subr.mxu0 0.0
    %2087 = vmatpush2.msra.mxu0 0.0
    %2088 = vmatprep.subr.mxu0 0.0
    %2089 = vmatpush2.msra.mxu0 0.0
    %2090 = vmatprep.subr.mxu0 0.0
    %2091 = vmatpush2.msra.mxu0 0.0
    %2092 = vmatprep.mubr.f32.mxu0 0.0
    %2093 = vmatmul.mubr.f32.gmra.mxu0 %v1055
    %v2094 = vpop.f32.mrf.mxu0
    %v2095 = vadd.f32 %v1928, %v2094
    %v2096 = vpop.f32.mrf.mxu0
    %v2097 = vadd.f32 %v1932, %v2096
    %2098 = vdwg.mxu0
    %2099 = vmatprep.subr.mxu0 0.0
    %2100 = vmatpush1.msra.mxu0 0.0
    %2101 = vmatprep.subr.mxu0 0.0
    %2102 = vmatpush1.msra.mxu0 0.0
    %2103 = vmatprep.subr.mxu0 0.0
    %2104 = vmatpush1.msra.mxu0 0.0
    %2105 = vmatprep.subr.mxu0 0.0
    %2106 = vmatpush1.msra.mxu0 0.0
    %2107 = vmatprep.subr.mxu0 0.0
    %2108 = vmatpush1.msra.mxu0 0.0
    %2109 = vmatprep.subr.mxu0 0.0
    %2110 = vmatpush1.msra.mxu0 0.0
    %2111 = vmatprep.subr.mxu0 0.0
    %2112 = vmatpush1.msra.mxu0 0.0
    %2113 = vmatprep.subr.mxu0 0.0
    %2114 = vmatpush1.msra.mxu0 0.0
    %2115 = vmatprep.subr.mxu0 0.0
    %2116 = vmatpush1.msra.mxu0 0.0
    %2117 = vmatprep.subr.mxu0 0.0
    %2118 = vmatpush1.msra.mxu0 0.0
    %2119 = vmatprep.subr.mxu0 0.0
    %2120 = vmatpush1.msra.mxu0 0.0
    %2121 = vmatprep.subr.mxu0 0.0
    %2122 = vmatpush1.msra.mxu0 0.0
    %2123 = vmatprep.subr.mxu0 %v1911
    %2124 = vmatpush1.msra.mxu0 %v1910
    %2125 = vmatprep.subr.mxu0 %v1903
    %2126 = vmatpush1.msra.mxu0 %v1902
    %2127 = vmatprep.subr.mxu0 %v1895
    %2128 = vmatpush1.msra.mxu0 %v1894
    %2129 = vmatprep.subr.mxu0 %v1887
    %2130 = vmatpush1.msra.mxu0 %v1886
    %2131 = vmatprep.subr.mxu0 0.0
    %2132 = vmatpush2.msra.mxu0 0.0
    %2133 = vmatprep.subr.mxu0 0.0
    %2134 = vmatpush2.msra.mxu0 0.0
    %2135 = vmatprep.subr.mxu0 0.0
    %2136 = vmatpush2.msra.mxu0 0.0
    %2137 = vmatprep.subr.mxu0 0.0
    %2138 = vmatpush2.msra.mxu0 0.0
    %2139 = vmatprep.subr.mxu0 0.0
    %2140 = vmatpush2.msra.mxu0 0.0
    %2141 = vmatprep.subr.mxu0 0.0
    %2142 = vmatpush2.msra.mxu0 0.0
    %2143 = vmatprep.subr.mxu0 0.0
    %2144 = vmatpush2.msra.mxu0 0.0
    %2145 = vmatprep.subr.mxu0 0.0
    %2146 = vmatpush2.msra.mxu0 0.0
    %2147 = vmatprep.subr.mxu0 0.0
    %2148 = vmatpush2.msra.mxu0 0.0
    %2149 = vmatprep.subr.mxu0 0.0
    %2150 = vmatpush2.msra.mxu0 0.0
    %2151 = vmatprep.subr.mxu0 0.0
    %2152 = vmatpush2.msra.mxu0 0.0
    %2153 = vmatprep.subr.mxu0 0.0
    %2154 = vmatpush2.msra.mxu0 0.0
    %2155 = vmatprep.subr.mxu0 0.0
    %2156 = vmatpush2.msra.mxu0 0.0
    %2157 = vmatprep.subr.mxu0 0.0
    %2158 = vmatpush2.msra.mxu0 0.0
    %2159 = vmatprep.subr.mxu0 0.0
    %2160 = vmatpush2.msra.mxu0 0.0
    %2161 = vmatprep.subr.mxu0 0.0
    %2162 = vmatpush2.msra.mxu0 0.0
    %2163 = vmatprep.mubr.f32.mxu0 0.0
    %2164 = vmatmul.mubr.f32.gmra.mxu0 %v1055
    %v2165 = vpop.f32.mrf.mxu0
    %v2166 = vadd.f32 %v1936, %v2165
    %v2167 = vpop.f32.mrf.mxu0
    %v2168 = vadd.f32 %v1940, %v2167
    %2169 = vdwg.mxu0
    %2170 = vmatprep.subr.mxu0 0.0
    %2171 = vmatpush1.msra.mxu0 0.0
    %2172 = vmatprep.subr.mxu0 0.0
    %2173 = vmatpush1.msra.mxu0 0.0
    %2174 = vmatprep.subr.mxu0 0.0
    %2175 = vmatpush1.msra.mxu0 0.0
    %2176 = vmatprep.subr.mxu0 0.0
    %2177 = vmatpush1.msra.mxu0 0.0
    %2178 = vmatprep.subr.mxu0 0.0
    %2179 = vmatpush1.msra.mxu0 0.0
    %2180 = vmatprep.subr.mxu0 0.0
    %2181 = vmatpush1.msra.mxu0 0.0
    %2182 = vmatprep.subr.mxu0 0.0
    %2183 = vmatpush1.msra.mxu0 0.0
    %2184 = vmatprep.subr.mxu0 0.0
    %2185 = vmatpush1.msra.mxu0 0.0
    %2186 = vmatprep.subr.mxu0 0.0
    %2187 = vmatpush1.msra.mxu0 0.0
    %2188 = vmatprep.subr.mxu0 0.0
    %2189 = vmatpush1.msra.mxu0 0.0
    %2190 = vmatprep.subr.mxu0 0.0
    %2191 = vmatpush1.msra.mxu0 0.0
    %2192 = vmatprep.subr.mxu0 0.0
    %2193 = vmatpush1.msra.mxu0 0.0
    %2194 = vmatprep.subr.mxu0 %v1913
    %2195 = vmatpush1.msra.mxu0 %v1912
    %2196 = vmatprep.subr.mxu0 %v1905
    %2197 = vmatpush1.msra.mxu0 %v1904
    %2198 = vmatprep.subr.mxu0 %v1897
    %2199 = vmatpush1.msra.mxu0 %v1896
    %2200 = vmatprep.subr.mxu0 %v1889
    %2201 = vmatpush1.msra.mxu0 %v1888
    %2202 = vmatprep.subr.mxu0 0.0
    %2203 = vmatpush2.msra.mxu0 0.0
    %2204 = vmatprep.subr.mxu0 0.0
    %2205 = vmatpush2.msra.mxu0 0.0
    %2206 = vmatprep.subr.mxu0 0.0
    %2207 = vmatpush2.msra.mxu0 0.0
    %2208 = vmatprep.subr.mxu0 0.0
    %2209 = vmatpush2.msra.mxu0 0.0
    %2210 = vmatprep.subr.mxu0 0.0
    %2211 = vmatpush2.msra.mxu0 0.0
    %2212 = vmatprep.subr.mxu0 0.0
    %2213 = vmatpush2.msra.mxu0 0.0
    %2214 = vmatprep.subr.mxu0 0.0
    %2215 = vmatpush2.msra.mxu0 0.0
    %2216 = vmatprep.subr.mxu0 0.0
    %2217 = vmatpush2.msra.mxu0 0.0
    %2218 = vmatprep.subr.mxu0 0.0
    %2219 = vmatpush2.msra.mxu0 0.0
    %2220 = vmatprep.subr.mxu0 0.0
    %2221 = vmatpush2.msra.mxu0 0.0
    %2222 = vmatprep.subr.mxu0 0.0
    %2223 = vmatpush2.msra.mxu0 0.0
    %2224 = vmatprep.subr.mxu0 0.0
    %2225 = vmatpush2.msra.mxu0 0.0
    %2226 = vmatprep.subr.mxu0 0.0
    %2227 = vmatpush2.msra.mxu0 0.0
    %2228 = vmatprep.subr.mxu0 0.0
    %2229 = vmatpush2.msra.mxu0 0.0
    %2230 = vmatprep.subr.mxu0 0.0
    %2231 = vmatpush2.msra.mxu0 0.0
    %2232 = vmatprep.subr.mxu0 0.0
    %2233 = vmatpush2.msra.mxu0 0.0
    %2234 = vmatprep.mubr.f32.mxu0 0.0
    %2235 = vmatmul.mubr.f32.gmra.mxu0 %v1055
    %v2236 = vpop.f32.mrf.mxu0
    %v2237 = vadd.f32 %v1944, %v2236
    %v2238 = vpop.f32.mrf.mxu0
    %v2239 = vadd.f32 %v1948, %v2238
    %2240 = vdwg.mxu0
    %v2241 = vmul.f32 %v2024, 0.5
    %v2242 = vmul.f32 %v2026, 0.5
    %v2243 = vmul.f32 %v2095, 0.5
    %v2244 = vmul.f32 %v2097, 0.5
    %v2245 = vmul.f32 %v2166, 0.5
    %v2246 = vmul.f32 %v2168, 0.5
    %v2247 = vmul.f32 %v2237, 0.5
    %v2248 = vmul.f32 %v2239, 0.5
    %v2249 = vmul.f32 %v2024, 0.044715
    %v2250 = vmul.f32 %v2026, 0.044715
    %v2251 = vmul.f32 %v2095, 0.044715
    %v2252 = vmul.f32 %v2097, 0.044715
    %v2253 = vmul.f32 %v2166, 0.044715
    %v2254 = vmul.f32 %v2168, 0.044715
    %v2255 = vmul.f32 %v2237, 0.044715
    %v2256 = vmul.f32 %v2239, 0.044715
    %v2257 = vmul.f32 %v2249, %v2024
    %v2258 = vmul.f32 %v2250, %v2026
    %v2259 = vmul.f32 %v2251, %v2095
    %v2260 = vmul.f32 %v2252, %v2097
    %v2261 = vmul.f32 %v2253, %v2166
    %v2262 = vmul.f32 %v2254, %v2168
    %v2263 = vmul.f32 %v2255, %v2237
    %v2264 = vmul.f32 %v2256, %v2239
    %v2265 = vmul.f32 %v2257, %v2024
    %v2266 = vmul.f32 %v2258, %v2026
    %v2267 = vmul.f32 %v2259, %v2095
    %v2268 = vmul.f32 %v2260, %v2097
    %v2269 = vmul.f32 %v2261, %v2166
    %v2270 = vmul.f32 %v2262, %v2168
    %v2271 = vmul.f32 %v2263, %v2237
    %v2272 = vmul.f32 %v2264, %v2239
    %v2273 = vadd.f32 %v2024, %v2265
    %v2274 = vadd.f32 %v2026, %v2266
    %v2275 = vadd.f32 %v2095, %v2267
    %v2276 = vadd.f32 %v2097, %v2268
    %v2277 = vadd.f32 %v2166, %v2269
    %v2278 = vadd.f32 %v2168, %v2270
    %v2279 = vadd.f32 %v2237, %v2271
    %v2280 = vadd.f32 %v2239, %v2272
    %v2281 = vmul.f32 %v2273, 0.7978846
    %v2282 = vmul.f32 %v2274, 0.7978846
    %v2283 = vmul.f32 %v2275, 0.7978846
    %v2284 = vmul.f32 %v2276, 0.7978846
    %v2285 = vmul.f32 %v2277, 0.7978846
    %v2286 = vmul.f32 %v2278, 0.7978846
    %v2287 = vmul.f32 %v2279, 0.7978846
    %v2288 = vmul.f32 %v2280, 0.7978846
    %v2289 = vtanh.pop %v2281
    %v2290 = vtanh.pop %v2282
    %v2291 = vtanh.pop %v2283
    %v2292 = vtanh.pop %v2284
    %v2293 = vtanh.pop %v2285
    %v2294 = vtanh.pop %v2286
    %v2295 = vtanh.pop %v2287
    %v2296 = vtanh.pop %v2288
    %v2297 = vadd.f32 %v2289, 1.0
    %v2298 = vadd.f32 %v2290, 1.0
    %v2299 = vadd.f32 %v2291, 1.0
    %v2300 = vadd.f32 %v2292, 1.0
    %v2301 = vadd.f32 %v2293, 1.0
    %v2302 = vadd.f32 %v2294, 1.0
    %v2303 = vadd.f32 %v2295, 1.0
    %v2304 = vadd.f32 %v2296, 1.0
    %v2305 = vmul.f32 %v2241, %v2297
    %v2306 = vmul.f32 %v2242, %v2298
    %v2307 = vmul.f32 %v2243, %v2299
    %v2308 = vmul.f32 %v2244, %v2300
    %v2309 = vmul.f32 %v2245, %v2301
    %v2310 = vmul.f32 %v2246, %v2302
    %v2311 = vmul.f32 %v2247, %v2303
    %v2312 = vmul.f32 %v2248, %v2304
    %v2313 = vmul.f32 %v1863, %v2305
    %v2314 = vmul.f32 %v1863, %v2306
    %v2315 = vmul.f32 %v1863, %v2307
    %v2316 = vmul.f32 %v1863, %v2308
    %v2317 = vmul.f32 %v1863, %v2309
    %v2318 = vmul.f32 %v1863, %v2310
    %v2319 = vmul.f32 %v1863, %v2311
    %v2320 = vmul.f32 %v1863, %v2312
    %v2321 = vadd.f32 %v1421, %v2313
    %v2322 = vadd.f32 %v1422, %v2314
    %v2323 = vadd.f32 %v1423, %v2315
    %v2324 = vadd.f32 %v1424, %v2316
    %v2325 = vadd.f32 %v1425, %v2317
    %v2326 = vadd.f32 %v1426, %v2318
    %v2327 = vadd.f32 %v1427, %v2319
    %v2328 = vadd.f32 %v1428, %v2320
    %s2329 = scalar_lea.vmem %s10, 512
    %v2330 = vld [vmem:[%s2329] sm:$0xff]
    %v2331 = vld [vmem:[%s2329 + $0x8] sm:$0xff]
    %v2332 = vld [vmem:[%s2329 + $0x10] sm:$0xff]
    %v2333 = vld [vmem:[%s2329 + $0x18] sm:$0xff]
    %v2334 = vld [vmem:[%s2329 + $0x20] sm:$0xff]
    %v2335 = vld [vmem:[%s2329 + $0x28] sm:$0xff]
    %v2336 = vld [vmem:[%s2329 + $0x30] sm:$0xff]
    %v2337 = vld [vmem:[%s2329 + $0x38] sm:$0xff]
    %v2338 = vld [vmem:[%s2329 + $0x40] sm:$0xff]
    %v2339 = vld [vmem:[%s2329 + $0x48] sm:$0xff]
    %v2340 = vld [vmem:[%s2329 + $0x50] sm:$0xff]
    %v2341 = vld [vmem:[%s2329 + $0x58] sm:$0xff]
    %v2342 = vld [vmem:[%s2329 + $0x60] sm:$0xff]
    %v2343 = vld [vmem:[%s2329 + $0x68] sm:$0xff]
    %v2344 = vld [vmem:[%s2329 + $0x70] sm:$0xff]
    %v2345 = vld [vmem:[%s2329 + $0x78] sm:$0xff]
    %v2346 = vld [vmem:[%s2329 + $0x80] sm:$0xff]
    %v2347 = vld [vmem:[%s2329 + $0x88] sm:$0xff]
    %v2348 = vld [vmem:[%s2329 + $0x90] sm:$0xff]
    %v2349 = vld [vmem:[%s2329 + $0x98] sm:$0xff]
    %v2350 = vld [vmem:[%s2329 + $0xa0] sm:$0xff]
    %v2351 = vld [vmem:[%s2329 + $0xa8] sm:$0xff]
    %v2352 = vld [vmem:[%s2329 + $0xb0] sm:$0xff]
    %v2353 = vld [vmem:[%s2329 + $0xb8] sm:$0xff]
    %v2354 = vld [vmem:[%s2329 + $0xc0] sm:$0xff]
    %v2355 = vld [vmem:[%s2329 + $0xc8] sm:$0xff]
    %v2356 = vld [vmem:[%s2329 + $0xd0] sm:$0xff]
    %v2357 = vld [vmem:[%s2329 + $0xd8] sm:$0xff]
    %v2358 = vld [vmem:[%s2329 + $0xe0] sm:$0xff]
    %v2359 = vld [vmem:[%s2329 + $0xe8] sm:$0xff]
    %v2360 = vld [vmem:[%s2329 + $0xf0] sm:$0xff]
    %v2361 = vld [vmem:[%s2329 + $0xf8] sm:$0xff]
    %s2362 = scalar_lea.vmem %s11, 16
    %v2363 = vld [vmem:[%s2362] sm:$0xff]
    %v2365 = vlaneseq
    %v2366 = vshrl.u32 %v2365, 7
    %v2367 = vsub.s32 0, %v2366
    %v2368 = vrot.slane %v2363, %v2367
    %v2369 = vlaneseq
    %v2370 = vshrl.u32 %v2369, 7
    %v2371 = vsub.s32 1, %v2370
    %v2372 = vrot.slane %v2363, %v2371
    %v2373 = vlaneseq
    %v2374 = vshrl.u32 %v2373, 7
    %v2375 = vsub.s32 2, %v2374
    %v2376 = vrot.slane %v2363, %v2375
    %v2377 = vlaneseq
    %v2378 = vshrl.u32 %v2377, 7
    %v2379 = vsub.s32 3, %v2378
    %v2380 = vrot.slane %v2363, %v2379
    %v2381 = vlaneseq
    %v2382 = vshrl.u32 %v2381, 7
    %v2383 = vsub.s32 4, %v2382
    %v2384 = vrot.slane %v2363, %v2383
    %v2385 = vlaneseq
    %v2386 = vshrl.u32 %v2385, 7
    %v2387 = vsub.s32 5, %v2386
    %v2388 = vrot.slane %v2363, %v2387
    %v2389 = vlaneseq
    %v2390 = vshrl.u32 %v2389, 7
    %v2391 = vsub.s32 6, %v2390
    %v2392 = vrot.slane %v2363, %v2391
    %v2393 = vlaneseq
    %v2394 = vshrl.u32 %v2393, 7
    %v2395 = vsub.s32 7, %v2394
    %v2396 = vrot.slane %v2363, %v2395
    %2405 = vmatprep.subr.mxu0 0.0
    %2406 = vmatpush1.msra.mxu0 0.0
    %2407 = vmatprep.subr.mxu0 0.0
    %2408 = vmatpush1.msra.mxu0 0.0
    %2409 = vmatprep.subr.mxu0 0.0
    %2410 = vmatpush1.msra.mxu0 0.0
    %2411 = vmatprep.subr.mxu0 0.0
    %2412 = vmatpush1.msra.mxu0 0.0
    %2413 = vmatprep.subr.mxu0 0.0
    %2414 = vmatpush1.msra.mxu0 0.0
    %2415 = vmatprep.subr.mxu0 0.0
    %2416 = vmatpush1.msra.mxu0 0.0
    %2417 = vmatprep.subr.mxu0 0.0
    %2418 = vmatpush1.msra.mxu0 0.0
    %2419 = vmatprep.subr.mxu0 0.0
    %2420 = vmatpush1.msra.mxu0 0.0
    %2421 = vmatprep.subr.mxu0 0.0
    %2422 = vmatpush1.msra.mxu0 0.0
    %2423 = vmatprep.subr.mxu0 0.0
    %2424 = vmatpush1.msra.mxu0 0.0
    %2425 = vmatprep.subr.mxu0 0.0
    %2426 = vmatpush1.msra.mxu0 0.0
    %2427 = vmatprep.subr.mxu0 0.0
    %2428 = vmatpush1.msra.mxu0 0.0
    %2429 = vmatprep.subr.mxu0 %v2355
    %2430 = vmatpush1.msra.mxu0 %v2354
    %2431 = vmatprep.subr.mxu0 %v2347
    %2432 = vmatpush1.msra.mxu0 %v2346
    %2433 = vmatprep.subr.mxu0 %v2339
    %2434 = vmatpush1.msra.mxu0 %v2338
    %2435 = vmatprep.subr.mxu0 %v2331
    %2436 = vmatpush1.msra.mxu0 %v2330
    %2437 = vmatprep.subr.mxu0 0.0
    %2438 = vmatpush2.msra.mxu0 0.0
    %2439 = vmatprep.subr.mxu0 0.0
    %2440 = vmatpush2.msra.mxu0 0.0
    %2441 = vmatprep.subr.mxu0 0.0
    %2442 = vmatpush2.msra.mxu0 0.0
    %2443 = vmatprep.subr.mxu0 0.0
    %2444 = vmatpush2.msra.mxu0 0.0
    %2445 = vmatprep.subr.mxu0 0.0
    %2446 = vmatpush2.msra.mxu0 0.0
    %2447 = vmatprep.subr.mxu0 0.0
    %2448 = vmatpush2.msra.mxu0 0.0
    %2449 = vmatprep.subr.mxu0 0.0
    %2450 = vmatpush2.msra.mxu0 0.0
    %2451 = vmatprep.subr.mxu0 0.0
    %2452 = vmatpush2.msra.mxu0 0.0
    %2453 = vmatprep.subr.mxu0 0.0
    %2454 = vmatpush2.msra.mxu0 0.0
    %2455 = vmatprep.subr.mxu0 0.0
    %2456 = vmatpush2.msra.mxu0 0.0
    %2457 = vmatprep.subr.mxu0 0.0
    %2458 = vmatpush2.msra.mxu0 0.0
    %2459 = vmatprep.subr.mxu0 0.0
    %2460 = vmatpush2.msra.mxu0 0.0
    %2461 = vmatprep.subr.mxu0 0.0
    %2462 = vmatpush2.msra.mxu0 0.0
    %2463 = vmatprep.subr.mxu0 0.0
    %2464 = vmatpush2.msra.mxu0 0.0
    %2465 = vmatprep.subr.mxu0 0.0
    %2466 = vmatpush2.msra.mxu0 0.0
    %2467 = vmatprep.subr.mxu0 0.0
    %2468 = vmatpush2.msra.mxu0 0.0
    %2469 = vmatprep.mubr.f32.mxu0 0.0
    %2470 = vmatmul.mubr.f32.gmra.mxu0 %v599
    %v2471 = vpop.f32.mrf.mxu0
    %v2472 = vadd.f32 %v2368, %v2471
    %v2473 = vpop.f32.mrf.mxu0
    %v2474 = vadd.f32 %v2372, %v2473
    %2475 = vdwg.mxu0
    %2476 = vmatprep.subr.mxu0 0.0
    %2477 = vmatpush1.msra.mxu0 0.0
    %2478 = vmatprep.subr.mxu0 0.0
    %2479 = vmatpush1.msra.mxu0 0.0
    %2480 = vmatprep.subr.mxu0 0.0
    %2481 = vmatpush1.msra.mxu0 0.0
    %2482 = vmatprep.subr.mxu0 0.0
    %2483 = vmatpush1.msra.mxu0 0.0
    %2484 = vmatprep.subr.mxu0 0.0
    %2485 = vmatpush1.msra.mxu0 0.0
    %2486 = vmatprep.subr.mxu0 0.0
    %2487 = vmatpush1.msra.mxu0 0.0
    %2488 = vmatprep.subr.mxu0 0.0
    %2489 = vmatpush1.msra.mxu0 0.0
    %2490 = vmatprep.subr.mxu0 0.0
    %2491 = vmatpush1.msra.mxu0 0.0
    %2492 = vmatprep.subr.mxu0 0.0
    %2493 = vmatpush1.msra.mxu0 0.0
    %2494 = vmatprep.subr.mxu0 0.0
    %2495 = vmatpush1.msra.mxu0 0.0
    %2496 = vmatprep.subr.mxu0 0.0
    %2497 = vmatpush1.msra.mxu0 0.0
    %2498 = vmatprep.subr.mxu0 0.0
    %2499 = vmatpush1.msra.mxu0 0.0
    %2500 = vmatprep.subr.mxu0 %v2357
    %2501 = vmatpush1.msra.mxu0 %v2356
    %2502 = vmatprep.subr.mxu0 %v2349
    %2503 = vmatpush1.msra.mxu0 %v2348
    %2504 = vmatprep.subr.mxu0 %v2341
    %2505 = vmatpush1.msra.mxu0 %v2340
    %2506 = vmatprep.subr.mxu0 %v2333
    %2507 = vmatpush1.msra.mxu0 %v2332
    %2508 = vmatprep.subr.mxu0 0.0
    %2509 = vmatpush2.msra.mxu0 0.0
    %2510 = vmatprep.subr.mxu0 0.0
    %2511 = vmatpush2.msra.mxu0 0.0
    %2512 = vmatprep.subr.mxu0 0.0
    %2513 = vmatpush2.msra.mxu0 0.0
    %2514 = vmatprep.subr.mxu0 0.0
    %2515 = vmatpush2.msra.mxu0 0.0
    %2516 = vmatprep.subr.mxu0 0.0
    %2517 = vmatpush2.msra.mxu0 0.0
    %2518 = vmatprep.subr.mxu0 0.0
    %2519 = vmatpush2.msra.mxu0 0.0
    %2520 = vmatprep.subr.mxu0 0.0
    %2521 = vmatpush2.msra.mxu0 0.0
    %2522 = vmatprep.subr.mxu0 0.0
    %2523 = vmatpush2.msra.mxu0 0.0
    %2524 = vmatprep.subr.mxu0 0.0
    %2525 = vmatpush2.msra.mxu0 0.0
    %2526 = vmatprep.subr.mxu0 0.0
    %2527 = vmatpush2.msra.mxu0 0.0
    %2528 = vmatprep.subr.mxu0 0.0
    %2529 = vmatpush2.msra.mxu0 0.0
    %2530 = vmatprep.subr.mxu0 0.0
    %2531 = vmatpush2.msra.mxu0 0.0
    %2532 = vmatprep.subr.mxu0 0.0
    %2533 = vmatpush2.msra.mxu0 0.0
    %2534 = vmatprep.subr.mxu0 0.0
    %2535 = vmatpush2.msra.mxu0 0.0
    %2536 = vmatprep.subr.mxu0 0.0
    %2537 = vmatpush2.msra.mxu0 0.0
    %2538 = vmatprep.subr.mxu0 0.0
    %2539 = vmatpush2.msra.mxu0 0.0
    %2540 = vmatprep.mubr.f32.mxu0 0.0
    %2541 = vmatmul.mubr.f32.gmra.mxu0 %v599
    %v2542 = vpop.f32.mrf.mxu0
    %v2543 = vadd.f32 %v2376, %v2542
    %v2544 = vpop.f32.mrf.mxu0
    %v2545 = vadd.f32 %v2380, %v2544
    %2546 = vdwg.mxu0
    %2547 = vmatprep.subr.mxu0 0.0
    %2548 = vmatpush1.msra.mxu0 0.0
    %2549 = vmatprep.subr.mxu0 0.0
    %2550 = vmatpush1.msra.mxu0 0.0
    %2551 = vmatprep.subr.mxu0 0.0
    %2552 = vmatpush1.msra.mxu0 0.0
    %2553 = vmatprep.subr.mxu0 0.0
    %2554 = vmatpush1.msra.mxu0 0.0
    %2555 = vmatprep.subr.mxu0 0.0
    %2556 = vmatpush1.msra.mxu0 0.0
    %2557 = vmatprep.subr.mxu0 0.0
    %2558 = vmatpush1.msra.mxu0 0.0
    %2559 = vmatprep.subr.mxu0 0.0
    %2560 = vmatpush1.msra.mxu0 0.0
    %2561 = vmatprep.subr.mxu0 0.0
    %2562 = vmatpush1.msra.mxu0 0.0
    %2563 = vmatprep.subr.mxu0 0.0
    %2564 = vmatpush1.msra.mxu0 0.0
    %2565 = vmatprep.subr.mxu0 0.0
    %2566 = vmatpush1.msra.mxu0 0.0
    %2567 = vmatprep.subr.mxu0 0.0
    %2568 = vmatpush1.msra.mxu0 0.0
    %2569 = vmatprep.subr.mxu0 0.0
    %2570 = vmatpush1.msra.mxu0 0.0
    %2571 = vmatprep.subr.mxu0 %v2359
    %2572 = vmatpush1.msra.mxu0 %v2358
    %2573 = vmatprep.subr.mxu0 %v2351
    %2574 = vmatpush1.msra.mxu0 %v2350
    %2575 = vmatprep.subr.mxu0 %v2343
    %2576 = vmatpush1.msra.mxu0 %v2342
    %2577 = vmatprep.subr.mxu0 %v2335
    %2578 = vmatpush1.msra.mxu0 %v2334
    %2579 = vmatprep.subr.mxu0 0.0
    %2580 = vmatpush2.msra.mxu0 0.0
    %2581 = vmatprep.subr.mxu0 0.0
    %2582 = vmatpush2.msra.mxu0 0.0
    %2583 = vmatprep.subr.mxu0 0.0
    %2584 = vmatpush2.msra.mxu0 0.0
    %2585 = vmatprep.subr.mxu0 0.0
    %2586 = vmatpush2.msra.mxu0 0.0
    %2587 = vmatprep.subr.mxu0 0.0
    %2588 = vmatpush2.msra.mxu0 0.0
    %2589 = vmatprep.subr.mxu0 0.0
    %2590 = vmatpush2.msra.mxu0 0.0
    %2591 = vmatprep.subr.mxu0 0.0
    %2592 = vmatpush2.msra.mxu0 0.0
    %2593 = vmatprep.subr.mxu0 0.0
    %2594 = vmatpush2.msra.mxu0 0.0
    %2595 = vmatprep.subr.mxu0 0.0
    %2596 = vmatpush2.msra.mxu0 0.0
    %2597 = vmatprep.subr.mxu0 0.0
    %2598 = vmatpush2.msra.mxu0 0.0
    %2599 = vmatprep.subr.mxu0 0.0
    %2600 = vmatpush2.msra.mxu0 0.0
    %2601 = vmatprep.subr.mxu0 0.0
    %2602 = vmatpush2.msra.mxu0 0.0
    %2603 = vmatprep.subr.mxu0 0.0
    %2604 = vmatpush2.msra.mxu0 0.0
    %2605 = vmatprep.subr.mxu0 0.0
    %2606 = vmatpush2.msra.mxu0 0.0
    %2607 = vmatprep.subr.mxu0 0.0
    %2608 = vmatpush2.msra.mxu0 0.0
    %2609 = vmatprep.subr.mxu0 0.0
    %2610 = vmatpush2.msra.mxu0 0.0
    %2611 = vmatprep.mubr.f32.mxu0 0.0
    %2612 = vmatmul.mubr.f32.gmra.mxu0 %v599
    %v2613 = vpop.f32.mrf.mxu0
    %v2614 = vadd.f32 %v2384, %v2613
    %v2615 = vpop.f32.mrf.mxu0
    %v2616 = vadd.f32 %v2388, %v2615
    %2617 = vdwg.mxu0
    %2618 = vmatprep.subr.mxu0 0.0
    %2619 = vmatpush1.msra.mxu0 0.0
    %2620 = vmatprep.subr.mxu0 0.0
    %2621 = vmatpush1.msra.mxu0 0.0
    %2622 = vmatprep.subr.mxu0 0.0
    %2623 = vmatpush1.msra.mxu0 0.0
    %2624 = vmatprep.subr.mxu0 0.0
    %2625 = vmatpush1.msra.mxu0 0.0
    %2626 = vmatprep.subr.mxu0 0.0
    %2627 = vmatpush1.msra.mxu0 0.0
    %2628 = vmatprep.subr.mxu0 0.0
    %2629 = vmatpush1.msra.mxu0 0.0
    %2630 = vmatprep.subr.mxu0 0.0
    %2631 = vmatpush1.msra.mxu0 0.0
    %2632 = vmatprep.subr.mxu0 0.0
    %2633 = vmatpush1.msra.mxu0 0.0
    %2634 = vmatprep.subr.mxu0 0.0
    %2635 = vmatpush1.msra.mxu0 0.0
    %2636 = vmatprep.subr.mxu0 0.0
    %2637 = vmatpush1.msra.mxu0 0.0
    %2638 = vmatprep.subr.mxu0 0.0
    %2639 = vmatpush1.msra.mxu0 0.0
    %2640 = vmatprep.subr.mxu0 0.0
    %2641 = vmatpush1.msra.mxu0 0.0
    %2642 = vmatprep.subr.mxu0 %v2361
    %2643 = vmatpush1.msra.mxu0 %v2360
    %2644 = vmatprep.subr.mxu0 %v2353
    %2645 = vmatpush1.msra.mxu0 %v2352
    %2646 = vmatprep.subr.mxu0 %v2345
    %2647 = vmatpush1.msra.mxu0 %v2344
    %2648 = vmatprep.subr.mxu0 %v2337
    %2649 = vmatpush1.msra.mxu0 %v2336
    %2650 = vmatprep.subr.mxu0 0.0
    %2651 = vmatpush2.msra.mxu0 0.0
    %2652 = vmatprep.subr.mxu0 0.0
    %2653 = vmatpush2.msra.mxu0 0.0
    %2654 = vmatprep.subr.mxu0 0.0
    %2655 = vmatpush2.msra.mxu0 0.0
    %2656 = vmatprep.subr.mxu0 0.0
    %2657 = vmatpush2.msra.mxu0 0.0
    %2658 = vmatprep.subr.mxu0 0.0
    %2659 = vmatpush2.msra.mxu0 0.0
    %2660 = vmatprep.subr.mxu0 0.0
    %2661 = vmatpush2.msra.mxu0 0.0
    %2662 = vmatprep.subr.mxu0 0.0
    %2663 = vmatpush2.msra.mxu0 0.0
    %2664 = vmatprep.subr.mxu0 0.0
    %2665 = vmatpush2.msra.mxu0 0.0
    %2666 = vmatprep.subr.mxu0 0.0
    %2667 = vmatpush2.msra.mxu0 0.0
    %2668 = vmatprep.subr.mxu0 0.0
    %2669 = vmatpush2.msra.mxu0 0.0
    %2670 = vmatprep.subr.mxu0 0.0
    %2671 = vmatpush2.msra.mxu0 0.0
    %2672 = vmatprep.subr.mxu0 0.0
    %2673 = vmatpush2.msra.mxu0 0.0
    %2674 = vmatprep.subr.mxu0 0.0
    %2675 = vmatpush2.msra.mxu0 0.0
    %2676 = vmatprep.subr.mxu0 0.0
    %2677 = vmatpush2.msra.mxu0 0.0
    %2678 = vmatprep.subr.mxu0 0.0
    %2679 = vmatpush2.msra.mxu0 0.0
    %2680 = vmatprep.subr.mxu0 0.0
    %2681 = vmatpush2.msra.mxu0 0.0
    %2682 = vmatprep.mubr.f32.mxu0 0.0
    %2683 = vmatmul.mubr.f32.gmra.mxu0 %v599
    %v2684 = vpop.f32.mrf.mxu0
    %v2685 = vadd.f32 %v2392, %v2684
    %v2686 = vpop.f32.mrf.mxu0
    %v2687 = vadd.f32 %v2396, %v2686
    %2688 = vdwg.mxu0
    %v2689 = vmul.f32 %v2472, 0.5
    %v2690 = vmul.f32 %v2474, 0.5
    %v2691 = vmul.f32 %v2543, 0.5
    %v2692 = vmul.f32 %v2545, 0.5
    %v2693 = vmul.f32 %v2614, 0.5
    %v2694 = vmul.f32 %v2616, 0.5
    %v2695 = vmul.f32 %v2685, 0.5
    %v2696 = vmul.f32 %v2687, 0.5
    %v2697 = vmul.f32 %v2472, 0.044715
    %v2698 = vmul.f32 %v2474, 0.044715
    %v2699 = vmul.f32 %v2543, 0.044715
    %v2700 = vmul.f32 %v2545, 0.044715
    %v2701 = vmul.f32 %v2614, 0.044715
    %v2702 = vmul.f32 %v2616, 0.044715
    %v2703 = vmul.f32 %v2685, 0.044715
    %v2704 = vmul.f32 %v2687, 0.044715
    %v2705 = vmul.f32 %v2697, %v2472
    %v2706 = vmul.f32 %v2698, %v2474
    %v2707 = vmul.f32 %v2699, %v2543
    %v2708 = vmul.f32 %v2700, %v2545
    %v2709 = vmul.f32 %v2701, %v2614
    %v2710 = vmul.f32 %v2702, %v2616
    %v2711 = vmul.f32 %v2703, %v2685
    %v2712 = vmul.f32 %v2704, %v2687
    %v2713 = vmul.f32 %v2705, %v2472
    %v2714 = vmul.f32 %v2706, %v2474
    %v2715 = vmul.f32 %v2707, %v2543
    %v2716 = vmul.f32 %v2708, %v2545
    %v2717 = vmul.f32 %v2709, %v2614
    %v2718 = vmul.f32 %v2710, %v2616
    %v2719 = vmul.f32 %v2711, %v2685
    %v2720 = vmul.f32 %v2712, %v2687
    %v2721 = vadd.f32 %v2472, %v2713
    %v2722 = vadd.f32 %v2474, %v2714
    %v2723 = vadd.f32 %v2543, %v2715
    %v2724 = vadd.f32 %v2545, %v2716
    %v2725 = vadd.f32 %v2614, %v2717
    %v2726 = vadd.f32 %v2616, %v2718
    %v2727 = vadd.f32 %v2685, %v2719
    %v2728 = vadd.f32 %v2687, %v2720
    %v2729 = vmul.f32 %v2721, 0.7978846
    %v2730 = vmul.f32 %v2722, 0.7978846
    %v2731 = vmul.f32 %v2723, 0.7978846
    %v2732 = vmul.f32 %v2724, 0.7978846
    %v2733 = vmul.f32 %v2725, 0.7978846
    %v2734 = vmul.f32 %v2726, 0.7978846
    %v2735 = vmul.f32 %v2727, 0.7978846
    %v2736 = vmul.f32 %v2728, 0.7978846
    %v2737 = vtanh.pop %v2729
    %v2738 = vtanh.pop %v2730
    %v2739 = vtanh.pop %v2731
    %v2740 = vtanh.pop %v2732
    %v2741 = vtanh.pop %v2733
    %v2742 = vtanh.pop %v2734
    %v2743 = vtanh.pop %v2735
    %v2744 = vtanh.pop %v2736
    %v2745 = vadd.f32 %v2737, 1.0
    %v2746 = vadd.f32 %v2738, 1.0
    %v2747 = vadd.f32 %v2739, 1.0
    %v2748 = vadd.f32 %v2740, 1.0
    %v2749 = vadd.f32 %v2741, 1.0
    %v2750 = vadd.f32 %v2742, 1.0
    %v2751 = vadd.f32 %v2743, 1.0
    %v2752 = vadd.f32 %v2744, 1.0
    %v2753 = vmul.f32 %v2689, %v2745
    %v2754 = vmul.f32 %v2690, %v2746
    %v2755 = vmul.f32 %v2691, %v2747
    %v2756 = vmul.f32 %v2692, %v2748
    %v2757 = vmul.f32 %v2693, %v2749
    %v2758 = vmul.f32 %v2694, %v2750
    %v2759 = vmul.f32 %v2695, %v2751
    %v2760 = vmul.f32 %v2696, %v2752
    %2761 = vset.pattern.permute.xlu0 2
    %2762 = vperm.xlu0 %2761, %v474
    %v2763 = vpop.permute.xlu0 %2762
    %v2765 = vmul.f32 %v2763, %v2753
    %v2766 = vmul.f32 %v2763, %v2754
    %v2767 = vmul.f32 %v2763, %v2755
    %v2768 = vmul.f32 %v2763, %v2756
    %v2769 = vmul.f32 %v2763, %v2757
    %v2770 = vmul.f32 %v2763, %v2758
    %v2771 = vmul.f32 %v2763, %v2759
    %v2772 = vmul.f32 %v2763, %v2760
    %v2773 = vadd.f32 %v1873, %v2765
    %v2774 = vadd.f32 %v1874, %v2766
    %v2775 = vadd.f32 %v1875, %v2767
    %v2776 = vadd.f32 %v1876, %v2768
    %v2777 = vadd.f32 %v1877, %v2769
    %v2778 = vadd.f32 %v1878, %v2770
    %v2779 = vadd.f32 %v1879, %v2771
    %v2780 = vadd.f32 %v1880, %v2772
    %s2781 = scalar_lea.vmem %s12, 512
    %v2782 = vld [vmem:[%s2781] sm:$0xff]
    %v2783 = vld [vmem:[%s2781 + $0x8] sm:$0xff]
    %v2784 = vld [vmem:[%s2781 + $0x10] sm:$0xff]
    %v2785 = vld [vmem:[%s2781 + $0x18] sm:$0xff]
    %v2786 = vld [vmem:[%s2781 + $0x20] sm:$0xff]
    %v2787 = vld [vmem:[%s2781 + $0x28] sm:$0xff]
    %v2788 = vld [vmem:[%s2781 + $0x30] sm:$0xff]
    %v2789 = vld [vmem:[%s2781 + $0x38] sm:$0xff]
    %v2790 = vld [vmem:[%s2781 + $0x40] sm:$0xff]
    %v2791 = vld [vmem:[%s2781 + $0x48] sm:$0xff]
    %v2792 = vld [vmem:[%s2781 + $0x50] sm:$0xff]
    %v2793 = vld [vmem:[%s2781 + $0x58] sm:$0xff]
    %v2794 = vld [vmem:[%s2781 + $0x60] sm:$0xff]
    %v2795 = vld [vmem:[%s2781 + $0x68] sm:$0xff]
    %v2796 = vld [vmem:[%s2781 + $0x70] sm:$0xff]
    %v2797 = vld [vmem:[%s2781 + $0x78] sm:$0xff]
    %v2798 = vld [vmem:[%s2781 + $0x80] sm:$0xff]
    %v2799 = vld [vmem:[%s2781 + $0x88] sm:$0xff]
    %v2800 = vld [vmem:[%s2781 + $0x90] sm:$0xff]
    %v2801 = vld [vmem:[%s2781 + $0x98] sm:$0xff]
    %v2802 = vld [vmem:[%s2781 + $0xa0] sm:$0xff]
    %v2803 = vld [vmem:[%s2781 + $0xa8] sm:$0xff]
    %v2804 = vld [vmem:[%s2781 + $0xb0] sm:$0xff]
    %v2805 = vld [vmem:[%s2781 + $0xb8] sm:$0xff]
    %v2806 = vld [vmem:[%s2781 + $0xc0] sm:$0xff]
    %v2807 = vld [vmem:[%s2781 + $0xc8] sm:$0xff]
    %v2808 = vld [vmem:[%s2781 + $0xd0] sm:$0xff]
    %v2809 = vld [vmem:[%s2781 + $0xd8] sm:$0xff]
    %v2810 = vld [vmem:[%s2781 + $0xe0] sm:$0xff]
    %v2811 = vld [vmem:[%s2781 + $0xe8] sm:$0xff]
    %v2812 = vld [vmem:[%s2781 + $0xf0] sm:$0xff]
    %v2813 = vld [vmem:[%s2781 + $0xf8] sm:$0xff]
    %s2814 = scalar_lea.vmem %s13, 16
    %v2815 = vld [vmem:[%s2814] sm:$0xff]
    %v2817 = vlaneseq
    %v2818 = vshrl.u32 %v2817, 7
    %v2819 = vsub.s32 0, %v2818
    %v2820 = vrot.slane %v2815, %v2819
    %v2821 = vlaneseq
    %v2822 = vshrl.u32 %v2821, 7
    %v2823 = vsub.s32 1, %v2822
    %v2824 = vrot.slane %v2815, %v2823
    %v2825 = vlaneseq
    %v2826 = vshrl.u32 %v2825, 7
    %v2827 = vsub.s32 2, %v2826
    %v2828 = vrot.slane %v2815, %v2827
    %v2829 = vlaneseq
    %v2830 = vshrl.u32 %v2829, 7
    %v2831 = vsub.s32 3, %v2830
    %v2832 = vrot.slane %v2815, %v2831
    %v2833 = vlaneseq
    %v2834 = vshrl.u32 %v2833, 7
    %v2835 = vsub.s32 4, %v2834
    %v2836 = vrot.slane %v2815, %v2835
    %v2837 = vlaneseq
    %v2838 = vshrl.u32 %v2837, 7
    %v2839 = vsub.s32 5, %v2838
    %v2840 = vrot.slane %v2815, %v2839
    %v2841 = vlaneseq
    %v2842 = vshrl.u32 %v2841, 7
    %v2843 = vsub.s32 6, %v2842
    %v2844 = vrot.slane %v2815, %v2843
    %v2845 = vlaneseq
    %v2846 = vshrl.u32 %v2845, 7
    %v2847 = vsub.s32 7, %v2846
    %v2848 = vrot.slane %v2815, %v2847
    %2857 = vmatprep.subr.mxu0 0.0
    %2858 = vmatpush1.msra.mxu0 0.0
    %2859 = vmatprep.subr.mxu0 0.0
    %2860 = vmatpush1.msra.mxu0 0.0
    %2861 = vmatprep.subr.mxu0 0.0
    %2862 = vmatpush1.msra.mxu0 0.0
    %2863 = vmatprep.subr.mxu0 0.0
    %2864 = vmatpush1.msra.mxu0 0.0
    %2865 = vmatprep.subr.mxu0 0.0
    %2866 = vmatpush1.msra.mxu0 0.0
    %2867 = vmatprep.subr.mxu0 0.0
    %2868 = vmatpush1.msra.mxu0 0.0
    %2869 = vmatprep.subr.mxu0 0.0
    %2870 = vmatpush1.msra.mxu0 0.0
    %2871 = vmatprep.subr.mxu0 0.0
    %2872 = vmatpush1.msra.mxu0 0.0
    %2873 = vmatprep.subr.mxu0 0.0
    %2874 = vmatpush1.msra.mxu0 0.0
    %2875 = vmatprep.subr.mxu0 0.0
    %2876 = vmatpush1.msra.mxu0 0.0
    %2877 = vmatprep.subr.mxu0 0.0
    %2878 = vmatpush1.msra.mxu0 0.0
    %2879 = vmatprep.subr.mxu0 0.0
    %2880 = vmatpush1.msra.mxu0 0.0
    %2881 = vmatprep.subr.mxu0 %v2807
    %2882 = vmatpush1.msra.mxu0 %v2806
    %2883 = vmatprep.subr.mxu0 %v2799
    %2884 = vmatpush1.msra.mxu0 %v2798
    %2885 = vmatprep.subr.mxu0 %v2791
    %2886 = vmatpush1.msra.mxu0 %v2790
    %2887 = vmatprep.subr.mxu0 %v2783
    %2888 = vmatpush1.msra.mxu0 %v2782
    %2889 = vmatprep.subr.mxu0 0.0
    %2890 = vmatpush2.msra.mxu0 0.0
    %2891 = vmatprep.subr.mxu0 0.0
    %2892 = vmatpush2.msra.mxu0 0.0
    %2893 = vmatprep.subr.mxu0 0.0
    %2894 = vmatpush2.msra.mxu0 0.0
    %2895 = vmatprep.subr.mxu0 0.0
    %2896 = vmatpush2.msra.mxu0 0.0
    %2897 = vmatprep.subr.mxu0 0.0
    %2898 = vmatpush2.msra.mxu0 0.0
    %2899 = vmatprep.subr.mxu0 0.0
    %2900 = vmatpush2.msra.mxu0 0.0
    %2901 = vmatprep.subr.mxu0 0.0
    %2902 = vmatpush2.msra.mxu0 0.0
    %2903 = vmatprep.subr.mxu0 0.0
    %2904 = vmatpush2.msra.mxu0 0.0
    %2905 = vmatprep.subr.mxu0 0.0
    %2906 = vmatpush2.msra.mxu0 0.0
    %2907 = vmatprep.subr.mxu0 0.0
    %2908 = vmatpush2.msra.mxu0 0.0
    %2909 = vmatprep.subr.mxu0 0.0
    %2910 = vmatpush2.msra.mxu0 0.0
    %2911 = vmatprep.subr.mxu0 0.0
    %2912 = vmatpush2.msra.mxu0 0.0
    %2913 = vmatprep.subr.mxu0 0.0
    %2914 = vmatpush2.msra.mxu0 0.0
    %2915 = vmatprep.subr.mxu0 0.0
    %2916 = vmatpush2.msra.mxu0 0.0
    %2917 = vmatprep.subr.mxu0 0.0
    %2918 = vmatpush2.msra.mxu0 0.0
    %2919 = vmatprep.subr.mxu0 0.0
    %2920 = vmatpush2.msra.mxu0 0.0
    %2921 = vmatprep.mubr.f32.mxu0 0.0
    %2922 = vmatmul.mubr.f32.gmra.mxu0 %v1055
    %v2923 = vpop.f32.mrf.mxu0
    %v2924 = vadd.f32 %v2820, %v2923
    %v2925 = vpop.f32.mrf.mxu0
    %v2926 = vadd.f32 %v2824, %v2925
    %2927 = vdwg.mxu0
    %2928 = vmatprep.subr.mxu0 0.0
    %2929 = vmatpush1.msra.mxu0 0.0
    %2930 = vmatprep.subr.mxu0 0.0
    %2931 = vmatpush1.msra.mxu0 0.0
    %2932 = vmatprep.subr.mxu0 0.0
    %2933 = vmatpush1.msra.mxu0 0.0
    %2934 = vmatprep.subr.mxu0 0.0
    %2935 = vmatpush1.msra.mxu0 0.0
    %2936 = vmatprep.subr.mxu0 0.0
    %2937 = vmatpush1.msra.mxu0 0.0
    %2938 = vmatprep.subr.mxu0 0.0
    %2939 = vmatpush1.msra.mxu0 0.0
    %2940 = vmatprep.subr.mxu0 0.0
    %2941 = vmatpush1.msra.mxu0 0.0
    %2942 = vmatprep.subr.mxu0 0.0
    %2943 = vmatpush1.msra.mxu0 0.0
    %2944 = vmatprep.subr.mxu0 0.0
    %2945 = vmatpush1.msra.mxu0 0.0
    %2946 = vmatprep.subr.mxu0 0.0
    %2947 = vmatpush1.msra.mxu0 0.0
    %2948 = vmatprep.subr.mxu0 0.0
    %2949 = vmatpush1.msra.mxu0 0.0
    %2950 = vmatprep.subr.mxu0 0.0
    %2951 = vmatpush1.msra.mxu0 0.0
    %2952 = vmatprep.subr.mxu0 %v2809
    %2953 = vmatpush1.msra.mxu0 %v2808
    %2954 = vmatprep.subr.mxu0 %v2801
    %2955 = vmatpush1.msra.mxu0 %v2800
    %2956 = vmatprep.subr.mxu0 %v2793
    %2957 = vmatpush1.msra.mxu0 %v2792
    %2958 = vmatprep.subr.mxu0 %v2785
    %2959 = vmatpush1.msra.mxu0 %v2784
    %2960 = vmatprep.subr.mxu0 0.0
    %2961 = vmatpush2.msra.mxu0 0.0
    %2962 = vmatprep.subr.mxu0 0.0
    %2963 = vmatpush2.msra.mxu0 0.0
    %2964 = vmatprep.subr.mxu0 0.0
    %2965 = vmatpush2.msra.mxu0 0.0
    %2966 = vmatprep.subr.mxu0 0.0
    %2967 = vmatpush2.msra.mxu0 0.0
    %2968 = vmatprep.subr.mxu0 0.0
    %2969 = vmatpush2.msra.mxu0 0.0
    %2970 = vmatprep.subr.mxu0 0.0
    %2971 = vmatpush2.msra.mxu0 0.0
    %2972 = vmatprep.subr.mxu0 0.0
    %2973 = vmatpush2.msra.mxu0 0.0
    %2974 = vmatprep.subr.mxu0 0.0
    %2975 = vmatpush2.msra.mxu0 0.0
    %2976 = vmatprep.subr.mxu0 0.0
    %2977 = vmatpush2.msra.mxu0 0.0
    %2978 = vmatprep.subr.mxu0 0.0
    %2979 = vmatpush2.msra.mxu0 0.0
    %2980 = vmatprep.subr.mxu0 0.0
    %2981 = vmatpush2.msra.mxu0 0.0
    %2982 = vmatprep.subr.mxu0 0.0
    %2983 = vmatpush2.msra.mxu0 0.0
    %2984 = vmatprep.subr.mxu0 0.0
    %2985 = vmatpush2.msra.mxu0 0.0
    %2986 = vmatprep.subr.mxu0 0.0
    %2987 = vmatpush2.msra.mxu0 0.0
    %2988 = vmatprep.subr.mxu0 0.0
    %2989 = vmatpush2.msra.mxu0 0.0
    %2990 = vmatprep.subr.mxu0 0.0
    %2991 = vmatpush2.msra.mxu0 0.0
    %2992 = vmatprep.mubr.f32.mxu0 0.0
    %2993 = vmatmul.mubr.f32.gmra.mxu0 %v1055
    %v2994 = vpop.f32.mrf.mxu0
    %v2995 = vadd.f32 %v2828, %v2994
    %v2996 = vpop.f32.mrf.mxu0
    %v2997 = vadd.f32 %v2832, %v2996
    %2998 = vdwg.mxu0
    %2999 = vmatprep.subr.mxu0 0.0
    %3000 = vmatpush1.msra.mxu0 0.0
    %3001 = vmatprep.subr.mxu0 0.0
    %3002 = vmatpush1.msra.mxu0 0.0
    %3003 = vmatprep.subr.mxu0 0.0
    %3004 = vmatpush1.msra.mxu0 0.0
    %3005 = vmatprep.subr.mxu0 0.0
    %3006 = vmatpush1.msra.mxu0 0.0
    %3007 = vmatprep.subr.mxu0 0.0
    %3008 = vmatpush1.msra.mxu0 0.0
    %3009 = vmatprep.subr.mxu0 0.0
    %3010 = vmatpush1.msra.mxu0 0.0
    %3011 = vmatprep.subr.mxu0 0.0
    %3012 = vmatpush1.msra.mxu0 0.0
    %3013 = vmatprep.subr.mxu0 0.0
    %3014 = vmatpush1.msra.mxu0 0.0
    %3015 = vmatprep.subr.mxu0 0.0
    %3016 = vmatpush1.msra.mxu0 0.0
    %3017 = vmatprep.subr.mxu0 0.0
    %3018 = vmatpush1.msra.mxu0 0.0
    %3019 = vmatprep.subr.mxu0 0.0
    %3020 = vmatpush1.msra.mxu0 0.0
    %3021 = vmatprep.subr.mxu0 0.0
    %3022 = vmatpush1.msra.mxu0 0.0
    %3023 = vmatprep.subr.mxu0 %v2811
    %3024 = vmatpush1.msra.mxu0 %v2810
    %3025 = vmatprep.subr.mxu0 %v2803
    %3026 = vmatpush1.msra.mxu0 %v2802
    %3027 = vmatprep.subr.mxu0 %v2795
    %3028 = vmatpush1.msra.mxu0 %v2794
    %3029 = vmatprep.subr.mxu0 %v2787
    %3030 = vmatpush1.msra.mxu0 %v2786
    %3031 = vmatprep.subr.mxu0 0.0
    %3032 = vmatpush2.msra.mxu0 0.0
    %3033 = vmatprep.subr.mxu0 0.0
    %3034 = vmatpush2.msra.mxu0 0.0
    %3035 = vmatprep.subr.mxu0 0.0
    %3036 = vmatpush2.msra.mxu0 0.0
    %3037 = vmatprep.subr.mxu0 0.0
    %3038 = vmatpush2.msra.mxu0 0.0
    %3039 = vmatprep.subr.mxu0 0.0
    %3040 = vmatpush2.msra.mxu0 0.0
    %3041 = vmatprep.subr.mxu0 0.0
    %3042 = vmatpush2.msra.mxu0 0.0
    %3043 = vmatprep.subr.mxu0 0.0
    %3044 = vmatpush2.msra.mxu0 0.0
    %3045 = vmatprep.subr.mxu0 0.0
    %3046 = vmatpush2.msra.mxu0 0.0
    %3047 = vmatprep.subr.mxu0 0.0
    %3048 = vmatpush2.msra.mxu0 0.0
    %3049 = vmatprep.subr.mxu0 0.0
    %3050 = vmatpush2.msra.mxu0 0.0
    %3051 = vmatprep.subr.mxu0 0.0
    %3052 = vmatpush2.msra.mxu0 0.0
    %3053 = vmatprep.subr.mxu0 0.0
    %3054 = vmatpush2.msra.mxu0 0.0
    %3055 = vmatprep.subr.mxu0 0.0
    %3056 = vmatpush2.msra.mxu0 0.0
    %3057 = vmatprep.subr.mxu0 0.0
    %3058 = vmatpush2.msra.mxu0 0.0
    %3059 = vmatprep.subr.mxu0 0.0
    %3060 = vmatpush2.msra.mxu0 0.0
    %3061 = vmatprep.subr.mxu0 0.0
    %3062 = vmatpush2.msra.mxu0 0.0
    %3063 = vmatprep.mubr.f32.mxu0 0.0
    %3064 = vmatmul.mubr.f32.gmra.mxu0 %v1055
    %v3065 = vpop.f32.mrf.mxu0
    %v3066 = vadd.f32 %v2836, %v3065
    %v3067 = vpop.f32.mrf.mxu0
    %v3068 = vadd.f32 %v2840, %v3067
    %3069 = vdwg.mxu0
    %3070 = vmatprep.subr.mxu0 0.0
    %3071 = vmatpush1.msra.mxu0 0.0
    %3072 = vmatprep.subr.mxu0 0.0
    %3073 = vmatpush1.msra.mxu0 0.0
    %3074 = vmatprep.subr.mxu0 0.0
    %3075 = vmatpush1.msra.mxu0 0.0
    %3076 = vmatprep.subr.mxu0 0.0
    %3077 = vmatpush1.msra.mxu0 0.0
    %3078 = vmatprep.subr.mxu0 0.0
    %3079 = vmatpush1.msra.mxu0 0.0
    %3080 = vmatprep.subr.mxu0 0.0
    %3081 = vmatpush1.msra.mxu0 0.0
    %3082 = vmatprep.subr.mxu0 0.0
    %3083 = vmatpush1.msra.mxu0 0.0
    %3084 = vmatprep.subr.mxu0 0.0
    %3085 = vmatpush1.msra.mxu0 0.0
    %3086 = vmatprep.subr.mxu0 0.0
    %3087 = vmatpush1.msra.mxu0 0.0
    %3088 = vmatprep.subr.mxu0 0.0
    %3089 = vmatpush1.msra.mxu0 0.0
    %3090 = vmatprep.subr.mxu0 0.0
    %3091 = vmatpush1.msra.mxu0 0.0
    %3092 = vmatprep.subr.mxu0 0.0
    %3093 = vmatpush1.msra.mxu0 0.0
    %3094 = vmatprep.subr.mxu0 %v2813
    %3095 = vmatpush1.msra.mxu0 %v2812
    %3096 = vmatprep.subr.mxu0 %v2805
    %3097 = vmatpush1.msra.mxu0 %v2804
    %3098 = vmatprep.subr.mxu0 %v2797
    %3099 = vmatpush1.msra.mxu0 %v2796
    %3100 = vmatprep.subr.mxu0 %v2789
    %3101 = vmatpush1.msra.mxu0 %v2788
    %3102 = vmatprep.subr.mxu0 0.0
    %3103 = vmatpush2.msra.mxu0 0.0
    %3104 = vmatprep.subr.mxu0 0.0
    %3105 = vmatpush2.msra.mxu0 0.0
    %3106 = vmatprep.subr.mxu0 0.0
    %3107 = vmatpush2.msra.mxu0 0.0
    %3108 = vmatprep.subr.mxu0 0.0
    %3109 = vmatpush2.msra.mxu0 0.0
    %3110 = vmatprep.subr.mxu0 0.0
    %3111 = vmatpush2.msra.mxu0 0.0
    %3112 = vmatprep.subr.mxu0 0.0
    %3113 = vmatpush2.msra.mxu0 0.0
    %3114 = vmatprep.subr.mxu0 0.0
    %3115 = vmatpush2.msra.mxu0 0.0
    %3116 = vmatprep.subr.mxu0 0.0
    %3117 = vmatpush2.msra.mxu0 0.0
    %3118 = vmatprep.subr.mxu0 0.0
    %3119 = vmatpush2.msra.mxu0 0.0
    %3120 = vmatprep.subr.mxu0 0.0
    %3121 = vmatpush2.msra.mxu0 0.0
    %3122 = vmatprep.subr.mxu0 0.0
    %3123 = vmatpush2.msra.mxu0 0.0
    %3124 = vmatprep.subr.mxu0 0.0
    %3125 = vmatpush2.msra.mxu0 0.0
    %3126 = vmatprep.subr.mxu0 0.0
    %3127 = vmatpush2.msra.mxu0 0.0
    %3128 = vmatprep.subr.mxu0 0.0
    %3129 = vmatpush2.msra.mxu0 0.0
    %3130 = vmatprep.subr.mxu0 0.0
    %3131 = vmatpush2.msra.mxu0 0.0
    %3132 = vmatprep.subr.mxu0 0.0
    %3133 = vmatpush2.msra.mxu0 0.0
    %3134 = vmatprep.mubr.f32.mxu0 0.0
    %3135 = vmatmul.mubr.f32.gmra.mxu0 %v1055
    %v3136 = vpop.f32.mrf.mxu0
    %v3137 = vadd.f32 %v2844, %v3136
    %v3138 = vpop.f32.mrf.mxu0
    %v3139 = vadd.f32 %v2848, %v3138
    %3140 = vdwg.mxu0
    %v3141 = vmul.f32 %v2924, 0.5
    %v3142 = vmul.f32 %v2926, 0.5
    %v3143 = vmul.f32 %v2995, 0.5
    %v3144 = vmul.f32 %v2997, 0.5
    %v3145 = vmul.f32 %v3066, 0.5
    %v3146 = vmul.f32 %v3068, 0.5
    %v3147 = vmul.f32 %v3137, 0.5
    %v3148 = vmul.f32 %v3139, 0.5
    %v3149 = vmul.f32 %v2924, 0.044715
    %v3150 = vmul.f32 %v2926, 0.044715
    %v3151 = vmul.f32 %v2995, 0.044715
    %v3152 = vmul.f32 %v2997, 0.044715
    %v3153 = vmul.f32 %v3066, 0.044715
    %v3154 = vmul.f32 %v3068, 0.044715
    %v3155 = vmul.f32 %v3137, 0.044715
    %v3156 = vmul.f32 %v3139, 0.044715
    %v3157 = vmul.f32 %v3149, %v2924
    %v3158 = vmul.f32 %v3150, %v2926
    %v3159 = vmul.f32 %v3151, %v2995
    %v3160 = vmul.f32 %v3152, %v2997
    %v3161 = vmul.f32 %v3153, %v3066
    %v3162 = vmul.f32 %v3154, %v3068
    %v3163 = vmul.f32 %v3155, %v3137
    %v3164 = vmul.f32 %v3156, %v3139
    %v3165 = vmul.f32 %v3157, %v2924
    %v3166 = vmul.f32 %v3158, %v2926
    %v3167 = vmul.f32 %v3159, %v2995
    %v3168 = vmul.f32 %v3160, %v2997
    %v3169 = vmul.f32 %v3161, %v3066
    %v3170 = vmul.f32 %v3162, %v3068
    %v3171 = vmul.f32 %v3163, %v3137
    %v3172 = vmul.f32 %v3164, %v3139
    %v3173 = vadd.f32 %v2924, %v3165
    %v3174 = vadd.f32 %v2926, %v3166
    %v3175 = vadd.f32 %v2995, %v3167
    %v3176 = vadd.f32 %v2997, %v3168
    %v3177 = vadd.f32 %v3066, %v3169
    %v3178 = vadd.f32 %v3068, %v3170
    %v3179 = vadd.f32 %v3137, %v3171
    %v3180 = vadd.f32 %v3139, %v3172
    %v3181 = vmul.f32 %v3173, 0.7978846
    %v3182 = vmul.f32 %v3174, 0.7978846
    %v3183 = vmul.f32 %v3175, 0.7978846
    %v3184 = vmul.f32 %v3176, 0.7978846
    %v3185 = vmul.f32 %v3177, 0.7978846
    %v3186 = vmul.f32 %v3178, 0.7978846
    %v3187 = vmul.f32 %v3179, 0.7978846
    %v3188 = vmul.f32 %v3180, 0.7978846
    %v3189 = vtanh.pop %v3181
    %v3190 = vtanh.pop %v3182
    %v3191 = vtanh.pop %v3183
    %v3192 = vtanh.pop %v3184
    %v3193 = vtanh.pop %v3185
    %v3194 = vtanh.pop %v3186
    %v3195 = vtanh.pop %v3187
    %v3196 = vtanh.pop %v3188
    %v3197 = vadd.f32 %v3189, 1.0
    %v3198 = vadd.f32 %v3190, 1.0
    %v3199 = vadd.f32 %v3191, 1.0
    %v3200 = vadd.f32 %v3192, 1.0
    %v3201 = vadd.f32 %v3193, 1.0
    %v3202 = vadd.f32 %v3194, 1.0
    %v3203 = vadd.f32 %v3195, 1.0
    %v3204 = vadd.f32 %v3196, 1.0
    %v3205 = vmul.f32 %v3141, %v3197
    %v3206 = vmul.f32 %v3142, %v3198
    %v3207 = vmul.f32 %v3143, %v3199
    %v3208 = vmul.f32 %v3144, %v3200
    %v3209 = vmul.f32 %v3145, %v3201
    %v3210 = vmul.f32 %v3146, %v3202
    %v3211 = vmul.f32 %v3147, %v3203
    %v3212 = vmul.f32 %v3148, %v3204
    %v3213 = vmul.f32 %v2763, %v3205
    %v3214 = vmul.f32 %v2763, %v3206
    %v3215 = vmul.f32 %v2763, %v3207
    %v3216 = vmul.f32 %v2763, %v3208
    %v3217 = vmul.f32 %v2763, %v3209
    %v3218 = vmul.f32 %v2763, %v3210
    %v3219 = vmul.f32 %v2763, %v3211
    %v3220 = vmul.f32 %v2763, %v3212
    %v3221 = vadd.f32 %v2321, %v3213
    %v3222 = vadd.f32 %v2322, %v3214
    %v3223 = vadd.f32 %v2323, %v3215
    %v3224 = vadd.f32 %v2324, %v3216
    %v3225 = vadd.f32 %v2325, %v3217
    %v3226 = vadd.f32 %v2326, %v3218
    %v3227 = vadd.f32 %v2327, %v3219
    %v3228 = vadd.f32 %v2328, %v3220
    %s3229 = scalar_lea.vmem %s10, 768
    %v3230 = vld [vmem:[%s3229] sm:$0xff]
    %v3231 = vld [vmem:[%s3229 + $0x8] sm:$0xff]
    %v3232 = vld [vmem:[%s3229 + $0x10] sm:$0xff]
    %v3233 = vld [vmem:[%s3229 + $0x18] sm:$0xff]
    %v3234 = vld [vmem:[%s3229 + $0x20] sm:$0xff]
    %v3235 = vld [vmem:[%s3229 + $0x28] sm:$0xff]
    %v3236 = vld [vmem:[%s3229 + $0x30] sm:$0xff]
    %v3237 = vld [vmem:[%s3229 + $0x38] sm:$0xff]
    %v3238 = vld [vmem:[%s3229 + $0x40] sm:$0xff]
    %v3239 = vld [vmem:[%s3229 + $0x48] sm:$0xff]
    %v3240 = vld [vmem:[%s3229 + $0x50] sm:$0xff]
    %v3241 = vld [vmem:[%s3229 + $0x58] sm:$0xff]
    %v3242 = vld [vmem:[%s3229 + $0x60] sm:$0xff]
    %v3243 = vld [vmem:[%s3229 + $0x68] sm:$0xff]
    %v3244 = vld [vmem:[%s3229 + $0x70] sm:$0xff]
    %v3245 = vld [vmem:[%s3229 + $0x78] sm:$0xff]
    %v3246 = vld [vmem:[%s3229 + $0x80] sm:$0xff]
    %v3247 = vld [vmem:[%s3229 + $0x88] sm:$0xff]
    %v3248 = vld [vmem:[%s3229 + $0x90] sm:$0xff]
    %v3249 = vld [vmem:[%s3229 + $0x98] sm:$0xff]
    %v3250 = vld [vmem:[%s3229 + $0xa0] sm:$0xff]
    %v3251 = vld [vmem:[%s3229 + $0xa8] sm:$0xff]
    %v3252 = vld [vmem:[%s3229 + $0xb0] sm:$0xff]
    %v3253 = vld [vmem:[%s3229 + $0xb8] sm:$0xff]
    %v3254 = vld [vmem:[%s3229 + $0xc0] sm:$0xff]
    %v3255 = vld [vmem:[%s3229 + $0xc8] sm:$0xff]
    %v3256 = vld [vmem:[%s3229 + $0xd0] sm:$0xff]
    %v3257 = vld [vmem:[%s3229 + $0xd8] sm:$0xff]
    %v3258 = vld [vmem:[%s3229 + $0xe0] sm:$0xff]
    %v3259 = vld [vmem:[%s3229 + $0xe8] sm:$0xff]
    %v3260 = vld [vmem:[%s3229 + $0xf0] sm:$0xff]
    %v3261 = vld [vmem:[%s3229 + $0xf8] sm:$0xff]
    %s3262 = scalar_lea.vmem %s11, 24
    %v3263 = vld [vmem:[%s3262] sm:$0xff]
    %v3265 = vlaneseq
    %v3266 = vshrl.u32 %v3265, 7
    %v3267 = vsub.s32 0, %v3266
    %v3268 = vrot.slane %v3263, %v3267
    %v3269 = vlaneseq
    %v3270 = vshrl.u32 %v3269, 7
    %v3271 = vsub.s32 1, %v3270
    %v3272 = vrot.slane %v3263, %v3271
    %v3273 = vlaneseq
    %v3274 = vshrl.u32 %v3273, 7
    %v3275 = vsub.s32 2, %v3274
    %v3276 = vrot.slane %v3263, %v3275
    %v3277 = vlaneseq
    %v3278 = vshrl.u32 %v3277, 7
    %v3279 = vsub.s32 3, %v3278
    %v3280 = vrot.slane %v3263, %v3279
    %v3281 = vlaneseq
    %v3282 = vshrl.u32 %v3281, 7
    %v3283 = vsub.s32 4, %v3282
    %v3284 = vrot.slane %v3263, %v3283
    %v3285 = vlaneseq
    %v3286 = vshrl.u32 %v3285, 7
    %v3287 = vsub.s32 5, %v3286
    %v3288 = vrot.slane %v3263, %v3287
    %v3289 = vlaneseq
    %v3290 = vshrl.u32 %v3289, 7
    %v3291 = vsub.s32 6, %v3290
    %v3292 = vrot.slane %v3263, %v3291
    %v3293 = vlaneseq
    %v3294 = vshrl.u32 %v3293, 7
    %v3295 = vsub.s32 7, %v3294
    %v3296 = vrot.slane %v3263, %v3295
    %3305 = vmatprep.subr.mxu0 0.0
    %3306 = vmatpush1.msra.mxu0 0.0
    %3307 = vmatprep.subr.mxu0 0.0
    %3308 = vmatpush1.msra.mxu0 0.0
    %3309 = vmatprep.subr.mxu0 0.0
    %3310 = vmatpush1.msra.mxu0 0.0
    %3311 = vmatprep.subr.mxu0 0.0
    %3312 = vmatpush1.msra.mxu0 0.0
    %3313 = vmatprep.subr.mxu0 0.0
    %3314 = vmatpush1.msra.mxu0 0.0
    %3315 = vmatprep.subr.mxu0 0.0
    %3316 = vmatpush1.msra.mxu0 0.0
    %3317 = vmatprep.subr.mxu0 0.0
    %3318 = vmatpush1.msra.mxu0 0.0
    %3319 = vmatprep.subr.mxu0 0.0
    %3320 = vmatpush1.msra.mxu0 0.0
    %3321 = vmatprep.subr.mxu0 0.0
    %3322 = vmatpush1.msra.mxu0 0.0
    %3323 = vmatprep.subr.mxu0 0.0
    %3324 = vmatpush1.msra.mxu0 0.0
    %3325 = vmatprep.subr.mxu0 0.0
    %3326 = vmatpush1.msra.mxu0 0.0
    %3327 = vmatprep.subr.mxu0 0.0
    %3328 = vmatpush1.msra.mxu0 0.0
    %3329 = vmatprep.subr.mxu0 %v3255
    %3330 = vmatpush1.msra.mxu0 %v3254
    %3331 = vmatprep.subr.mxu0 %v3247
    %3332 = vmatpush1.msra.mxu0 %v3246
    %3333 = vmatprep.subr.mxu0 %v3239
    %3334 = vmatpush1.msra.mxu0 %v3238
    %3335 = vmatprep.subr.mxu0 %v3231
    %3336 = vmatpush1.msra.mxu0 %v3230
    %3337 = vmatprep.subr.mxu0 0.0
    %3338 = vmatpush2.msra.mxu0 0.0
    %3339 = vmatprep.subr.mxu0 0.0
    %3340 = vmatpush2.msra.mxu0 0.0
    %3341 = vmatprep.subr.mxu0 0.0
    %3342 = vmatpush2.msra.mxu0 0.0
    %3343 = vmatprep.subr.mxu0 0.0
    %3344 = vmatpush2.msra.mxu0 0.0
    %3345 = vmatprep.subr.mxu0 0.0
    %3346 = vmatpush2.msra.mxu0 0.0
    %3347 = vmatprep.subr.mxu0 0.0
    %3348 = vmatpush2.msra.mxu0 0.0
    %3349 = vmatprep.subr.mxu0 0.0
    %3350 = vmatpush2.msra.mxu0 0.0
    %3351 = vmatprep.subr.mxu0 0.0
    %3352 = vmatpush2.msra.mxu0 0.0
    %3353 = vmatprep.subr.mxu0 0.0
    %3354 = vmatpush2.msra.mxu0 0.0
    %3355 = vmatprep.subr.mxu0 0.0
    %3356 = vmatpush2.msra.mxu0 0.0
    %3357 = vmatprep.subr.mxu0 0.0
    %3358 = vmatpush2.msra.mxu0 0.0
    %3359 = vmatprep.subr.mxu0 0.0
    %3360 = vmatpush2.msra.mxu0 0.0
    %3361 = vmatprep.subr.mxu0 0.0
    %3362 = vmatpush2.msra.mxu0 0.0
    %3363 = vmatprep.subr.mxu0 0.0
    %3364 = vmatpush2.msra.mxu0 0.0
    %3365 = vmatprep.subr.mxu0 0.0
    %3366 = vmatpush2.msra.mxu0 0.0
    %3367 = vmatprep.subr.mxu0 0.0
    %3368 = vmatpush2.msra.mxu0 0.0
    %3369 = vmatprep.mubr.f32.mxu0 0.0
    %3370 = vmatmul.mubr.f32.gmra.mxu0 %v599
    %v3371 = vpop.f32.mrf.mxu0
    %v3372 = vadd.f32 %v3268, %v3371
    %v3373 = vpop.f32.mrf.mxu0
    %v3374 = vadd.f32 %v3272, %v3373
    %3375 = vdwg.mxu0
    %3376 = vmatprep.subr.mxu0 0.0
    %3377 = vmatpush1.msra.mxu0 0.0
    %3378 = vmatprep.subr.mxu0 0.0
    %3379 = vmatpush1.msra.mxu0 0.0
    %3380 = vmatprep.subr.mxu0 0.0
    %3381 = vmatpush1.msra.mxu0 0.0
    %3382 = vmatprep.subr.mxu0 0.0
    %3383 = vmatpush1.msra.mxu0 0.0
    %3384 = vmatprep.subr.mxu0 0.0
    %3385 = vmatpush1.msra.mxu0 0.0
    %3386 = vmatprep.subr.mxu0 0.0
    %3387 = vmatpush1.msra.mxu0 0.0
    %3388 = vmatprep.subr.mxu0 0.0
    %3389 = vmatpush1.msra.mxu0 0.0
    %3390 = vmatprep.subr.mxu0 0.0
    %3391 = vmatpush1.msra.mxu0 0.0
    %3392 = vmatprep.subr.mxu0 0.0
    %3393 = vmatpush1.msra.mxu0 0.0
    %3394 = vmatprep.subr.mxu0 0.0
    %3395 = vmatpush1.msra.mxu0 0.0
    %3396 = vmatprep.subr.mxu0 0.0
    %3397 = vmatpush1.msra.mxu0 0.0
    %3398 = vmatprep.subr.mxu0 0.0
    %3399 = vmatpush1.msra.mxu0 0.0
    %3400 = vmatprep.subr.mxu0 %v3257
    %3401 = vmatpush1.msra.mxu0 %v3256
    %3402 = vmatprep.subr.mxu0 %v3249
    %3403 = vmatpush1.msra.mxu0 %v3248
    %3404 = vmatprep.subr.mxu0 %v3241
    %3405 = vmatpush1.msra.mxu0 %v3240
    %3406 = vmatprep.subr.mxu0 %v3233
    %3407 = vmatpush1.msra.mxu0 %v3232
    %3408 = vmatprep.subr.mxu0 0.0
    %3409 = vmatpush2.msra.mxu0 0.0
    %3410 = vmatprep.subr.mxu0 0.0
    %3411 = vmatpush2.msra.mxu0 0.0
    %3412 = vmatprep.subr.mxu0 0.0
    %3413 = vmatpush2.msra.mxu0 0.0
    %3414 = vmatprep.subr.mxu0 0.0
    %3415 = vmatpush2.msra.mxu0 0.0
    %3416 = vmatprep.subr.mxu0 0.0
    %3417 = vmatpush2.msra.mxu0 0.0
    %3418 = vmatprep.subr.mxu0 0.0
    %3419 = vmatpush2.msra.mxu0 0.0
    %3420 = vmatprep.subr.mxu0 0.0
    %3421 = vmatpush2.msra.mxu0 0.0
    %3422 = vmatprep.subr.mxu0 0.0
    %3423 = vmatpush2.msra.mxu0 0.0
    %3424 = vmatprep.subr.mxu0 0.0
    %3425 = vmatpush2.msra.mxu0 0.0
    %3426 = vmatprep.subr.mxu0 0.0
    %3427 = vmatpush2.msra.mxu0 0.0
    %3428 = vmatprep.subr.mxu0 0.0
    %3429 = vmatpush2.msra.mxu0 0.0
    %3430 = vmatprep.subr.mxu0 0.0
    %3431 = vmatpush2.msra.mxu0 0.0
    %3432 = vmatprep.subr.mxu0 0.0
    %3433 = vmatpush2.msra.mxu0 0.0
    %3434 = vmatprep.subr.mxu0 0.0
    %3435 = vmatpush2.msra.mxu0 0.0
    %3436 = vmatprep.subr.mxu0 0.0
    %3437 = vmatpush2.msra.mxu0 0.0
    %3438 = vmatprep.subr.mxu0 0.0
    %3439 = vmatpush2.msra.mxu0 0.0
    %3440 = vmatprep.mubr.f32.mxu0 0.0
    %3441 = vmatmul.mubr.f32.gmra.mxu0 %v599
    %v3442 = vpop.f32.mrf.mxu0
    %v3443 = vadd.f32 %v3276, %v3442
    %v3444 = vpop.f32.mrf.mxu0
    %v3445 = vadd.f32 %v3280, %v3444
    %3446 = vdwg.mxu0
    %3447 = vmatprep.subr.mxu0 0.0
    %3448 = vmatpush1.msra.mxu0 0.0
    %3449 = vmatprep.subr.mxu0 0.0
    %3450 = vmatpush1.msra.mxu0 0.0
    %3451 = vmatprep.subr.mxu0 0.0
    %3452 = vmatpush1.msra.mxu0 0.0
    %3453 = vmatprep.subr.mxu0 0.0
    %3454 = vmatpush1.msra.mxu0 0.0
    %3455 = vmatprep.subr.mxu0 0.0
    %3456 = vmatpush1.msra.mxu0 0.0
    %3457 = vmatprep.subr.mxu0 0.0
    %3458 = vmatpush1.msra.mxu0 0.0
    %3459 = vmatprep.subr.mxu0 0.0
    %3460 = vmatpush1.msra.mxu0 0.0
    %3461 = vmatprep.subr.mxu0 0.0
    %3462 = vmatpush1.msra.mxu0 0.0
    %3463 = vmatprep.subr.mxu0 0.0
    %3464 = vmatpush1.msra.mxu0 0.0
    %3465 = vmatprep.subr.mxu0 0.0
    %3466 = vmatpush1.msra.mxu0 0.0
    %3467 = vmatprep.subr.mxu0 0.0
    %3468 = vmatpush1.msra.mxu0 0.0
    %3469 = vmatprep.subr.mxu0 0.0
    %3470 = vmatpush1.msra.mxu0 0.0
    %3471 = vmatprep.subr.mxu0 %v3259
    %3472 = vmatpush1.msra.mxu0 %v3258
    %3473 = vmatprep.subr.mxu0 %v3251
    %3474 = vmatpush1.msra.mxu0 %v3250
    %3475 = vmatprep.subr.mxu0 %v3243
    %3476 = vmatpush1.msra.mxu0 %v3242
    %3477 = vmatprep.subr.mxu0 %v3235
    %3478 = vmatpush1.msra.mxu0 %v3234
    %3479 = vmatprep.subr.mxu0 0.0
    %3480 = vmatpush2.msra.mxu0 0.0
    %3481 = vmatprep.subr.mxu0 0.0
    %3482 = vmatpush2.msra.mxu0 0.0
    %3483 = vmatprep.subr.mxu0 0.0
    %3484 = vmatpush2.msra.mxu0 0.0
    %3485 = vmatprep.subr.mxu0 0.0
    %3486 = vmatpush2.msra.mxu0 0.0
    %3487 = vmatprep.subr.mxu0 0.0
    %3488 = vmatpush2.msra.mxu0 0.0
    %3489 = vmatprep.subr.mxu0 0.0
    %3490 = vmatpush2.msra.mxu0 0.0
    %3491 = vmatprep.subr.mxu0 0.0
    %3492 = vmatpush2.msra.mxu0 0.0
    %3493 = vmatprep.subr.mxu0 0.0
    %3494 = vmatpush2.msra.mxu0 0.0
    %3495 = vmatprep.subr.mxu0 0.0
    %3496 = vmatpush2.msra.mxu0 0.0
    %3497 = vmatprep.subr.mxu0 0.0
    %3498 = vmatpush2.msra.mxu0 0.0
    %3499 = vmatprep.subr.mxu0 0.0
    %3500 = vmatpush2.msra.mxu0 0.0
    %3501 = vmatprep.subr.mxu0 0.0
    %3502 = vmatpush2.msra.mxu0 0.0
    %3503 = vmatprep.subr.mxu0 0.0
    %3504 = vmatpush2.msra.mxu0 0.0
    %3505 = vmatprep.subr.mxu0 0.0
    %3506 = vmatpush2.msra.mxu0 0.0
    %3507 = vmatprep.subr.mxu0 0.0
    %3508 = vmatpush2.msra.mxu0 0.0
    %3509 = vmatprep.subr.mxu0 0.0
    %3510 = vmatpush2.msra.mxu0 0.0
    %3511 = vmatprep.mubr.f32.mxu0 0.0
    %3512 = vmatmul.mubr.f32.gmra.mxu0 %v599
    %v3513 = vpop.f32.mrf.mxu0
    %v3514 = vadd.f32 %v3284, %v3513
    %v3515 = vpop.f32.mrf.mxu0
    %v3516 = vadd.f32 %v3288, %v3515
    %3517 = vdwg.mxu0
    %3518 = vmatprep.subr.mxu0 0.0
    %3519 = vmatpush1.msra.mxu0 0.0
    %3520 = vmatprep.subr.mxu0 0.0
    %3521 = vmatpush1.msra.mxu0 0.0
    %3522 = vmatprep.subr.mxu0 0.0
    %3523 = vmatpush1.msra.mxu0 0.0
    %3524 = vmatprep.subr.mxu0 0.0
    %3525 = vmatpush1.msra.mxu0 0.0
    %3526 = vmatprep.subr.mxu0 0.0
    %3527 = vmatpush1.msra.mxu0 0.0
    %3528 = vmatprep.subr.mxu0 0.0
    %3529 = vmatpush1.msra.mxu0 0.0
    %3530 = vmatprep.subr.mxu0 0.0
    %3531 = vmatpush1.msra.mxu0 0.0
    %3532 = vmatprep.subr.mxu0 0.0
    %3533 = vmatpush1.msra.mxu0 0.0
    %3534 = vmatprep.subr.mxu0 0.0
    %3535 = vmatpush1.msra.mxu0 0.0
    %3536 = vmatprep.subr.mxu0 0.0
    %3537 = vmatpush1.msra.mxu0 0.0
    %3538 = vmatprep.subr.mxu0 0.0
    %3539 = vmatpush1.msra.mxu0 0.0
    %3540 = vmatprep.subr.mxu0 0.0
    %3541 = vmatpush1.msra.mxu0 0.0
    %3542 = vmatprep.subr.mxu0 %v3261
    %3543 = vmatpush1.msra.mxu0 %v3260
    %3544 = vmatprep.subr.mxu0 %v3253
    %3545 = vmatpush1.msra.mxu0 %v3252
    %3546 = vmatprep.subr.mxu0 %v3245
    %3547 = vmatpush1.msra.mxu0 %v3244
    %3548 = vmatprep.subr.mxu0 %v3237
    %3549 = vmatpush1.msra.mxu0 %v3236
    %3550 = vmatprep.subr.mxu0 0.0
    %3551 = vmatpush2.msra.mxu0 0.0
    %3552 = vmatprep.subr.mxu0 0.0
    %3553 = vmatpush2.msra.mxu0 0.0
    %3554 = vmatprep.subr.mxu0 0.0
    %3555 = vmatpush2.msra.mxu0 0.0
    %3556 = vmatprep.subr.mxu0 0.0
    %3557 = vmatpush2.msra.mxu0 0.0
    %3558 = vmatprep.subr.mxu0 0.0
    %3559 = vmatpush2.msra.mxu0 0.0
    %3560 = vmatprep.subr.mxu0 0.0
    %3561 = vmatpush2.msra.mxu0 0.0
    %3562 = vmatprep.subr.mxu0 0.0
    %3563 = vmatpush2.msra.mxu0 0.0
    %3564 = vmatprep.subr.mxu0 0.0
    %3565 = vmatpush2.msra.mxu0 0.0
    %3566 = vmatprep.subr.mxu0 0.0
    %3567 = vmatpush2.msra.mxu0 0.0
    %3568 = vmatprep.subr.mxu0 0.0
    %3569 = vmatpush2.msra.mxu0 0.0
    %3570 = vmatprep.subr.mxu0 0.0
    %3571 = vmatpush2.msra.mxu0 0.0
    %3572 = vmatprep.subr.mxu0 0.0
    %3573 = vmatpush2.msra.mxu0 0.0
    %3574 = vmatprep.subr.mxu0 0.0
    %3575 = vmatpush2.msra.mxu0 0.0
    %3576 = vmatprep.subr.mxu0 0.0
    %3577 = vmatpush2.msra.mxu0 0.0
    %3578 = vmatprep.subr.mxu0 0.0
    %3579 = vmatpush2.msra.mxu0 0.0
    %3580 = vmatprep.subr.mxu0 0.0
    %3581 = vmatpush2.msra.mxu0 0.0
    %3582 = vmatprep.mubr.f32.mxu0 0.0
    %3583 = vmatmul.mubr.f32.gmra.mxu0 %v599
    %v3584 = vpop.f32.mrf.mxu0
    %v3585 = vadd.f32 %v3292, %v3584
    %v3586 = vpop.f32.mrf.mxu0
    %v3587 = vadd.f32 %v3296, %v3586
    %3588 = vdwg.mxu0
    %v3589 = vmul.f32 %v3372, 0.5
    %v3590 = vmul.f32 %v3374, 0.5
    %v3591 = vmul.f32 %v3443, 0.5
    %v3592 = vmul.f32 %v3445, 0.5
    %v3593 = vmul.f32 %v3514, 0.5
    %v3594 = vmul.f32 %v3516, 0.5
    %v3595 = vmul.f32 %v3585, 0.5
    %v3596 = vmul.f32 %v3587, 0.5
    %v3597 = vmul.f32 %v3372, 0.044715
    %v3598 = vmul.f32 %v3374, 0.044715
    %v3599 = vmul.f32 %v3443, 0.044715
    %v3600 = vmul.f32 %v3445, 0.044715
    %v3601 = vmul.f32 %v3514, 0.044715
    %v3602 = vmul.f32 %v3516, 0.044715
    %v3603 = vmul.f32 %v3585, 0.044715
    %v3604 = vmul.f32 %v3587, 0.044715
    %v3605 = vmul.f32 %v3597, %v3372
    %v3606 = vmul.f32 %v3598, %v3374
    %v3607 = vmul.f32 %v3599, %v3443
    %v3608 = vmul.f32 %v3600, %v3445
    %v3609 = vmul.f32 %v3601, %v3514
    %v3610 = vmul.f32 %v3602, %v3516
    %v3611 = vmul.f32 %v3603, %v3585
    %v3612 = vmul.f32 %v3604, %v3587
    %v3613 = vmul.f32 %v3605, %v3372
    %v3614 = vmul.f32 %v3606, %v3374
    %v3615 = vmul.f32 %v3607, %v3443
    %v3616 = vmul.f32 %v3608, %v3445
    %v3617 = vmul.f32 %v3609, %v3514
    %v3618 = vmul.f32 %v3610, %v3516
    %v3619 = vmul.f32 %v3611, %v3585
    %v3620 = vmul.f32 %v3612, %v3587
    %v3621 = vadd.f32 %v3372, %v3613
    %v3622 = vadd.f32 %v3374, %v3614
    %v3623 = vadd.f32 %v3443, %v3615
    %v3624 = vadd.f32 %v3445, %v3616
    %v3625 = vadd.f32 %v3514, %v3617
    %v3626 = vadd.f32 %v3516, %v3618
    %v3627 = vadd.f32 %v3585, %v3619
    %v3628 = vadd.f32 %v3587, %v3620
    %v3629 = vmul.f32 %v3621, 0.7978846
    %v3630 = vmul.f32 %v3622, 0.7978846
    %v3631 = vmul.f32 %v3623, 0.7978846
    %v3632 = vmul.f32 %v3624, 0.7978846
    %v3633 = vmul.f32 %v3625, 0.7978846
    %v3634 = vmul.f32 %v3626, 0.7978846
    %v3635 = vmul.f32 %v3627, 0.7978846
    %v3636 = vmul.f32 %v3628, 0.7978846
    %v3637 = vtanh.pop %v3629
    %v3638 = vtanh.pop %v3630
    %v3639 = vtanh.pop %v3631
    %v3640 = vtanh.pop %v3632
    %v3641 = vtanh.pop %v3633
    %v3642 = vtanh.pop %v3634
    %v3643 = vtanh.pop %v3635
    %v3644 = vtanh.pop %v3636
    %v3645 = vadd.f32 %v3637, 1.0
    %v3646 = vadd.f32 %v3638, 1.0
    %v3647 = vadd.f32 %v3639, 1.0
    %v3648 = vadd.f32 %v3640, 1.0
    %v3649 = vadd.f32 %v3641, 1.0
    %v3650 = vadd.f32 %v3642, 1.0
    %v3651 = vadd.f32 %v3643, 1.0
    %v3652 = vadd.f32 %v3644, 1.0
    %v3653 = vmul.f32 %v3589, %v3645
    %v3654 = vmul.f32 %v3590, %v3646
    %v3655 = vmul.f32 %v3591, %v3647
    %v3656 = vmul.f32 %v3592, %v3648
    %v3657 = vmul.f32 %v3593, %v3649
    %v3658 = vmul.f32 %v3594, %v3650
    %v3659 = vmul.f32 %v3595, %v3651
    %v3660 = vmul.f32 %v3596, %v3652
    %3661 = vset.pattern.permute.xlu0 3
    %3662 = vperm.xlu0 %3661, %v474
    %v3663 = vpop.permute.xlu0 %3662
    %v3665 = vmul.f32 %v3663, %v3653
    %v3666 = vmul.f32 %v3663, %v3654
    %v3667 = vmul.f32 %v3663, %v3655
    %v3668 = vmul.f32 %v3663, %v3656
    %v3669 = vmul.f32 %v3663, %v3657
    %v3670 = vmul.f32 %v3663, %v3658
    %v3671 = vmul.f32 %v3663, %v3659
    %v3672 = vmul.f32 %v3663, %v3660
    %v3673 = vadd.f32 %v2773, %v3665
    %v3674 = vadd.f32 %v2774, %v3666
    %v3675 = vadd.f32 %v2775, %v3667
    %v3676 = vadd.f32 %v2776, %v3668
    %v3677 = vadd.f32 %v2777, %v3669
    %v3678 = vadd.f32 %v2778, %v3670
    %v3679 = vadd.f32 %v2779, %v3671
    %v3680 = vadd.f32 %v2780, %v3672
    %s3681 = scalar_lea.vmem %s12, 768
    %v3682 = vld [vmem:[%s3681] sm:$0xff]
    %v3683 = vld [vmem:[%s3681 + $0x8] sm:$0xff]
    %v3684 = vld [vmem:[%s3681 + $0x10] sm:$0xff]
    %v3685 = vld [vmem:[%s3681 + $0x18] sm:$0xff]
    %v3686 = vld [vmem:[%s3681 + $0x20] sm:$0xff]
    %v3687 = vld [vmem:[%s3681 + $0x28] sm:$0xff]
    %v3688 = vld [vmem:[%s3681 + $0x30] sm:$0xff]
    %v3689 = vld [vmem:[%s3681 + $0x38] sm:$0xff]
    %v3690 = vld [vmem:[%s3681 + $0x40] sm:$0xff]
    %v3691 = vld [vmem:[%s3681 + $0x48] sm:$0xff]
    %v3692 = vld [vmem:[%s3681 + $0x50] sm:$0xff]
    %v3693 = vld [vmem:[%s3681 + $0x58] sm:$0xff]
    %v3694 = vld [vmem:[%s3681 + $0x60] sm:$0xff]
    %v3695 = vld [vmem:[%s3681 + $0x68] sm:$0xff]
    %v3696 = vld [vmem:[%s3681 + $0x70] sm:$0xff]
    %v3697 = vld [vmem:[%s3681 + $0x78] sm:$0xff]
    %v3698 = vld [vmem:[%s3681 + $0x80] sm:$0xff]
    %v3699 = vld [vmem:[%s3681 + $0x88] sm:$0xff]
    %v3700 = vld [vmem:[%s3681 + $0x90] sm:$0xff]
    %v3701 = vld [vmem:[%s3681 + $0x98] sm:$0xff]
    %v3702 = vld [vmem:[%s3681 + $0xa0] sm:$0xff]
    %v3703 = vld [vmem:[%s3681 + $0xa8] sm:$0xff]
    %v3704 = vld [vmem:[%s3681 + $0xb0] sm:$0xff]
    %v3705 = vld [vmem:[%s3681 + $0xb8] sm:$0xff]
    %v3706 = vld [vmem:[%s3681 + $0xc0] sm:$0xff]
    %v3707 = vld [vmem:[%s3681 + $0xc8] sm:$0xff]
    %v3708 = vld [vmem:[%s3681 + $0xd0] sm:$0xff]
    %v3709 = vld [vmem:[%s3681 + $0xd8] sm:$0xff]
    %v3710 = vld [vmem:[%s3681 + $0xe0] sm:$0xff]
    %v3711 = vld [vmem:[%s3681 + $0xe8] sm:$0xff]
    %v3712 = vld [vmem:[%s3681 + $0xf0] sm:$0xff]
    %v3713 = vld [vmem:[%s3681 + $0xf8] sm:$0xff]
    %s3714 = scalar_lea.vmem %s13, 24
    %v3715 = vld [vmem:[%s3714] sm:$0xff]
    %v3717 = vlaneseq
    %v3718 = vshrl.u32 %v3717, 7
    %v3719 = vsub.s32 0, %v3718
    %v3720 = vrot.slane %v3715, %v3719
    %v3721 = vlaneseq
    %v3722 = vshrl.u32 %v3721, 7
    %v3723 = vsub.s32 1, %v3722
    %v3724 = vrot.slane %v3715, %v3723
    %v3725 = vlaneseq
    %v3726 = vshrl.u32 %v3725, 7
    %v3727 = vsub.s32 2, %v3726
    %v3728 = vrot.slane %v3715, %v3727
    %v3729 = vlaneseq
    %v3730 = vshrl.u32 %v3729, 7
    %v3731 = vsub.s32 3, %v3730
    %v3732 = vrot.slane %v3715, %v3731
    %v3733 = vlaneseq
    %v3734 = vshrl.u32 %v3733, 7
    %v3735 = vsub.s32 4, %v3734
    %v3736 = vrot.slane %v3715, %v3735
    %v3737 = vlaneseq
    %v3738 = vshrl.u32 %v3737, 7
    %v3739 = vsub.s32 5, %v3738
    %v3740 = vrot.slane %v3715, %v3739
    %v3741 = vlaneseq
    %v3742 = vshrl.u32 %v3741, 7
    %v3743 = vsub.s32 6, %v3742
    %v3744 = vrot.slane %v3715, %v3743
    %v3745 = vlaneseq
    %v3746 = vshrl.u32 %v3745, 7
    %v3747 = vsub.s32 7, %v3746
    %v3748 = vrot.slane %v3715, %v3747
    %3757 = vmatprep.subr.mxu0 0.0
    %3758 = vmatpush1.msra.mxu0 0.0
    %3759 = vmatprep.subr.mxu0 0.0
    %3760 = vmatpush1.msra.mxu0 0.0
    %3761 = vmatprep.subr.mxu0 0.0
    %3762 = vmatpush1.msra.mxu0 0.0
    %3763 = vmatprep.subr.mxu0 0.0
    %3764 = vmatpush1.msra.mxu0 0.0
    %3765 = vmatprep.subr.mxu0 0.0
    %3766 = vmatpush1.msra.mxu0 0.0
    %3767 = vmatprep.subr.mxu0 0.0
    %3768 = vmatpush1.msra.mxu0 0.0
    %3769 = vmatprep.subr.mxu0 0.0
    %3770 = vmatpush1.msra.mxu0 0.0
    %3771 = vmatprep.subr.mxu0 0.0
    %3772 = vmatpush1.msra.mxu0 0.0
    %3773 = vmatprep.subr.mxu0 0.0
    %3774 = vmatpush1.msra.mxu0 0.0
    %3775 = vmatprep.subr.mxu0 0.0
    %3776 = vmatpush1.msra.mxu0 0.0
    %3777 = vmatprep.subr.mxu0 0.0
    %3778 = vmatpush1.msra.mxu0 0.0
    %3779 = vmatprep.subr.mxu0 0.0
    %3780 = vmatpush1.msra.mxu0 0.0
    %3781 = vmatprep.subr.mxu0 %v3707
    %3782 = vmatpush1.msra.mxu0 %v3706
    %3783 = vmatprep.subr.mxu0 %v3699
    %3784 = vmatpush1.msra.mxu0 %v3698
    %3785 = vmatprep.subr.mxu0 %v3691
    %3786 = vmatpush1.msra.mxu0 %v3690
    %3787 = vmatprep.subr.mxu0 %v3683
    %3788 = vmatpush1.msra.mxu0 %v3682
    %3789 = vmatprep.subr.mxu0 0.0
    %3790 = vmatpush2.msra.mxu0 0.0
    %3791 = vmatprep.subr.mxu0 0.0
    %3792 = vmatpush2.msra.mxu0 0.0
    %3793 = vmatprep.subr.mxu0 0.0
    %3794 = vmatpush2.msra.mxu0 0.0
    %3795 = vmatprep.subr.mxu0 0.0
    %3796 = vmatpush2.msra.mxu0 0.0
    %3797 = vmatprep.subr.mxu0 0.0
    %3798 = vmatpush2.msra.mxu0 0.0
    %3799 = vmatprep.subr.mxu0 0.0
    %3800 = vmatpush2.msra.mxu0 0.0
    %3801 = vmatprep.subr.mxu0 0.0
    %3802 = vmatpush2.msra.mxu0 0.0
    %3803 = vmatprep.subr.mxu0 0.0
    %3804 = vmatpush2.msra.mxu0 0.0
    %3805 = vmatprep.subr.mxu0 0.0
    %3806 = vmatpush2.msra.mxu0 0.0
    %3807 = vmatprep.subr.mxu0 0.0
    %3808 = vmatpush2.msra.mxu0 0.0
    %3809 = vmatprep.subr.mxu0 0.0
    %3810 = vmatpush2.msra.mxu0 0.0
    %3811 = vmatprep.subr.mxu0 0.0
    %3812 = vmatpush2.msra.mxu0 0.0
    %3813 = vmatprep.subr.mxu0 0.0
    %3814 = vmatpush2.msra.mxu0 0.0
    %3815 = vmatprep.subr.mxu0 0.0
    %3816 = vmatpush2.msra.mxu0 0.0
    %3817 = vmatprep.subr.mxu0 0.0
    %3818 = vmatpush2.msra.mxu0 0.0
    %3819 = vmatprep.subr.mxu0 0.0
    %3820 = vmatpush2.msra.mxu0 0.0
    %3821 = vmatprep.mubr.f32.mxu0 0.0
    %3822 = vmatmul.mubr.f32.gmra.mxu0 %v1055
    %v3823 = vpop.f32.mrf.mxu0
    %v3824 = vadd.f32 %v3720, %v3823
    %v3825 = vpop.f32.mrf.mxu0
    %v3826 = vadd.f32 %v3724, %v3825
    %3827 = vdwg.mxu0
    %3828 = vmatprep.subr.mxu0 0.0
    %3829 = vmatpush1.msra.mxu0 0.0
    %3830 = vmatprep.subr.mxu0 0.0
    %3831 = vmatpush1.msra.mxu0 0.0
    %3832 = vmatprep.subr.mxu0 0.0
    %3833 = vmatpush1.msra.mxu0 0.0
    %3834 = vmatprep.subr.mxu0 0.0
    %3835 = vmatpush1.msra.mxu0 0.0
    %3836 = vmatprep.subr.mxu0 0.0
    %3837 = vmatpush1.msra.mxu0 0.0
    %3838 = vmatprep.subr.mxu0 0.0
    %3839 = vmatpush1.msra.mxu0 0.0
    %3840 = vmatprep.subr.mxu0 0.0
    %3841 = vmatpush1.msra.mxu0 0.0
    %3842 = vmatprep.subr.mxu0 0.0
    %3843 = vmatpush1.msra.mxu0 0.0
    %3844 = vmatprep.subr.mxu0 0.0
    %3845 = vmatpush1.msra.mxu0 0.0
    %3846 = vmatprep.subr.mxu0 0.0
    %3847 = vmatpush1.msra.mxu0 0.0
    %3848 = vmatprep.subr.mxu0 0.0
    %3849 = vmatpush1.msra.mxu0 0.0
    %3850 = vmatprep.subr.mxu0 0.0
    %3851 = vmatpush1.msra.mxu0 0.0
    %3852 = vmatprep.subr.mxu0 %v3709
    %3853 = vmatpush1.msra.mxu0 %v3708
    %3854 = vmatprep.subr.mxu0 %v3701
    %3855 = vmatpush1.msra.mxu0 %v3700
    %3856 = vmatprep.subr.mxu0 %v3693
    %3857 = vmatpush1.msra.mxu0 %v3692
    %3858 = vmatprep.subr.mxu0 %v3685
    %3859 = vmatpush1.msra.mxu0 %v3684
    %3860 = vmatprep.subr.mxu0 0.0
    %3861 = vmatpush2.msra.mxu0 0.0
    %3862 = vmatprep.subr.mxu0 0.0
    %3863 = vmatpush2.msra.mxu0 0.0
    %3864 = vmatprep.subr.mxu0 0.0
    %3865 = vmatpush2.msra.mxu0 0.0
    %3866 = vmatprep.subr.mxu0 0.0
    %3867 = vmatpush2.msra.mxu0 0.0
    %3868 = vmatprep.subr.mxu0 0.0
    %3869 = vmatpush2.msra.mxu0 0.0
    %3870 = vmatprep.subr.mxu0 0.0
    %3871 = vmatpush2.msra.mxu0 0.0
    %3872 = vmatprep.subr.mxu0 0.0
    %3873 = vmatpush2.msra.mxu0 0.0
    %3874 = vmatprep.subr.mxu0 0.0
    %3875 = vmatpush2.msra.mxu0 0.0
    %3876 = vmatprep.subr.mxu0 0.0
    %3877 = vmatpush2.msra.mxu0 0.0
    %3878 = vmatprep.subr.mxu0 0.0
    %3879 = vmatpush2.msra.mxu0 0.0
    %3880 = vmatprep.subr.mxu0 0.0
    %3881 = vmatpush2.msra.mxu0 0.0
    %3882 = vmatprep.subr.mxu0 0.0
    %3883 = vmatpush2.msra.mxu0 0.0
    %3884 = vmatprep.subr.mxu0 0.0
    %3885 = vmatpush2.msra.mxu0 0.0
    %3886 = vmatprep.subr.mxu0 0.0
    %3887 = vmatpush2.msra.mxu0 0.0
    %3888 = vmatprep.subr.mxu0 0.0
    %3889 = vmatpush2.msra.mxu0 0.0
    %3890 = vmatprep.subr.mxu0 0.0
    %3891 = vmatpush2.msra.mxu0 0.0
    %3892 = vmatprep.mubr.f32.mxu0 0.0
    %3893 = vmatmul.mubr.f32.gmra.mxu0 %v1055
    %v3894 = vpop.f32.mrf.mxu0
    %v3895 = vadd.f32 %v3728, %v3894
    %v3896 = vpop.f32.mrf.mxu0
    %v3897 = vadd.f32 %v3732, %v3896
    %3898 = vdwg.mxu0
    %3899 = vmatprep.subr.mxu0 0.0
    %3900 = vmatpush1.msra.mxu0 0.0
    %3901 = vmatprep.subr.mxu0 0.0
    %3902 = vmatpush1.msra.mxu0 0.0
    %3903 = vmatprep.subr.mxu0 0.0
    %3904 = vmatpush1.msra.mxu0 0.0
    %3905 = vmatprep.subr.mxu0 0.0
    %3906 = vmatpush1.msra.mxu0 0.0
    %3907 = vmatprep.subr.mxu0 0.0
    %3908 = vmatpush1.msra.mxu0 0.0
    %3909 = vmatprep.subr.mxu0 0.0
    %3910 = vmatpush1.msra.mxu0 0.0
    %3911 = vmatprep.subr.mxu0 0.0
    %3912 = vmatpush1.msra.mxu0 0.0
    %3913 = vmatprep.subr.mxu0 0.0
    %3914 = vmatpush1.msra.mxu0 0.0
    %3915 = vmatprep.subr.mxu0 0.0
    %3916 = vmatpush1.msra.mxu0 0.0
    %3917 = vmatprep.subr.mxu0 0.0
    %3918 = vmatpush1.msra.mxu0 0.0
    %3919 = vmatprep.subr.mxu0 0.0
    %3920 = vmatpush1.msra.mxu0 0.0
    %3921 = vmatprep.subr.mxu0 0.0
    %3922 = vmatpush1.msra.mxu0 0.0
    %3923 = vmatprep.subr.mxu0 %v3711
    %3924 = vmatpush1.msra.mxu0 %v3710
    %3925 = vmatprep.subr.mxu0 %v3703
    %3926 = vmatpush1.msra.mxu0 %v3702
    %3927 = vmatprep.subr.mxu0 %v3695
    %3928 = vmatpush1.msra.mxu0 %v3694
    %3929 = vmatprep.subr.mxu0 %v3687
    %3930 = vmatpush1.msra.mxu0 %v3686
    %3931 = vmatprep.subr.mxu0 0.0
    %3932 = vmatpush2.msra.mxu0 0.0
    %3933 = vmatprep.subr.mxu0 0.0
    %3934 = vmatpush2.msra.mxu0 0.0
    %3935 = vmatprep.subr.mxu0 0.0
    %3936 = vmatpush2.msra.mxu0 0.0
    %3937 = vmatprep.subr.mxu0 0.0
    %3938 = vmatpush2.msra.mxu0 0.0
    %3939 = vmatprep.subr.mxu0 0.0
    %3940 = vmatpush2.msra.mxu0 0.0
    %3941 = vmatprep.subr.mxu0 0.0
    %3942 = vmatpush2.msra.mxu0 0.0
    %3943 = vmatprep.subr.mxu0 0.0
    %3944 = vmatpush2.msra.mxu0 0.0
    %3945 = vmatprep.subr.mxu0 0.0
    %3946 = vmatpush2.msra.mxu0 0.0
    %3947 = vmatprep.subr.mxu0 0.0
    %3948 = vmatpush2.msra.mxu0 0.0
    %3949 = vmatprep.subr.mxu0 0.0
    %3950 = vmatpush2.msra.mxu0 0.0
    %3951 = vmatprep.subr.mxu0 0.0
    %3952 = vmatpush2.msra.mxu0 0.0
    %3953 = vmatprep.subr.mxu0 0.0
    %3954 = vmatpush2.msra.mxu0 0.0
    %3955 = vmatprep.subr.mxu0 0.0
    %3956 = vmatpush2.msra.mxu0 0.0
    %3957 = vmatprep.subr.mxu0 0.0
    %3958 = vmatpush2.msra.mxu0 0.0
    %3959 = vmatprep.subr.mxu0 0.0
    %3960 = vmatpush2.msra.mxu0 0.0
    %3961 = vmatprep.subr.mxu0 0.0
    %3962 = vmatpush2.msra.mxu0 0.0
    %3963 = vmatprep.mubr.f32.mxu0 0.0
    %3964 = vmatmul.mubr.f32.gmra.mxu0 %v1055
    %v3965 = vpop.f32.mrf.mxu0
    %v3966 = vadd.f32 %v3736, %v3965
    %v3967 = vpop.f32.mrf.mxu0
    %v3968 = vadd.f32 %v3740, %v3967
    %3969 = vdwg.mxu0
    %3970 = vmatprep.subr.mxu0 0.0
    %3971 = vmatpush1.msra.mxu0 0.0
    %3972 = vmatprep.subr.mxu0 0.0
    %3973 = vmatpush1.msra.mxu0 0.0
    %3974 = vmatprep.subr.mxu0 0.0
    %3975 = vmatpush1.msra.mxu0 0.0
    %3976 = vmatprep.subr.mxu0 0.0
    %3977 = vmatpush1.msra.mxu0 0.0
    %3978 = vmatprep.subr.mxu0 0.0
    %3979 = vmatpush1.msra.mxu0 0.0
    %3980 = vmatprep.subr.mxu0 0.0
    %3981 = vmatpush1.msra.mxu0 0.0
    %3982 = vmatprep.subr.mxu0 0.0
    %3983 = vmatpush1.msra.mxu0 0.0
    %3984 = vmatprep.subr.mxu0 0.0
    %3985 = vmatpush1.msra.mxu0 0.0
    %3986 = vmatprep.subr.mxu0 0.0
    %3987 = vmatpush1.msra.mxu0 0.0
    %3988 = vmatprep.subr.mxu0 0.0
    %3989 = vmatpush1.msra.mxu0 0.0
    %3990 = vmatprep.subr.mxu0 0.0
    %3991 = vmatpush1.msra.mxu0 0.0
    %3992 = vmatprep.subr.mxu0 0.0
    %3993 = vmatpush1.msra.mxu0 0.0
    %3994 = vmatprep.subr.mxu0 %v3713
    %3995 = vmatpush1.msra.mxu0 %v3712
    %3996 = vmatprep.subr.mxu0 %v3705
    %3997 = vmatpush1.msra.mxu0 %v3704
    %3998 = vmatprep.subr.mxu0 %v3697
    %3999 = vmatpush1.msra.mxu0 %v3696
    %4000 = vmatprep.subr.mxu0 %v3689
    %4001 = vmatpush1.msra.mxu0 %v3688
    %4002 = vmatprep.subr.mxu0 0.0
    %4003 = vmatpush2.msra.mxu0 0.0
    %4004 = vmatprep.subr.mxu0 0.0
    %4005 = vmatpush2.msra.mxu0 0.0
    %4006 = vmatprep.subr.mxu0 0.0
    %4007 = vmatpush2.msra.mxu0 0.0
    %4008 = vmatprep.subr.mxu0 0.0
    %4009 = vmatpush2.msra.mxu0 0.0
    %4010 = vmatprep.subr.mxu0 0.0
    %4011 = vmatpush2.msra.mxu0 0.0
    %4012 = vmatprep.subr.mxu0 0.0
    %4013 = vmatpush2.msra.mxu0 0.0
    %4014 = vmatprep.subr.mxu0 0.0
    %4015 = vmatpush2.msra.mxu0 0.0
    %4016 = vmatprep.subr.mxu0 0.0
    %4017 = vmatpush2.msra.mxu0 0.0
    %4018 = vmatprep.subr.mxu0 0.0
    %4019 = vmatpush2.msra.mxu0 0.0
    %4020 = vmatprep.subr.mxu0 0.0
    %4021 = vmatpush2.msra.mxu0 0.0
    %4022 = vmatprep.subr.mxu0 0.0
    %4023 = vmatpush2.msra.mxu0 0.0
    %4024 = vmatprep.subr.mxu0 0.0
    %4025 = vmatpush2.msra.mxu0 0.0
    %4026 = vmatprep.subr.mxu0 0.0
    %4027 = vmatpush2.msra.mxu0 0.0
    %4028 = vmatprep.subr.mxu0 0.0
    %4029 = vmatpush2.msra.mxu0 0.0
    %4030 = vmatprep.subr.mxu0 0.0
    %4031 = vmatpush2.msra.mxu0 0.0
    %4032 = vmatprep.subr.mxu0 0.0
    %4033 = vmatpush2.msra.mxu0 0.0
    %4034 = vmatprep.mubr.f32.mxu0 0.0
    %4035 = vmatmul.mubr.f32.gmra.mxu0 %v1055
    %v4036 = vpop.f32.mrf.mxu0
    %v4037 = vadd.f32 %v3744, %v4036
    %v4038 = vpop.f32.mrf.mxu0
    %v4039 = vadd.f32 %v3748, %v4038
    %4040 = vdwg.mxu0
    %v4041 = vmul.f32 %v3824, 0.5
    %v4042 = vmul.f32 %v3826, 0.5
    %v4043 = vmul.f32 %v3895, 0.5
    %v4044 = vmul.f32 %v3897, 0.5
    %v4045 = vmul.f32 %v3966, 0.5
    %v4046 = vmul.f32 %v3968, 0.5
    %v4047 = vmul.f32 %v4037, 0.5
    %v4048 = vmul.f32 %v4039, 0.5
    %v4049 = vmul.f32 %v3824, 0.044715
    %v4050 = vmul.f32 %v3826, 0.044715
    %v4051 = vmul.f32 %v3895, 0.044715
    %v4052 = vmul.f32 %v3897, 0.044715
    %v4053 = vmul.f32 %v3966, 0.044715
    %v4054 = vmul.f32 %v3968, 0.044715
    %v4055 = vmul.f32 %v4037, 0.044715
    %v4056 = vmul.f32 %v4039, 0.044715
    %v4057 = vmul.f32 %v4049, %v3824
    %v4058 = vmul.f32 %v4050, %v3826
    %v4059 = vmul.f32 %v4051, %v3895
    %v4060 = vmul.f32 %v4052, %v3897
    %v4061 = vmul.f32 %v4053, %v3966
    %v4062 = vmul.f32 %v4054, %v3968
    %v4063 = vmul.f32 %v4055, %v4037
    %v4064 = vmul.f32 %v4056, %v4039
    %v4065 = vmul.f32 %v4057, %v3824
    %v4066 = vmul.f32 %v4058, %v3826
    %v4067 = vmul.f32 %v4059, %v3895
    %v4068 = vmul.f32 %v4060, %v3897
    %v4069 = vmul.f32 %v4061, %v3966
    %v4070 = vmul.f32 %v4062, %v3968
    %v4071 = vmul.f32 %v4063, %v4037
    %v4072 = vmul.f32 %v4064, %v4039
    %v4073 = vadd.f32 %v3824, %v4065
    %v4074 = vadd.f32 %v3826, %v4066
    %v4075 = vadd.f32 %v3895, %v4067
    %v4076 = vadd.f32 %v3897, %v4068
    %v4077 = vadd.f32 %v3966, %v4069
    %v4078 = vadd.f32 %v3968, %v4070
    %v4079 = vadd.f32 %v4037, %v4071
    %v4080 = vadd.f32 %v4039, %v4072
    %v4081 = vmul.f32 %v4073, 0.7978846
    %v4082 = vmul.f32 %v4074, 0.7978846
    %v4083 = vmul.f32 %v4075, 0.7978846
    %v4084 = vmul.f32 %v4076, 0.7978846
    %v4085 = vmul.f32 %v4077, 0.7978846
    %v4086 = vmul.f32 %v4078, 0.7978846
    %v4087 = vmul.f32 %v4079, 0.7978846
    %v4088 = vmul.f32 %v4080, 0.7978846
    %v4089 = vtanh.pop %v4081
    %v4090 = vtanh.pop %v4082
    %v4091 = vtanh.pop %v4083
    %v4092 = vtanh.pop %v4084
    %v4093 = vtanh.pop %v4085
    %v4094 = vtanh.pop %v4086
    %v4095 = vtanh.pop %v4087
    %v4096 = vtanh.pop %v4088
    %v4097 = vadd.f32 %v4089, 1.0
    %v4098 = vadd.f32 %v4090, 1.0
    %v4099 = vadd.f32 %v4091, 1.0
    %v4100 = vadd.f32 %v4092, 1.0
    %v4101 = vadd.f32 %v4093, 1.0
    %v4102 = vadd.f32 %v4094, 1.0
    %v4103 = vadd.f32 %v4095, 1.0
    %v4104 = vadd.f32 %v4096, 1.0
    %v4105 = vmul.f32 %v4041, %v4097
    %v4106 = vmul.f32 %v4042, %v4098
    %v4107 = vmul.f32 %v4043, %v4099
    %v4108 = vmul.f32 %v4044, %v4100
    %v4109 = vmul.f32 %v4045, %v4101
    %v4110 = vmul.f32 %v4046, %v4102
    %v4111 = vmul.f32 %v4047, %v4103
    %v4112 = vmul.f32 %v4048, %v4104
    %v4113 = vmul.f32 %v3663, %v4105
    %v4114 = vmul.f32 %v3663, %v4106
    %v4115 = vmul.f32 %v3663, %v4107
    %v4116 = vmul.f32 %v3663, %v4108
    %v4117 = vmul.f32 %v3663, %v4109
    %v4118 = vmul.f32 %v3663, %v4110
    %v4119 = vmul.f32 %v3663, %v4111
    %v4120 = vmul.f32 %v3663, %v4112
    %v4121 = vadd.f32 %v3221, %v4113
    %v4122 = vadd.f32 %v3222, %v4114
    %v4123 = vadd.f32 %v3223, %v4115
    %v4124 = vadd.f32 %v3224, %v4116
    %v4125 = vadd.f32 %v3225, %v4117
    %v4126 = vadd.f32 %v3226, %v4118
    %v4127 = vadd.f32 %v3227, %v4119
    %v4128 = vadd.f32 %v3228, %v4120
    %v4129 = vld [vmem:[%s14] sm:$0xff]
    %v4130 = vld [vmem:[%s14 + $0x8] sm:$0xff]
    %v4131 = vld [vmem:[%s14 + $0x10] sm:$0xff]
    %v4132 = vld [vmem:[%s14 + $0x18] sm:$0xff]
    %v4133 = vld [vmem:[%s14 + $0x20] sm:$0xff]
    %v4134 = vld [vmem:[%s14 + $0x28] sm:$0xff]
    %v4135 = vld [vmem:[%s14 + $0x30] sm:$0xff]
    %v4136 = vld [vmem:[%s14 + $0x38] sm:$0xff]
    %v4137 = vld [vmem:[%s14 + $0x40] sm:$0xff]
    %v4138 = vld [vmem:[%s14 + $0x48] sm:$0xff]
    %v4139 = vld [vmem:[%s14 + $0x50] sm:$0xff]
    %v4140 = vld [vmem:[%s14 + $0x58] sm:$0xff]
    %v4141 = vld [vmem:[%s14 + $0x60] sm:$0xff]
    %v4142 = vld [vmem:[%s14 + $0x68] sm:$0xff]
    %v4143 = vld [vmem:[%s14 + $0x70] sm:$0xff]
    %v4144 = vld [vmem:[%s14 + $0x78] sm:$0xff]
    %v4145 = vld [vmem:[%s14 + $0x80] sm:$0xff]
    %v4146 = vld [vmem:[%s14 + $0x88] sm:$0xff]
    %v4147 = vld [vmem:[%s14 + $0x90] sm:$0xff]
    %v4148 = vld [vmem:[%s14 + $0x98] sm:$0xff]
    %v4149 = vld [vmem:[%s14 + $0xa0] sm:$0xff]
    %v4150 = vld [vmem:[%s14 + $0xa8] sm:$0xff]
    %v4151 = vld [vmem:[%s14 + $0xb0] sm:$0xff]
    %v4152 = vld [vmem:[%s14 + $0xb8] sm:$0xff]
    %v4153 = vld [vmem:[%s14 + $0xc0] sm:$0xff]
    %v4154 = vld [vmem:[%s14 + $0xc8] sm:$0xff]
    %v4155 = vld [vmem:[%s14 + $0xd0] sm:$0xff]
    %v4156 = vld [vmem:[%s14 + $0xd8] sm:$0xff]
    %v4157 = vld [vmem:[%s14 + $0xe0] sm:$0xff]
    %v4158 = vld [vmem:[%s14 + $0xe8] sm:$0xff]
    %v4159 = vld [vmem:[%s14 + $0xf0] sm:$0xff]
    %v4160 = vld [vmem:[%s14 + $0xf8] sm:$0xff]
    %v4161 = vld [vmem:[%s14 + $0x100] sm:$0xff]
    %v4162 = vld [vmem:[%s14 + $0x108] sm:$0xff]
    %v4163 = vld [vmem:[%s14 + $0x110] sm:$0xff]
    %v4164 = vld [vmem:[%s14 + $0x118] sm:$0xff]
    %v4165 = vld [vmem:[%s14 + $0x120] sm:$0xff]
    %v4166 = vld [vmem:[%s14 + $0x128] sm:$0xff]
    %v4167 = vld [vmem:[%s14 + $0x130] sm:$0xff]
    %v4168 = vld [vmem:[%s14 + $0x138] sm:$0xff]
    %v4169 = vld [vmem:[%s14 + $0x140] sm:$0xff]
    %v4170 = vld [vmem:[%s14 + $0x148] sm:$0xff]
    %v4171 = vld [vmem:[%s14 + $0x150] sm:$0xff]
    %v4172 = vld [vmem:[%s14 + $0x158] sm:$0xff]
    %v4173 = vld [vmem:[%s14 + $0x160] sm:$0xff]
    %v4174 = vld [vmem:[%s14 + $0x168] sm:$0xff]
    %v4175 = vld [vmem:[%s14 + $0x170] sm:$0xff]
    %v4176 = vld [vmem:[%s14 + $0x178] sm:$0xff]
    %v4177 = vld [vmem:[%s14 + $0x180] sm:$0xff]
    %v4178 = vld [vmem:[%s14 + $0x188] sm:$0xff]
    %v4179 = vld [vmem:[%s14 + $0x190] sm:$0xff]
    %v4180 = vld [vmem:[%s14 + $0x198] sm:$0xff]
    %v4181 = vld [vmem:[%s14 + $0x1a0] sm:$0xff]
    %v4182 = vld [vmem:[%s14 + $0x1a8] sm:$0xff]
    %v4183 = vld [vmem:[%s14 + $0x1b0] sm:$0xff]
    %v4184 = vld [vmem:[%s14 + $0x1b8] sm:$0xff]
    %v4185 = vld [vmem:[%s14 + $0x1c0] sm:$0xff]
    %v4186 = vld [vmem:[%s14 + $0x1c8] sm:$0xff]
    %v4187 = vld [vmem:[%s14 + $0x1d0] sm:$0xff]
    %v4188 = vld [vmem:[%s14 + $0x1d8] sm:$0xff]
    %v4189 = vld [vmem:[%s14 + $0x1e0] sm:$0xff]
    %v4190 = vld [vmem:[%s14 + $0x1e8] sm:$0xff]
    %v4191 = vld [vmem:[%s14 + $0x1f0] sm:$0xff]
    %v4192 = vld [vmem:[%s14 + $0x1f8] sm:$0xff]
    %v4193 = vld [vmem:[%s14 + $0x200] sm:$0xff]
    %v4194 = vld [vmem:[%s14 + $0x208] sm:$0xff]
    %v4195 = vld [vmem:[%s14 + $0x210] sm:$0xff]
    %v4196 = vld [vmem:[%s14 + $0x218] sm:$0xff]
    %v4197 = vld [vmem:[%s14 + $0x220] sm:$0xff]
    %v4198 = vld [vmem:[%s14 + $0x228] sm:$0xff]
    %v4199 = vld [vmem:[%s14 + $0x230] sm:$0xff]
    %v4200 = vld [vmem:[%s14 + $0x238] sm:$0xff]
    %v4201 = vld [vmem:[%s14 + $0x240] sm:$0xff]
    %v4202 = vld [vmem:[%s14 + $0x248] sm:$0xff]
    %v4203 = vld [vmem:[%s14 + $0x250] sm:$0xff]
    %v4204 = vld [vmem:[%s14 + $0x258] sm:$0xff]
    %v4205 = vld [vmem:[%s14 + $0x260] sm:$0xff]
    %v4206 = vld [vmem:[%s14 + $0x268] sm:$0xff]
    %v4207 = vld [vmem:[%s14 + $0x270] sm:$0xff]
    %v4208 = vld [vmem:[%s14 + $0x278] sm:$0xff]
    %v4209 = vld [vmem:[%s14 + $0x280] sm:$0xff]
    %v4210 = vld [vmem:[%s14 + $0x288] sm:$0xff]
    %v4211 = vld [vmem:[%s14 + $0x290] sm:$0xff]
    %v4212 = vld [vmem:[%s14 + $0x298] sm:$0xff]
    %v4213 = vld [vmem:[%s14 + $0x2a0] sm:$0xff]
    %v4214 = vld [vmem:[%s14 + $0x2a8] sm:$0xff]
    %v4215 = vld [vmem:[%s14 + $0x2b0] sm:$0xff]
    %v4216 = vld [vmem:[%s14 + $0x2b8] sm:$0xff]
    %v4217 = vld [vmem:[%s14 + $0x2c0] sm:$0xff]
    %v4218 = vld [vmem:[%s14 + $0x2c8] sm:$0xff]
    %v4219 = vld [vmem:[%s14 + $0x2d0] sm:$0xff]
    %v4220 = vld [vmem:[%s14 + $0x2d8] sm:$0xff]
    %v4221 = vld [vmem:[%s14 + $0x2e0] sm:$0xff]
    %v4222 = vld [vmem:[%s14 + $0x2e8] sm:$0xff]
    %v4223 = vld [vmem:[%s14 + $0x2f0] sm:$0xff]
    %v4224 = vld [vmem:[%s14 + $0x2f8] sm:$0xff]
    %v4225 = vld [vmem:[%s14 + $0x300] sm:$0xff]
    %v4226 = vld [vmem:[%s14 + $0x308] sm:$0xff]
    %v4227 = vld [vmem:[%s14 + $0x310] sm:$0xff]
    %v4228 = vld [vmem:[%s14 + $0x318] sm:$0xff]
    %v4229 = vld [vmem:[%s14 + $0x320] sm:$0xff]
    %v4230 = vld [vmem:[%s14 + $0x328] sm:$0xff]
    %v4231 = vld [vmem:[%s14 + $0x330] sm:$0xff]
    %v4232 = vld [vmem:[%s14 + $0x338] sm:$0xff]
    %v4233 = vld [vmem:[%s14 + $0x340] sm:$0xff]
    %v4234 = vld [vmem:[%s14 + $0x348] sm:$0xff]
    %v4235 = vld [vmem:[%s14 + $0x350] sm:$0xff]
    %v4236 = vld [vmem:[%s14 + $0x358] sm:$0xff]
    %v4237 = vld [vmem:[%s14 + $0x360] sm:$0xff]
    %v4238 = vld [vmem:[%s14 + $0x368] sm:$0xff]
    %v4239 = vld [vmem:[%s14 + $0x370] sm:$0xff]
    %v4240 = vld [vmem:[%s14 + $0x378] sm:$0xff]
    %v4241 = vld [vmem:[%s14 + $0x380] sm:$0xff]
    %v4242 = vld [vmem:[%s14 + $0x388] sm:$0xff]
    %v4243 = vld [vmem:[%s14 + $0x390] sm:$0xff]
    %v4244 = vld [vmem:[%s14 + $0x398] sm:$0xff]
    %v4245 = vld [vmem:[%s14 + $0x3a0] sm:$0xff]
    %v4246 = vld [vmem:[%s14 + $0x3a8] sm:$0xff]
    %v4247 = vld [vmem:[%s14 + $0x3b0] sm:$0xff]
    %v4248 = vld [vmem:[%s14 + $0x3b8] sm:$0xff]
    %v4249 = vld [vmem:[%s14 + $0x3c0] sm:$0xff]
    %v4250 = vld [vmem:[%s14 + $0x3c8] sm:$0xff]
    %v4251 = vld [vmem:[%s14 + $0x3d0] sm:$0xff]
    %v4252 = vld [vmem:[%s14 + $0x3d8] sm:$0xff]
    %v4253 = vld [vmem:[%s14 + $0x3e0] sm:$0xff]
    %v4254 = vld [vmem:[%s14 + $0x3e8] sm:$0xff]
    %v4255 = vld [vmem:[%s14 + $0x3f0] sm:$0xff]
    %v4256 = vld [vmem:[%s14 + $0x3f8] sm:$0xff]
    %v4257 = vld [vmem:[%s15] sm:$0xff]
    %v4258 = vld [vmem:[%s15 + $0x8] sm:$0xff]
    %v4259 = vld [vmem:[%s15 + $0x10] sm:$0xff]
    %v4260 = vld [vmem:[%s15 + $0x18] sm:$0xff]
    %v4261 = vld [vmem:[%s15 + $0x20] sm:$0xff]
    %v4262 = vld [vmem:[%s15 + $0x28] sm:$0xff]
    %v4263 = vld [vmem:[%s15 + $0x30] sm:$0xff]
    %v4264 = vld [vmem:[%s15 + $0x38] sm:$0xff]
    %v4265 = vld [vmem:[%s15 + $0x40] sm:$0xff]
    %v4266 = vld [vmem:[%s15 + $0x48] sm:$0xff]
    %v4267 = vld [vmem:[%s15 + $0x50] sm:$0xff]
    %v4268 = vld [vmem:[%s15 + $0x58] sm:$0xff]
    %v4269 = vld [vmem:[%s15 + $0x60] sm:$0xff]
    %v4270 = vld [vmem:[%s15 + $0x68] sm:$0xff]
    %v4271 = vld [vmem:[%s15 + $0x70] sm:$0xff]
    %v4272 = vld [vmem:[%s15 + $0x78] sm:$0xff]
    %v4273 = vld [vmem:[%s15 + $0x80] sm:$0xff]
    %v4274 = vld [vmem:[%s15 + $0x88] sm:$0xff]
    %v4275 = vld [vmem:[%s15 + $0x90] sm:$0xff]
    %v4276 = vld [vmem:[%s15 + $0x98] sm:$0xff]
    %v4277 = vld [vmem:[%s15 + $0xa0] sm:$0xff]
    %v4278 = vld [vmem:[%s15 + $0xa8] sm:$0xff]
    %v4279 = vld [vmem:[%s15 + $0xb0] sm:$0xff]
    %v4280 = vld [vmem:[%s15 + $0xb8] sm:$0xff]
    %v4281 = vld [vmem:[%s15 + $0xc0] sm:$0xff]
    %v4282 = vld [vmem:[%s15 + $0xc8] sm:$0xff]
    %v4283 = vld [vmem:[%s15 + $0xd0] sm:$0xff]
    %v4284 = vld [vmem:[%s15 + $0xd8] sm:$0xff]
    %v4285 = vld [vmem:[%s15 + $0xe0] sm:$0xff]
    %v4286 = vld [vmem:[%s15 + $0xe8] sm:$0xff]
    %v4287 = vld [vmem:[%s15 + $0xf0] sm:$0xff]
    %v4288 = vld [vmem:[%s15 + $0xf8] sm:$0xff]
    %v4289 = vld [vmem:[%s15 + $0x100] sm:$0xff]
    %v4290 = vld [vmem:[%s15 + $0x108] sm:$0xff]
    %v4291 = vld [vmem:[%s15 + $0x110] sm:$0xff]
    %v4292 = vld [vmem:[%s15 + $0x118] sm:$0xff]
    %v4293 = vld [vmem:[%s15 + $0x120] sm:$0xff]
    %v4294 = vld [vmem:[%s15 + $0x128] sm:$0xff]
    %v4295 = vld [vmem:[%s15 + $0x130] sm:$0xff]
    %v4296 = vld [vmem:[%s15 + $0x138] sm:$0xff]
    %v4297 = vld [vmem:[%s15 + $0x140] sm:$0xff]
    %v4298 = vld [vmem:[%s15 + $0x148] sm:$0xff]
    %v4299 = vld [vmem:[%s15 + $0x150] sm:$0xff]
    %v4300 = vld [vmem:[%s15 + $0x158] sm:$0xff]
    %v4301 = vld [vmem:[%s15 + $0x160] sm:$0xff]
    %v4302 = vld [vmem:[%s15 + $0x168] sm:$0xff]
    %v4303 = vld [vmem:[%s15 + $0x170] sm:$0xff]
    %v4304 = vld [vmem:[%s15 + $0x178] sm:$0xff]
    %v4305 = vld [vmem:[%s15 + $0x180] sm:$0xff]
    %v4306 = vld [vmem:[%s15 + $0x188] sm:$0xff]
    %v4307 = vld [vmem:[%s15 + $0x190] sm:$0xff]
    %v4308 = vld [vmem:[%s15 + $0x198] sm:$0xff]
    %v4309 = vld [vmem:[%s15 + $0x1a0] sm:$0xff]
    %v4310 = vld [vmem:[%s15 + $0x1a8] sm:$0xff]
    %v4311 = vld [vmem:[%s15 + $0x1b0] sm:$0xff]
    %v4312 = vld [vmem:[%s15 + $0x1b8] sm:$0xff]
    %v4313 = vld [vmem:[%s15 + $0x1c0] sm:$0xff]
    %v4314 = vld [vmem:[%s15 + $0x1c8] sm:$0xff]
    %v4315 = vld [vmem:[%s15 + $0x1d0] sm:$0xff]
    %v4316 = vld [vmem:[%s15 + $0x1d8] sm:$0xff]
    %v4317 = vld [vmem:[%s15 + $0x1e0] sm:$0xff]
    %v4318 = vld [vmem:[%s15 + $0x1e8] sm:$0xff]
    %v4319 = vld [vmem:[%s15 + $0x1f0] sm:$0xff]
    %v4320 = vld [vmem:[%s15 + $0x1f8] sm:$0xff]
    %v4321 = vld [vmem:[%s15 + $0x200] sm:$0xff]
    %v4322 = vld [vmem:[%s15 + $0x208] sm:$0xff]
    %v4323 = vld [vmem:[%s15 + $0x210] sm:$0xff]
    %v4324 = vld [vmem:[%s15 + $0x218] sm:$0xff]
    %v4325 = vld [vmem:[%s15 + $0x220] sm:$0xff]
    %v4326 = vld [vmem:[%s15 + $0x228] sm:$0xff]
    %v4327 = vld [vmem:[%s15 + $0x230] sm:$0xff]
    %v4328 = vld [vmem:[%s15 + $0x238] sm:$0xff]
    %v4329 = vld [vmem:[%s15 + $0x240] sm:$0xff]
    %v4330 = vld [vmem:[%s15 + $0x248] sm:$0xff]
    %v4331 = vld [vmem:[%s15 + $0x250] sm:$0xff]
    %v4332 = vld [vmem:[%s15 + $0x258] sm:$0xff]
    %v4333 = vld [vmem:[%s15 + $0x260] sm:$0xff]
    %v4334 = vld [vmem:[%s15 + $0x268] sm:$0xff]
    %v4335 = vld [vmem:[%s15 + $0x270] sm:$0xff]
    %v4336 = vld [vmem:[%s15 + $0x278] sm:$0xff]
    %v4337 = vld [vmem:[%s15 + $0x280] sm:$0xff]
    %v4338 = vld [vmem:[%s15 + $0x288] sm:$0xff]
    %v4339 = vld [vmem:[%s15 + $0x290] sm:$0xff]
    %v4340 = vld [vmem:[%s15 + $0x298] sm:$0xff]
    %v4341 = vld [vmem:[%s15 + $0x2a0] sm:$0xff]
    %v4342 = vld [vmem:[%s15 + $0x2a8] sm:$0xff]
    %v4343 = vld [vmem:[%s15 + $0x2b0] sm:$0xff]
    %v4344 = vld [vmem:[%s15 + $0x2b8] sm:$0xff]
    %v4345 = vld [vmem:[%s15 + $0x2c0] sm:$0xff]
    %v4346 = vld [vmem:[%s15 + $0x2c8] sm:$0xff]
    %v4347 = vld [vmem:[%s15 + $0x2d0] sm:$0xff]
    %v4348 = vld [vmem:[%s15 + $0x2d8] sm:$0xff]
    %v4349 = vld [vmem:[%s15 + $0x2e0] sm:$0xff]
    %v4350 = vld [vmem:[%s15 + $0x2e8] sm:$0xff]
    %v4351 = vld [vmem:[%s15 + $0x2f0] sm:$0xff]
    %v4352 = vld [vmem:[%s15 + $0x2f8] sm:$0xff]
    %v4353 = vld [vmem:[%s15 + $0x300] sm:$0xff]
    %v4354 = vld [vmem:[%s15 + $0x308] sm:$0xff]
    %v4355 = vld [vmem:[%s15 + $0x310] sm:$0xff]
    %v4356 = vld [vmem:[%s15 + $0x318] sm:$0xff]
    %v4357 = vld [vmem:[%s15 + $0x320] sm:$0xff]
    %v4358 = vld [vmem:[%s15 + $0x328] sm:$0xff]
    %v4359 = vld [vmem:[%s15 + $0x330] sm:$0xff]
    %v4360 = vld [vmem:[%s15 + $0x338] sm:$0xff]
    %v4361 = vld [vmem:[%s15 + $0x340] sm:$0xff]
    %v4362 = vld [vmem:[%s15 + $0x348] sm:$0xff]
    %v4363 = vld [vmem:[%s15 + $0x350] sm:$0xff]
    %v4364 = vld [vmem:[%s15 + $0x358] sm:$0xff]
    %v4365 = vld [vmem:[%s15 + $0x360] sm:$0xff]
    %v4366 = vld [vmem:[%s15 + $0x368] sm:$0xff]
    %v4367 = vld [vmem:[%s15 + $0x370] sm:$0xff]
    %v4368 = vld [vmem:[%s15 + $0x378] sm:$0xff]
    %v4369 = vld [vmem:[%s15 + $0x380] sm:$0xff]
    %v4370 = vld [vmem:[%s15 + $0x388] sm:$0xff]
    %v4371 = vld [vmem:[%s15 + $0x390] sm:$0xff]
    %v4372 = vld [vmem:[%s15 + $0x398] sm:$0xff]
    %v4373 = vld [vmem:[%s15 + $0x3a0] sm:$0xff]
    %v4374 = vld [vmem:[%s15 + $0x3a8] sm:$0xff]
    %v4375 = vld [vmem:[%s15 + $0x3b0] sm:$0xff]
    %v4376 = vld [vmem:[%s15 + $0x3b8] sm:$0xff]
    %v4377 = vld [vmem:[%s15 + $0x3c0] sm:$0xff]
    %v4378 = vld [vmem:[%s15 + $0x3c8] sm:$0xff]
    %v4379 = vld [vmem:[%s15 + $0x3d0] sm:$0xff]
    %v4380 = vld [vmem:[%s15 + $0x3d8] sm:$0xff]
    %v4381 = vld [vmem:[%s15 + $0x3e0] sm:$0xff]
    %v4382 = vld [vmem:[%s15 + $0x3e8] sm:$0xff]
    %v4383 = vld [vmem:[%s15 + $0x3f0] sm:$0xff]
    %v4384 = vld [vmem:[%s15 + $0x3f8] sm:$0xff]
    %4385 = vmatprep.subr.mxu0 0.0
    %4386 = vmatpush1.msra.mxu0 %v4272
    %4387 = vmatprep.subr.mxu0 0.0
    %4388 = vmatpush1.msra.mxu0 %v4271
    %4389 = vmatprep.subr.mxu0 0.0
    %4390 = vmatpush1.msra.mxu0 %v4270
    %4391 = vmatprep.subr.mxu0 0.0
    %4392 = vmatpush1.msra.mxu0 %v4269
    %4393 = vmatprep.subr.mxu0 0.0
    %4394 = vmatpush1.msra.mxu0 %v4268
    %4395 = vmatprep.subr.mxu0 0.0
    %4396 = vmatpush1.msra.mxu0 %v4267
    %4397 = vmatprep.subr.mxu0 0.0
    %4398 = vmatpush1.msra.mxu0 %v4266
    %4399 = vmatprep.subr.mxu0 0.0
    %4400 = vmatpush1.msra.mxu0 %v4265
    %4401 = vmatprep.subr.mxu0 0.0
    %4402 = vmatpush1.msra.mxu0 %v4264
    %4403 = vmatprep.subr.mxu0 0.0
    %4404 = vmatpush1.msra.mxu0 %v4263
    %4405 = vmatprep.subr.mxu0 0.0
    %4406 = vmatpush1.msra.mxu0 %v4262
    %4407 = vmatprep.subr.mxu0 0.0
    %4408 = vmatpush1.msra.mxu0 %v4261
    %4409 = vmatprep.subr.mxu0 0.0
    %4410 = vmatpush1.msra.mxu0 %v4260
    %4411 = vmatprep.subr.mxu0 0.0
    %4412 = vmatpush1.msra.mxu0 %v4259
    %4413 = vmatprep.subr.mxu0 0.0
    %4414 = vmatpush1.msra.mxu0 %v4258
    %4415 = vmatprep.subr.mxu0 0.0
    %4416 = vmatpush1.msra.mxu0 %v4257
    %4417 = vmatprep.subr.mxu0 0.0
    %4418 = vmatpush2.msra.mxu0 %v4288
    %4419 = vmatprep.subr.mxu0 0.0
    %4420 = vmatpush2.msra.mxu0 %v4287
    %4421 = vmatprep.subr.mxu0 0.0
    %4422 = vmatpush2.msra.mxu0 %v4286
    %4423 = vmatprep.subr.mxu0 0.0
    %4424 = vmatpush2.msra.mxu0 %v4285
    %4425 = vmatprep.subr.mxu0 0.0
    %4426 = vmatpush2.msra.mxu0 %v4284
    %4427 = vmatprep.subr.mxu0 0.0
    %4428 = vmatpush2.msra.mxu0 %v4283
    %4429 = vmatprep.subr.mxu0 0.0
    %4430 = vmatpush2.msra.mxu0 %v4282
    %4431 = vmatprep.subr.mxu0 0.0
    %4432 = vmatpush2.msra.mxu0 %v4281
    %4433 = vmatprep.subr.mxu0 0.0
    %4434 = vmatpush2.msra.mxu0 %v4280
    %4435 = vmatprep.subr.mxu0 0.0
    %4436 = vmatpush2.msra.mxu0 %v4279
    %4437 = vmatprep.subr.mxu0 0.0
    %4438 = vmatpush2.msra.mxu0 %v4278
    %4439 = vmatprep.subr.mxu0 0.0
    %4440 = vmatpush2.msra.mxu0 %v4277
    %4441 = vmatprep.subr.mxu0 0.0
    %4442 = vmatpush2.msra.mxu0 %v4276
    %4443 = vmatprep.subr.mxu0 0.0
    %4444 = vmatpush2.msra.mxu0 %v4275
    %4445 = vmatprep.subr.mxu0 0.0
    %4446 = vmatpush2.msra.mxu0 %v4274
    %4447 = vmatprep.subr.mxu0 0.0
    %4448 = vmatpush2.msra.mxu0 %v4273
    %4449 = vmatprep.mubr.f32.mxu0 %v4122
    %4450 = vmatmul.mubr.f32.gmra.mxu0 %v4121
    %v4451 = vpop.f32.mrf.mxu0
    %v4452 = vadd.f32 0.0, %v4451
    %v4453 = vpop.f32.mrf.mxu0
    %4454 = vdwg.mxu0
    %4455 = vmatprep.subr.mxu0 0.0
    %4456 = vmatpush1.msra.mxu0 %v4304
    %4457 = vmatprep.subr.mxu0 0.0
    %4458 = vmatpush1.msra.mxu0 %v4303
    %4459 = vmatprep.subr.mxu0 0.0
    %4460 = vmatpush1.msra.mxu0 %v4302
    %4461 = vmatprep.subr.mxu0 0.0
    %4462 = vmatpush1.msra.mxu0 %v4301
    %4463 = vmatprep.subr.mxu0 0.0
    %4464 = vmatpush1.msra.mxu0 %v4300
    %4465 = vmatprep.subr.mxu0 0.0
    %4466 = vmatpush1.msra.mxu0 %v4299
    %4467 = vmatprep.subr.mxu0 0.0
    %4468 = vmatpush1.msra.mxu0 %v4298
    %4469 = vmatprep.subr.mxu0 0.0
    %4470 = vmatpush1.msra.mxu0 %v4297
    %4471 = vmatprep.subr.mxu0 0.0
    %4472 = vmatpush1.msra.mxu0 %v4296
    %4473 = vmatprep.subr.mxu0 0.0
    %4474 = vmatpush1.msra.mxu0 %v4295
    %4475 = vmatprep.subr.mxu0 0.0
    %4476 = vmatpush1.msra.mxu0 %v4294
    %4477 = vmatprep.subr.mxu0 0.0
    %4478 = vmatpush1.msra.mxu0 %v4293
    %4479 = vmatprep.subr.mxu0 0.0
    %4480 = vmatpush1.msra.mxu0 %v4292
    %4481 = vmatprep.subr.mxu0 0.0
    %4482 = vmatpush1.msra.mxu0 %v4291
    %4483 = vmatprep.subr.mxu0 0.0
    %4484 = vmatpush1.msra.mxu0 %v4290
    %4485 = vmatprep.subr.mxu0 0.0
    %4486 = vmatpush1.msra.mxu0 %v4289
    %4487 = vmatprep.subr.mxu0 0.0
    %4488 = vmatpush2.msra.mxu0 %v4320
    %4489 = vmatprep.subr.mxu0 0.0
    %4490 = vmatpush2.msra.mxu0 %v4319
    %4491 = vmatprep.subr.mxu0 0.0
    %4492 = vmatpush2.msra.mxu0 %v4318
    %4493 = vmatprep.subr.mxu0 0.0
    %4494 = vmatpush2.msra.mxu0 %v4317
    %4495 = vmatprep.subr.mxu0 0.0
    %4496 = vmatpush2.msra.mxu0 %v4316
    %4497 = vmatprep.subr.mxu0 0.0
    %4498 = vmatpush2.msra.mxu0 %v4315
    %4499 = vmatprep.subr.mxu0 0.0
    %4500 = vmatpush2.msra.mxu0 %v4314
    %4501 = vmatprep.subr.mxu0 0.0
    %4502 = vmatpush2.msra.mxu0 %v4313
    %4503 = vmatprep.subr.mxu0 0.0
    %4504 = vmatpush2.msra.mxu0 %v4312
    %4505 = vmatprep.subr.mxu0 0.0
    %4506 = vmatpush2.msra.mxu0 %v4311
    %4507 = vmatprep.subr.mxu0 0.0
    %4508 = vmatpush2.msra.mxu0 %v4310
    %4509 = vmatprep.subr.mxu0 0.0
    %4510 = vmatpush2.msra.mxu0 %v4309
    %4511 = vmatprep.subr.mxu0 0.0
    %4512 = vmatpush2.msra.mxu0 %v4308
    %4513 = vmatprep.subr.mxu0 0.0
    %4514 = vmatpush2.msra.mxu0 %v4307
    %4515 = vmatprep.subr.mxu0 0.0
    %4516 = vmatpush2.msra.mxu0 %v4306
    %4517 = vmatprep.subr.mxu0 0.0
    %4518 = vmatpush2.msra.mxu0 %v4305
    %4519 = vmatprep.mubr.f32.mxu0 %v4124
    %4520 = vmatmul.mubr.f32.gmra.mxu0 %v4123
    %v4521 = vpop.f32.mrf.mxu0
    %v4522 = vadd.f32 %v4452, %v4521
    %v4523 = vpop.f32.mrf.mxu0
    %4524 = vdwg.mxu0
    %4525 = vmatprep.subr.mxu0 0.0
    %4526 = vmatpush1.msra.mxu0 %v4336
    %4527 = vmatprep.subr.mxu0 0.0
    %4528 = vmatpush1.msra.mxu0 %v4335
    %4529 = vmatprep.subr.mxu0 0.0
    %4530 = vmatpush1.msra.mxu0 %v4334
    %4531 = vmatprep.subr.mxu0 0.0
    %4532 = vmatpush1.msra.mxu0 %v4333
    %4533 = vmatprep.subr.mxu0 0.0
    %4534 = vmatpush1.msra.mxu0 %v4332
    %4535 = vmatprep.subr.mxu0 0.0
    %4536 = vmatpush1.msra.mxu0 %v4331
    %4537 = vmatprep.subr.mxu0 0.0
    %4538 = vmatpush1.msra.mxu0 %v4330
    %4539 = vmatprep.subr.mxu0 0.0
    %4540 = vmatpush1.msra.mxu0 %v4329
    %4541 = vmatprep.subr.mxu0 0.0
    %4542 = vmatpush1.msra.mxu0 %v4328
    %4543 = vmatprep.subr.mxu0 0.0
    %4544 = vmatpush1.msra.mxu0 %v4327
    %4545 = vmatprep.subr.mxu0 0.0
    %4546 = vmatpush1.msra.mxu0 %v4326
    %4547 = vmatprep.subr.mxu0 0.0
    %4548 = vmatpush1.msra.mxu0 %v4325
    %4549 = vmatprep.subr.mxu0 0.0
    %4550 = vmatpush1.msra.mxu0 %v4324
    %4551 = vmatprep.subr.mxu0 0.0
    %4552 = vmatpush1.msra.mxu0 %v4323
    %4553 = vmatprep.subr.mxu0 0.0
    %4554 = vmatpush1.msra.mxu0 %v4322
    %4555 = vmatprep.subr.mxu0 0.0
    %4556 = vmatpush1.msra.mxu0 %v4321
    %4557 = vmatprep.subr.mxu0 0.0
    %4558 = vmatpush2.msra.mxu0 %v4352
    %4559 = vmatprep.subr.mxu0 0.0
    %4560 = vmatpush2.msra.mxu0 %v4351
    %4561 = vmatprep.subr.mxu0 0.0
    %4562 = vmatpush2.msra.mxu0 %v4350
    %4563 = vmatprep.subr.mxu0 0.0
    %4564 = vmatpush2.msra.mxu0 %v4349
    %4565 = vmatprep.subr.mxu0 0.0
    %4566 = vmatpush2.msra.mxu0 %v4348
    %4567 = vmatprep.subr.mxu0 0.0
    %4568 = vmatpush2.msra.mxu0 %v4347
    %4569 = vmatprep.subr.mxu0 0.0
    %4570 = vmatpush2.msra.mxu0 %v4346
    %4571 = vmatprep.subr.mxu0 0.0
    %4572 = vmatpush2.msra.mxu0 %v4345
    %4573 = vmatprep.subr.mxu0 0.0
    %4574 = vmatpush2.msra.mxu0 %v4344
    %4575 = vmatprep.subr.mxu0 0.0
    %4576 = vmatpush2.msra.mxu0 %v4343
    %4577 = vmatprep.subr.mxu0 0.0
    %4578 = vmatpush2.msra.mxu0 %v4342
    %4579 = vmatprep.subr.mxu0 0.0
    %4580 = vmatpush2.msra.mxu0 %v4341
    %4581 = vmatprep.subr.mxu0 0.0
    %4582 = vmatpush2.msra.mxu0 %v4340
    %4583 = vmatprep.subr.mxu0 0.0
    %4584 = vmatpush2.msra.mxu0 %v4339
    %4585 = vmatprep.subr.mxu0 0.0
    %4586 = vmatpush2.msra.mxu0 %v4338
    %4587 = vmatprep.subr.mxu0 0.0
    %4588 = vmatpush2.msra.mxu0 %v4337
    %4589 = vmatprep.mubr.f32.mxu0 %v4126
    %4590 = vmatmul.mubr.f32.gmra.mxu0 %v4125
    %v4591 = vpop.f32.mrf.mxu0
    %v4592 = vadd.f32 %v4522, %v4591
    %v4593 = vpop.f32.mrf.mxu0
    %4594 = vdwg.mxu0
    %4595 = vmatprep.subr.mxu0 0.0
    %4596 = vmatpush1.msra.mxu0 %v4368
    %4597 = vmatprep.subr.mxu0 0.0
    %4598 = vmatpush1.msra.mxu0 %v4367
    %4599 = vmatprep.subr.mxu0 0.0
    %4600 = vmatpush1.msra.mxu0 %v4366
    %4601 = vmatprep.subr.mxu0 0.0
    %4602 = vmatpush1.msra.mxu0 %v4365
    %4603 = vmatprep.subr.mxu0 0.0
    %4604 = vmatpush1.msra.mxu0 %v4364
    %4605 = vmatprep.subr.mxu0 0.0
    %4606 = vmatpush1.msra.mxu0 %v4363
    %4607 = vmatprep.subr.mxu0 0.0
    %4608 = vmatpush1.msra.mxu0 %v4362
    %4609 = vmatprep.subr.mxu0 0.0
    %4610 = vmatpush1.msra.mxu0 %v4361
    %4611 = vmatprep.subr.mxu0 0.0
    %4612 = vmatpush1.msra.mxu0 %v4360
    %4613 = vmatprep.subr.mxu0 0.0
    %4614 = vmatpush1.msra.mxu0 %v4359
    %4615 = vmatprep.subr.mxu0 0.0
    %4616 = vmatpush1.msra.mxu0 %v4358
    %4617 = vmatprep.subr.mxu0 0.0
    %4618 = vmatpush1.msra.mxu0 %v4357
    %4619 = vmatprep.subr.mxu0 0.0
    %4620 = vmatpush1.msra.mxu0 %v4356
    %4621 = vmatprep.subr.mxu0 0.0
    %4622 = vmatpush1.msra.mxu0 %v4355
    %4623 = vmatprep.subr.mxu0 0.0
    %4624 = vmatpush1.msra.mxu0 %v4354
    %4625 = vmatprep.subr.mxu0 0.0
    %4626 = vmatpush1.msra.mxu0 %v4353
    %4627 = vmatprep.subr.mxu0 0.0
    %4628 = vmatpush2.msra.mxu0 %v4384
    %4629 = vmatprep.subr.mxu0 0.0
    %4630 = vmatpush2.msra.mxu0 %v4383
    %4631 = vmatprep.subr.mxu0 0.0
    %4632 = vmatpush2.msra.mxu0 %v4382
    %4633 = vmatprep.subr.mxu0 0.0
    %4634 = vmatpush2.msra.mxu0 %v4381
    %4635 = vmatprep.subr.mxu0 0.0
    %4636 = vmatpush2.msra.mxu0 %v4380
    %4637 = vmatprep.subr.mxu0 0.0
    %4638 = vmatpush2.msra.mxu0 %v4379
    %4639 = vmatprep.subr.mxu0 0.0
    %4640 = vmatpush2.msra.mxu0 %v4378
    %4641 = vmatprep.subr.mxu0 0.0
    %4642 = vmatpush2.msra.mxu0 %v4377
    %4643 = vmatprep.subr.mxu0 0.0
    %4644 = vmatpush2.msra.mxu0 %v4376
    %4645 = vmatprep.subr.mxu0 0.0
    %4646 = vmatpush2.msra.mxu0 %v4375
    %4647 = vmatprep.subr.mxu0 0.0
    %4648 = vmatpush2.msra.mxu0 %v4374
    %4649 = vmatprep.subr.mxu0 0.0
    %4650 = vmatpush2.msra.mxu0 %v4373
    %4651 = vmatprep.subr.mxu0 0.0
    %4652 = vmatpush2.msra.mxu0 %v4372
    %4653 = vmatprep.subr.mxu0 0.0
    %4654 = vmatpush2.msra.mxu0 %v4371
    %4655 = vmatprep.subr.mxu0 0.0
    %4656 = vmatpush2.msra.mxu0 %v4370
    %4657 = vmatprep.subr.mxu0 0.0
    %4658 = vmatpush2.msra.mxu0 %v4369
    %4659 = vmatprep.mubr.f32.mxu0 %v4128
    %4660 = vmatmul.mubr.f32.gmra.mxu0 %v4127
    %v4661 = vpop.f32.mrf.mxu0
    %v4662 = vadd.f32 %v4592, %v4661
    %v4663 = vpop.f32.mrf.mxu0
    %4664 = vdwg.mxu0
    %4665 = vmatprep.subr.mxu0 0.0
    %4666 = vmatpush1.msra.mxu0 %v4144
    %4667 = vmatprep.subr.mxu0 0.0
    %4668 = vmatpush1.msra.mxu0 %v4143
    %4669 = vmatprep.subr.mxu0 0.0
    %4670 = vmatpush1.msra.mxu0 %v4142
    %4671 = vmatprep.subr.mxu0 0.0
    %4672 = vmatpush1.msra.mxu0 %v4141
    %4673 = vmatprep.subr.mxu0 0.0
    %4674 = vmatpush1.msra.mxu0 %v4140
    %4675 = vmatprep.subr.mxu0 0.0
    %4676 = vmatpush1.msra.mxu0 %v4139
    %4677 = vmatprep.subr.mxu0 0.0
    %4678 = vmatpush1.msra.mxu0 %v4138
    %4679 = vmatprep.subr.mxu0 0.0
    %4680 = vmatpush1.msra.mxu0 %v4137
    %4681 = vmatprep.subr.mxu0 0.0
    %4682 = vmatpush1.msra.mxu0 %v4136
    %4683 = vmatprep.subr.mxu0 0.0
    %4684 = vmatpush1.msra.mxu0 %v4135
    %4685 = vmatprep.subr.mxu0 0.0
    %4686 = vmatpush1.msra.mxu0 %v4134
    %4687 = vmatprep.subr.mxu0 0.0
    %4688 = vmatpush1.msra.mxu0 %v4133
    %4689 = vmatprep.subr.mxu0 0.0
    %4690 = vmatpush1.msra.mxu0 %v4132
    %4691 = vmatprep.subr.mxu0 0.0
    %4692 = vmatpush1.msra.mxu0 %v4131
    %4693 = vmatprep.subr.mxu0 0.0
    %4694 = vmatpush1.msra.mxu0 %v4130
    %4695 = vmatprep.subr.mxu0 0.0
    %4696 = vmatpush1.msra.mxu0 %v4129
    %4697 = vmatprep.subr.mxu0 0.0
    %4698 = vmatpush2.msra.mxu0 %v4160
    %4699 = vmatprep.subr.mxu0 0.0
    %4700 = vmatpush2.msra.mxu0 %v4159
    %4701 = vmatprep.subr.mxu0 0.0
    %4702 = vmatpush2.msra.mxu0 %v4158
    %4703 = vmatprep.subr.mxu0 0.0
    %4704 = vmatpush2.msra.mxu0 %v4157
    %4705 = vmatprep.subr.mxu0 0.0
    %4706 = vmatpush2.msra.mxu0 %v4156
    %4707 = vmatprep.subr.mxu0 0.0
    %4708 = vmatpush2.msra.mxu0 %v4155
    %4709 = vmatprep.subr.mxu0 0.0
    %4710 = vmatpush2.msra.mxu0 %v4154
    %4711 = vmatprep.subr.mxu0 0.0
    %4712 = vmatpush2.msra.mxu0 %v4153
    %4713 = vmatprep.subr.mxu0 0.0
    %4714 = vmatpush2.msra.mxu0 %v4152
    %4715 = vmatprep.subr.mxu0 0.0
    %4716 = vmatpush2.msra.mxu0 %v4151
    %4717 = vmatprep.subr.mxu0 0.0
    %4718 = vmatpush2.msra.mxu0 %v4150
    %4719 = vmatprep.subr.mxu0 0.0
    %4720 = vmatpush2.msra.mxu0 %v4149
    %4721 = vmatprep.subr.mxu0 0.0
    %4722 = vmatpush2.msra.mxu0 %v4148
    %4723 = vmatprep.subr.mxu0 0.0
    %4724 = vmatpush2.msra.mxu0 %v4147
    %4725 = vmatprep.subr.mxu0 0.0
    %4726 = vmatpush2.msra.mxu0 %v4146
    %4727 = vmatprep.subr.mxu0 0.0
    %4728 = vmatpush2.msra.mxu0 %v4145
    %4729 = vmatprep.mubr.f32.mxu0 %v3674
    %4730 = vmatmul.mubr.f32.gmra.mxu0 %v3673
    %v4731 = vpop.f32.mrf.mxu0
    %v4732 = vadd.f32 %v4662, %v4731
    %v4733 = vpop.f32.mrf.mxu0
    %4734 = vdwg.mxu0
    %4735 = vmatprep.subr.mxu0 0.0
    %4736 = vmatpush1.msra.mxu0 %v4176
    %4737 = vmatprep.subr.mxu0 0.0
    %4738 = vmatpush1.msra.mxu0 %v4175
    %4739 = vmatprep.subr.mxu0 0.0
    %4740 = vmatpush1.msra.mxu0 %v4174
    %4741 = vmatprep.subr.mxu0 0.0
    %4742 = vmatpush1.msra.mxu0 %v4173
    %4743 = vmatprep.subr.mxu0 0.0
    %4744 = vmatpush1.msra.mxu0 %v4172
    %4745 = vmatprep.subr.mxu0 0.0
    %4746 = vmatpush1.msra.mxu0 %v4171
    %4747 = vmatprep.subr.mxu0 0.0
    %4748 = vmatpush1.msra.mxu0 %v4170
    %4749 = vmatprep.subr.mxu0 0.0
    %4750 = vmatpush1.msra.mxu0 %v4169
    %4751 = vmatprep.subr.mxu0 0.0
    %4752 = vmatpush1.msra.mxu0 %v4168
    %4753 = vmatprep.subr.mxu0 0.0
    %4754 = vmatpush1.msra.mxu0 %v4167
    %4755 = vmatprep.subr.mxu0 0.0
    %4756 = vmatpush1.msra.mxu0 %v4166
    %4757 = vmatprep.subr.mxu0 0.0
    %4758 = vmatpush1.msra.mxu0 %v4165
    %4759 = vmatprep.subr.mxu0 0.0
    %4760 = vmatpush1.msra.mxu0 %v4164
    %4761 = vmatprep.subr.mxu0 0.0
    %4762 = vmatpush1.msra.mxu0 %v4163
    %4763 = vmatprep.subr.mxu0 0.0
    %4764 = vmatpush1.msra.mxu0 %v4162
    %4765 = vmatprep.subr.mxu0 0.0
    %4766 = vmatpush1.msra.mxu0 %v4161
    %4767 = vmatprep.subr.mxu0 0.0
    %4768 = vmatpush2.msra.mxu0 %v4192
    %4769 = vmatprep.subr.mxu0 0.0
    %4770 = vmatpush2.msra.mxu0 %v4191
    %4771 = vmatprep.subr.mxu0 0.0
    %4772 = vmatpush2.msra.mxu0 %v4190
    %4773 = vmatprep.subr.mxu0 0.0
    %4774 = vmatpush2.msra.mxu0 %v4189
    %4775 = vmatprep.subr.mxu0 0.0
    %4776 = vmatpush2.msra.mxu0 %v4188
    %4777 = vmatprep.subr.mxu0 0.0
    %4778 = vmatpush2.msra.mxu0 %v4187
    %4779 = vmatprep.subr.mxu0 0.0
    %4780 = vmatpush2.msra.mxu0 %v4186
    %4781 = vmatprep.subr.mxu0 0.0
    %4782 = vmatpush2.msra.mxu0 %v4185
    %4783 = vmatprep.subr.mxu0 0.0
    %4784 = vmatpush2.msra.mxu0 %v4184
    %4785 = vmatprep.subr.mxu0 0.0
    %4786 = vmatpush2.msra.mxu0 %v4183
    %4787 = vmatprep.subr.mxu0 0.0
    %4788 = vmatpush2.msra.mxu0 %v4182
    %4789 = vmatprep.subr.mxu0 0.0
    %4790 = vmatpush2.msra.mxu0 %v4181
    %4791 = vmatprep.subr.mxu0 0.0
    %4792 = vmatpush2.msra.mxu0 %v4180
    %4793 = vmatprep.subr.mxu0 0.0
    %4794 = vmatpush2.msra.mxu0 %v4179
    %4795 = vmatprep.subr.mxu0 0.0
    %4796 = vmatpush2.msra.mxu0 %v4178
    %4797 = vmatprep.subr.mxu0 0.0
    %4798 = vmatpush2.msra.mxu0 %v4177
    %4799 = vmatprep.mubr.f32.mxu0 %v3676
    %4800 = vmatmul.mubr.f32.gmra.mxu0 %v3675
    %v4801 = vpop.f32.mrf.mxu0
    %v4802 = vadd.f32 %v4732, %v4801
    %v4803 = vpop.f32.mrf.mxu0
    %4804 = vdwg.mxu0
    %4805 = vmatprep.subr.mxu0 0.0
    %4806 = vmatpush1.msra.mxu0 %v4208
    %4807 = vmatprep.subr.mxu0 0.0
    %4808 = vmatpush1.msra.mxu0 %v4207
    %4809 = vmatprep.subr.mxu0 0.0
    %4810 = vmatpush1.msra.mxu0 %v4206
    %4811 = vmatprep.subr.mxu0 0.0
    %4812 = vmatpush1.msra.mxu0 %v4205
    %4813 = vmatprep.subr.mxu0 0.0
    %4814 = vmatpush1.msra.mxu0 %v4204
    %4815 = vmatprep.subr.mxu0 0.0
    %4816 = vmatpush1.msra.mxu0 %v4203
    %4817 = vmatprep.subr.mxu0 0.0
    %4818 = vmatpush1.msra.mxu0 %v4202
    %4819 = vmatprep.subr.mxu0 0.0
    %4820 = vmatpush1.msra.mxu0 %v4201
    %4821 = vmatprep.subr.mxu0 0.0
    %4822 = vmatpush1.msra.mxu0 %v4200
    %4823 = vmatprep.subr.mxu0 0.0
    %4824 = vmatpush1.msra.mxu0 %v4199
    %4825 = vmatprep.subr.mxu0 0.0
    %4826 = vmatpush1.msra.mxu0 %v4198
    %4827 = vmatprep.subr.mxu0 0.0
    %4828 = vmatpush1.msra.mxu0 %v4197
    %4829 = vmatprep.subr.mxu0 0.0
    %4830 = vmatpush1.msra.mxu0 %v4196
    %4831 = vmatprep.subr.mxu0 0.0
    %4832 = vmatpush1.msra.mxu0 %v4195
    %4833 = vmatprep.subr.mxu0 0.0
    %4834 = vmatpush1.msra.mxu0 %v4194
    %4835 = vmatprep.subr.mxu0 0.0
    %4836 = vmatpush1.msra.mxu0 %v4193
    %4837 = vmatprep.subr.mxu0 0.0
    %4838 = vmatpush2.msra.mxu0 %v4224
    %4839 = vmatprep.subr.mxu0 0.0
    %4840 = vmatpush2.msra.mxu0 %v4223
    %4841 = vmatprep.subr.mxu0 0.0
    %4842 = vmatpush2.msra.mxu0 %v4222
    %4843 = vmatprep.subr.mxu0 0.0
    %4844 = vmatpush2.msra.mxu0 %v4221
    %4845 = vmatprep.subr.mxu0 0.0
    %4846 = vmatpush2.msra.mxu0 %v4220
    %4847 = vmatprep.subr.mxu0 0.0
    %4848 = vmatpush2.msra.mxu0 %v4219
    %4849 = vmatprep.subr.mxu0 0.0
    %4850 = vmatpush2.msra.mxu0 %v4218
    %4851 = vmatprep.subr.mxu0 0.0
    %4852 = vmatpush2.msra.mxu0 %v4217
    %4853 = vmatprep.subr.mxu0 0.0
    %4854 = vmatpush2.msra.mxu0 %v4216
    %4855 = vmatprep.subr.mxu0 0.0
    %4856 = vmatpush2.msra.mxu0 %v4215
    %4857 = vmatprep.subr.mxu0 0.0
    %4858 = vmatpush2.msra.mxu0 %v4214
    %4859 = vmatprep.subr.mxu0 0.0
    %4860 = vmatpush2.msra.mxu0 %v4213
    %4861 = vmatprep.subr.mxu0 0.0
    %4862 = vmatpush2.msra.mxu0 %v4212
    %4863 = vmatprep.subr.mxu0 0.0
    %4864 = vmatpush2.msra.mxu0 %v4211
    %4865 = vmatprep.subr.mxu0 0.0
    %4866 = vmatpush2.msra.mxu0 %v4210
    %4867 = vmatprep.subr.mxu0 0.0
    %4868 = vmatpush2.msra.mxu0 %v4209
    %4869 = vmatprep.mubr.f32.mxu0 %v3678
    %4870 = vmatmul.mubr.f32.gmra.mxu0 %v3677
    %v4871 = vpop.f32.mrf.mxu0
    %v4872 = vadd.f32 %v4802, %v4871
    %v4873 = vpop.f32.mrf.mxu0
    %4874 = vdwg.mxu0
    %4875 = vmatprep.subr.mxu0 0.0
    %4876 = vmatpush1.msra.mxu0 %v4240
    %4877 = vmatprep.subr.mxu0 0.0
    %4878 = vmatpush1.msra.mxu0 %v4239
    %4879 = vmatprep.subr.mxu0 0.0
    %4880 = vmatpush1.msra.mxu0 %v4238
    %4881 = vmatprep.subr.mxu0 0.0
    %4882 = vmatpush1.msra.mxu0 %v4237
    %4883 = vmatprep.subr.mxu0 0.0
    %4884 = vmatpush1.msra.mxu0 %v4236
    %4885 = vmatprep.subr.mxu0 0.0
    %4886 = vmatpush1.msra.mxu0 %v4235
    %4887 = vmatprep.subr.mxu0 0.0
    %4888 = vmatpush1.msra.mxu0 %v4234
    %4889 = vmatprep.subr.mxu0 0.0
    %4890 = vmatpush1.msra.mxu0 %v4233
    %4891 = vmatprep.subr.mxu0 0.0
    %4892 = vmatpush1.msra.mxu0 %v4232
    %4893 = vmatprep.subr.mxu0 0.0
    %4894 = vmatpush1.msra.mxu0 %v4231
    %4895 = vmatprep.subr.mxu0 0.0
    %4896 = vmatpush1.msra.mxu0 %v4230
    %4897 = vmatprep.subr.mxu0 0.0
    %4898 = vmatpush1.msra.mxu0 %v4229
    %4899 = vmatprep.subr.mxu0 0.0
    %4900 = vmatpush1.msra.mxu0 %v4228
    %4901 = vmatprep.subr.mxu0 0.0
    %4902 = vmatpush1.msra.mxu0 %v4227
    %4903 = vmatprep.subr.mxu0 0.0
    %4904 = vmatpush1.msra.mxu0 %v4226
    %4905 = vmatprep.subr.mxu0 0.0
    %4906 = vmatpush1.msra.mxu0 %v4225
    %4907 = vmatprep.subr.mxu0 0.0
    %4908 = vmatpush2.msra.mxu0 %v4256
    %4909 = vmatprep.subr.mxu0 0.0
    %4910 = vmatpush2.msra.mxu0 %v4255
    %4911 = vmatprep.subr.mxu0 0.0
    %4912 = vmatpush2.msra.mxu0 %v4254
    %4913 = vmatprep.subr.mxu0 0.0
    %4914 = vmatpush2.msra.mxu0 %v4253
    %4915 = vmatprep.subr.mxu0 0.0
    %4916 = vmatpush2.msra.mxu0 %v4252
    %4917 = vmatprep.subr.mxu0 0.0
    %4918 = vmatpush2.msra.mxu0 %v4251
    %4919 = vmatprep.subr.mxu0 0.0
    %4920 = vmatpush2.msra.mxu0 %v4250
    %4921 = vmatprep.subr.mxu0 0.0
    %4922 = vmatpush2.msra.mxu0 %v4249
    %4923 = vmatprep.subr.mxu0 0.0
    %4924 = vmatpush2.msra.mxu0 %v4248
    %4925 = vmatprep.subr.mxu0 0.0
    %4926 = vmatpush2.msra.mxu0 %v4247
    %4927 = vmatprep.subr.mxu0 0.0
    %4928 = vmatpush2.msra.mxu0 %v4246
    %4929 = vmatprep.subr.mxu0 0.0
    %4930 = vmatpush2.msra.mxu0 %v4245
    %4931 = vmatprep.subr.mxu0 0.0
    %4932 = vmatpush2.msra.mxu0 %v4244
    %4933 = vmatprep.subr.mxu0 0.0
    %4934 = vmatpush2.msra.mxu0 %v4243
    %4935 = vmatprep.subr.mxu0 0.0
    %4936 = vmatpush2.msra.mxu0 %v4242
    %4937 = vmatprep.subr.mxu0 0.0
    %4938 = vmatpush2.msra.mxu0 %v4241
    %4939 = vmatprep.mubr.f32.mxu0 %v3680
    %4940 = vmatmul.mubr.f32.gmra.mxu0 %v3679
    %v4941 = vpop.f32.mrf.mxu0
    %v4942 = vadd.f32 %v4872, %v4941
    %v4943 = vpop.f32.mrf.mxu0
    %4944 = vdwg.mxu0
    %v4945 = vld [vmem:[%s16] sm:$0x1]
    %v4947 = vlaneseq
    %v4948 = vshrl.u32 %v4947, 7
    %v4949 = vsub.s32 0, %v4948
    %v4950 = vrot.slane %v4945, %v4949
    %v4952 = vadd.f32 %v4942, %v4950
    %v4953 = vmul.f32 %v960, %v4952
    %v4954 = vadd.f32 %v4953, 0.0
    %s4955 = scalar_lea.vmem %s14, 1024
    %v4956 = vld [vmem:[%s4955] sm:$0xff]
    %v4957 = vld [vmem:[%s4955 + $0x8] sm:$0xff]
    %v4958 = vld [vmem:[%s4955 + $0x10] sm:$0xff]
    %v4959 = vld [vmem:[%s4955 + $0x18] sm:$0xff]
    %v4960 = vld [vmem:[%s4955 + $0x20] sm:$0xff]
    %v4961 = vld [vmem:[%s4955 + $0x28] sm:$0xff]
    %v4962 = vld [vmem:[%s4955 + $0x30] sm:$0xff]
    %v4963 = vld [vmem:[%s4955 + $0x38] sm:$0xff]
    %v4964 = vld [vmem:[%s4955 + $0x40] sm:$0xff]
    %v4965 = vld [vmem:[%s4955 + $0x48] sm:$0xff]
    %v4966 = vld [vmem:[%s4955 + $0x50] sm:$0xff]
    %v4967 = vld [vmem:[%s4955 + $0x58] sm:$0xff]
    %v4968 = vld [vmem:[%s4955 + $0x60] sm:$0xff]
    %v4969 = vld [vmem:[%s4955 + $0x68] sm:$0xff]
    %v4970 = vld [vmem:[%s4955 + $0x70] sm:$0xff]
    %v4971 = vld [vmem:[%s4955 + $0x78] sm:$0xff]
    %v4972 = vld [vmem:[%s4955 + $0x80] sm:$0xff]
    %v4973 = vld [vmem:[%s4955 + $0x88] sm:$0xff]
    %v4974 = vld [vmem:[%s4955 + $0x90] sm:$0xff]
    %v4975 = vld [vmem:[%s4955 + $0x98] sm:$0xff]
    %v4976 = vld [vmem:[%s4955 + $0xa0] sm:$0xff]
    %v4977 = vld [vmem:[%s4955 + $0xa8] sm:$0xff]
    %v4978 = vld [vmem:[%s4955 + $0xb0] sm:$0xff]
    %v4979 = vld [vmem:[%s4955 + $0xb8] sm:$0xff]
    %v4980 = vld [vmem:[%s4955 + $0xc0] sm:$0xff]
    %v4981 = vld [vmem:[%s4955 + $0xc8] sm:$0xff]
    %v4982 = vld [vmem:[%s4955 + $0xd0] sm:$0xff]
    %v4983 = vld [vmem:[%s4955 + $0xd8] sm:$0xff]
    %v4984 = vld [vmem:[%s4955 + $0xe0] sm:$0xff]
    %v4985 = vld [vmem:[%s4955 + $0xe8] sm:$0xff]
    %v4986 = vld [vmem:[%s4955 + $0xf0] sm:$0xff]
    %v4987 = vld [vmem:[%s4955 + $0xf8] sm:$0xff]
    %v4988 = vld [vmem:[%s4955 + $0x100] sm:$0xff]
    %v4989 = vld [vmem:[%s4955 + $0x108] sm:$0xff]
    %v4990 = vld [vmem:[%s4955 + $0x110] sm:$0xff]
    %v4991 = vld [vmem:[%s4955 + $0x118] sm:$0xff]
    %v4992 = vld [vmem:[%s4955 + $0x120] sm:$0xff]
    %v4993 = vld [vmem:[%s4955 + $0x128] sm:$0xff]
    %v4994 = vld [vmem:[%s4955 + $0x130] sm:$0xff]
    %v4995 = vld [vmem:[%s4955 + $0x138] sm:$0xff]
    %v4996 = vld [vmem:[%s4955 + $0x140] sm:$0xff]
    %v4997 = vld [vmem:[%s4955 + $0x148] sm:$0xff]
    %v4998 = vld [vmem:[%s4955 + $0x150] sm:$0xff]
    %v4999 = vld [vmem:[%s4955 + $0x158] sm:$0xff]
    %v5000 = vld [vmem:[%s4955 + $0x160] sm:$0xff]
    %v5001 = vld [vmem:[%s4955 + $0x168] sm:$0xff]
    %v5002 = vld [vmem:[%s4955 + $0x170] sm:$0xff]
    %v5003 = vld [vmem:[%s4955 + $0x178] sm:$0xff]
    %v5004 = vld [vmem:[%s4955 + $0x180] sm:$0xff]
    %v5005 = vld [vmem:[%s4955 + $0x188] sm:$0xff]
    %v5006 = vld [vmem:[%s4955 + $0x190] sm:$0xff]
    %v5007 = vld [vmem:[%s4955 + $0x198] sm:$0xff]
    %v5008 = vld [vmem:[%s4955 + $0x1a0] sm:$0xff]
    %v5009 = vld [vmem:[%s4955 + $0x1a8] sm:$0xff]
    %v5010 = vld [vmem:[%s4955 + $0x1b0] sm:$0xff]
    %v5011 = vld [vmem:[%s4955 + $0x1b8] sm:$0xff]
    %v5012 = vld [vmem:[%s4955 + $0x1c0] sm:$0xff]
    %v5013 = vld [vmem:[%s4955 + $0x1c8] sm:$0xff]
    %v5014 = vld [vmem:[%s4955 + $0x1d0] sm:$0xff]
    %v5015 = vld [vmem:[%s4955 + $0x1d8] sm:$0xff]
    %v5016 = vld [vmem:[%s4955 + $0x1e0] sm:$0xff]
    %v5017 = vld [vmem:[%s4955 + $0x1e8] sm:$0xff]
    %v5018 = vld [vmem:[%s4955 + $0x1f0] sm:$0xff]
    %v5019 = vld [vmem:[%s4955 + $0x1f8] sm:$0xff]
    %v5020 = vld [vmem:[%s4955 + $0x200] sm:$0xff]
    %v5021 = vld [vmem:[%s4955 + $0x208] sm:$0xff]
    %v5022 = vld [vmem:[%s4955 + $0x210] sm:$0xff]
    %v5023 = vld [vmem:[%s4955 + $0x218] sm:$0xff]
    %v5024 = vld [vmem:[%s4955 + $0x220] sm:$0xff]
    %v5025 = vld [vmem:[%s4955 + $0x228] sm:$0xff]
    %v5026 = vld [vmem:[%s4955 + $0x230] sm:$0xff]
    %v5027 = vld [vmem:[%s4955 + $0x238] sm:$0xff]
    %v5028 = vld [vmem:[%s4955 + $0x240] sm:$0xff]
    %v5029 = vld [vmem:[%s4955 + $0x248] sm:$0xff]
    %v5030 = vld [vmem:[%s4955 + $0x250] sm:$0xff]
    %v5031 = vld [vmem:[%s4955 + $0x258] sm:$0xff]
    %v5032 = vld [vmem:[%s4955 + $0x260] sm:$0xff]
    %v5033 = vld [vmem:[%s4955 + $0x268] sm:$0xff]
    %v5034 = vld [vmem:[%s4955 + $0x270] sm:$0xff]
    %v5035 = vld [vmem:[%s4955 + $0x278] sm:$0xff]
    %v5036 = vld [vmem:[%s4955 + $0x280] sm:$0xff]
    %v5037 = vld [vmem:[%s4955 + $0x288] sm:$0xff]
    %v5038 = vld [vmem:[%s4955 + $0x290] sm:$0xff]
    %v5039 = vld [vmem:[%s4955 + $0x298] sm:$0xff]
    %v5040 = vld [vmem:[%s4955 + $0x2a0] sm:$0xff]
    %v5041 = vld [vmem:[%s4955 + $0x2a8] sm:$0xff]
    %v5042 = vld [vmem:[%s4955 + $0x2b0] sm:$0xff]
    %v5043 = vld [vmem:[%s4955 + $0x2b8] sm:$0xff]
    %v5044 = vld [vmem:[%s4955 + $0x2c0] sm:$0xff]
    %v5045 = vld [vmem:[%s4955 + $0x2c8] sm:$0xff]
    %v5046 = vld [vmem:[%s4955 + $0x2d0] sm:$0xff]
    %v5047 = vld [vmem:[%s4955 + $0x2d8] sm:$0xff]
    %v5048 = vld [vmem:[%s4955 + $0x2e0] sm:$0xff]
    %v5049 = vld [vmem:[%s4955 + $0x2e8] sm:$0xff]
    %v5050 = vld [vmem:[%s4955 + $0x2f0] sm:$0xff]
    %v5051 = vld [vmem:[%s4955 + $0x2f8] sm:$0xff]
    %v5052 = vld [vmem:[%s4955 + $0x300] sm:$0xff]
    %v5053 = vld [vmem:[%s4955 + $0x308] sm:$0xff]
    %v5054 = vld [vmem:[%s4955 + $0x310] sm:$0xff]
    %v5055 = vld [vmem:[%s4955 + $0x318] sm:$0xff]
    %v5056 = vld [vmem:[%s4955 + $0x320] sm:$0xff]
    %v5057 = vld [vmem:[%s4955 + $0x328] sm:$0xff]
    %v5058 = vld [vmem:[%s4955 + $0x330] sm:$0xff]
    %v5059 = vld [vmem:[%s4955 + $0x338] sm:$0xff]
    %v5060 = vld [vmem:[%s4955 + $0x340] sm:$0xff]
    %v5061 = vld [vmem:[%s4955 + $0x348] sm:$0xff]
    %v5062 = vld [vmem:[%s4955 + $0x350] sm:$0xff]
    %v5063 = vld [vmem:[%s4955 + $0x358] sm:$0xff]
    %v5064 = vld [vmem:[%s4955 + $0x360] sm:$0xff]
    %v5065 = vld [vmem:[%s4955 + $0x368] sm:$0xff]
    %v5066 = vld [vmem:[%s4955 + $0x370] sm:$0xff]
    %v5067 = vld [vmem:[%s4955 + $0x378] sm:$0xff]
    %v5068 = vld [vmem:[%s4955 + $0x380] sm:$0xff]
    %v5069 = vld [vmem:[%s4955 + $0x388] sm:$0xff]
    %v5070 = vld [vmem:[%s4955 + $0x390] sm:$0xff]
    %v5071 = vld [vmem:[%s4955 + $0x398] sm:$0xff]
    %v5072 = vld [vmem:[%s4955 + $0x3a0] sm:$0xff]
    %v5073 = vld [vmem:[%s4955 + $0x3a8] sm:$0xff]
    %v5074 = vld [vmem:[%s4955 + $0x3b0] sm:$0xff]
    %v5075 = vld [vmem:[%s4955 + $0x3b8] sm:$0xff]
    %v5076 = vld [vmem:[%s4955 + $0x3c0] sm:$0xff]
    %v5077 = vld [vmem:[%s4955 + $0x3c8] sm:$0xff]
    %v5078 = vld [vmem:[%s4955 + $0x3d0] sm:$0xff]
    %v5079 = vld [vmem:[%s4955 + $0x3d8] sm:$0xff]
    %v5080 = vld [vmem:[%s4955 + $0x3e0] sm:$0xff]
    %v5081 = vld [vmem:[%s4955 + $0x3e8] sm:$0xff]
    %v5082 = vld [vmem:[%s4955 + $0x3f0] sm:$0xff]
    %v5083 = vld [vmem:[%s4955 + $0x3f8] sm:$0xff]
    %s5084 = scalar_lea.vmem %s15, 1024
    %v5085 = vld [vmem:[%s5084] sm:$0xff]
    %v5086 = vld [vmem:[%s5084 + $0x8] sm:$0xff]
    %v5087 = vld [vmem:[%s5084 + $0x10] sm:$0xff]
    %v5088 = vld [vmem:[%s5084 + $0x18] sm:$0xff]
    %v5089 = vld [vmem:[%s5084 + $0x20] sm:$0xff]
    %v5090 = vld [vmem:[%s5084 + $0x28] sm:$0xff]
    %v5091 = vld [vmem:[%s5084 + $0x30] sm:$0xff]
    %v5092 = vld [vmem:[%s5084 + $0x38] sm:$0xff]
    %v5093 = vld [vmem:[%s5084 + $0x40] sm:$0xff]
    %v5094 = vld [vmem:[%s5084 + $0x48] sm:$0xff]
    %v5095 = vld [vmem:[%s5084 + $0x50] sm:$0xff]
    %v5096 = vld [vmem:[%s5084 + $0x58] sm:$0xff]
    %v5097 = vld [vmem:[%s5084 + $0x60] sm:$0xff]
    %v5098 = vld [vmem:[%s5084 + $0x68] sm:$0xff]
    %v5099 = vld [vmem:[%s5084 + $0x70] sm:$0xff]
    %v5100 = vld [vmem:[%s5084 + $0x78] sm:$0xff]
    %v5101 = vld [vmem:[%s5084 + $0x80] sm:$0xff]
    %v5102 = vld [vmem:[%s5084 + $0x88] sm:$0xff]
    %v5103 = vld [vmem:[%s5084 + $0x90] sm:$0xff]
    %v5104 = vld [vmem:[%s5084 + $0x98] sm:$0xff]
    %v5105 = vld [vmem:[%s5084 + $0xa0] sm:$0xff]
    %v5106 = vld [vmem:[%s5084 + $0xa8] sm:$0xff]
    %v5107 = vld [vmem:[%s5084 + $0xb0] sm:$0xff]
    %v5108 = vld [vmem:[%s5084 + $0xb8] sm:$0xff]
    %v5109 = vld [vmem:[%s5084 + $0xc0] sm:$0xff]
    %v5110 = vld [vmem:[%s5084 + $0xc8] sm:$0xff]
    %v5111 = vld [vmem:[%s5084 + $0xd0] sm:$0xff]
    %v5112 = vld [vmem:[%s5084 + $0xd8] sm:$0xff]
    %v5113 = vld [vmem:[%s5084 + $0xe0] sm:$0xff]
    %v5114 = vld [vmem:[%s5084 + $0xe8] sm:$0xff]
    %v5115 = vld [vmem:[%s5084 + $0xf0] sm:$0xff]
    %v5116 = vld [vmem:[%s5084 + $0xf8] sm:$0xff]
    %v5117 = vld [vmem:[%s5084 + $0x100] sm:$0xff]
    %v5118 = vld [vmem:[%s5084 + $0x108] sm:$0xff]
    %v5119 = vld [vmem:[%s5084 + $0x110] sm:$0xff]
    %v5120 = vld [vmem:[%s5084 + $0x118] sm:$0xff]
    %v5121 = vld [vmem:[%s5084 + $0x120] sm:$0xff]
    %v5122 = vld [vmem:[%s5084 + $0x128] sm:$0xff]
    %v5123 = vld [vmem:[%s5084 + $0x130] sm:$0xff]
    %v5124 = vld [vmem:[%s5084 + $0x138] sm:$0xff]
    %v5125 = vld [vmem:[%s5084 + $0x140] sm:$0xff]
    %v5126 = vld [vmem:[%s5084 + $0x148] sm:$0xff]
    %v5127 = vld [vmem:[%s5084 + $0x150] sm:$0xff]
    %v5128 = vld [vmem:[%s5084 + $0x158] sm:$0xff]
    %v5129 = vld [vmem:[%s5084 + $0x160] sm:$0xff]
    %v5130 = vld [vmem:[%s5084 + $0x168] sm:$0xff]
    %v5131 = vld [vmem:[%s5084 + $0x170] sm:$0xff]
    %v5132 = vld [vmem:[%s5084 + $0x178] sm:$0xff]
    %v5133 = vld [vmem:[%s5084 + $0x180] sm:$0xff]
    %v5134 = vld [vmem:[%s5084 + $0x188] sm:$0xff]
    %v5135 = vld [vmem:[%s5084 + $0x190] sm:$0xff]
    %v5136 = vld [vmem:[%s5084 + $0x198] sm:$0xff]
    %v5137 = vld [vmem:[%s5084 + $0x1a0] sm:$0xff]
    %v5138 = vld [vmem:[%s5084 + $0x1a8] sm:$0xff]
    %v5139 = vld [vmem:[%s5084 + $0x1b0] sm:$0xff]
    %v5140 = vld [vmem:[%s5084 + $0x1b8] sm:$0xff]
    %v5141 = vld [vmem:[%s5084 + $0x1c0] sm:$0xff]
    %v5142 = vld [vmem:[%s5084 + $0x1c8] sm:$0xff]
    %v5143 = vld [vmem:[%s5084 + $0x1d0] sm:$0xff]
    %v5144 = vld [vmem:[%s5084 + $0x1d8] sm:$0xff]
    %v5145 = vld [vmem:[%s5084 + $0x1e0] sm:$0xff]
    %v5146 = vld [vmem:[%s5084 + $0x1e8] sm:$0xff]
    %v5147 = vld [vmem:[%s5084 + $0x1f0] sm:$0xff]
    %v5148 = vld [vmem:[%s5084 + $0x1f8] sm:$0xff]
    %v5149 = vld [vmem:[%s5084 + $0x200] sm:$0xff]
    %v5150 = vld [vmem:[%s5084 + $0x208] sm:$0xff]
    %v5151 = vld [vmem:[%s5084 + $0x210] sm:$0xff]
    %v5152 = vld [vmem:[%s5084 + $0x218] sm:$0xff]
    %v5153 = vld [vmem:[%s5084 + $0x220] sm:$0xff]
    %v5154 = vld [vmem:[%s5084 + $0x228] sm:$0xff]
    %v5155 = vld [vmem:[%s5084 + $0x230] sm:$0xff]
    %v5156 = vld [vmem:[%s5084 + $0x238] sm:$0xff]
    %v5157 = vld [vmem:[%s5084 + $0x240] sm:$0xff]
    %v5158 = vld [vmem:[%s5084 + $0x248] sm:$0xff]
    %v5159 = vld [vmem:[%s5084 + $0x250] sm:$0xff]
    %v5160 = vld [vmem:[%s5084 + $0x258] sm:$0xff]
    %v5161 = vld [vmem:[%s5084 + $0x260] sm:$0xff]
    %v5162 = vld [vmem:[%s5084 + $0x268] sm:$0xff]
    %v5163 = vld [vmem:[%s5084 + $0x270] sm:$0xff]
    %v5164 = vld [vmem:[%s5084 + $0x278] sm:$0xff]
    %v5165 = vld [vmem:[%s5084 + $0x280] sm:$0xff]
    %v5166 = vld [vmem:[%s5084 + $0x288] sm:$0xff]
    %v5167 = vld [vmem:[%s5084 + $0x290] sm:$0xff]
    %v5168 = vld [vmem:[%s5084 + $0x298] sm:$0xff]
    %v5169 = vld [vmem:[%s5084 + $0x2a0] sm:$0xff]
    %v5170 = vld [vmem:[%s5084 + $0x2a8] sm:$0xff]
    %v5171 = vld [vmem:[%s5084 + $0x2b0] sm:$0xff]
    %v5172 = vld [vmem:[%s5084 + $0x2b8] sm:$0xff]
    %v5173 = vld [vmem:[%s5084 + $0x2c0] sm:$0xff]
    %v5174 = vld [vmem:[%s5084 + $0x2c8] sm:$0xff]
    %v5175 = vld [vmem:[%s5084 + $0x2d0] sm:$0xff]
    %v5176 = vld [vmem:[%s5084 + $0x2d8] sm:$0xff]
    %v5177 = vld [vmem:[%s5084 + $0x2e0] sm:$0xff]
    %v5178 = vld [vmem:[%s5084 + $0x2e8] sm:$0xff]
    %v5179 = vld [vmem:[%s5084 + $0x2f0] sm:$0xff]
    %v5180 = vld [vmem:[%s5084 + $0x2f8] sm:$0xff]
    %v5181 = vld [vmem:[%s5084 + $0x300] sm:$0xff]
    %v5182 = vld [vmem:[%s5084 + $0x308] sm:$0xff]
    %v5183 = vld [vmem:[%s5084 + $0x310] sm:$0xff]
    %v5184 = vld [vmem:[%s5084 + $0x318] sm:$0xff]
    %v5185 = vld [vmem:[%s5084 + $0x320] sm:$0xff]
    %v5186 = vld [vmem:[%s5084 + $0x328] sm:$0xff]
    %v5187 = vld [vmem:[%s5084 + $0x330] sm:$0xff]
    %v5188 = vld [vmem:[%s5084 + $0x338] sm:$0xff]
    %v5189 = vld [vmem:[%s5084 + $0x340] sm:$0xff]
    %v5190 = vld [vmem:[%s5084 + $0x348] sm:$0xff]
    %v5191 = vld [vmem:[%s5084 + $0x350] sm:$0xff]
    %v5192 = vld [vmem:[%s5084 + $0x358] sm:$0xff]
    %v5193 = vld [vmem:[%s5084 + $0x360] sm:$0xff]
    %v5194 = vld [vmem:[%s5084 + $0x368] sm:$0xff]
    %v5195 = vld [vmem:[%s5084 + $0x370] sm:$0xff]
    %v5196 = vld [vmem:[%s5084 + $0x378] sm:$0xff]
    %v5197 = vld [vmem:[%s5084 + $0x380] sm:$0xff]
    %v5198 = vld [vmem:[%s5084 + $0x388] sm:$0xff]
    %v5199 = vld [vmem:[%s5084 + $0x390] sm:$0xff]
    %v5200 = vld [vmem:[%s5084 + $0x398] sm:$0xff]
    %v5201 = vld [vmem:[%s5084 + $0x3a0] sm:$0xff]
    %v5202 = vld [vmem:[%s5084 + $0x3a8] sm:$0xff]
    %v5203 = vld [vmem:[%s5084 + $0x3b0] sm:$0xff]
    %v5204 = vld [vmem:[%s5084 + $0x3b8] sm:$0xff]
    %v5205 = vld [vmem:[%s5084 + $0x3c0] sm:$0xff]
    %v5206 = vld [vmem:[%s5084 + $0x3c8] sm:$0xff]
    %v5207 = vld [vmem:[%s5084 + $0x3d0] sm:$0xff]
    %v5208 = vld [vmem:[%s5084 + $0x3d8] sm:$0xff]
    %v5209 = vld [vmem:[%s5084 + $0x3e0] sm:$0xff]
    %v5210 = vld [vmem:[%s5084 + $0x3e8] sm:$0xff]
    %v5211 = vld [vmem:[%s5084 + $0x3f0] sm:$0xff]
    %v5212 = vld [vmem:[%s5084 + $0x3f8] sm:$0xff]
    %5213 = vmatprep.subr.mxu0 0.0
    %5214 = vmatpush1.msra.mxu0 %v5100
    %5215 = vmatprep.subr.mxu0 0.0
    %5216 = vmatpush1.msra.mxu0 %v5099
    %5217 = vmatprep.subr.mxu0 0.0
    %5218 = vmatpush1.msra.mxu0 %v5098
    %5219 = vmatprep.subr.mxu0 0.0
    %5220 = vmatpush1.msra.mxu0 %v5097
    %5221 = vmatprep.subr.mxu0 0.0
    %5222 = vmatpush1.msra.mxu0 %v5096
    %5223 = vmatprep.subr.mxu0 0.0
    %5224 = vmatpush1.msra.mxu0 %v5095
    %5225 = vmatprep.subr.mxu0 0.0
    %5226 = vmatpush1.msra.mxu0 %v5094
    %5227 = vmatprep.subr.mxu0 0.0
    %5228 = vmatpush1.msra.mxu0 %v5093
    %5229 = vmatprep.subr.mxu0 0.0
    %5230 = vmatpush1.msra.mxu0 %v5092
    %5231 = vmatprep.subr.mxu0 0.0
    %5232 = vmatpush1.msra.mxu0 %v5091
    %5233 = vmatprep.subr.mxu0 0.0
    %5234 = vmatpush1.msra.mxu0 %v5090
    %5235 = vmatprep.subr.mxu0 0.0
    %5236 = vmatpush1.msra.mxu0 %v5089
    %5237 = vmatprep.subr.mxu0 0.0
    %5238 = vmatpush1.msra.mxu0 %v5088
    %5239 = vmatprep.subr.mxu0 0.0
    %5240 = vmatpush1.msra.mxu0 %v5087
    %5241 = vmatprep.subr.mxu0 0.0
    %5242 = vmatpush1.msra.mxu0 %v5086
    %5243 = vmatprep.subr.mxu0 0.0
    %5244 = vmatpush1.msra.mxu0 %v5085
    %5245 = vmatprep.subr.mxu0 0.0
    %5246 = vmatpush2.msra.mxu0 %v5116
    %5247 = vmatprep.subr.mxu0 0.0
    %5248 = vmatpush2.msra.mxu0 %v5115
    %5249 = vmatprep.subr.mxu0 0.0
    %5250 = vmatpush2.msra.mxu0 %v5114
    %5251 = vmatprep.subr.mxu0 0.0
    %5252 = vmatpush2.msra.mxu0 %v5113
    %5253 = vmatprep.subr.mxu0 0.0
    %5254 = vmatpush2.msra.mxu0 %v5112
    %5255 = vmatprep.subr.mxu0 0.0
    %5256 = vmatpush2.msra.mxu0 %v5111
    %5257 = vmatprep.subr.mxu0 0.0
    %5258 = vmatpush2.msra.mxu0 %v5110
    %5259 = vmatprep.subr.mxu0 0.0
    %5260 = vmatpush2.msra.mxu0 %v5109
    %5261 = vmatprep.subr.mxu0 0.0
    %5262 = vmatpush2.msra.mxu0 %v5108
    %5263 = vmatprep.subr.mxu0 0.0
    %5264 = vmatpush2.msra.mxu0 %v5107
    %5265 = vmatprep.subr.mxu0 0.0
    %5266 = vmatpush2.msra.mxu0 %v5106
    %5267 = vmatprep.subr.mxu0 0.0
    %5268 = vmatpush2.msra.mxu0 %v5105
    %5269 = vmatprep.subr.mxu0 0.0
    %5270 = vmatpush2.msra.mxu0 %v5104
    %5271 = vmatprep.subr.mxu0 0.0
    %5272 = vmatpush2.msra.mxu0 %v5103
    %5273 = vmatprep.subr.mxu0 0.0
    %5274 = vmatpush2.msra.mxu0 %v5102
    %5275 = vmatprep.subr.mxu0 0.0
    %5276 = vmatpush2.msra.mxu0 %v5101
    %5277 = vmatprep.mubr.f32.mxu0 %v4122
    %5278 = vmatmul.mubr.f32.gmra.mxu0 %v4121
    %v5279 = vpop.f32.mrf.mxu0
    %v5280 = vadd.f32 0.0, %v5279
    %v5281 = vpop.f32.mrf.mxu0
    %5282 = vdwg.mxu0
    %5283 = vmatprep.subr.mxu0 0.0
    %5284 = vmatpush1.msra.mxu0 %v5132
    %5285 = vmatprep.subr.mxu0 0.0
    %5286 = vmatpush1.msra.mxu0 %v5131
    %5287 = vmatprep.subr.mxu0 0.0
    %5288 = vmatpush1.msra.mxu0 %v5130
    %5289 = vmatprep.subr.mxu0 0.0
    %5290 = vmatpush1.msra.mxu0 %v5129
    %5291 = vmatprep.subr.mxu0 0.0
    %5292 = vmatpush1.msra.mxu0 %v5128
    %5293 = vmatprep.subr.mxu0 0.0
    %5294 = vmatpush1.msra.mxu0 %v5127
    %5295 = vmatprep.subr.mxu0 0.0
    %5296 = vmatpush1.msra.mxu0 %v5126
    %5297 = vmatprep.subr.mxu0 0.0
    %5298 = vmatpush1.msra.mxu0 %v5125
    %5299 = vmatprep.subr.mxu0 0.0
    %5300 = vmatpush1.msra.mxu0 %v5124
    %5301 = vmatprep.subr.mxu0 0.0
    %5302 = vmatpush1.msra.mxu0 %v5123
    %5303 = vmatprep.subr.mxu0 0.0
    %5304 = vmatpush1.msra.mxu0 %v5122
    %5305 = vmatprep.subr.mxu0 0.0
    %5306 = vmatpush1.msra.mxu0 %v5121
    %5307 = vmatprep.subr.mxu0 0.0
    %5308 = vmatpush1.msra.mxu0 %v5120
    %5309 = vmatprep.subr.mxu0 0.0
    %5310 = vmatpush1.msra.mxu0 %v5119
    %5311 = vmatprep.subr.mxu0 0.0
    %5312 = vmatpush1.msra.mxu0 %v5118
    %5313 = vmatprep.subr.mxu0 0.0
    %5314 = vmatpush1.msra.mxu0 %v5117
    %5315 = vmatprep.subr.mxu0 0.0
    %5316 = vmatpush2.msra.mxu0 %v5148
    %5317 = vmatprep.subr.mxu0 0.0
    %5318 = vmatpush2.msra.mxu0 %v5147
    %5319 = vmatprep.subr.mxu0 0.0
    %5320 = vmatpush2.msra.mxu0 %v5146
    %5321 = vmatprep.subr.mxu0 0.0
    %5322 = vmatpush2.msra.mxu0 %v5145
    %5323 = vmatprep.subr.mxu0 0.0
    %5324 = vmatpush2.msra.mxu0 %v5144
    %5325 = vmatprep.subr.mxu0 0.0
    %5326 = vmatpush2.msra.mxu0 %v5143
    %5327 = vmatprep.subr.mxu0 0.0
    %5328 = vmatpush2.msra.mxu0 %v5142
    %5329 = vmatprep.subr.mxu0 0.0
    %5330 = vmatpush2.msra.mxu0 %v5141
    %5331 = vmatprep.subr.mxu0 0.0
    %5332 = vmatpush2.msra.mxu0 %v5140
    %5333 = vmatprep.subr.mxu0 0.0
    %5334 = vmatpush2.msra.mxu0 %v5139
    %5335 = vmatprep.subr.mxu0 0.0
    %5336 = vmatpush2.msra.mxu0 %v5138
    %5337 = vmatprep.subr.mxu0 0.0
    %5338 = vmatpush2.msra.mxu0 %v5137
    %5339 = vmatprep.subr.mxu0 0.0
    %5340 = vmatpush2.msra.mxu0 %v5136
    %5341 = vmatprep.subr.mxu0 0.0
    %5342 = vmatpush2.msra.mxu0 %v5135
    %5343 = vmatprep.subr.mxu0 0.0
    %5344 = vmatpush2.msra.mxu0 %v5134
    %5345 = vmatprep.subr.mxu0 0.0
    %5346 = vmatpush2.msra.mxu0 %v5133
    %5347 = vmatprep.mubr.f32.mxu0 %v4124
    %5348 = vmatmul.mubr.f32.gmra.mxu0 %v4123
    %v5349 = vpop.f32.mrf.mxu0
    %v5350 = vadd.f32 %v5280, %v5349
    %v5351 = vpop.f32.mrf.mxu0
    %5352 = vdwg.mxu0
    %5353 = vmatprep.subr.mxu0 0.0
    %5354 = vmatpush1.msra.mxu0 %v5164
    %5355 = vmatprep.subr.mxu0 0.0
    %5356 = vmatpush1.msra.mxu0 %v5163
    %5357 = vmatprep.subr.mxu0 0.0
    %5358 = vmatpush1.msra.mxu0 %v5162
    %5359 = vmatprep.subr.mxu0 0.0
    %5360 = vmatpush1.msra.mxu0 %v5161
    %5361 = vmatprep.subr.mxu0 0.0
    %5362 = vmatpush1.msra.mxu0 %v5160
    %5363 = vmatprep.subr.mxu0 0.0
    %5364 = vmatpush1.msra.mxu0 %v5159
    %5365 = vmatprep.subr.mxu0 0.0
    %5366 = vmatpush1.msra.mxu0 %v5158
    %5367 = vmatprep.subr.mxu0 0.0
    %5368 = vmatpush1.msra.mxu0 %v5157
    %5369 = vmatprep.subr.mxu0 0.0
    %5370 = vmatpush1.msra.mxu0 %v5156
    %5371 = vmatprep.subr.mxu0 0.0
    %5372 = vmatpush1.msra.mxu0 %v5155
    %5373 = vmatprep.subr.mxu0 0.0
    %5374 = vmatpush1.msra.mxu0 %v5154
    %5375 = vmatprep.subr.mxu0 0.0
    %5376 = vmatpush1.msra.mxu0 %v5153
    %5377 = vmatprep.subr.mxu0 0.0
    %5378 = vmatpush1.msra.mxu0 %v5152
    %5379 = vmatprep.subr.mxu0 0.0
    %5380 = vmatpush1.msra.mxu0 %v5151
    %5381 = vmatprep.subr.mxu0 0.0
    %5382 = vmatpush1.msra.mxu0 %v5150
    %5383 = vmatprep.subr.mxu0 0.0
    %5384 = vmatpush1.msra.mxu0 %v5149
    %5385 = vmatprep.subr.mxu0 0.0
    %5386 = vmatpush2.msra.mxu0 %v5180
    %5387 = vmatprep.subr.mxu0 0.0
    %5388 = vmatpush2.msra.mxu0 %v5179
    %5389 = vmatprep.subr.mxu0 0.0
    %5390 = vmatpush2.msra.mxu0 %v5178
    %5391 = vmatprep.subr.mxu0 0.0
    %5392 = vmatpush2.msra.mxu0 %v5177
    %5393 = vmatprep.subr.mxu0 0.0
    %5394 = vmatpush2.msra.mxu0 %v5176
    %5395 = vmatprep.subr.mxu0 0.0
    %5396 = vmatpush2.msra.mxu0 %v5175
    %5397 = vmatprep.subr.mxu0 0.0
    %5398 = vmatpush2.msra.mxu0 %v5174
    %5399 = vmatprep.subr.mxu0 0.0
    %5400 = vmatpush2.msra.mxu0 %v5173
    %5401 = vmatprep.subr.mxu0 0.0
    %5402 = vmatpush2.msra.mxu0 %v5172
    %5403 = vmatprep.subr.mxu0 0.0
    %5404 = vmatpush2.msra.mxu0 %v5171
    %5405 = vmatprep.subr.mxu0 0.0
    %5406 = vmatpush2.msra.mxu0 %v5170
    %5407 = vmatprep.subr.mxu0 0.0
    %5408 = vmatpush2.msra.mxu0 %v5169
    %5409 = vmatprep.subr.mxu0 0.0
    %5410 = vmatpush2.msra.mxu0 %v5168
    %5411 = vmatprep.subr.mxu0 0.0
    %5412 = vmatpush2.msra.mxu0 %v5167
    %5413 = vmatprep.subr.mxu0 0.0
    %5414 = vmatpush2.msra.mxu0 %v5166
    %5415 = vmatprep.subr.mxu0 0.0
    %5416 = vmatpush2.msra.mxu0 %v5165
    %5417 = vmatprep.mubr.f32.mxu0 %v4126
    %5418 = vmatmul.mubr.f32.gmra.mxu0 %v4125
    %v5419 = vpop.f32.mrf.mxu0
    %v5420 = vadd.f32 %v5350, %v5419
    %v5421 = vpop.f32.mrf.mxu0
    %5422 = vdwg.mxu0
    %5423 = vmatprep.subr.mxu0 0.0
    %5424 = vmatpush1.msra.mxu0 %v5196
    %5425 = vmatprep.subr.mxu0 0.0
    %5426 = vmatpush1.msra.mxu0 %v5195
    %5427 = vmatprep.subr.mxu0 0.0
    %5428 = vmatpush1.msra.mxu0 %v5194
    %5429 = vmatprep.subr.mxu0 0.0
    %5430 = vmatpush1.msra.mxu0 %v5193
    %5431 = vmatprep.subr.mxu0 0.0
    %5432 = vmatpush1.msra.mxu0 %v5192
    %5433 = vmatprep.subr.mxu0 0.0
    %5434 = vmatpush1.msra.mxu0 %v5191
    %5435 = vmatprep.subr.mxu0 0.0
    %5436 = vmatpush1.msra.mxu0 %v5190
    %5437 = vmatprep.subr.mxu0 0.0
    %5438 = vmatpush1.msra.mxu0 %v5189
    %5439 = vmatprep.subr.mxu0 0.0
    %5440 = vmatpush1.msra.mxu0 %v5188
    %5441 = vmatprep.subr.mxu0 0.0
    %5442 = vmatpush1.msra.mxu0 %v5187
    %5443 = vmatprep.subr.mxu0 0.0
    %5444 = vmatpush1.msra.mxu0 %v5186
    %5445 = vmatprep.subr.mxu0 0.0
    %5446 = vmatpush1.msra.mxu0 %v5185
    %5447 = vmatprep.subr.mxu0 0.0
    %5448 = vmatpush1.msra.mxu0 %v5184
    %5449 = vmatprep.subr.mxu0 0.0
    %5450 = vmatpush1.msra.mxu0 %v5183
    %5451 = vmatprep.subr.mxu0 0.0
    %5452 = vmatpush1.msra.mxu0 %v5182
    %5453 = vmatprep.subr.mxu0 0.0
    %5454 = vmatpush1.msra.mxu0 %v5181
    %5455 = vmatprep.subr.mxu0 0.0
    %5456 = vmatpush2.msra.mxu0 %v5212
    %5457 = vmatprep.subr.mxu0 0.0
    %5458 = vmatpush2.msra.mxu0 %v5211
    %5459 = vmatprep.subr.mxu0 0.0
    %5460 = vmatpush2.msra.mxu0 %v5210
    %5461 = vmatprep.subr.mxu0 0.0
    %5462 = vmatpush2.msra.mxu0 %v5209
    %5463 = vmatprep.subr.mxu0 0.0
    %5464 = vmatpush2.msra.mxu0 %v5208
    %5465 = vmatprep.subr.mxu0 0.0
    %5466 = vmatpush2.msra.mxu0 %v5207
    %5467 = vmatprep.subr.mxu0 0.0
    %5468 = vmatpush2.msra.mxu0 %v5206
    %5469 = vmatprep.subr.mxu0 0.0
    %5470 = vmatpush2.msra.mxu0 %v5205
    %5471 = vmatprep.subr.mxu0 0.0
    %5472 = vmatpush2.msra.mxu0 %v5204
    %5473 = vmatprep.subr.mxu0 0.0
    %5474 = vmatpush2.msra.mxu0 %v5203
    %5475 = vmatprep.subr.mxu0 0.0
    %5476 = vmatpush2.msra.mxu0 %v5202
    %5477 = vmatprep.subr.mxu0 0.0
    %5478 = vmatpush2.msra.mxu0 %v5201
    %5479 = vmatprep.subr.mxu0 0.0
    %5480 = vmatpush2.msra.mxu0 %v5200
    %5481 = vmatprep.subr.mxu0 0.0
    %5482 = vmatpush2.msra.mxu0 %v5199
    %5483 = vmatprep.subr.mxu0 0.0
    %5484 = vmatpush2.msra.mxu0 %v5198
    %5485 = vmatprep.subr.mxu0 0.0
    %5486 = vmatpush2.msra.mxu0 %v5197
    %5487 = vmatprep.mubr.f32.mxu0 %v4128
    %5488 = vmatmul.mubr.f32.gmra.mxu0 %v4127
    %v5489 = vpop.f32.mrf.mxu0
    %v5490 = vadd.f32 %v5420, %v5489
    %v5491 = vpop.f32.mrf.mxu0
    %5492 = vdwg.mxu0
    %5493 = vmatprep.subr.mxu0 0.0
    %5494 = vmatpush1.msra.mxu0 %v4971
    %5495 = vmatprep.subr.mxu0 0.0
    %5496 = vmatpush1.msra.mxu0 %v4970
    %5497 = vmatprep.subr.mxu0 0.0
    %5498 = vmatpush1.msra.mxu0 %v4969
    %5499 = vmatprep.subr.mxu0 0.0
    %5500 = vmatpush1.msra.mxu0 %v4968
    %5501 = vmatprep.subr.mxu0 0.0
    %5502 = vmatpush1.msra.mxu0 %v4967
    %5503 = vmatprep.subr.mxu0 0.0
    %5504 = vmatpush1.msra.mxu0 %v4966
    %5505 = vmatprep.subr.mxu0 0.0
    %5506 = vmatpush1.msra.mxu0 %v4965
    %5507 = vmatprep.subr.mxu0 0.0
    %5508 = vmatpush1.msra.mxu0 %v4964
    %5509 = vmatprep.subr.mxu0 0.0
    %5510 = vmatpush1.msra.mxu0 %v4963
    %5511 = vmatprep.subr.mxu0 0.0
    %5512 = vmatpush1.msra.mxu0 %v4962
    %5513 = vmatprep.subr.mxu0 0.0
    %5514 = vmatpush1.msra.mxu0 %v4961
    %5515 = vmatprep.subr.mxu0 0.0
    %5516 = vmatpush1.msra.mxu0 %v4960
    %5517 = vmatprep.subr.mxu0 0.0
    %5518 = vmatpush1.msra.mxu0 %v4959
    %5519 = vmatprep.subr.mxu0 0.0
    %5520 = vmatpush1.msra.mxu0 %v4958
    %5521 = vmatprep.subr.mxu0 0.0
    %5522 = vmatpush1.msra.mxu0 %v4957
    %5523 = vmatprep.subr.mxu0 0.0
    %5524 = vmatpush1.msra.mxu0 %v4956
    %5525 = vmatprep.subr.mxu0 0.0
    %5526 = vmatpush2.msra.mxu0 %v4987
    %5527 = vmatprep.subr.mxu0 0.0
    %5528 = vmatpush2.msra.mxu0 %v4986
    %5529 = vmatprep.subr.mxu0 0.0
    %5530 = vmatpush2.msra.mxu0 %v4985
    %5531 = vmatprep.subr.mxu0 0.0
    %5532 = vmatpush2.msra.mxu0 %v4984
    %5533 = vmatprep.subr.mxu0 0.0
    %5534 = vmatpush2.msra.mxu0 %v4983
    %5535 = vmatprep.subr.mxu0 0.0
    %5536 = vmatpush2.msra.mxu0 %v4982
    %5537 = vmatprep.subr.mxu0 0.0
    %5538 = vmatpush2.msra.mxu0 %v4981
    %5539 = vmatprep.subr.mxu0 0.0
    %5540 = vmatpush2.msra.mxu0 %v4980
    %5541 = vmatprep.subr.mxu0 0.0
    %5542 = vmatpush2.msra.mxu0 %v4979
    %5543 = vmatprep.subr.mxu0 0.0
    %5544 = vmatpush2.msra.mxu0 %v4978
    %5545 = vmatprep.subr.mxu0 0.0
    %5546 = vmatpush2.msra.mxu0 %v4977
    %5547 = vmatprep.subr.mxu0 0.0
    %5548 = vmatpush2.msra.mxu0 %v4976
    %5549 = vmatprep.subr.mxu0 0.0
    %5550 = vmatpush2.msra.mxu0 %v4975
    %5551 = vmatprep.subr.mxu0 0.0
    %5552 = vmatpush2.msra.mxu0 %v4974
    %5553 = vmatprep.subr.mxu0 0.0
    %5554 = vmatpush2.msra.mxu0 %v4973
    %5555 = vmatprep.subr.mxu0 0.0
    %5556 = vmatpush2.msra.mxu0 %v4972
    %5557 = vmatprep.mubr.f32.mxu0 %v3674
    %5558 = vmatmul.mubr.f32.gmra.mxu0 %v3673
    %v5559 = vpop.f32.mrf.mxu0
    %v5560 = vadd.f32 %v5490, %v5559
    %v5561 = vpop.f32.mrf.mxu0
    %5562 = vdwg.mxu0
    %5563 = vmatprep.subr.mxu0 0.0
    %5564 = vmatpush1.msra.mxu0 %v5003
    %5565 = vmatprep.subr.mxu0 0.0
    %5566 = vmatpush1.msra.mxu0 %v5002
    %5567 = vmatprep.subr.mxu0 0.0
    %5568 = vmatpush1.msra.mxu0 %v5001
    %5569 = vmatprep.subr.mxu0 0.0
    %5570 = vmatpush1.msra.mxu0 %v5000
    %5571 = vmatprep.subr.mxu0 0.0
    %5572 = vmatpush1.msra.mxu0 %v4999
    %5573 = vmatprep.subr.mxu0 0.0
    %5574 = vmatpush1.msra.mxu0 %v4998
    %5575 = vmatprep.subr.mxu0 0.0
    %5576 = vmatpush1.msra.mxu0 %v4997
    %5577 = vmatprep.subr.mxu0 0.0
    %5578 = vmatpush1.msra.mxu0 %v4996
    %5579 = vmatprep.subr.mxu0 0.0
    %5580 = vmatpush1.msra.mxu0 %v4995
    %5581 = vmatprep.subr.mxu0 0.0
    %5582 = vmatpush1.msra.mxu0 %v4994
    %5583 = vmatprep.subr.mxu0 0.0
    %5584 = vmatpush1.msra.mxu0 %v4993
    %5585 = vmatprep.subr.mxu0 0.0
    %5586 = vmatpush1.msra.mxu0 %v4992
    %5587 = vmatprep.subr.mxu0 0.0
    %5588 = vmatpush1.msra.mxu0 %v4991
    %5589 = vmatprep.subr.mxu0 0.0
    %5590 = vmatpush1.msra.mxu0 %v4990
    %5591 = vmatprep.subr.mxu0 0.0
    %5592 = vmatpush1.msra.mxu0 %v4989
    %5593 = vmatprep.subr.mxu0 0.0
    %5594 = vmatpush1.msra.mxu0 %v4988
    %5595 = vmatprep.subr.mxu0 0.0
    %5596 = vmatpush2.msra.mxu0 %v5019
    %5597 = vmatprep.subr.mxu0 0.0
    %5598 = vmatpush2.msra.mxu0 %v5018
    %5599 = vmatprep.subr.mxu0 0.0
    %5600 = vmatpush2.msra.mxu0 %v5017
    %5601 = vmatprep.subr.mxu0 0.0
    %5602 = vmatpush2.msra.mxu0 %v5016
    %5603 = vmatprep.subr.mxu0 0.0
    %5604 = vmatpush2.msra.mxu0 %v5015
    %5605 = vmatprep.subr.mxu0 0.0
    %5606 = vmatpush2.msra.mxu0 %v5014
    %5607 = vmatprep.subr.mxu0 0.0
    %5608 = vmatpush2.msra.mxu0 %v5013
    %5609 = vmatprep.subr.mxu0 0.0
    %5610 = vmatpush2.msra.mxu0 %v5012
    %5611 = vmatprep.subr.mxu0 0.0
    %5612 = vmatpush2.msra.mxu0 %v5011
    %5613 = vmatprep.subr.mxu0 0.0
    %5614 = vmatpush2.msra.mxu0 %v5010
    %5615 = vmatprep.subr.mxu0 0.0
    %5616 = vmatpush2.msra.mxu0 %v5009
    %5617 = vmatprep.subr.mxu0 0.0
    %5618 = vmatpush2.msra.mxu0 %v5008
    %5619 = vmatprep.subr.mxu0 0.0
    %5620 = vmatpush2.msra.mxu0 %v5007
    %5621 = vmatprep.subr.mxu0 0.0
    %5622 = vmatpush2.msra.mxu0 %v5006
    %5623 = vmatprep.subr.mxu0 0.0
    %5624 = vmatpush2.msra.mxu0 %v5005
    %5625 = vmatprep.subr.mxu0 0.0
    %5626 = vmatpush2.msra.mxu0 %v5004
    %5627 = vmatprep.mubr.f32.mxu0 %v3676
    %5628 = vmatmul.mubr.f32.gmra.mxu0 %v3675
    %v5629 = vpop.f32.mrf.mxu0
    %v5630 = vadd.f32 %v5560, %v5629
    %v5631 = vpop.f32.mrf.mxu0
    %5632 = vdwg.mxu0
    %5633 = vmatprep.subr.mxu0 0.0
    %5634 = vmatpush1.msra.mxu0 %v5035
    %5635 = vmatprep.subr.mxu0 0.0
    %5636 = vmatpush1.msra.mxu0 %v5034
    %5637 = vmatprep.subr.mxu0 0.0
    %5638 = vmatpush1.msra.mxu0 %v5033
    %5639 = vmatprep.subr.mxu0 0.0
    %5640 = vmatpush1.msra.mxu0 %v5032
    %5641 = vmatprep.subr.mxu0 0.0
    %5642 = vmatpush1.msra.mxu0 %v5031
    %5643 = vmatprep.subr.mxu0 0.0
    %5644 = vmatpush1.msra.mxu0 %v5030
    %5645 = vmatprep.subr.mxu0 0.0
    %5646 = vmatpush1.msra.mxu0 %v5029
    %5647 = vmatprep.subr.mxu0 0.0
    %5648 = vmatpush1.msra.mxu0 %v5028
    %5649 = vmatprep.subr.mxu0 0.0
    %5650 = vmatpush1.msra.mxu0 %v5027
    %5651 = vmatprep.subr.mxu0 0.0
    %5652 = vmatpush1.msra.mxu0 %v5026
    %5653 = vmatprep.subr.mxu0 0.0
    %5654 = vmatpush1.msra.mxu0 %v5025
    %5655 = vmatprep.subr.mxu0 0.0
    %5656 = vmatpush1.msra.mxu0 %v5024
    %5657 = vmatprep.subr.mxu0 0.0
    %5658 = vmatpush1.msra.mxu0 %v5023
    %5659 = vmatprep.subr.mxu0 0.0
    %5660 = vmatpush1.msra.mxu0 %v5022
    %5661 = vmatprep.subr.mxu0 0.0
    %5662 = vmatpush1.msra.mxu0 %v5021
    %5663 = vmatprep.subr.mxu0 0.0
    %5664 = vmatpush1.msra.mxu0 %v5020
    %5665 = vmatprep.subr.mxu0 0.0
    %5666 = vmatpush2.msra.mxu0 %v5051
    %5667 = vmatprep.subr.mxu0 0.0
    %5668 = vmatpush2.msra.mxu0 %v5050
    %5669 = vmatprep.subr.mxu0 0.0
    %5670 = vmatpush2.msra.mxu0 %v5049
    %5671 = vmatprep.subr.mxu0 0.0
    %5672 = vmatpush2.msra.mxu0 %v5048
    %5673 = vmatprep.subr.mxu0 0.0
    %5674 = vmatpush2.msra.mxu0 %v5047
    %5675 = vmatprep.subr.mxu0 0.0
    %5676 = vmatpush2.msra.mxu0 %v5046
    %5677 = vmatprep.subr.mxu0 0.0
    %5678 = vmatpush2.msra.mxu0 %v5045
    %5679 = vmatprep.subr.mxu0 0.0
    %5680 = vmatpush2.msra.mxu0 %v5044
    %5681 = vmatprep.subr.mxu0 0.0
    %5682 = vmatpush2.msra.mxu0 %v5043
    %5683 = vmatprep.subr.mxu0 0.0
    %5684 = vmatpush2.msra.mxu0 %v5042
    %5685 = vmatprep.subr.mxu0 0.0
    %5686 = vmatpush2.msra.mxu0 %v5041
    %5687 = vmatprep.subr.mxu0 0.0
    %5688 = vmatpush2.msra.mxu0 %v5040
    %5689 = vmatprep.subr.mxu0 0.0
    %5690 = vmatpush2.msra.mxu0 %v5039
    %5691 = vmatprep.subr.mxu0 0.0
    %5692 = vmatpush2.msra.mxu0 %v5038
    %5693 = vmatprep.subr.mxu0 0.0
    %5694 = vmatpush2.msra.mxu0 %v5037
    %5695 = vmatprep.subr.mxu0 0.0
    %5696 = vmatpush2.msra.mxu0 %v5036
    %5697 = vmatprep.mubr.f32.mxu0 %v3678
    %5698 = vmatmul.mubr.f32.gmra.mxu0 %v3677
    %v5699 = vpop.f32.mrf.mxu0
    %v5700 = vadd.f32 %v5630, %v5699
    %v5701 = vpop.f32.mrf.mxu0
    %5702 = vdwg.mxu0
    %5703 = vmatprep.subr.mxu0 0.0
    %5704 = vmatpush1.msra.mxu0 %v5067
    %5705 = vmatprep.subr.mxu0 0.0
    %5706 = vmatpush1.msra.mxu0 %v5066
    %5707 = vmatprep.subr.mxu0 0.0
    %5708 = vmatpush1.msra.mxu0 %v5065
    %5709 = vmatprep.subr.mxu0 0.0
    %5710 = vmatpush1.msra.mxu0 %v5064
    %5711 = vmatprep.subr.mxu0 0.0
    %5712 = vmatpush1.msra.mxu0 %v5063
    %5713 = vmatprep.subr.mxu0 0.0
    %5714 = vmatpush1.msra.mxu0 %v5062
    %5715 = vmatprep.subr.mxu0 0.0
    %5716 = vmatpush1.msra.mxu0 %v5061
    %5717 = vmatprep.subr.mxu0 0.0
    %5718 = vmatpush1.msra.mxu0 %v5060
    %5719 = vmatprep.subr.mxu0 0.0
    %5720 = vmatpush1.msra.mxu0 %v5059
    %5721 = vmatprep.subr.mxu0 0.0
    %5722 = vmatpush1.msra.mxu0 %v5058
    %5723 = vmatprep.subr.mxu0 0.0
    %5724 = vmatpush1.msra.mxu0 %v5057
    %5725 = vmatprep.subr.mxu0 0.0
    %5726 = vmatpush1.msra.mxu0 %v5056
    %5727 = vmatprep.subr.mxu0 0.0
    %5728 = vmatpush1.msra.mxu0 %v5055
    %5729 = vmatprep.subr.mxu0 0.0
    %5730 = vmatpush1.msra.mxu0 %v5054
    %5731 = vmatprep.subr.mxu0 0.0
    %5732 = vmatpush1.msra.mxu0 %v5053
    %5733 = vmatprep.subr.mxu0 0.0
    %5734 = vmatpush1.msra.mxu0 %v5052
    %5735 = vmatprep.subr.mxu0 0.0
    %5736 = vmatpush2.msra.mxu0 %v5083
    %5737 = vmatprep.subr.mxu0 0.0
    %5738 = vmatpush2.msra.mxu0 %v5082
    %5739 = vmatprep.subr.mxu0 0.0
    %5740 = vmatpush2.msra.mxu0 %v5081
    %5741 = vmatprep.subr.mxu0 0.0
    %5742 = vmatpush2.msra.mxu0 %v5080
    %5743 = vmatprep.subr.mxu0 0.0
    %5744 = vmatpush2.msra.mxu0 %v5079
    %5745 = vmatprep.subr.mxu0 0.0
    %5746 = vmatpush2.msra.mxu0 %v5078
    %5747 = vmatprep.subr.mxu0 0.0
    %5748 = vmatpush2.msra.mxu0 %v5077
    %5749 = vmatprep.subr.mxu0 0.0
    %5750 = vmatpush2.msra.mxu0 %v5076
    %5751 = vmatprep.subr.mxu0 0.0
    %5752 = vmatpush2.msra.mxu0 %v5075
    %5753 = vmatprep.subr.mxu0 0.0
    %5754 = vmatpush2.msra.mxu0 %v5074
    %5755 = vmatprep.subr.mxu0 0.0
    %5756 = vmatpush2.msra.mxu0 %v5073
    %5757 = vmatprep.subr.mxu0 0.0
    %5758 = vmatpush2.msra.mxu0 %v5072
    %5759 = vmatprep.subr.mxu0 0.0
    %5760 = vmatpush2.msra.mxu0 %v5071
    %5761 = vmatprep.subr.mxu0 0.0
    %5762 = vmatpush2.msra.mxu0 %v5070
    %5763 = vmatprep.subr.mxu0 0.0
    %5764 = vmatpush2.msra.mxu0 %v5069
    %5765 = vmatprep.subr.mxu0 0.0
    %5766 = vmatpush2.msra.mxu0 %v5068
    %5767 = vmatprep.mubr.f32.mxu0 %v3680
    %5768 = vmatmul.mubr.f32.gmra.mxu0 %v3679
    %v5769 = vpop.f32.mrf.mxu0
    %v5770 = vadd.f32 %v5700, %v5769
    %v5771 = vpop.f32.mrf.mxu0
    %5772 = vdwg.mxu0
    %s5773 = scalar_lea.vmem %s16, 1
    %v5774 = vld [vmem:[%s5773] sm:$0x1]
    %v5776 = vlaneseq
    %v5777 = vshrl.u32 %v5776, 7
    %v5778 = vsub.s32 0, %v5777
    %v5779 = vrot.slane %v5774, %v5778
    %v5781 = vadd.f32 %v5770, %v5779
    %v5782 = vmul.f32 %v1863, %v5781
    %v5783 = vadd.f32 %v4954, %v5782
    %s5784 = scalar_lea.vmem %s14, 2048
    %v5785 = vld [vmem:[%s5784] sm:$0xff]
    %v5786 = vld [vmem:[%s5784 + $0x8] sm:$0xff]
    %v5787 = vld [vmem:[%s5784 + $0x10] sm:$0xff]
    %v5788 = vld [vmem:[%s5784 + $0x18] sm:$0xff]
    %v5789 = vld [vmem:[%s5784 + $0x20] sm:$0xff]
    %v5790 = vld [vmem:[%s5784 + $0x28] sm:$0xff]
    %v5791 = vld [vmem:[%s5784 + $0x30] sm:$0xff]
    %v5792 = vld [vmem:[%s5784 + $0x38] sm:$0xff]
    %v5793 = vld [vmem:[%s5784 + $0x40] sm:$0xff]
    %v5794 = vld [vmem:[%s5784 + $0x48] sm:$0xff]
    %v5795 = vld [vmem:[%s5784 + $0x50] sm:$0xff]
    %v5796 = vld [vmem:[%s5784 + $0x58] sm:$0xff]
    %v5797 = vld [vmem:[%s5784 + $0x60] sm:$0xff]
    %v5798 = vld [vmem:[%s5784 + $0x68] sm:$0xff]
    %v5799 = vld [vmem:[%s5784 + $0x70] sm:$0xff]
    %v5800 = vld [vmem:[%s5784 + $0x78] sm:$0xff]
    %v5801 = vld [vmem:[%s5784 + $0x80] sm:$0xff]
    %v5802 = vld [vmem:[%s5784 + $0x88] sm:$0xff]
    %v5803 = vld [vmem:[%s5784 + $0x90] sm:$0xff]
    %v5804 = vld [vmem:[%s5784 + $0x98] sm:$0xff]
    %v5805 = vld [vmem:[%s5784 + $0xa0] sm:$0xff]
    %v5806 = vld [vmem:[%s5784 + $0xa8] sm:$0xff]
    %v5807 = vld [vmem:[%s5784 + $0xb0] sm:$0xff]
    %v5808 = vld [vmem:[%s5784 + $0xb8] sm:$0xff]
    %v5809 = vld [vmem:[%s5784 + $0xc0] sm:$0xff]
    %v5810 = vld [vmem:[%s5784 + $0xc8] sm:$0xff]
    %v5811 = vld [vmem:[%s5784 + $0xd0] sm:$0xff]
    %v5812 = vld [vmem:[%s5784 + $0xd8] sm:$0xff]
    %v5813 = vld [vmem:[%s5784 + $0xe0] sm:$0xff]
    %v5814 = vld [vmem:[%s5784 + $0xe8] sm:$0xff]
    %v5815 = vld [vmem:[%s5784 + $0xf0] sm:$0xff]
    %v5816 = vld [vmem:[%s5784 + $0xf8] sm:$0xff]
    %v5817 = vld [vmem:[%s5784 + $0x100] sm:$0xff]
    %v5818 = vld [vmem:[%s5784 + $0x108] sm:$0xff]
    %v5819 = vld [vmem:[%s5784 + $0x110] sm:$0xff]
    %v5820 = vld [vmem:[%s5784 + $0x118] sm:$0xff]
    %v5821 = vld [vmem:[%s5784 + $0x120] sm:$0xff]
    %v5822 = vld [vmem:[%s5784 + $0x128] sm:$0xff]
    %v5823 = vld [vmem:[%s5784 + $0x130] sm:$0xff]
    %v5824 = vld [vmem:[%s5784 + $0x138] sm:$0xff]
    %v5825 = vld [vmem:[%s5784 + $0x140] sm:$0xff]
    %v5826 = vld [vmem:[%s5784 + $0x148] sm:$0xff]
    %v5827 = vld [vmem:[%s5784 + $0x150] sm:$0xff]
    %v5828 = vld [vmem:[%s5784 + $0x158] sm:$0xff]
    %v5829 = vld [vmem:[%s5784 + $0x160] sm:$0xff]
    %v5830 = vld [vmem:[%s5784 + $0x168] sm:$0xff]
    %v5831 = vld [vmem:[%s5784 + $0x170] sm:$0xff]
    %v5832 = vld [vmem:[%s5784 + $0x178] sm:$0xff]
    %v5833 = vld [vmem:[%s5784 + $0x180] sm:$0xff]
    %v5834 = vld [vmem:[%s5784 + $0x188] sm:$0xff]
    %v5835 = vld [vmem:[%s5784 + $0x190] sm:$0xff]
    %v5836 = vld [vmem:[%s5784 + $0x198] sm:$0xff]
    %v5837 = vld [vmem:[%s5784 + $0x1a0] sm:$0xff]
    %v5838 = vld [vmem:[%s5784 + $0x1a8] sm:$0xff]
    %v5839 = vld [vmem:[%s5784 + $0x1b0] sm:$0xff]
    %v5840 = vld [vmem:[%s5784 + $0x1b8] sm:$0xff]
    %v5841 = vld [vmem:[%s5784 + $0x1c0] sm:$0xff]
    %v5842 = vld [vmem:[%s5784 + $0x1c8] sm:$0xff]
    %v5843 = vld [vmem:[%s5784 + $0x1d0] sm:$0xff]
    %v5844 = vld [vmem:[%s5784 + $0x1d8] sm:$0xff]
    %v5845 = vld [vmem:[%s5784 + $0x1e0] sm:$0xff]
    %v5846 = vld [vmem:[%s5784 + $0x1e8] sm:$0xff]
    %v5847 = vld [vmem:[%s5784 + $0x1f0] sm:$0xff]
    %v5848 = vld [vmem:[%s5784 + $0x1f8] sm:$0xff]
    %v5849 = vld [vmem:[%s5784 + $0x200] sm:$0xff]
    %v5850 = vld [vmem:[%s5784 + $0x208] sm:$0xff]
    %v5851 = vld [vmem:[%s5784 + $0x210] sm:$0xff]
    %v5852 = vld [vmem:[%s5784 + $0x218] sm:$0xff]
    %v5853 = vld [vmem:[%s5784 + $0x220] sm:$0xff]
    %v5854 = vld [vmem:[%s5784 + $0x228] sm:$0xff]
    %v5855 = vld [vmem:[%s5784 + $0x230] sm:$0xff]
    %v5856 = vld [vmem:[%s5784 + $0x238] sm:$0xff]
    %v5857 = vld [vmem:[%s5784 + $0x240] sm:$0xff]
    %v5858 = vld [vmem:[%s5784 + $0x248] sm:$0xff]
    %v5859 = vld [vmem:[%s5784 + $0x250] sm:$0xff]
    %v5860 = vld [vmem:[%s5784 + $0x258] sm:$0xff]
    %v5861 = vld [vmem:[%s5784 + $0x260] sm:$0xff]
    %v5862 = vld [vmem:[%s5784 + $0x268] sm:$0xff]
    %v5863 = vld [vmem:[%s5784 + $0x270] sm:$0xff]
    %v5864 = vld [vmem:[%s5784 + $0x278] sm:$0xff]
    %v5865 = vld [vmem:[%s5784 + $0x280] sm:$0xff]
    %v5866 = vld [vmem:[%s5784 + $0x288] sm:$0xff]
    %v5867 = vld [vmem:[%s5784 + $0x290] sm:$0xff]
    %v5868 = vld [vmem:[%s5784 + $0x298] sm:$0xff]
    %v5869 = vld [vmem:[%s5784 + $0x2a0] sm:$0xff]
    %v5870 = vld [vmem:[%s5784 + $0x2a8] sm:$0xff]
    %v5871 = vld [vmem:[%s5784 + $0x2b0] sm:$0xff]
    %v5872 = vld [vmem:[%s5784 + $0x2b8] sm:$0xff]
    %v5873 = vld [vmem:[%s5784 + $0x2c0] sm:$0xff]
    %v5874 = vld [vmem:[%s5784 + $0x2c8] sm:$0xff]
    %v5875 = vld [vmem:[%s5784 + $0x2d0] sm:$0xff]
    %v5876 = vld [vmem:[%s5784 + $0x2d8] sm:$0xff]
    %v5877 = vld [vmem:[%s5784 + $0x2e0] sm:$0xff]
    %v5878 = vld [vmem:[%s5784 + $0x2e8] sm:$0xff]
    %v5879 = vld [vmem:[%s5784 + $0x2f0] sm:$0xff]
    %v5880 = vld [vmem:[%s5784 + $0x2f8] sm:$0xff]
    %v5881 = vld [vmem:[%s5784 + $0x300] sm:$0xff]
    %v5882 = vld [vmem:[%s5784 + $0x308] sm:$0xff]
    %v5883 = vld [vmem:[%s5784 + $0x310] sm:$0xff]
    %v5884 = vld [vmem:[%s5784 + $0x318] sm:$0xff]
    %v5885 = vld [vmem:[%s5784 + $0x320] sm:$0xff]
    %v5886 = vld [vmem:[%s5784 + $0x328] sm:$0xff]
    %v5887 = vld [vmem:[%s5784 + $0x330] sm:$0xff]
    %v5888 = vld [vmem:[%s5784 + $0x338] sm:$0xff]
    %v5889 = vld [vmem:[%s5784 + $0x340] sm:$0xff]
    %v5890 = vld [vmem:[%s5784 + $0x348] sm:$0xff]
    %v5891 = vld [vmem:[%s5784 + $0x350] sm:$0xff]
    %v5892 = vld [vmem:[%s5784 + $0x358] sm:$0xff]
    %v5893 = vld [vmem:[%s5784 + $0x360] sm:$0xff]
    %v5894 = vld [vmem:[%s5784 + $0x368] sm:$0xff]
    %v5895 = vld [vmem:[%s5784 + $0x370] sm:$0xff]
    %v5896 = vld [vmem:[%s5784 + $0x378] sm:$0xff]
    %v5897 = vld [vmem:[%s5784 + $0x380] sm:$0xff]
    %v5898 = vld [vmem:[%s5784 + $0x388] sm:$0xff]
    %v5899 = vld [vmem:[%s5784 + $0x390] sm:$0xff]
    %v5900 = vld [vmem:[%s5784 + $0x398] sm:$0xff]
    %v5901 = vld [vmem:[%s5784 + $0x3a0] sm:$0xff]
    %v5902 = vld [vmem:[%s5784 + $0x3a8] sm:$0xff]
    %v5903 = vld [vmem:[%s5784 + $0x3b0] sm:$0xff]
    %v5904 = vld [vmem:[%s5784 + $0x3b8] sm:$0xff]
    %v5905 = vld [vmem:[%s5784 + $0x3c0] sm:$0xff]
    %v5906 = vld [vmem:[%s5784 + $0x3c8] sm:$0xff]
    %v5907 = vld [vmem:[%s5784 + $0x3d0] sm:$0xff]
    %v5908 = vld [vmem:[%s5784 + $0x3d8] sm:$0xff]
    %v5909 = vld [vmem:[%s5784 + $0x3e0] sm:$0xff]
    %v5910 = vld [vmem:[%s5784 + $0x3e8] sm:$0xff]
    %v5911 = vld [vmem:[%s5784 + $0x3f0] sm:$0xff]
    %v5912 = vld [vmem:[%s5784 + $0x3f8] sm:$0xff]
    %s5913 = scalar_lea.vmem %s15, 2048
    %v5914 = vld [vmem:[%s5913] sm:$0xff]
    %v5915 = vld [vmem:[%s5913 + $0x8] sm:$0xff]
    %v5916 = vld [vmem:[%s5913 + $0x10] sm:$0xff]
    %v5917 = vld [vmem:[%s5913 + $0x18] sm:$0xff]
    %v5918 = vld [vmem:[%s5913 + $0x20] sm:$0xff]
    %v5919 = vld [vmem:[%s5913 + $0x28] sm:$0xff]
    %v5920 = vld [vmem:[%s5913 + $0x30] sm:$0xff]
    %v5921 = vld [vmem:[%s5913 + $0x38] sm:$0xff]
    %v5922 = vld [vmem:[%s5913 + $0x40] sm:$0xff]
    %v5923 = vld [vmem:[%s5913 + $0x48] sm:$0xff]
    %v5924 = vld [vmem:[%s5913 + $0x50] sm:$0xff]
    %v5925 = vld [vmem:[%s5913 + $0x58] sm:$0xff]
    %v5926 = vld [vmem:[%s5913 + $0x60] sm:$0xff]
    %v5927 = vld [vmem:[%s5913 + $0x68] sm:$0xff]
    %v5928 = vld [vmem:[%s5913 + $0x70] sm:$0xff]
    %v5929 = vld [vmem:[%s5913 + $0x78] sm:$0xff]
    %v5930 = vld [vmem:[%s5913 + $0x80] sm:$0xff]
    %v5931 = vld [vmem:[%s5913 + $0x88] sm:$0xff]
    %v5932 = vld [vmem:[%s5913 + $0x90] sm:$0xff]
    %v5933 = vld [vmem:[%s5913 + $0x98] sm:$0xff]
    %v5934 = vld [vmem:[%s5913 + $0xa0] sm:$0xff]
    %v5935 = vld [vmem:[%s5913 + $0xa8] sm:$0xff]
    %v5936 = vld [vmem:[%s5913 + $0xb0] sm:$0xff]
    %v5937 = vld [vmem:[%s5913 + $0xb8] sm:$0xff]
    %v5938 = vld [vmem:[%s5913 + $0xc0] sm:$0xff]
    %v5939 = vld [vmem:[%s5913 + $0xc8] sm:$0xff]
    %v5940 = vld [vmem:[%s5913 + $0xd0] sm:$0xff]
    %v5941 = vld [vmem:[%s5913 + $0xd8] sm:$0xff]
    %v5942 = vld [vmem:[%s5913 + $0xe0] sm:$0xff]
    %v5943 = vld [vmem:[%s5913 + $0xe8] sm:$0xff]
    %v5944 = vld [vmem:[%s5913 + $0xf0] sm:$0xff]
    %v5945 = vld [vmem:[%s5913 + $0xf8] sm:$0xff]
    %v5946 = vld [vmem:[%s5913 + $0x100] sm:$0xff]
    %v5947 = vld [vmem:[%s5913 + $0x108] sm:$0xff]
    %v5948 = vld [vmem:[%s5913 + $0x110] sm:$0xff]
    %v5949 = vld [vmem:[%s5913 + $0x118] sm:$0xff]
    %v5950 = vld [vmem:[%s5913 + $0x120] sm:$0xff]
    %v5951 = vld [vmem:[%s5913 + $0x128] sm:$0xff]
    %v5952 = vld [vmem:[%s5913 + $0x130] sm:$0xff]
    %v5953 = vld [vmem:[%s5913 + $0x138] sm:$0xff]
    %v5954 = vld [vmem:[%s5913 + $0x140] sm:$0xff]
    %v5955 = vld [vmem:[%s5913 + $0x148] sm:$0xff]
    %v5956 = vld [vmem:[%s5913 + $0x150] sm:$0xff]
    %v5957 = vld [vmem:[%s5913 + $0x158] sm:$0xff]
    %v5958 = vld [vmem:[%s5913 + $0x160] sm:$0xff]
    %v5959 = vld [vmem:[%s5913 + $0x168] sm:$0xff]
    %v5960 = vld [vmem:[%s5913 + $0x170] sm:$0xff]
    %v5961 = vld [vmem:[%s5913 + $0x178] sm:$0xff]
    %v5962 = vld [vmem:[%s5913 + $0x180] sm:$0xff]
    %v5963 = vld [vmem:[%s5913 + $0x188] sm:$0xff]
    %v5964 = vld [vmem:[%s5913 + $0x190] sm:$0xff]
    %v5965 = vld [vmem:[%s5913 + $0x198] sm:$0xff]
    %v5966 = vld [vmem:[%s5913 + $0x1a0] sm:$0xff]
    %v5967 = vld [vmem:[%s5913 + $0x1a8] sm:$0xff]
    %v5968 = vld [vmem:[%s5913 + $0x1b0] sm:$0xff]
    %v5969 = vld [vmem:[%s5913 + $0x1b8] sm:$0xff]
    %v5970 = vld [vmem:[%s5913 + $0x1c0] sm:$0xff]
    %v5971 = vld [vmem:[%s5913 + $0x1c8] sm:$0xff]
    %v5972 = vld [vmem:[%s5913 + $0x1d0] sm:$0xff]
    %v5973 = vld [vmem:[%s5913 + $0x1d8] sm:$0xff]
    %v5974 = vld [vmem:[%s5913 + $0x1e0] sm:$0xff]
    %v5975 = vld [vmem:[%s5913 + $0x1e8] sm:$0xff]
    %v5976 = vld [vmem:[%s5913 + $0x1f0] sm:$0xff]
    %v5977 = vld [vmem:[%s5913 + $0x1f8] sm:$0xff]
    %v5978 = vld [vmem:[%s5913 + $0x200] sm:$0xff]
    %v5979 = vld [vmem:[%s5913 + $0x208] sm:$0xff]
    %v5980 = vld [vmem:[%s5913 + $0x210] sm:$0xff]
    %v5981 = vld [vmem:[%s5913 + $0x218] sm:$0xff]
    %v5982 = vld [vmem:[%s5913 + $0x220] sm:$0xff]
    %v5983 = vld [vmem:[%s5913 + $0x228] sm:$0xff]
    %v5984 = vld [vmem:[%s5913 + $0x230] sm:$0xff]
    %v5985 = vld [vmem:[%s5913 + $0x238] sm:$0xff]
    %v5986 = vld [vmem:[%s5913 + $0x240] sm:$0xff]
    %v5987 = vld [vmem:[%s5913 + $0x248] sm:$0xff]
    %v5988 = vld [vmem:[%s5913 + $0x250] sm:$0xff]
    %v5989 = vld [vmem:[%s5913 + $0x258] sm:$0xff]
    %v5990 = vld [vmem:[%s5913 + $0x260] sm:$0xff]
    %v5991 = vld [vmem:[%s5913 + $0x268] sm:$0xff]
    %v5992 = vld [vmem:[%s5913 + $0x270] sm:$0xff]
    %v5993 = vld [vmem:[%s5913 + $0x278] sm:$0xff]
    %v5994 = vld [vmem:[%s5913 + $0x280] sm:$0xff]
    %v5995 = vld [vmem:[%s5913 + $0x288] sm:$0xff]
    %v5996 = vld [vmem:[%s5913 + $0x290] sm:$0xff]
    %v5997 = vld [vmem:[%s5913 + $0x298] sm:$0xff]
    %v5998 = vld [vmem:[%s5913 + $0x2a0] sm:$0xff]
    %v5999 = vld [vmem:[%s5913 + $0x2a8] sm:$0xff]
    %v6000 = vld [vmem:[%s5913 + $0x2b0] sm:$0xff]
    %v6001 = vld [vmem:[%s5913 + $0x2b8] sm:$0xff]
    %v6002 = vld [vmem:[%s5913 + $0x2c0] sm:$0xff]
    %v6003 = vld [vmem:[%s5913 + $0x2c8] sm:$0xff]
    %v6004 = vld [vmem:[%s5913 + $0x2d0] sm:$0xff]
    %v6005 = vld [vmem:[%s5913 + $0x2d8] sm:$0xff]
    %v6006 = vld [vmem:[%s5913 + $0x2e0] sm:$0xff]
    %v6007 = vld [vmem:[%s5913 + $0x2e8] sm:$0xff]
    %v6008 = vld [vmem:[%s5913 + $0x2f0] sm:$0xff]
    %v6009 = vld [vmem:[%s5913 + $0x2f8] sm:$0xff]
    %v6010 = vld [vmem:[%s5913 + $0x300] sm:$0xff]
    %v6011 = vld [vmem:[%s5913 + $0x308] sm:$0xff]
    %v6012 = vld [vmem:[%s5913 + $0x310] sm:$0xff]
    %v6013 = vld [vmem:[%s5913 + $0x318] sm:$0xff]
    %v6014 = vld [vmem:[%s5913 + $0x320] sm:$0xff]
    %v6015 = vld [vmem:[%s5913 + $0x328] sm:$0xff]
    %v6016 = vld [vmem:[%s5913 + $0x330] sm:$0xff]
    %v6017 = vld [vmem:[%s5913 + $0x338] sm:$0xff]
    %v6018 = vld [vmem:[%s5913 + $0x340] sm:$0xff]
    %v6019 = vld [vmem:[%s5913 + $0x348] sm:$0xff]
    %v6020 = vld [vmem:[%s5913 + $0x350] sm:$0xff]
    %v6021 = vld [vmem:[%s5913 + $0x358] sm:$0xff]
    %v6022 = vld [vmem:[%s5913 + $0x360] sm:$0xff]
    %v6023 = vld [vmem:[%s5913 + $0x368] sm:$0xff]
    %v6024 = vld [vmem:[%s5913 + $0x370] sm:$0xff]
    %v6025 = vld [vmem:[%s5913 + $0x378] sm:$0xff]
    %v6026 = vld [vmem:[%s5913 + $0x380] sm:$0xff]
    %v6027 = vld [vmem:[%s5913 + $0x388] sm:$0xff]
    %v6028 = vld [vmem:[%s5913 + $0x390] sm:$0xff]
    %v6029 = vld [vmem:[%s5913 + $0x398] sm:$0xff]
    %v6030 = vld [vmem:[%s5913 + $0x3a0] sm:$0xff]
    %v6031 = vld [vmem:[%s5913 + $0x3a8] sm:$0xff]
    %v6032 = vld [vmem:[%s5913 + $0x3b0] sm:$0xff]
    %v6033 = vld [vmem:[%s5913 + $0x3b8] sm:$0xff]
    %v6034 = vld [vmem:[%s5913 + $0x3c0] sm:$0xff]
    %v6035 = vld [vmem:[%s5913 + $0x3c8] sm:$0xff]
    %v6036 = vld [vmem:[%s5913 + $0x3d0] sm:$0xff]
    %v6037 = vld [vmem:[%s5913 + $0x3d8] sm:$0xff]
    %v6038 = vld [vmem:[%s5913 + $0x3e0] sm:$0xff]
    %v6039 = vld [vmem:[%s5913 + $0x3e8] sm:$0xff]
    %v6040 = vld [vmem:[%s5913 + $0x3f0] sm:$0xff]
    %v6041 = vld [vmem:[%s5913 + $0x3f8] sm:$0xff]
    %6042 = vmatprep.subr.mxu0 0.0
    %6043 = vmatpush1.msra.mxu0 %v5929
    %6044 = vmatprep.subr.mxu0 0.0
    %6045 = vmatpush1.msra.mxu0 %v5928
    %6046 = vmatprep.subr.mxu0 0.0
    %6047 = vmatpush1.msra.mxu0 %v5927
    %6048 = vmatprep.subr.mxu0 0.0
    %6049 = vmatpush1.msra.mxu0 %v5926
    %6050 = vmatprep.subr.mxu0 0.0
    %6051 = vmatpush1.msra.mxu0 %v5925
    %6052 = vmatprep.subr.mxu0 0.0
    %6053 = vmatpush1.msra.mxu0 %v5924
    %6054 = vmatprep.subr.mxu0 0.0
    %6055 = vmatpush1.msra.mxu0 %v5923
    %6056 = vmatprep.subr.mxu0 0.0
    %6057 = vmatpush1.msra.mxu0 %v5922
    %6058 = vmatprep.subr.mxu0 0.0
    %6059 = vmatpush1.msra.mxu0 %v5921
    %6060 = vmatprep.subr.mxu0 0.0
    %6061 = vmatpush1.msra.mxu0 %v5920
    %6062 = vmatprep.subr.mxu0 0.0
    %6063 = vmatpush1.msra.mxu0 %v5919
    %6064 = vmatprep.subr.mxu0 0.0
    %6065 = vmatpush1.msra.mxu0 %v5918
    %6066 = vmatprep.subr.mxu0 0.0
    %6067 = vmatpush1.msra.mxu0 %v5917
    %6068 = vmatprep.subr.mxu0 0.0
    %6069 = vmatpush1.msra.mxu0 %v5916
    %6070 = vmatprep.subr.mxu0 0.0
    %6071 = vmatpush1.msra.mxu0 %v5915
    %6072 = vmatprep.subr.mxu0 0.0
    %6073 = vmatpush1.msra.mxu0 %v5914
    %6074 = vmatprep.subr.mxu0 0.0
    %6075 = vmatpush2.msra.mxu0 %v5945
    %6076 = vmatprep.subr.mxu0 0.0
    %6077 = vmatpush2.msra.mxu0 %v5944
    %6078 = vmatprep.subr.mxu0 0.0
    %6079 = vmatpush2.msra.mxu0 %v5943
    %6080 = vmatprep.subr.mxu0 0.0
    %6081 = vmatpush2.msra.mxu0 %v5942
    %6082 = vmatprep.subr.mxu0 0.0
    %6083 = vmatpush2.msra.mxu0 %v5941
    %6084 = vmatprep.subr.mxu0 0.0
    %6085 = vmatpush2.msra.mxu0 %v5940
    %6086 = vmatprep.subr.mxu0 0.0
    %6087 = vmatpush2.msra.mxu0 %v5939
    %6088 = vmatprep.subr.mxu0 0.0
    %6089 = vmatpush2.msra.mxu0 %v5938
    %6090 = vmatprep.subr.mxu0 0.0
    %6091 = vmatpush2.msra.mxu0 %v5937
    %6092 = vmatprep.subr.mxu0 0.0
    %6093 = vmatpush2.msra.mxu0 %v5936
    %6094 = vmatprep.subr.mxu0 0.0
    %6095 = vmatpush2.msra.mxu0 %v5935
    %6096 = vmatprep.subr.mxu0 0.0
    %6097 = vmatpush2.msra.mxu0 %v5934
    %6098 = vmatprep.subr.mxu0 0.0
    %6099 = vmatpush2.msra.mxu0 %v5933
    %6100 = vmatprep.subr.mxu0 0.0
    %6101 = vmatpush2.msra.mxu0 %v5932
    %6102 = vmatprep.subr.mxu0 0.0
    %6103 = vmatpush2.msra.mxu0 %v5931
    %6104 = vmatprep.subr.mxu0 0.0
    %6105 = vmatpush2.msra.mxu0 %v5930
    %6106 = vmatprep.mubr.f32.mxu0 %v4122
    %6107 = vmatmul.mubr.f32.gmra.mxu0 %v4121
    %v6108 = vpop.f32.mrf.mxu0
    %v6109 = vadd.f32 0.0, %v6108
    %v6110 = vpop.f32.mrf.mxu0
    %6111 = vdwg.mxu0
    %6112 = vmatprep.subr.mxu0 0.0
    %6113 = vmatpush1.msra.mxu0 %v5961
    %6114 = vmatprep.subr.mxu0 0.0
    %6115 = vmatpush1.msra.mxu0 %v5960
    %6116 = vmatprep.subr.mxu0 0.0
    %6117 = vmatpush1.msra.mxu0 %v5959
    %6118 = vmatprep.subr.mxu0 0.0
    %6119 = vmatpush1.msra.mxu0 %v5958
    %6120 = vmatprep.subr.mxu0 0.0
    %6121 = vmatpush1.msra.mxu0 %v5957
    %6122 = vmatprep.subr.mxu0 0.0
    %6123 = vmatpush1.msra.mxu0 %v5956
    %6124 = vmatprep.subr.mxu0 0.0
    %6125 = vmatpush1.msra.mxu0 %v5955
    %6126 = vmatprep.subr.mxu0 0.0
    %6127 = vmatpush1.msra.mxu0 %v5954
    %6128 = vmatprep.subr.mxu0 0.0
    %6129 = vmatpush1.msra.mxu0 %v5953
    %6130 = vmatprep.subr.mxu0 0.0
    %6131 = vmatpush1.msra.mxu0 %v5952
    %6132 = vmatprep.subr.mxu0 0.0
    %6133 = vmatpush1.msra.mxu0 %v5951
    %6134 = vmatprep.subr.mxu0 0.0
    %6135 = vmatpush1.msra.mxu0 %v5950
    %6136 = vmatprep.subr.mxu0 0.0
    %6137 = vmatpush1.msra.mxu0 %v5949
    %6138 = vmatprep.subr.mxu0 0.0
    %6139 = vmatpush1.msra.mxu0 %v5948
    %6140 = vmatprep.subr.mxu0 0.0
    %6141 = vmatpush1.msra.mxu0 %v5947
    %6142 = vmatprep.subr.mxu0 0.0
    %6143 = vmatpush1.msra.mxu0 %v5946
    %6144 = vmatprep.subr.mxu0 0.0
    %6145 = vmatpush2.msra.mxu0 %v5977
    %6146 = vmatprep.subr.mxu0 0.0
    %6147 = vmatpush2.msra.mxu0 %v5976
    %6148 = vmatprep.subr.mxu0 0.0
    %6149 = vmatpush2.msra.mxu0 %v5975
    %6150 = vmatprep.subr.mxu0 0.0
    %6151 = vmatpush2.msra.mxu0 %v5974
    %6152 = vmatprep.subr.mxu0 0.0
    %6153 = vmatpush2.msra.mxu0 %v5973
    %6154 = vmatprep.subr.mxu0 0.0
    %6155 = vmatpush2.msra.mxu0 %v5972
    %6156 = vmatprep.subr.mxu0 0.0
    %6157 = vmatpush2.msra.mxu0 %v5971
    %6158 = vmatprep.subr.mxu0 0.0
    %6159 = vmatpush2.msra.mxu0 %v5970
    %6160 = vmatprep.subr.mxu0 0.0
    %6161 = vmatpush2.msra.mxu0 %v5969
    %6162 = vmatprep.subr.mxu0 0.0
    %6163 = vmatpush2.msra.mxu0 %v5968
    %6164 = vmatprep.subr.mxu0 0.0
    %6165 = vmatpush2.msra.mxu0 %v5967
    %6166 = vmatprep.subr.mxu0 0.0
    %6167 = vmatpush2.msra.mxu0 %v5966
    %6168 = vmatprep.subr.mxu0 0.0
    %6169 = vmatpush2.msra.mxu0 %v5965
    %6170 = vmatprep.subr.mxu0 0.0
    %6171 = vmatpush2.msra.mxu0 %v5964
    %6172 = vmatprep.subr.mxu0 0.0
    %6173 = vmatpush2.msra.mxu0 %v5963
    %6174 = vmatprep.subr.mxu0 0.0
    %6175 = vmatpush2.msra.mxu0 %v5962
    %6176 = vmatprep.mubr.f32.mxu0 %v4124
    %6177 = vmatmul.mubr.f32.gmra.mxu0 %v4123
    %v6178 = vpop.f32.mrf.mxu0
    %v6179 = vadd.f32 %v6109, %v6178
    %v6180 = vpop.f32.mrf.mxu0
    %6181 = vdwg.mxu0
    %6182 = vmatprep.subr.mxu0 0.0
    %6183 = vmatpush1.msra.mxu0 %v5993
    %6184 = vmatprep.subr.mxu0 0.0
    %6185 = vmatpush1.msra.mxu0 %v5992
    %6186 = vmatprep.subr.mxu0 0.0
    %6187 = vmatpush1.msra.mxu0 %v5991
    %6188 = vmatprep.subr.mxu0 0.0
    %6189 = vmatpush1.msra.mxu0 %v5990
    %6190 = vmatprep.subr.mxu0 0.0
    %6191 = vmatpush1.msra.mxu0 %v5989
    %6192 = vmatprep.subr.mxu0 0.0
    %6193 = vmatpush1.msra.mxu0 %v5988
    %6194 = vmatprep.subr.mxu0 0.0
    %6195 = vmatpush1.msra.mxu0 %v5987
    %6196 = vmatprep.subr.mxu0 0.0
    %6197 = vmatpush1.msra.mxu0 %v5986
    %6198 = vmatprep.subr.mxu0 0.0
    %6199 = vmatpush1.msra.mxu0 %v5985
    %6200 = vmatprep.subr.mxu0 0.0
    %6201 = vmatpush1.msra.mxu0 %v5984
    %6202 = vmatprep.subr.mxu0 0.0
    %6203 = vmatpush1.msra.mxu0 %v5983
    %6204 = vmatprep.subr.mxu0 0.0
    %6205 = vmatpush1.msra.mxu0 %v5982
    %6206 = vmatprep.subr.mxu0 0.0
    %6207 = vmatpush1.msra.mxu0 %v5981
    %6208 = vmatprep.subr.mxu0 0.0
    %6209 = vmatpush1.msra.mxu0 %v5980
    %6210 = vmatprep.subr.mxu0 0.0
    %6211 = vmatpush1.msra.mxu0 %v5979
    %6212 = vmatprep.subr.mxu0 0.0
    %6213 = vmatpush1.msra.mxu0 %v5978
    %6214 = vmatprep.subr.mxu0 0.0
    %6215 = vmatpush2.msra.mxu0 %v6009
    %6216 = vmatprep.subr.mxu0 0.0
    %6217 = vmatpush2.msra.mxu0 %v6008
    %6218 = vmatprep.subr.mxu0 0.0
    %6219 = vmatpush2.msra.mxu0 %v6007
    %6220 = vmatprep.subr.mxu0 0.0
    %6221 = vmatpush2.msra.mxu0 %v6006
    %6222 = vmatprep.subr.mxu0 0.0
    %6223 = vmatpush2.msra.mxu0 %v6005
    %6224 = vmatprep.subr.mxu0 0.0
    %6225 = vmatpush2.msra.mxu0 %v6004
    %6226 = vmatprep.subr.mxu0 0.0
    %6227 = vmatpush2.msra.mxu0 %v6003
    %6228 = vmatprep.subr.mxu0 0.0
    %6229 = vmatpush2.msra.mxu0 %v6002
    %6230 = vmatprep.subr.mxu0 0.0
    %6231 = vmatpush2.msra.mxu0 %v6001
    %6232 = vmatprep.subr.mxu0 0.0
    %6233 = vmatpush2.msra.mxu0 %v6000
    %6234 = vmatprep.subr.mxu0 0.0
    %6235 = vmatpush2.msra.mxu0 %v5999
    %6236 = vmatprep.subr.mxu0 0.0
    %6237 = vmatpush2.msra.mxu0 %v5998
    %6238 = vmatprep.subr.mxu0 0.0
    %6239 = vmatpush2.msra.mxu0 %v5997
    %6240 = vmatprep.subr.mxu0 0.0
    %6241 = vmatpush2.msra.mxu0 %v5996
    %6242 = vmatprep.subr.mxu0 0.0
    %6243 = vmatpush2.msra.mxu0 %v5995
    %6244 = vmatprep.subr.mxu0 0.0
    %6245 = vmatpush2.msra.mxu0 %v5994
    %6246 = vmatprep.mubr.f32.mxu0 %v4126
    %6247 = vmatmul.mubr.f32.gmra.mxu0 %v4125
    %v6248 = vpop.f32.mrf.mxu0
    %v6249 = vadd.f32 %v6179, %v6248
    %v6250 = vpop.f32.mrf.mxu0
    %6251 = vdwg.mxu0
    %6252 = vmatprep.subr.mxu0 0.0
    %6253 = vmatpush1.msra.mxu0 %v6025
    %6254 = vmatprep.subr.mxu0 0.0
    %6255 = vmatpush1.msra.mxu0 %v6024
    %6256 = vmatprep.subr.mxu0 0.0
    %6257 = vmatpush1.msra.mxu0 %v6023
    %6258 = vmatprep.subr.mxu0 0.0
    %6259 = vmatpush1.msra.mxu0 %v6022
    %6260 = vmatprep.subr.mxu0 0.0
    %6261 = vmatpush1.msra.mxu0 %v6021
    %6262 = vmatprep.subr.mxu0 0.0
    %6263 = vmatpush1.msra.mxu0 %v6020
    %6264 = vmatprep.subr.mxu0 0.0
    %6265 = vmatpush1.msra.mxu0 %v6019
    %6266 = vmatprep.subr.mxu0 0.0
    %6267 = vmatpush1.msra.mxu0 %v6018
    %6268 = vmatprep.subr.mxu0 0.0
    %6269 = vmatpush1.msra.mxu0 %v6017
    %6270 = vmatprep.subr.mxu0 0.0
    %6271 = vmatpush1.msra.mxu0 %v6016
    %6272 = vmatprep.subr.mxu0 0.0
    %6273 = vmatpush1.msra.mxu0 %v6015
    %6274 = vmatprep.subr.mxu0 0.0
    %6275 = vmatpush1.msra.mxu0 %v6014
    %6276 = vmatprep.subr.mxu0 0.0
    %6277 = vmatpush1.msra.mxu0 %v6013
    %6278 = vmatprep.subr.mxu0 0.0
    %6279 = vmatpush1.msra.mxu0 %v6012
    %6280 = vmatprep.subr.mxu0 0.0
    %6281 = vmatpush1.msra.mxu0 %v6011
    %6282 = vmatprep.subr.mxu0 0.0
    %6283 = vmatpush1.msra.mxu0 %v6010
    %6284 = vmatprep.subr.mxu0 0.0
    %6285 = vmatpush2.msra.mxu0 %v6041
    %6286 = vmatprep.subr.mxu0 0.0
    %6287 = vmatpush2.msra.mxu0 %v6040
    %6288 = vmatprep.subr.mxu0 0.0
    %6289 = vmatpush2.msra.mxu0 %v6039
    %6290 = vmatprep.subr.mxu0 0.0
    %6291 = vmatpush2.msra.mxu0 %v6038
    %6292 = vmatprep.subr.mxu0 0.0
    %6293 = vmatpush2.msra.mxu0 %v6037
    %6294 = vmatprep.subr.mxu0 0.0
    %6295 = vmatpush2.msra.mxu0 %v6036
    %6296 = vmatprep.subr.mxu0 0.0
    %6297 = vmatpush2.msra.mxu0 %v6035
    %6298 = vmatprep.subr.mxu0 0.0
    %6299 = vmatpush2.msra.mxu0 %v6034
    %6300 = vmatprep.subr.mxu0 0.0
    %6301 = vmatpush2.msra.mxu0 %v6033
    %6302 = vmatprep.subr.mxu0 0.0
    %6303 = vmatpush2.msra.mxu0 %v6032
    %6304 = vmatprep.subr.mxu0 0.0
    %6305 = vmatpush2.msra.mxu0 %v6031
    %6306 = vmatprep.subr.mxu0 0.0
    %6307 = vmatpush2.msra.mxu0 %v6030
    %6308 = vmatprep.subr.mxu0 0.0
    %6309 = vmatpush2.msra.mxu0 %v6029
    %6310 = vmatprep.subr.mxu0 0.0
    %6311 = vmatpush2.msra.mxu0 %v6028
    %6312 = vmatprep.subr.mxu0 0.0
    %6313 = vmatpush2.msra.mxu0 %v6027
    %6314 = vmatprep.subr.mxu0 0.0
    %6315 = vmatpush2.msra.mxu0 %v6026
    %6316 = vmatprep.mubr.f32.mxu0 %v4128
    %6317 = vmatmul.mubr.f32.gmra.mxu0 %v4127
    %v6318 = vpop.f32.mrf.mxu0
    %v6319 = vadd.f32 %v6249, %v6318
    %v6320 = vpop.f32.mrf.mxu0
    %6321 = vdwg.mxu0
    %6322 = vmatprep.subr.mxu0 0.0
    %6323 = vmatpush1.msra.mxu0 %v5800
    %6324 = vmatprep.subr.mxu0 0.0
    %6325 = vmatpush1.msra.mxu0 %v5799
    %6326 = vmatprep.subr.mxu0 0.0
    %6327 = vmatpush1.msra.mxu0 %v5798
    %6328 = vmatprep.subr.mxu0 0.0
    %6329 = vmatpush1.msra.mxu0 %v5797
    %6330 = vmatprep.subr.mxu0 0.0
    %6331 = vmatpush1.msra.mxu0 %v5796
    %6332 = vmatprep.subr.mxu0 0.0
    %6333 = vmatpush1.msra.mxu0 %v5795
    %6334 = vmatprep.subr.mxu0 0.0
    %6335 = vmatpush1.msra.mxu0 %v5794
    %6336 = vmatprep.subr.mxu0 0.0
    %6337 = vmatpush1.msra.mxu0 %v5793
    %6338 = vmatprep.subr.mxu0 0.0
    %6339 = vmatpush1.msra.mxu0 %v5792
    %6340 = vmatprep.subr.mxu0 0.0
    %6341 = vmatpush1.msra.mxu0 %v5791
    %6342 = vmatprep.subr.mxu0 0.0
    %6343 = vmatpush1.msra.mxu0 %v5790
    %6344 = vmatprep.subr.mxu0 0.0
    %6345 = vmatpush1.msra.mxu0 %v5789
    %6346 = vmatprep.subr.mxu0 0.0
    %6347 = vmatpush1.msra.mxu0 %v5788
    %6348 = vmatprep.subr.mxu0 0.0
    %6349 = vmatpush1.msra.mxu0 %v5787
    %6350 = vmatprep.subr.mxu0 0.0
    %6351 = vmatpush1.msra.mxu0 %v5786
    %6352 = vmatprep.subr.mxu0 0.0
    %6353 = vmatpush1.msra.mxu0 %v5785
    %6354 = vmatprep.subr.mxu0 0.0
    %6355 = vmatpush2.msra.mxu0 %v5816
    %6356 = vmatprep.subr.mxu0 0.0
    %6357 = vmatpush2.msra.mxu0 %v5815
    %6358 = vmatprep.subr.mxu0 0.0
    %6359 = vmatpush2.msra.mxu0 %v5814
    %6360 = vmatprep.subr.mxu0 0.0
    %6361 = vmatpush2.msra.mxu0 %v5813
    %6362 = vmatprep.subr.mxu0 0.0
    %6363 = vmatpush2.msra.mxu0 %v5812
    %6364 = vmatprep.subr.mxu0 0.0
    %6365 = vmatpush2.msra.mxu0 %v5811
    %6366 = vmatprep.subr.mxu0 0.0
    %6367 = vmatpush2.msra.mxu0 %v5810
    %6368 = vmatprep.subr.mxu0 0.0
    %6369 = vmatpush2.msra.mxu0 %v5809
    %6370 = vmatprep.subr.mxu0 0.0
    %6371 = vmatpush2.msra.mxu0 %v5808
    %6372 = vmatprep.subr.mxu0 0.0
    %6373 = vmatpush2.msra.mxu0 %v5807
    %6374 = vmatprep.subr.mxu0 0.0
    %6375 = vmatpush2.msra.mxu0 %v5806
    %6376 = vmatprep.subr.mxu0 0.0
    %6377 = vmatpush2.msra.mxu0 %v5805
    %6378 = vmatprep.subr.mxu0 0.0
    %6379 = vmatpush2.msra.mxu0 %v5804
    %6380 = vmatprep.subr.mxu0 0.0
    %6381 = vmatpush2.msra.mxu0 %v5803
    %6382 = vmatprep.subr.mxu0 0.0
    %6383 = vmatpush2.msra.mxu0 %v5802
    %6384 = vmatprep.subr.mxu0 0.0
    %6385 = vmatpush2.msra.mxu0 %v5801
    %6386 = vmatprep.mubr.f32.mxu0 %v3674
    %6387 = vmatmul.mubr.f32.gmra.mxu0 %v3673
    %v6388 = vpop.f32.mrf.mxu0
    %v6389 = vadd.f32 %v6319, %v6388
    %v6390 = vpop.f32.mrf.mxu0
    %6391 = vdwg.mxu0
    %6392 = vmatprep.subr.mxu0 0.0
    %6393 = vmatpush1.msra.mxu0 %v5832
    %6394 = vmatprep.subr.mxu0 0.0
    %6395 = vmatpush1.msra.mxu0 %v5831
    %6396 = vmatprep.subr.mxu0 0.0
    %6397 = vmatpush1.msra.mxu0 %v5830
    %6398 = vmatprep.subr.mxu0 0.0
    %6399 = vmatpush1.msra.mxu0 %v5829
    %6400 = vmatprep.subr.mxu0 0.0
    %6401 = vmatpush1.msra.mxu0 %v5828
    %6402 = vmatprep.subr.mxu0 0.0
    %6403 = vmatpush1.msra.mxu0 %v5827
    %6404 = vmatprep.subr.mxu0 0.0
    %6405 = vmatpush1.msra.mxu0 %v5826
    %6406 = vmatprep.subr.mxu0 0.0
    %6407 = vmatpush1.msra.mxu0 %v5825
    %6408 = vmatprep.subr.mxu0 0.0
    %6409 = vmatpush1.msra.mxu0 %v5824
    %6410 = vmatprep.subr.mxu0 0.0
    %6411 = vmatpush1.msra.mxu0 %v5823
    %6412 = vmatprep.subr.mxu0 0.0
    %6413 = vmatpush1.msra.mxu0 %v5822
    %6414 = vmatprep.subr.mxu0 0.0
    %6415 = vmatpush1.msra.mxu0 %v5821
    %6416 = vmatprep.subr.mxu0 0.0
    %6417 = vmatpush1.msra.mxu0 %v5820
    %6418 = vmatprep.subr.mxu0 0.0
    %6419 = vmatpush1.msra.mxu0 %v5819
    %6420 = vmatprep.subr.mxu0 0.0
    %6421 = vmatpush1.msra.mxu0 %v5818
    %6422 = vmatprep.subr.mxu0 0.0
    %6423 = vmatpush1.msra.mxu0 %v5817
    %6424 = vmatprep.subr.mxu0 0.0
    %6425 = vmatpush2.msra.mxu0 %v5848
    %6426 = vmatprep.subr.mxu0 0.0
    %6427 = vmatpush2.msra.mxu0 %v5847
    %6428 = vmatprep.subr.mxu0 0.0
    %6429 = vmatpush2.msra.mxu0 %v5846
    %6430 = vmatprep.subr.mxu0 0.0
    %6431 = vmatpush2.msra.mxu0 %v5845
    %6432 = vmatprep.subr.mxu0 0.0
    %6433 = vmatpush2.msra.mxu0 %v5844
    %6434 = vmatprep.subr.mxu0 0.0
    %6435 = vmatpush2.msra.mxu0 %v5843
    %6436 = vmatprep.subr.mxu0 0.0
    %6437 = vmatpush2.msra.mxu0 %v5842
    %6438 = vmatprep.subr.mxu0 0.0
    %6439 = vmatpush2.msra.mxu0 %v5841
    %6440 = vmatprep.subr.mxu0 0.0
    %6441 = vmatpush2.msra.mxu0 %v5840
    %6442 = vmatprep.subr.mxu0 0.0
    %6443 = vmatpush2.msra.mxu0 %v5839
    %6444 = vmatprep.subr.mxu0 0.0
    %6445 = vmatpush2.msra.mxu0 %v5838
    %6446 = vmatprep.subr.mxu0 0.0
    %6447 = vmatpush2.msra.mxu0 %v5837
    %6448 = vmatprep.subr.mxu0 0.0
    %6449 = vmatpush2.msra.mxu0 %v5836
    %6450 = vmatprep.subr.mxu0 0.0
    %6451 = vmatpush2.msra.mxu0 %v5835
    %6452 = vmatprep.subr.mxu0 0.0
    %6453 = vmatpush2.msra.mxu0 %v5834
    %6454 = vmatprep.subr.mxu0 0.0
    %6455 = vmatpush2.msra.mxu0 %v5833
    %6456 = vmatprep.mubr.f32.mxu0 %v3676
    %6457 = vmatmul.mubr.f32.gmra.mxu0 %v3675
    %v6458 = vpop.f32.mrf.mxu0
    %v6459 = vadd.f32 %v6389, %v6458
    %v6460 = vpop.f32.mrf.mxu0
    %6461 = vdwg.mxu0
    %6462 = vmatprep.subr.mxu0 0.0
    %6463 = vmatpush1.msra.mxu0 %v5864
    %6464 = vmatprep.subr.mxu0 0.0
    %6465 = vmatpush1.msra.mxu0 %v5863
    %6466 = vmatprep.subr.mxu0 0.0
    %6467 = vmatpush1.msra.mxu0 %v5862
    %6468 = vmatprep.subr.mxu0 0.0
    %6469 = vmatpush1.msra.mxu0 %v5861
    %6470 = vmatprep.subr.mxu0 0.0
    %6471 = vmatpush1.msra.mxu0 %v5860
    %6472 = vmatprep.subr.mxu0 0.0
    %6473 = vmatpush1.msra.mxu0 %v5859
    %6474 = vmatprep.subr.mxu0 0.0
    %6475 = vmatpush1.msra.mxu0 %v5858
    %6476 = vmatprep.subr.mxu0 0.0
    %6477 = vmatpush1.msra.mxu0 %v5857
    %6478 = vmatprep.subr.mxu0 0.0
    %6479 = vmatpush1.msra.mxu0 %v5856
    %6480 = vmatprep.subr.mxu0 0.0
    %6481 = vmatpush1.msra.mxu0 %v5855
    %6482 = vmatprep.subr.mxu0 0.0
    %6483 = vmatpush1.msra.mxu0 %v5854
    %6484 = vmatprep.subr.mxu0 0.0
    %6485 = vmatpush1.msra.mxu0 %v5853
    %6486 = vmatprep.subr.mxu0 0.0
    %6487 = vmatpush1.msra.mxu0 %v5852
    %6488 = vmatprep.subr.mxu0 0.0
    %6489 = vmatpush1.msra.mxu0 %v5851
    %6490 = vmatprep.subr.mxu0 0.0
    %6491 = vmatpush1.msra.mxu0 %v5850
    %6492 = vmatprep.subr.mxu0 0.0
    %6493 = vmatpush1.msra.mxu0 %v5849
    %6494 = vmatprep.subr.mxu0 0.0
    %6495 = vmatpush2.msra.mxu0 %v5880
    %6496 = vmatprep.subr.mxu0 0.0
    %6497 = vmatpush2.msra.mxu0 %v5879
    %6498 = vmatprep.subr.mxu0 0.0
    %6499 = vmatpush2.msra.mxu0 %v5878
    %6500 = vmatprep.subr.mxu0 0.0
    %6501 = vmatpush2.msra.mxu0 %v5877
    %6502 = vmatprep.subr.mxu0 0.0
    %6503 = vmatpush2.msra.mxu0 %v5876
    %6504 = vmatprep.subr.mxu0 0.0
    %6505 = vmatpush2.msra.mxu0 %v5875
    %6506 = vmatprep.subr.mxu0 0.0
    %6507 = vmatpush2.msra.mxu0 %v5874
    %6508 = vmatprep.subr.mxu0 0.0
    %6509 = vmatpush2.msra.mxu0 %v5873
    %6510 = vmatprep.subr.mxu0 0.0
    %6511 = vmatpush2.msra.mxu0 %v5872
    %6512 = vmatprep.subr.mxu0 0.0
    %6513 = vmatpush2.msra.mxu0 %v5871
    %6514 = vmatprep.subr.mxu0 0.0
    %6515 = vmatpush2.msra.mxu0 %v5870
    %6516 = vmatprep.subr.mxu0 0.0
    %6517 = vmatpush2.msra.mxu0 %v5869
    %6518 = vmatprep.subr.mxu0 0.0
    %6519 = vmatpush2.msra.mxu0 %v5868
    %6520 = vmatprep.subr.mxu0 0.0
    %6521 = vmatpush2.msra.mxu0 %v5867
    %6522 = vmatprep.subr.mxu0 0.0
    %6523 = vmatpush2.msra.mxu0 %v5866
    %6524 = vmatprep.subr.mxu0 0.0
    %6525 = vmatpush2.msra.mxu0 %v5865
    %6526 = vmatprep.mubr.f32.mxu0 %v3678
    %6527 = vmatmul.mubr.f32.gmra.mxu0 %v3677
    %v6528 = vpop.f32.mrf.mxu0
    %v6529 = vadd.f32 %v6459, %v6528
    %v6530 = vpop.f32.mrf.mxu0
    %6531 = vdwg.mxu0
    %6532 = vmatprep.subr.mxu0 0.0
    %6533 = vmatpush1.msra.mxu0 %v5896
    %6534 = vmatprep.subr.mxu0 0.0
    %6535 = vmatpush1.msra.mxu0 %v5895
    %6536 = vmatprep.subr.mxu0 0.0
    %6537 = vmatpush1.msra.mxu0 %v5894
    %6538 = vmatprep.subr.mxu0 0.0
    %6539 = vmatpush1.msra.mxu0 %v5893
    %6540 = vmatprep.subr.mxu0 0.0
    %6541 = vmatpush1.msra.mxu0 %v5892
    %6542 = vmatprep.subr.mxu0 0.0
    %6543 = vmatpush1.msra.mxu0 %v5891
    %6544 = vmatprep.subr.mxu0 0.0
    %6545 = vmatpush1.msra.mxu0 %v5890
    %6546 = vmatprep.subr.mxu0 0.0
    %6547 = vmatpush1.msra.mxu0 %v5889
    %6548 = vmatprep.subr.mxu0 0.0
    %6549 = vmatpush1.msra.mxu0 %v5888
    %6550 = vmatprep.subr.mxu0 0.0
    %6551 = vmatpush1.msra.mxu0 %v5887
    %6552 = vmatprep.subr.mxu0 0.0
    %6553 = vmatpush1.msra.mxu0 %v5886
    %6554 = vmatprep.subr.mxu0 0.0
    %6555 = vmatpush1.msra.mxu0 %v5885
    %6556 = vmatprep.subr.mxu0 0.0
    %6557 = vmatpush1.msra.mxu0 %v5884
    %6558 = vmatprep.subr.mxu0 0.0
    %6559 = vmatpush1.msra.mxu0 %v5883
    %6560 = vmatprep.subr.mxu0 0.0
    %6561 = vmatpush1.msra.mxu0 %v5882
    %6562 = vmatprep.subr.mxu0 0.0
    %6563 = vmatpush1.msra.mxu0 %v5881
    %6564 = vmatprep.subr.mxu0 0.0
    %6565 = vmatpush2.msra.mxu0 %v5912
    %6566 = vmatprep.subr.mxu0 0.0
    %6567 = vmatpush2.msra.mxu0 %v5911
    %6568 = vmatprep.subr.mxu0 0.0
    %6569 = vmatpush2.msra.mxu0 %v5910
    %6570 = vmatprep.subr.mxu0 0.0
    %6571 = vmatpush2.msra.mxu0 %v5909
    %6572 = vmatprep.subr.mxu0 0.0
    %6573 = vmatpush2.msra.mxu0 %v5908
    %6574 = vmatprep.subr.mxu0 0.0
    %6575 = vmatpush2.msra.mxu0 %v5907
    %6576 = vmatprep.subr.mxu0 0.0
    %6577 = vmatpush2.msra.mxu0 %v5906
    %6578 = vmatprep.subr.mxu0 0.0
    %6579 = vmatpush2.msra.mxu0 %v5905
    %6580 = vmatprep.subr.mxu0 0.0
    %6581 = vmatpush2.msra.mxu0 %v5904
    %6582 = vmatprep.subr.mxu0 0.0
    %6583 = vmatpush2.msra.mxu0 %v5903
    %6584 = vmatprep.subr.mxu0 0.0
    %6585 = vmatpush2.msra.mxu0 %v5902
    %6586 = vmatprep.subr.mxu0 0.0
    %6587 = vmatpush2.msra.mxu0 %v5901
    %6588 = vmatprep.subr.mxu0 0.0
    %6589 = vmatpush2.msra.mxu0 %v5900
    %6590 = vmatprep.subr.mxu0 0.0
    %6591 = vmatpush2.msra.mxu0 %v5899
    %6592 = vmatprep.subr.mxu0 0.0
    %6593 = vmatpush2.msra.mxu0 %v5898
    %6594 = vmatprep.subr.mxu0 0.0
    %6595 = vmatpush2.msra.mxu0 %v5897
    %6596 = vmatprep.mubr.f32.mxu0 %v3680
    %6597 = vmatmul.mubr.f32.gmra.mxu0 %v3679
    %v6598 = vpop.f32.mrf.mxu0
    %v6599 = vadd.f32 %v6529, %v6598
    %v6600 = vpop.f32.mrf.mxu0
    %6601 = vdwg.mxu0
    %s6602 = scalar_lea.vmem %s16, 2
    %v6603 = vld [vmem:[%s6602] sm:$0x1]
    %v6605 = vlaneseq
    %v6606 = vshrl.u32 %v6605, 7
    %v6607 = vsub.s32 0, %v6606
    %v6608 = vrot.slane %v6603, %v6607
    %v6610 = vadd.f32 %v6599, %v6608
    %v6611 = vmul.f32 %v2763, %v6610
    %v6612 = vadd.f32 %v5783, %v6611
    %s6613 = scalar_lea.vmem %s14, 3072
    %v6614 = vld [vmem:[%s6613] sm:$0xff]
    %v6615 = vld [vmem:[%s6613 + $0x8] sm:$0xff]
    %v6616 = vld [vmem:[%s6613 + $0x10] sm:$0xff]
    %v6617 = vld [vmem:[%s6613 + $0x18] sm:$0xff]
    %v6618 = vld [vmem:[%s6613 + $0x20] sm:$0xff]
    %v6619 = vld [vmem:[%s6613 + $0x28] sm:$0xff]
    %v6620 = vld [vmem:[%s6613 + $0x30] sm:$0xff]
    %v6621 = vld [vmem:[%s6613 + $0x38] sm:$0xff]
    %v6622 = vld [vmem:[%s6613 + $0x40] sm:$0xff]
    %v6623 = vld [vmem:[%s6613 + $0x48] sm:$0xff]
    %v6624 = vld [vmem:[%s6613 + $0x50] sm:$0xff]
    %v6625 = vld [vmem:[%s6613 + $0x58] sm:$0xff]
    %v6626 = vld [vmem:[%s6613 + $0x60] sm:$0xff]
    %v6627 = vld [vmem:[%s6613 + $0x68] sm:$0xff]
    %v6628 = vld [vmem:[%s6613 + $0x70] sm:$0xff]
    %v6629 = vld [vmem:[%s6613 + $0x78] sm:$0xff]
    %v6630 = vld [vmem:[%s6613 + $0x80] sm:$0xff]
    %v6631 = vld [vmem:[%s6613 + $0x88] sm:$0xff]
    %v6632 = vld [vmem:[%s6613 + $0x90] sm:$0xff]
    %v6633 = vld [vmem:[%s6613 + $0x98] sm:$0xff]
    %v6634 = vld [vmem:[%s6613 + $0xa0] sm:$0xff]
    %v6635 = vld [vmem:[%s6613 + $0xa8] sm:$0xff]
    %v6636 = vld [vmem:[%s6613 + $0xb0] sm:$0xff]
    %v6637 = vld [vmem:[%s6613 + $0xb8] sm:$0xff]
    %v6638 = vld [vmem:[%s6613 + $0xc0] sm:$0xff]
    %v6639 = vld [vmem:[%s6613 + $0xc8] sm:$0xff]
    %v6640 = vld [vmem:[%s6613 + $0xd0] sm:$0xff]
    %v6641 = vld [vmem:[%s6613 + $0xd8] sm:$0xff]
    %v6642 = vld [vmem:[%s6613 + $0xe0] sm:$0xff]
    %v6643 = vld [vmem:[%s6613 + $0xe8] sm:$0xff]
    %v6644 = vld [vmem:[%s6613 + $0xf0] sm:$0xff]
    %v6645 = vld [vmem:[%s6613 + $0xf8] sm:$0xff]
    %v6646 = vld [vmem:[%s6613 + $0x100] sm:$0xff]
    %v6647 = vld [vmem:[%s6613 + $0x108] sm:$0xff]
    %v6648 = vld [vmem:[%s6613 + $0x110] sm:$0xff]
    %v6649 = vld [vmem:[%s6613 + $0x118] sm:$0xff]
    %v6650 = vld [vmem:[%s6613 + $0x120] sm:$0xff]
    %v6651 = vld [vmem:[%s6613 + $0x128] sm:$0xff]
    %v6652 = vld [vmem:[%s6613 + $0x130] sm:$0xff]
    %v6653 = vld [vmem:[%s6613 + $0x138] sm:$0xff]
    %v6654 = vld [vmem:[%s6613 + $0x140] sm:$0xff]
    %v6655 = vld [vmem:[%s6613 + $0x148] sm:$0xff]
    %v6656 = vld [vmem:[%s6613 + $0x150] sm:$0xff]
    %v6657 = vld [vmem:[%s6613 + $0x158] sm:$0xff]
    %v6658 = vld [vmem:[%s6613 + $0x160] sm:$0xff]
    %v6659 = vld [vmem:[%s6613 + $0x168] sm:$0xff]
    %v6660 = vld [vmem:[%s6613 + $0x170] sm:$0xff]
    %v6661 = vld [vmem:[%s6613 + $0x178] sm:$0xff]
    %v6662 = vld [vmem:[%s6613 + $0x180] sm:$0xff]
    %v6663 = vld [vmem:[%s6613 + $0x188] sm:$0xff]
    %v6664 = vld [vmem:[%s6613 + $0x190] sm:$0xff]
    %v6665 = vld [vmem:[%s6613 + $0x198] sm:$0xff]
    %v6666 = vld [vmem:[%s6613 + $0x1a0] sm:$0xff]
    %v6667 = vld [vmem:[%s6613 + $0x1a8] sm:$0xff]
    %v6668 = vld [vmem:[%s6613 + $0x1b0] sm:$0xff]
    %v6669 = vld [vmem:[%s6613 + $0x1b8] sm:$0xff]
    %v6670 = vld [vmem:[%s6613 + $0x1c0] sm:$0xff]
    %v6671 = vld [vmem:[%s6613 + $0x1c8] sm:$0xff]
    %v6672 = vld [vmem:[%s6613 + $0x1d0] sm:$0xff]
    %v6673 = vld [vmem:[%s6613 + $0x1d8] sm:$0xff]
    %v6674 = vld [vmem:[%s6613 + $0x1e0] sm:$0xff]
    %v6675 = vld [vmem:[%s6613 + $0x1e8] sm:$0xff]
    %v6676 = vld [vmem:[%s6613 + $0x1f0] sm:$0xff]
    %v6677 = vld [vmem:[%s6613 + $0x1f8] sm:$0xff]
    %v6678 = vld [vmem:[%s6613 + $0x200] sm:$0xff]
    %v6679 = vld [vmem:[%s6613 + $0x208] sm:$0xff]
    %v6680 = vld [vmem:[%s6613 + $0x210] sm:$0xff]
    %v6681 = vld [vmem:[%s6613 + $0x218] sm:$0xff]
    %v6682 = vld [vmem:[%s6613 + $0x220] sm:$0xff]
    %v6683 = vld [vmem:[%s6613 + $0x228] sm:$0xff]
    %v6684 = vld [vmem:[%s6613 + $0x230] sm:$0xff]
    %v6685 = vld [vmem:[%s6613 + $0x238] sm:$0xff]
    %v6686 = vld [vmem:[%s6613 + $0x240] sm:$0xff]
    %v6687 = vld [vmem:[%s6613 + $0x248] sm:$0xff]
    %v6688 = vld [vmem:[%s6613 + $0x250] sm:$0xff]
    %v6689 = vld [vmem:[%s6613 + $0x258] sm:$0xff]
    %v6690 = vld [vmem:[%s6613 + $0x260] sm:$0xff]
    %v6691 = vld [vmem:[%s6613 + $0x268] sm:$0xff]
    %v6692 = vld [vmem:[%s6613 + $0x270] sm:$0xff]
    %v6693 = vld [vmem:[%s6613 + $0x278] sm:$0xff]
    %v6694 = vld [vmem:[%s6613 + $0x280] sm:$0xff]
    %v6695 = vld [vmem:[%s6613 + $0x288] sm:$0xff]
    %v6696 = vld [vmem:[%s6613 + $0x290] sm:$0xff]
    %v6697 = vld [vmem:[%s6613 + $0x298] sm:$0xff]
    %v6698 = vld [vmem:[%s6613 + $0x2a0] sm:$0xff]
    %v6699 = vld [vmem:[%s6613 + $0x2a8] sm:$0xff]
    %v6700 = vld [vmem:[%s6613 + $0x2b0] sm:$0xff]
    %v6701 = vld [vmem:[%s6613 + $0x2b8] sm:$0xff]
    %v6702 = vld [vmem:[%s6613 + $0x2c0] sm:$0xff]
    %v6703 = vld [vmem:[%s6613 + $0x2c8] sm:$0xff]
    %v6704 = vld [vmem:[%s6613 + $0x2d0] sm:$0xff]
    %v6705 = vld [vmem:[%s6613 + $0x2d8] sm:$0xff]
    %v6706 = vld [vmem:[%s6613 + $0x2e0] sm:$0xff]
    %v6707 = vld [vmem:[%s6613 + $0x2e8] sm:$0xff]
    %v6708 = vld [vmem:[%s6613 + $0x2f0] sm:$0xff]
    %v6709 = vld [vmem:[%s6613 + $0x2f8] sm:$0xff]
    %v6710 = vld [vmem:[%s6613 + $0x300] sm:$0xff]
    %v6711 = vld [vmem:[%s6613 + $0x308] sm:$0xff]
    %v6712 = vld [vmem:[%s6613 + $0x310] sm:$0xff]
    %v6713 = vld [vmem:[%s6613 + $0x318] sm:$0xff]
    %v6714 = vld [vmem:[%s6613 + $0x320] sm:$0xff]
    %v6715 = vld [vmem:[%s6613 + $0x328] sm:$0xff]
    %v6716 = vld [vmem:[%s6613 + $0x330] sm:$0xff]
    %v6717 = vld [vmem:[%s6613 + $0x338] sm:$0xff]
    %v6718 = vld [vmem:[%s6613 + $0x340] sm:$0xff]
    %v6719 = vld [vmem:[%s6613 + $0x348] sm:$0xff]
    %v6720 = vld [vmem:[%s6613 + $0x350] sm:$0xff]
    %v6721 = vld [vmem:[%s6613 + $0x358] sm:$0xff]
    %v6722 = vld [vmem:[%s6613 + $0x360] sm:$0xff]
    %v6723 = vld [vmem:[%s6613 + $0x368] sm:$0xff]
    %v6724 = vld [vmem:[%s6613 + $0x370] sm:$0xff]
    %v6725 = vld [vmem:[%s6613 + $0x378] sm:$0xff]
    %v6726 = vld [vmem:[%s6613 + $0x380] sm:$0xff]
    %v6727 = vld [vmem:[%s6613 + $0x388] sm:$0xff]
    %v6728 = vld [vmem:[%s6613 + $0x390] sm:$0xff]
    %v6729 = vld [vmem:[%s6613 + $0x398] sm:$0xff]
    %v6730 = vld [vmem:[%s6613 + $0x3a0] sm:$0xff]
    %v6731 = vld [vmem:[%s6613 + $0x3a8] sm:$0xff]
    %v6732 = vld [vmem:[%s6613 + $0x3b0] sm:$0xff]
    %v6733 = vld [vmem:[%s6613 + $0x3b8] sm:$0xff]
    %v6734 = vld [vmem:[%s6613 + $0x3c0] sm:$0xff]
    %v6735 = vld [vmem:[%s6613 + $0x3c8] sm:$0xff]
    %v6736 = vld [vmem:[%s6613 + $0x3d0] sm:$0xff]
    %v6737 = vld [vmem:[%s6613 + $0x3d8] sm:$0xff]
    %v6738 = vld [vmem:[%s6613 + $0x3e0] sm:$0xff]
    %v6739 = vld [vmem:[%s6613 + $0x3e8] sm:$0xff]
    %v6740 = vld [vmem:[%s6613 + $0x3f0] sm:$0xff]
    %v6741 = vld [vmem:[%s6613 + $0x3f8] sm:$0xff]
    %s6742 = scalar_lea.vmem %s15, 3072
    %v6743 = vld [vmem:[%s6742] sm:$0xff]
    %v6744 = vld [vmem:[%s6742 + $0x8] sm:$0xff]
    %v6745 = vld [vmem:[%s6742 + $0x10] sm:$0xff]
    %v6746 = vld [vmem:[%s6742 + $0x18] sm:$0xff]
    %v6747 = vld [vmem:[%s6742 + $0x20] sm:$0xff]
    %v6748 = vld [vmem:[%s6742 + $0x28] sm:$0xff]
    %v6749 = vld [vmem:[%s6742 + $0x30] sm:$0xff]
    %v6750 = vld [vmem:[%s6742 + $0x38] sm:$0xff]
    %v6751 = vld [vmem:[%s6742 + $0x40] sm:$0xff]
    %v6752 = vld [vmem:[%s6742 + $0x48] sm:$0xff]
    %v6753 = vld [vmem:[%s6742 + $0x50] sm:$0xff]
    %v6754 = vld [vmem:[%s6742 + $0x58] sm:$0xff]
    %v6755 = vld [vmem:[%s6742 + $0x60] sm:$0xff]
    %v6756 = vld [vmem:[%s6742 + $0x68] sm:$0xff]
    %v6757 = vld [vmem:[%s6742 + $0x70] sm:$0xff]
    %v6758 = vld [vmem:[%s6742 + $0x78] sm:$0xff]
    %v6759 = vld [vmem:[%s6742 + $0x80] sm:$0xff]
    %v6760 = vld [vmem:[%s6742 + $0x88] sm:$0xff]
    %v6761 = vld [vmem:[%s6742 + $0x90] sm:$0xff]
    %v6762 = vld [vmem:[%s6742 + $0x98] sm:$0xff]
    %v6763 = vld [vmem:[%s6742 + $0xa0] sm:$0xff]
    %v6764 = vld [vmem:[%s6742 + $0xa8] sm:$0xff]
    %v6765 = vld [vmem:[%s6742 + $0xb0] sm:$0xff]
    %v6766 = vld [vmem:[%s6742 + $0xb8] sm:$0xff]
    %v6767 = vld [vmem:[%s6742 + $0xc0] sm:$0xff]
    %v6768 = vld [vmem:[%s6742 + $0xc8] sm:$0xff]
    %v6769 = vld [vmem:[%s6742 + $0xd0] sm:$0xff]
    %v6770 = vld [vmem:[%s6742 + $0xd8] sm:$0xff]
    %v6771 = vld [vmem:[%s6742 + $0xe0] sm:$0xff]
    %v6772 = vld [vmem:[%s6742 + $0xe8] sm:$0xff]
    %v6773 = vld [vmem:[%s6742 + $0xf0] sm:$0xff]
    %v6774 = vld [vmem:[%s6742 + $0xf8] sm:$0xff]
    %v6775 = vld [vmem:[%s6742 + $0x100] sm:$0xff]
    %v6776 = vld [vmem:[%s6742 + $0x108] sm:$0xff]
    %v6777 = vld [vmem:[%s6742 + $0x110] sm:$0xff]
    %v6778 = vld [vmem:[%s6742 + $0x118] sm:$0xff]
    %v6779 = vld [vmem:[%s6742 + $0x120] sm:$0xff]
    %v6780 = vld [vmem:[%s6742 + $0x128] sm:$0xff]
    %v6781 = vld [vmem:[%s6742 + $0x130] sm:$0xff]
    %v6782 = vld [vmem:[%s6742 + $0x138] sm:$0xff]
    %v6783 = vld [vmem:[%s6742 + $0x140] sm:$0xff]
    %v6784 = vld [vmem:[%s6742 + $0x148] sm:$0xff]
    %v6785 = vld [vmem:[%s6742 + $0x150] sm:$0xff]
    %v6786 = vld [vmem:[%s6742 + $0x158] sm:$0xff]
    %v6787 = vld [vmem:[%s6742 + $0x160] sm:$0xff]
    %v6788 = vld [vmem:[%s6742 + $0x168] sm:$0xff]
    %v6789 = vld [vmem:[%s6742 + $0x170] sm:$0xff]
    %v6790 = vld [vmem:[%s6742 + $0x178] sm:$0xff]
    %v6791 = vld [vmem:[%s6742 + $0x180] sm:$0xff]
    %v6792 = vld [vmem:[%s6742 + $0x188] sm:$0xff]
    %v6793 = vld [vmem:[%s6742 + $0x190] sm:$0xff]
    %v6794 = vld [vmem:[%s6742 + $0x198] sm:$0xff]
    %v6795 = vld [vmem:[%s6742 + $0x1a0] sm:$0xff]
    %v6796 = vld [vmem:[%s6742 + $0x1a8] sm:$0xff]
    %v6797 = vld [vmem:[%s6742 + $0x1b0] sm:$0xff]
    %v6798 = vld [vmem:[%s6742 + $0x1b8] sm:$0xff]
    %v6799 = vld [vmem:[%s6742 + $0x1c0] sm:$0xff]
    %v6800 = vld [vmem:[%s6742 + $0x1c8] sm:$0xff]
    %v6801 = vld [vmem:[%s6742 + $0x1d0] sm:$0xff]
    %v6802 = vld [vmem:[%s6742 + $0x1d8] sm:$0xff]
    %v6803 = vld [vmem:[%s6742 + $0x1e0] sm:$0xff]
    %v6804 = vld [vmem:[%s6742 + $0x1e8] sm:$0xff]
    %v6805 = vld [vmem:[%s6742 + $0x1f0] sm:$0xff]
    %v6806 = vld [vmem:[%s6742 + $0x1f8] sm:$0xff]
    %v6807 = vld [vmem:[%s6742 + $0x200] sm:$0xff]
    %v6808 = vld [vmem:[%s6742 + $0x208] sm:$0xff]
    %v6809 = vld [vmem:[%s6742 + $0x210] sm:$0xff]
    %v6810 = vld [vmem:[%s6742 + $0x218] sm:$0xff]
    %v6811 = vld [vmem:[%s6742 + $0x220] sm:$0xff]
    %v6812 = vld [vmem:[%s6742 + $0x228] sm:$0xff]
    %v6813 = vld [vmem:[%s6742 + $0x230] sm:$0xff]
    %v6814 = vld [vmem:[%s6742 + $0x238] sm:$0xff]
    %v6815 = vld [vmem:[%s6742 + $0x240] sm:$0xff]
    %v6816 = vld [vmem:[%s6742 + $0x248] sm:$0xff]
    %v6817 = vld [vmem:[%s6742 + $0x250] sm:$0xff]
    %v6818 = vld [vmem:[%s6742 + $0x258] sm:$0xff]
    %v6819 = vld [vmem:[%s6742 + $0x260] sm:$0xff]
    %v6820 = vld [vmem:[%s6742 + $0x268] sm:$0xff]
    %v6821 = vld [vmem:[%s6742 + $0x270] sm:$0xff]
    %v6822 = vld [vmem:[%s6742 + $0x278] sm:$0xff]
    %v6823 = vld [vmem:[%s6742 + $0x280] sm:$0xff]
    %v6824 = vld [vmem:[%s6742 + $0x288] sm:$0xff]
    %v6825 = vld [vmem:[%s6742 + $0x290] sm:$0xff]
    %v6826 = vld [vmem:[%s6742 + $0x298] sm:$0xff]
    %v6827 = vld [vmem:[%s6742 + $0x2a0] sm:$0xff]
    %v6828 = vld [vmem:[%s6742 + $0x2a8] sm:$0xff]
    %v6829 = vld [vmem:[%s6742 + $0x2b0] sm:$0xff]
    %v6830 = vld [vmem:[%s6742 + $0x2b8] sm:$0xff]
    %v6831 = vld [vmem:[%s6742 + $0x2c0] sm:$0xff]
    %v6832 = vld [vmem:[%s6742 + $0x2c8] sm:$0xff]
    %v6833 = vld [vmem:[%s6742 + $0x2d0] sm:$0xff]
    %v6834 = vld [vmem:[%s6742 + $0x2d8] sm:$0xff]
    %v6835 = vld [vmem:[%s6742 + $0x2e0] sm:$0xff]
    %v6836 = vld [vmem:[%s6742 + $0x2e8] sm:$0xff]
    %v6837 = vld [vmem:[%s6742 + $0x2f0] sm:$0xff]
    %v6838 = vld [vmem:[%s6742 + $0x2f8] sm:$0xff]
    %v6839 = vld [vmem:[%s6742 + $0x300] sm:$0xff]
    %v6840 = vld [vmem:[%s6742 + $0x308] sm:$0xff]
    %v6841 = vld [vmem:[%s6742 + $0x310] sm:$0xff]
    %v6842 = vld [vmem:[%s6742 + $0x318] sm:$0xff]
    %v6843 = vld [vmem:[%s6742 + $0x320] sm:$0xff]
    %v6844 = vld [vmem:[%s6742 + $0x328] sm:$0xff]
    %v6845 = vld [vmem:[%s6742 + $0x330] sm:$0xff]
    %v6846 = vld [vmem:[%s6742 + $0x338] sm:$0xff]
    %v6847 = vld [vmem:[%s6742 + $0x340] sm:$0xff]
    %v6848 = vld [vmem:[%s6742 + $0x348] sm:$0xff]
    %v6849 = vld [vmem:[%s6742 + $0x350] sm:$0xff]
    %v6850 = vld [vmem:[%s6742 + $0x358] sm:$0xff]
    %v6851 = vld [vmem:[%s6742 + $0x360] sm:$0xff]
    %v6852 = vld [vmem:[%s6742 + $0x368] sm:$0xff]
    %v6853 = vld [vmem:[%s6742 + $0x370] sm:$0xff]
    %v6854 = vld [vmem:[%s6742 + $0x378] sm:$0xff]
    %v6855 = vld [vmem:[%s6742 + $0x380] sm:$0xff]
    %v6856 = vld [vmem:[%s6742 + $0x388] sm:$0xff]
    %v6857 = vld [vmem:[%s6742 + $0x390] sm:$0xff]
    %v6858 = vld [vmem:[%s6742 + $0x398] sm:$0xff]
    %v6859 = vld [vmem:[%s6742 + $0x3a0] sm:$0xff]
    %v6860 = vld [vmem:[%s6742 + $0x3a8] sm:$0xff]
    %v6861 = vld [vmem:[%s6742 + $0x3b0] sm:$0xff]
    %v6862 = vld [vmem:[%s6742 + $0x3b8] sm:$0xff]
    %v6863 = vld [vmem:[%s6742 + $0x3c0] sm:$0xff]
    %v6864 = vld [vmem:[%s6742 + $0x3c8] sm:$0xff]
    %v6865 = vld [vmem:[%s6742 + $0x3d0] sm:$0xff]
    %v6866 = vld [vmem:[%s6742 + $0x3d8] sm:$0xff]
    %v6867 = vld [vmem:[%s6742 + $0x3e0] sm:$0xff]
    %v6868 = vld [vmem:[%s6742 + $0x3e8] sm:$0xff]
    %v6869 = vld [vmem:[%s6742 + $0x3f0] sm:$0xff]
    %v6870 = vld [vmem:[%s6742 + $0x3f8] sm:$0xff]
    %6871 = vmatprep.subr.mxu0 0.0
    %6872 = vmatpush1.msra.mxu0 %v6758
    %6873 = vmatprep.subr.mxu0 0.0
    %6874 = vmatpush1.msra.mxu0 %v6757
    %6875 = vmatprep.subr.mxu0 0.0
    %6876 = vmatpush1.msra.mxu0 %v6756
    %6877 = vmatprep.subr.mxu0 0.0
    %6878 = vmatpush1.msra.mxu0 %v6755
    %6879 = vmatprep.subr.mxu0 0.0
    %6880 = vmatpush1.msra.mxu0 %v6754
    %6881 = vmatprep.subr.mxu0 0.0
    %6882 = vmatpush1.msra.mxu0 %v6753
    %6883 = vmatprep.subr.mxu0 0.0
    %6884 = vmatpush1.msra.mxu0 %v6752
    %6885 = vmatprep.subr.mxu0 0.0
    %6886 = vmatpush1.msra.mxu0 %v6751
    %6887 = vmatprep.subr.mxu0 0.0
    %6888 = vmatpush1.msra.mxu0 %v6750
    %6889 = vmatprep.subr.mxu0 0.0
    %6890 = vmatpush1.msra.mxu0 %v6749
    %6891 = vmatprep.subr.mxu0 0.0
    %6892 = vmatpush1.msra.mxu0 %v6748
    %6893 = vmatprep.subr.mxu0 0.0
    %6894 = vmatpush1.msra.mxu0 %v6747
    %6895 = vmatprep.subr.mxu0 0.0
    %6896 = vmatpush1.msra.mxu0 %v6746
    %6897 = vmatprep.subr.mxu0 0.0
    %6898 = vmatpush1.msra.mxu0 %v6745
    %6899 = vmatprep.subr.mxu0 0.0
    %6900 = vmatpush1.msra.mxu0 %v6744
    %6901 = vmatprep.subr.mxu0 0.0
    %6902 = vmatpush1.msra.mxu0 %v6743
    %6903 = vmatprep.subr.mxu0 0.0
    %6904 = vmatpush2.msra.mxu0 %v6774
    %6905 = vmatprep.subr.mxu0 0.0
    %6906 = vmatpush2.msra.mxu0 %v6773
    %6907 = vmatprep.subr.mxu0 0.0
    %6908 = vmatpush2.msra.mxu0 %v6772
    %6909 = vmatprep.subr.mxu0 0.0
    %6910 = vmatpush2.msra.mxu0 %v6771
    %6911 = vmatprep.subr.mxu0 0.0
    %6912 = vmatpush2.msra.mxu0 %v6770
    %6913 = vmatprep.subr.mxu0 0.0
    %6914 = vmatpush2.msra.mxu0 %v6769
    %6915 = vmatprep.subr.mxu0 0.0
    %6916 = vmatpush2.msra.mxu0 %v6768
    %6917 = vmatprep.subr.mxu0 0.0
    %6918 = vmatpush2.msra.mxu0 %v6767
    %6919 = vmatprep.subr.mxu0 0.0
    %6920 = vmatpush2.msra.mxu0 %v6766
    %6921 = vmatprep.subr.mxu0 0.0
    %6922 = vmatpush2.msra.mxu0 %v6765
    %6923 = vmatprep.subr.mxu0 0.0
    %6924 = vmatpush2.msra.mxu0 %v6764
    %6925 = vmatprep.subr.mxu0 0.0
    %6926 = vmatpush2.msra.mxu0 %v6763
    %6927 = vmatprep.subr.mxu0 0.0
    %6928 = vmatpush2.msra.mxu0 %v6762
    %6929 = vmatprep.subr.mxu0 0.0
    %6930 = vmatpush2.msra.mxu0 %v6761
    %6931 = vmatprep.subr.mxu0 0.0
    %6932 = vmatpush2.msra.mxu0 %v6760
    %6933 = vmatprep.subr.mxu0 0.0
    %6934 = vmatpush2.msra.mxu0 %v6759
    %6935 = vmatprep.mubr.f32.mxu0 %v4122
    %6936 = vmatmul.mubr.f32.gmra.mxu0 %v4121
    %v6937 = vpop.f32.mrf.mxu0
    %v6938 = vadd.f32 0.0, %v6937
    %v6939 = vpop.f32.mrf.mxu0
    %6940 = vdwg.mxu0
    %6941 = vmatprep.subr.mxu0 0.0
    %6942 = vmatpush1.msra.mxu0 %v6790
    %6943 = vmatprep.subr.mxu0 0.0
    %6944 = vmatpush1.msra.mxu0 %v6789
    %6945 = vmatprep.subr.mxu0 0.0
    %6946 = vmatpush1.msra.mxu0 %v6788
    %6947 = vmatprep.subr.mxu0 0.0
    %6948 = vmatpush1.msra.mxu0 %v6787
    %6949 = vmatprep.subr.mxu0 0.0
    %6950 = vmatpush1.msra.mxu0 %v6786
    %6951 = vmatprep.subr.mxu0 0.0
    %6952 = vmatpush1.msra.mxu0 %v6785
    %6953 = vmatprep.subr.mxu0 0.0
    %6954 = vmatpush1.msra.mxu0 %v6784
    %6955 = vmatprep.subr.mxu0 0.0
    %6956 = vmatpush1.msra.mxu0 %v6783
    %6957 = vmatprep.subr.mxu0 0.0
    %6958 = vmatpush1.msra.mxu0 %v6782
    %6959 = vmatprep.subr.mxu0 0.0
    %6960 = vmatpush1.msra.mxu0 %v6781
    %6961 = vmatprep.subr.mxu0 0.0
    %6962 = vmatpush1.msra.mxu0 %v6780
    %6963 = vmatprep.subr.mxu0 0.0
    %6964 = vmatpush1.msra.mxu0 %v6779
    %6965 = vmatprep.subr.mxu0 0.0
    %6966 = vmatpush1.msra.mxu0 %v6778
    %6967 = vmatprep.subr.mxu0 0.0
    %6968 = vmatpush1.msra.mxu0 %v6777
    %6969 = vmatprep.subr.mxu0 0.0
    %6970 = vmatpush1.msra.mxu0 %v6776
    %6971 = vmatprep.subr.mxu0 0.0
    %6972 = vmatpush1.msra.mxu0 %v6775
    %6973 = vmatprep.subr.mxu0 0.0
    %6974 = vmatpush2.msra.mxu0 %v6806
    %6975 = vmatprep.subr.mxu0 0.0
    %6976 = vmatpush2.msra.mxu0 %v6805
    %6977 = vmatprep.subr.mxu0 0.0
    %6978 = vmatpush2.msra.mxu0 %v6804
    %6979 = vmatprep.subr.mxu0 0.0
    %6980 = vmatpush2.msra.mxu0 %v6803
    %6981 = vmatprep.subr.mxu0 0.0
    %6982 = vmatpush2.msra.mxu0 %v6802
    %6983 = vmatprep.subr.mxu0 0.0
    %6984 = vmatpush2.msra.mxu0 %v6801
    %6985 = vmatprep.subr.mxu0 0.0
    %6986 = vmatpush2.msra.mxu0 %v6800
    %6987 = vmatprep.subr.mxu0 0.0
    %6988 = vmatpush2.msra.mxu0 %v6799
    %6989 = vmatprep.subr.mxu0 0.0
    %6990 = vmatpush2.msra.mxu0 %v6798
    %6991 = vmatprep.subr.mxu0 0.0
    %6992 = vmatpush2.msra.mxu0 %v6797
    %6993 = vmatprep.subr.mxu0 0.0
    %6994 = vmatpush2.msra.mxu0 %v6796
    %6995 = vmatprep.subr.mxu0 0.0
    %6996 = vmatpush2.msra.mxu0 %v6795
    %6997 = vmatprep.subr.mxu0 0.0
    %6998 = vmatpush2.msra.mxu0 %v6794
    %6999 = vmatprep.subr.mxu0 0.0
    %7000 = vmatpush2.msra.mxu0 %v6793
    %7001 = vmatprep.subr.mxu0 0.0
    %7002 = vmatpush2.msra.mxu0 %v6792
    %7003 = vmatprep.subr.mxu0 0.0
    %7004 = vmatpush2.msra.mxu0 %v6791
    %7005 = vmatprep.mubr.f32.mxu0 %v4124
    %7006 = vmatmul.mubr.f32.gmra.mxu0 %v4123
    %v7007 = vpop.f32.mrf.mxu0
    %v7008 = vadd.f32 %v6938, %v7007
    %v7009 = vpop.f32.mrf.mxu0
    %7010 = vdwg.mxu0
    %7011 = vmatprep.subr.mxu0 0.0
    %7012 = vmatpush1.msra.mxu0 %v6822
    %7013 = vmatprep.subr.mxu0 0.0
    %7014 = vmatpush1.msra.mxu0 %v6821
    %7015 = vmatprep.subr.mxu0 0.0
    %7016 = vmatpush1.msra.mxu0 %v6820
    %7017 = vmatprep.subr.mxu0 0.0
    %7018 = vmatpush1.msra.mxu0 %v6819
    %7019 = vmatprep.subr.mxu0 0.0
    %7020 = vmatpush1.msra.mxu0 %v6818
    %7021 = vmatprep.subr.mxu0 0.0
    %7022 = vmatpush1.msra.mxu0 %v6817
    %7023 = vmatprep.subr.mxu0 0.0
    %7024 = vmatpush1.msra.mxu0 %v6816
    %7025 = vmatprep.subr.mxu0 0.0
    %7026 = vmatpush1.msra.mxu0 %v6815
    %7027 = vmatprep.subr.mxu0 0.0
    %7028 = vmatpush1.msra.mxu0 %v6814
    %7029 = vmatprep.subr.mxu0 0.0
    %7030 = vmatpush1.msra.mxu0 %v6813
    %7031 = vmatprep.subr.mxu0 0.0
    %7032 = vmatpush1.msra.mxu0 %v6812
    %7033 = vmatprep.subr.mxu0 0.0
    %7034 = vmatpush1.msra.mxu0 %v6811
    %7035 = vmatprep.subr.mxu0 0.0
    %7036 = vmatpush1.msra.mxu0 %v6810
    %7037 = vmatprep.subr.mxu0 0.0
    %7038 = vmatpush1.msra.mxu0 %v6809
    %7039 = vmatprep.subr.mxu0 0.0
    %7040 = vmatpush1.msra.mxu0 %v6808
    %7041 = vmatprep.subr.mxu0 0.0
    %7042 = vmatpush1.msra.mxu0 %v6807
    %7043 = vmatprep.subr.mxu0 0.0
    %7044 = vmatpush2.msra.mxu0 %v6838
    %7045 = vmatprep.subr.mxu0 0.0
    %7046 = vmatpush2.msra.mxu0 %v6837
    %7047 = vmatprep.subr.mxu0 0.0
    %7048 = vmatpush2.msra.mxu0 %v6836
    %7049 = vmatprep.subr.mxu0 0.0
    %7050 = vmatpush2.msra.mxu0 %v6835
    %7051 = vmatprep.subr.mxu0 0.0
    %7052 = vmatpush2.msra.mxu0 %v6834
    %7053 = vmatprep.subr.mxu0 0.0
    %7054 = vmatpush2.msra.mxu0 %v6833
    %7055 = vmatprep.subr.mxu0 0.0
    %7056 = vmatpush2.msra.mxu0 %v6832
    %7057 = vmatprep.subr.mxu0 0.0
    %7058 = vmatpush2.msra.mxu0 %v6831
    %7059 = vmatprep.subr.mxu0 0.0
    %7060 = vmatpush2.msra.mxu0 %v6830
    %7061 = vmatprep.subr.mxu0 0.0
    %7062 = vmatpush2.msra.mxu0 %v6829
    %7063 = vmatprep.subr.mxu0 0.0
    %7064 = vmatpush2.msra.mxu0 %v6828
    %7065 = vmatprep.subr.mxu0 0.0
    %7066 = vmatpush2.msra.mxu0 %v6827
    %7067 = vmatprep.subr.mxu0 0.0
    %7068 = vmatpush2.msra.mxu0 %v6826
    %7069 = vmatprep.subr.mxu0 0.0
    %7070 = vmatpush2.msra.mxu0 %v6825
    %7071 = vmatprep.subr.mxu0 0.0
    %7072 = vmatpush2.msra.mxu0 %v6824
    %7073 = vmatprep.subr.mxu0 0.0
    %7074 = vmatpush2.msra.mxu0 %v6823
    %7075 = vmatprep.mubr.f32.mxu0 %v4126
    %7076 = vmatmul.mubr.f32.gmra.mxu0 %v4125
    %v7077 = vpop.f32.mrf.mxu0
    %v7078 = vadd.f32 %v7008, %v7077
    %v7079 = vpop.f32.mrf.mxu0
    %7080 = vdwg.mxu0
    %7081 = vmatprep.subr.mxu0 0.0
    %7082 = vmatpush1.msra.mxu0 %v6854
    %7083 = vmatprep.subr.mxu0 0.0
    %7084 = vmatpush1.msra.mxu0 %v6853
    %7085 = vmatprep.subr.mxu0 0.0
    %7086 = vmatpush1.msra.mxu0 %v6852
    %7087 = vmatprep.subr.mxu0 0.0
    %7088 = vmatpush1.msra.mxu0 %v6851
    %7089 = vmatprep.subr.mxu0 0.0
    %7090 = vmatpush1.msra.mxu0 %v6850
    %7091 = vmatprep.subr.mxu0 0.0
    %7092 = vmatpush1.msra.mxu0 %v6849
    %7093 = vmatprep.subr.mxu0 0.0
    %7094 = vmatpush1.msra.mxu0 %v6848
    %7095 = vmatprep.subr.mxu0 0.0
    %7096 = vmatpush1.msra.mxu0 %v6847
    %7097 = vmatprep.subr.mxu0 0.0
    %7098 = vmatpush1.msra.mxu0 %v6846
    %7099 = vmatprep.subr.mxu0 0.0
    %7100 = vmatpush1.msra.mxu0 %v6845
    %7101 = vmatprep.subr.mxu0 0.0
    %7102 = vmatpush1.msra.mxu0 %v6844
    %7103 = vmatprep.subr.mxu0 0.0
    %7104 = vmatpush1.msra.mxu0 %v6843
    %7105 = vmatprep.subr.mxu0 0.0
    %7106 = vmatpush1.msra.mxu0 %v6842
    %7107 = vmatprep.subr.mxu0 0.0
    %7108 = vmatpush1.msra.mxu0 %v6841
    %7109 = vmatprep.subr.mxu0 0.0
    %7110 = vmatpush1.msra.mxu0 %v6840
    %7111 = vmatprep.subr.mxu0 0.0
    %7112 = vmatpush1.msra.mxu0 %v6839
    %7113 = vmatprep.subr.mxu0 0.0
    %7114 = vmatpush2.msra.mxu0 %v6870
    %7115 = vmatprep.subr.mxu0 0.0
    %7116 = vmatpush2.msra.mxu0 %v6869
    %7117 = vmatprep.subr.mxu0 0.0
    %7118 = vmatpush2.msra.mxu0 %v6868
    %7119 = vmatprep.subr.mxu0 0.0
    %7120 = vmatpush2.msra.mxu0 %v6867
    %7121 = vmatprep.subr.mxu0 0.0
    %7122 = vmatpush2.msra.mxu0 %v6866
    %7123 = vmatprep.subr.mxu0 0.0
    %7124 = vmatpush2.msra.mxu0 %v6865
    %7125 = vmatprep.subr.mxu0 0.0
    %7126 = vmatpush2.msra.mxu0 %v6864
    %7127 = vmatprep.subr.mxu0 0.0
    %7128 = vmatpush2.msra.mxu0 %v6863
    %7129 = vmatprep.subr.mxu0 0.0
    %7130 = vmatpush2.msra.mxu0 %v6862
    %7131 = vmatprep.subr.mxu0 0.0
    %7132 = vmatpush2.msra.mxu0 %v6861
    %7133 = vmatprep.subr.mxu0 0.0
    %7134 = vmatpush2.msra.mxu0 %v6860
    %7135 = vmatprep.subr.mxu0 0.0
    %7136 = vmatpush2.msra.mxu0 %v6859
    %7137 = vmatprep.subr.mxu0 0.0
    %7138 = vmatpush2.msra.mxu0 %v6858
    %7139 = vmatprep.subr.mxu0 0.0
    %7140 = vmatpush2.msra.mxu0 %v6857
    %7141 = vmatprep.subr.mxu0 0.0
    %7142 = vmatpush2.msra.mxu0 %v6856
    %7143 = vmatprep.subr.mxu0 0.0
    %7144 = vmatpush2.msra.mxu0 %v6855
    %7145 = vmatprep.mubr.f32.mxu0 %v4128
    %7146 = vmatmul.mubr.f32.gmra.mxu0 %v4127
    %v7147 = vpop.f32.mrf.mxu0
    %v7148 = vadd.f32 %v7078, %v7147
    %v7149 = vpop.f32.mrf.mxu0
    %7150 = vdwg.mxu0
    %7151 = vmatprep.subr.mxu0 0.0
    %7152 = vmatpush1.msra.mxu0 %v6629
    %7153 = vmatprep.subr.mxu0 0.0
    %7154 = vmatpush1.msra.mxu0 %v6628
    %7155 = vmatprep.subr.mxu0 0.0
    %7156 = vmatpush1.msra.mxu0 %v6627
    %7157 = vmatprep.subr.mxu0 0.0
    %7158 = vmatpush1.msra.mxu0 %v6626
    %7159 = vmatprep.subr.mxu0 0.0
    %7160 = vmatpush1.msra.mxu0 %v6625
    %7161 = vmatprep.subr.mxu0 0.0
    %7162 = vmatpush1.msra.mxu0 %v6624
    %7163 = vmatprep.subr.mxu0 0.0
    %7164 = vmatpush1.msra.mxu0 %v6623
    %7165 = vmatprep.subr.mxu0 0.0
    %7166 = vmatpush1.msra.mxu0 %v6622
    %7167 = vmatprep.subr.mxu0 0.0
    %7168 = vmatpush1.msra.mxu0 %v6621
    %7169 = vmatprep.subr.mxu0 0.0
    %7170 = vmatpush1.msra.mxu0 %v6620
    %7171 = vmatprep.subr.mxu0 0.0
    %7172 = vmatpush1.msra.mxu0 %v6619
    %7173 = vmatprep.subr.mxu0 0.0
    %7174 = vmatpush1.msra.mxu0 %v6618
    %7175 = vmatprep.subr.mxu0 0.0
    %7176 = vmatpush1.msra.mxu0 %v6617
    %7177 = vmatprep.subr.mxu0 0.0
    %7178 = vmatpush1.msra.mxu0 %v6616
    %7179 = vmatprep.subr.mxu0 0.0
    %7180 = vmatpush1.msra.mxu0 %v6615
    %7181 = vmatprep.subr.mxu0 0.0
    %7182 = vmatpush1.msra.mxu0 %v6614
    %7183 = vmatprep.subr.mxu0 0.0
    %7184 = vmatpush2.msra.mxu0 %v6645
    %7185 = vmatprep.subr.mxu0 0.0
    %7186 = vmatpush2.msra.mxu0 %v6644
    %7187 = vmatprep.subr.mxu0 0.0
    %7188 = vmatpush2.msra.mxu0 %v6643
    %7189 = vmatprep.subr.mxu0 0.0
    %7190 = vmatpush2.msra.mxu0 %v6642
    %7191 = vmatprep.subr.mxu0 0.0
    %7192 = vmatpush2.msra.mxu0 %v6641
    %7193 = vmatprep.subr.mxu0 0.0
    %7194 = vmatpush2.msra.mxu0 %v6640
    %7195 = vmatprep.subr.mxu0 0.0
    %7196 = vmatpush2.msra.mxu0 %v6639
    %7197 = vmatprep.subr.mxu0 0.0
    %7198 = vmatpush2.msra.mxu0 %v6638
    %7199 = vmatprep.subr.mxu0 0.0
    %7200 = vmatpush2.msra.mxu0 %v6637
    %7201 = vmatprep.subr.mxu0 0.0
    %7202 = vmatpush2.msra.mxu0 %v6636
    %7203 = vmatprep.subr.mxu0 0.0
    %7204 = vmatpush2.msra.mxu0 %v6635
    %7205 = vmatprep.subr.mxu0 0.0
    %7206 = vmatpush2.msra.mxu0 %v6634
    %7207 = vmatprep.subr.mxu0 0.0
    %7208 = vmatpush2.msra.mxu0 %v6633
    %7209 = vmatprep.subr.mxu0 0.0
    %7210 = vmatpush2.msra.mxu0 %v6632
    %7211 = vmatprep.subr.mxu0 0.0
    %7212 = vmatpush2.msra.mxu0 %v6631
    %7213 = vmatprep.subr.mxu0 0.0
    %7214 = vmatpush2.msra.mxu0 %v6630
    %7215 = vmatprep.mubr.f32.mxu0 %v3674
    %7216 = vmatmul.mubr.f32.gmra.mxu0 %v3673
    %v7217 = vpop.f32.mrf.mxu0
    %v7218 = vadd.f32 %v7148, %v7217
    %v7219 = vpop.f32.mrf.mxu0
    %7220 = vdwg.mxu0
    %7221 = vmatprep.subr.mxu0 0.0
    %7222 = vmatpush1.msra.mxu0 %v6661
    %7223 = vmatprep.subr.mxu0 0.0
    %7224 = vmatpush1.msra.mxu0 %v6660
    %7225 = vmatprep.subr.mxu0 0.0
    %7226 = vmatpush1.msra.mxu0 %v6659
    %7227 = vmatprep.subr.mxu0 0.0
    %7228 = vmatpush1.msra.mxu0 %v6658
    %7229 = vmatprep.subr.mxu0 0.0
    %7230 = vmatpush1.msra.mxu0 %v6657
    %7231 = vmatprep.subr.mxu0 0.0
    %7232 = vmatpush1.msra.mxu0 %v6656
    %7233 = vmatprep.subr.mxu0 0.0
    %7234 = vmatpush1.msra.mxu0 %v6655
    %7235 = vmatprep.subr.mxu0 0.0
    %7236 = vmatpush1.msra.mxu0 %v6654
    %7237 = vmatprep.subr.mxu0 0.0
    %7238 = vmatpush1.msra.mxu0 %v6653
    %7239 = vmatprep.subr.mxu0 0.0
    %7240 = vmatpush1.msra.mxu0 %v6652
    %7241 = vmatprep.subr.mxu0 0.0
    %7242 = vmatpush1.msra.mxu0 %v6651
    %7243 = vmatprep.subr.mxu0 0.0
    %7244 = vmatpush1.msra.mxu0 %v6650
    %7245 = vmatprep.subr.mxu0 0.0
    %7246 = vmatpush1.msra.mxu0 %v6649
    %7247 = vmatprep.subr.mxu0 0.0
    %7248 = vmatpush1.msra.mxu0 %v6648
    %7249 = vmatprep.subr.mxu0 0.0
    %7250 = vmatpush1.msra.mxu0 %v6647
    %7251 = vmatprep.subr.mxu0 0.0
    %7252 = vmatpush1.msra.mxu0 %v6646
    %7253 = vmatprep.subr.mxu0 0.0
    %7254 = vmatpush2.msra.mxu0 %v6677
    %7255 = vmatprep.subr.mxu0 0.0
    %7256 = vmatpush2.msra.mxu0 %v6676
    %7257 = vmatprep.subr.mxu0 0.0
    %7258 = vmatpush2.msra.mxu0 %v6675
    %7259 = vmatprep.subr.mxu0 0.0
    %7260 = vmatpush2.msra.mxu0 %v6674
    %7261 = vmatprep.subr.mxu0 0.0
    %7262 = vmatpush2.msra.mxu0 %v6673
    %7263 = vmatprep.subr.mxu0 0.0
    %7264 = vmatpush2.msra.mxu0 %v6672
    %7265 = vmatprep.subr.mxu0 0.0
    %7266 = vmatpush2.msra.mxu0 %v6671
    %7267 = vmatprep.subr.mxu0 0.0
    %7268 = vmatpush2.msra.mxu0 %v6670
    %7269 = vmatprep.subr.mxu0 0.0
    %7270 = vmatpush2.msra.mxu0 %v6669
    %7271 = vmatprep.subr.mxu0 0.0
    %7272 = vmatpush2.msra.mxu0 %v6668
    %7273 = vmatprep.subr.mxu0 0.0
    %7274 = vmatpush2.msra.mxu0 %v6667
    %7275 = vmatprep.subr.mxu0 0.0
    %7276 = vmatpush2.msra.mxu0 %v6666
    %7277 = vmatprep.subr.mxu0 0.0
    %7278 = vmatpush2.msra.mxu0 %v6665
    %7279 = vmatprep.subr.mxu0 0.0
    %7280 = vmatpush2.msra.mxu0 %v6664
    %7281 = vmatprep.subr.mxu0 0.0
    %7282 = vmatpush2.msra.mxu0 %v6663
    %7283 = vmatprep.subr.mxu0 0.0
    %7284 = vmatpush2.msra.mxu0 %v6662
    %7285 = vmatprep.mubr.f32.mxu0 %v3676
    %7286 = vmatmul.mubr.f32.gmra.mxu0 %v3675
    %v7287 = vpop.f32.mrf.mxu0
    %v7288 = vadd.f32 %v7218, %v7287
    %v7289 = vpop.f32.mrf.mxu0
    %7290 = vdwg.mxu0
    %7291 = vmatprep.subr.mxu0 0.0
    %7292 = vmatpush1.msra.mxu0 %v6693
    %7293 = vmatprep.subr.mxu0 0.0
    %7294 = vmatpush1.msra.mxu0 %v6692
    %7295 = vmatprep.subr.mxu0 0.0
    %7296 = vmatpush1.msra.mxu0 %v6691
    %7297 = vmatprep.subr.mxu0 0.0
    %7298 = vmatpush1.msra.mxu0 %v6690
    %7299 = vmatprep.subr.mxu0 0.0
    %7300 = vmatpush1.msra.mxu0 %v6689
    %7301 = vmatprep.subr.mxu0 0.0
    %7302 = vmatpush1.msra.mxu0 %v6688
    %7303 = vmatprep.subr.mxu0 0.0
    %7304 = vmatpush1.msra.mxu0 %v6687
    %7305 = vmatprep.subr.mxu0 0.0
    %7306 = vmatpush1.msra.mxu0 %v6686
    %7307 = vmatprep.subr.mxu0 0.0
    %7308 = vmatpush1.msra.mxu0 %v6685
    %7309 = vmatprep.subr.mxu0 0.0
    %7310 = vmatpush1.msra.mxu0 %v6684
    %7311 = vmatprep.subr.mxu0 0.0
    %7312 = vmatpush1.msra.mxu0 %v6683
    %7313 = vmatprep.subr.mxu0 0.0
    %7314 = vmatpush1.msra.mxu0 %v6682
    %7315 = vmatprep.subr.mxu0 0.0
    %7316 = vmatpush1.msra.mxu0 %v6681
    %7317 = vmatprep.subr.mxu0 0.0
    %7318 = vmatpush1.msra.mxu0 %v6680
    %7319 = vmatprep.subr.mxu0 0.0
    %7320 = vmatpush1.msra.mxu0 %v6679
    %7321 = vmatprep.subr.mxu0 0.0
    %7322 = vmatpush1.msra.mxu0 %v6678
    %7323 = vmatprep.subr.mxu0 0.0
    %7324 = vmatpush2.msra.mxu0 %v6709
    %7325 = vmatprep.subr.mxu0 0.0
    %7326 = vmatpush2.msra.mxu0 %v6708
    %7327 = vmatprep.subr.mxu0 0.0
    %7328 = vmatpush2.msra.mxu0 %v6707
    %7329 = vmatprep.subr.mxu0 0.0
    %7330 = vmatpush2.msra.mxu0 %v6706
    %7331 = vmatprep.subr.mxu0 0.0
    %7332 = vmatpush2.msra.mxu0 %v6705
    %7333 = vmatprep.subr.mxu0 0.0
    %7334 = vmatpush2.msra.mxu0 %v6704
    %7335 = vmatprep.subr.mxu0 0.0
    %7336 = vmatpush2.msra.mxu0 %v6703
    %7337 = vmatprep.subr.mxu0 0.0
    %7338 = vmatpush2.msra.mxu0 %v6702
    %7339 = vmatprep.subr.mxu0 0.0
    %7340 = vmatpush2.msra.mxu0 %v6701
    %7341 = vmatprep.subr.mxu0 0.0
    %7342 = vmatpush2.msra.mxu0 %v6700
    %7343 = vmatprep.subr.mxu0 0.0
    %7344 = vmatpush2.msra.mxu0 %v6699
    %7345 = vmatprep.subr.mxu0 0.0
    %7346 = vmatpush2.msra.mxu0 %v6698
    %7347 = vmatprep.subr.mxu0 0.0
    %7348 = vmatpush2.msra.mxu0 %v6697
    %7349 = vmatprep.subr.mxu0 0.0
    %7350 = vmatpush2.msra.mxu0 %v6696
    %7351 = vmatprep.subr.mxu0 0.0
    %7352 = vmatpush2.msra.mxu0 %v6695
    %7353 = vmatprep.subr.mxu0 0.0
    %7354 = vmatpush2.msra.mxu0 %v6694
    %7355 = vmatprep.mubr.f32.mxu0 %v3678
    %7356 = vmatmul.mubr.f32.gmra.mxu0 %v3677
    %v7357 = vpop.f32.mrf.mxu0
    %v7358 = vadd.f32 %v7288, %v7357
    %v7359 = vpop.f32.mrf.mxu0
    %7360 = vdwg.mxu0
    %7361 = vmatprep.subr.mxu0 0.0
    %7362 = vmatpush1.msra.mxu0 %v6725
    %7363 = vmatprep.subr.mxu0 0.0
    %7364 = vmatpush1.msra.mxu0 %v6724
    %7365 = vmatprep.subr.mxu0 0.0
    %7366 = vmatpush1.msra.mxu0 %v6723
    %7367 = vmatprep.subr.mxu0 0.0
    %7368 = vmatpush1.msra.mxu0 %v6722
    %7369 = vmatprep.subr.mxu0 0.0
    %7370 = vmatpush1.msra.mxu0 %v6721
    %7371 = vmatprep.subr.mxu0 0.0
    %7372 = vmatpush1.msra.mxu0 %v6720
    %7373 = vmatprep.subr.mxu0 0.0
    %7374 = vmatpush1.msra.mxu0 %v6719
    %7375 = vmatprep.subr.mxu0 0.0
    %7376 = vmatpush1.msra.mxu0 %v6718
    %7377 = vmatprep.subr.mxu0 0.0
    %7378 = vmatpush1.msra.mxu0 %v6717
    %7379 = vmatprep.subr.mxu0 0.0
    %7380 = vmatpush1.msra.mxu0 %v6716
    %7381 = vmatprep.subr.mxu0 0.0
    %7382 = vmatpush1.msra.mxu0 %v6715
    %7383 = vmatprep.subr.mxu0 0.0
    %7384 = vmatpush1.msra.mxu0 %v6714
    %7385 = vmatprep.subr.mxu0 0.0
    %7386 = vmatpush1.msra.mxu0 %v6713
    %7387 = vmatprep.subr.mxu0 0.0
    %7388 = vmatpush1.msra.mxu0 %v6712
    %7389 = vmatprep.subr.mxu0 0.0
    %7390 = vmatpush1.msra.mxu0 %v6711
    %7391 = vmatprep.subr.mxu0 0.0
    %7392 = vmatpush1.msra.mxu0 %v6710
    %7393 = vmatprep.subr.mxu0 0.0
    %7394 = vmatpush2.msra.mxu0 %v6741
    %7395 = vmatprep.subr.mxu0 0.0
    %7396 = vmatpush2.msra.mxu0 %v6740
    %7397 = vmatprep.subr.mxu0 0.0
    %7398 = vmatpush2.msra.mxu0 %v6739
    %7399 = vmatprep.subr.mxu0 0.0
    %7400 = vmatpush2.msra.mxu0 %v6738
    %7401 = vmatprep.subr.mxu0 0.0
    %7402 = vmatpush2.msra.mxu0 %v6737
    %7403 = vmatprep.subr.mxu0 0.0
    %7404 = vmatpush2.msra.mxu0 %v6736
    %7405 = vmatprep.subr.mxu0 0.0
    %7406 = vmatpush2.msra.mxu0 %v6735
    %7407 = vmatprep.subr.mxu0 0.0
    %7408 = vmatpush2.msra.mxu0 %v6734
    %7409 = vmatprep.subr.mxu0 0.0
    %7410 = vmatpush2.msra.mxu0 %v6733
    %7411 = vmatprep.subr.mxu0 0.0
    %7412 = vmatpush2.msra.mxu0 %v6732
    %7413 = vmatprep.subr.mxu0 0.0
    %7414 = vmatpush2.msra.mxu0 %v6731
    %7415 = vmatprep.subr.mxu0 0.0
    %7416 = vmatpush2.msra.mxu0 %v6730
    %7417 = vmatprep.subr.mxu0 0.0
    %7418 = vmatpush2.msra.mxu0 %v6729
    %7419 = vmatprep.subr.mxu0 0.0
    %7420 = vmatpush2.msra.mxu0 %v6728
    %7421 = vmatprep.subr.mxu0 0.0
    %7422 = vmatpush2.msra.mxu0 %v6727
    %7423 = vmatprep.subr.mxu0 0.0
    %7424 = vmatpush2.msra.mxu0 %v6726
    %7425 = vmatprep.mubr.f32.mxu0 %v3680
    %7426 = vmatmul.mubr.f32.gmra.mxu0 %v3679
    %v7427 = vpop.f32.mrf.mxu0
    %v7428 = vadd.f32 %v7358, %v7427
    %v7429 = vpop.f32.mrf.mxu0
    %7430 = vdwg.mxu0
    %s7431 = scalar_lea.vmem %s16, 3
    %v7432 = vld [vmem:[%s7431] sm:$0x1]
    %v7434 = vlaneseq
    %v7435 = vshrl.u32 %v7434, 7
    %v7436 = vsub.s32 0, %v7435
    %v7437 = vrot.slane %v7432, %v7436
    %v7439 = vadd.f32 %v7428, %v7437
    %v7440 = vmul.f32 %v3663, %v7439
    %v7441 = vadd.f32 %v6612, %v7440
    %vm7442 = vcmask 58368
    %7443 = vst.msk [vmem:[#allocation3] sm:$0x3] %vm7442, %v7441
    // Predicated region
    $region70: #{_lambda_.3} parent=1 // pred_check
      _
    $region71: #{_lambda_.3} parent=1 // pred_check_branch
      %7445 = sbr.rel (0) target = $region73
    $region72: #{_lambda_.3} parent=1 // pred_region
      %s7447 = ssub.s32 32, 32
      %7448 = vsyncadd [#allocation4], %s7447
      %s7450 = sshll.u32 [#allocation3], 4
      %s7451 = int_to_ptr.vmem [resolvable:$true] %s7450
      %7453 = dma.vmem_to_hbm [thread:$0]  %s7451, 32, %s17, [#allocation4]
    $region73: #{_lambda_.3} parent=1 // pred_fallthru
      _
    // Predicated region
    $region74: #{_lambda_.3} parent=1 // pred_check
      _
    $region75: #{_lambda_.3} parent=1 // pred_check_branch
      %7455 = sbr.rel (0) target = $region77
    $region76: #{_lambda_.3} parent=1 // pred_region
      %s7457 = ssub.s32 32, 32
      %7458 = vsyncadd [#allocation6], %s7457
      %s7460 = sshll.u32 [#allocation5], 4
      %s7461 = int_to_ptr.vmem [resolvable:$true] %s7460
      %7463 = dma.vmem_to_hbm [thread:$0]  %s7461, 32, %s18, [#allocation6]
    $region77: #{_lambda_.3} parent=1 // pred_fallthru
      _
    // Predicated region
    $region78: #{_lambda_.3} parent=1 // pred_check
      _
    $region79: #{_lambda_.3} parent=1 // pred_check_branch
      %7465 = sbr.rel (0) target = $region81
    $region80: #{_lambda_.3} parent=1 // pred_region
      %7466 = dma.done [#allocation4], 32
    $region81: #{_lambda_.3} parent=1 // pred_fallthru
      _
    // Predicated region
    $region82: #{_lambda_.3} parent=1 // pred_check
      _
    $region83: #{_lambda_.3} parent=1 // pred_check_branch
      %7468 = sbr.rel (0) target = $region85
    $region84: #{_lambda_.3} parent=1 // pred_region
      %7469 = dma.done [#allocation6], 32
    $region85: #{_lambda_.3} parent=1 // pred_fallthru
      _
    %7470 = vsyncpa [#allocation4], 1
    %7471 = vsyncpa [#allocation6], 1

</llo_original>
